<compile_context>
chip_gen: v6e
topology: v6e:2x2x1
jax: 0.10.0
libtpu: 0.0.40
codegen_flags: <defaults>
</compile_context>

<pallas_src>
import functools

import jax
import jax.numpy as jnp
from jax import lax
from jax.experimental import pallas as pl
from jax.experimental.pallas import tpu as pltpu

EPS = 1e-5


def _instance_norm(t):
    """Per-channel InstanceNorm over axis 0 of an (HW, C) tile (biased var, one pass)."""
    inv_n = 1.0 / t.shape[0]
    mean = jnp.sum(t, axis=0, keepdims=True) * inv_n
    mean_sq = jnp.sum(t * t, axis=0, keepdims=True) * inv_n
    var = jnp.maximum(mean_sq - mean * mean, 0.0)
    return (t - mean) * lax.rsqrt(var + EPS)


def _resnet_block_kernel(x_ref, w1_ref, w9_ref, w5_ref, out_ref, op_ref, *, H, W):
    HW = H * W
    C = x_ref.shape[-1]

    # ---- 1x1 conv -> InstanceNorm -> ReLU ------------------------------------------
    # (bias dropped: exactly cancelled by the InstanceNorm mean subtraction)
    h = jnp.dot(x_ref[0].astype(jnp.bfloat16), w1_ref[...],
                preferred_element_type=jnp.float32)
    h = jnp.maximum(_instance_norm(h), 0.0)

    # ---- 3x3 conv (padding=1) as ONE K=9C MXU matmul --------------------------------
    # Tap (dy, dx) of the 3x3 window is h shifted by d = dy*W + dx in the flattened
    # (HW, C) layout: pltpu.roll(h, -d % HW, axis=0)[i] == h[i + d].  Positions whose
    # (y+dy, x+dx) falls outside the image are exactly the wrapped rows and are zeroed
    # by the row/col border masks (this is the invariant the roll-based shift relies on).
    # Each masked window is cast to bf16 and written into its column slice of a
    # preallocated (HW, 9C) operand scratch; a single matmul against w3 reshaped to
    # (9C, C) then accumulates all 9 taps in one MXU pass.
    idx = lax.broadcasted_iota(jnp.int32, (HW, 1), 0)
    col = idx % W
    row_ok = {-1: idx >= W, 0: None, 1: idx < HW - W}
    col_ok = {-1: col != 0, 0: None, 1: col != (W - 1)}

    for ky in range(3):                                   # statically unrolled (9 taps)
        for kx in range(3):
            dy, dx = ky - 1, kx - 1
            shift = (-(dy * W + dx)) % HW
            win = h if shift == 0 else pltpu.roll(h, shift, axis=0)
            mask = None
            for m in (row_ok[dy], col_ok[dx]):
                if m is not None:
                    mask = m if mask is None else jnp.logical_and(mask, m)
            if mask is not None:
                win = jnp.where(mask, win, 0.0)
            k = ky * 3 + kx
            op_ref[:, k * C:(k + 1) * C] = win.astype(jnp.bfloat16)

    h = jnp.dot(op_ref[...], w9_ref[...], preferred_element_type=jnp.float32)
    h = jnp.maximum(_instance_norm(h), 0.0)

    # ---- 1x1 conv -> InstanceNorm -> ReLU --------------------------------------------
    h = jnp.dot(h.astype(jnp.bfloat16), w5_ref[...],
                preferred_element_type=jnp.float32)
    h = jnp.maximum(_instance_norm(h), 0.0)

    # TODO(synk): nn.Dropout(0.5) branch (use_dropout=True) omitted; identity in eval mode.

    # ---- residual (re-read x from the resident VMEM input block) ----------------------
    out_ref[0] = x_ref[0] + h


def resnet_block_channels_last(x, params, H, W):
    """x: (N, H*W, C) float32 channels-last.  Use this entry point when stacking blocks so
    the NCHW<->channels-last transposes are paid once per stack, not once per block."""
    w1, _b1, w3, _b3, w5, _b5 = params   # biases are mathematical no-ops before affine-free IN
    N, HW, C = x.shape
    assert HW == H * W

    # bf16 MXU weights (halves weight DMA).  w3 (ky, kx, ci, co) -> (9*C, C) stacked taps,
    # matching the operand column order k = ky*3 + kx used in the kernel.
    w1b = w1.astype(jnp.bfloat16)
    w5b = w5.astype(jnp.bfloat16)
    w9b = w3.reshape(9 * C, C).astype(jnp.bfloat16)

    # VMEM budget from the actual buffers (cap <= 48 MiB: v7x only has 64 MiB physical).
    need = (2 * 2 * HW * C * 4                  # x + out blocks, 2 pipeline buffers, f32
            + 2 * (2 * C * C + 9 * C * C) * 2   # w1, w5, w9 (bf16), 2 pipeline buffers
            + HW * 9 * C * 2                    # (HW, 9C) bf16 operand scratch
            + 8 * HW * C * 4)                   # live f32 temporaries (h, windows, IN stats)
    vmem_limit = int(min(48 * 2**20, max(16 * 2**20, 2 * need)))

    kernel = functools.partial(_resnet_block_kernel, H=H, W=W)

    # TODO(synk): v7x (64 MiB VMEM, 2 TCs) with large H*W*C or N==1 would want an H-band
    # tiled path (grid=(N, bands)) with two-pass InstanceNorm across bands.
    out = pl.pallas_call(
        kernel,
        out_shape=jax.ShapeDtypeStruct((N, HW, C), jnp.float32),
        grid_spec=pltpu.PrefetchScalarGridSpec(
            num_scalar_prefetch=0,
            grid=(N,),
            in_specs=[
                pl.BlockSpec((1, HW, C), lambda n: (n, 0, 0)),     # x
                pl.BlockSpec((C, C), lambda n: (0, 0)),            # w1 (bf16)
                pl.BlockSpec((9 * C, C), lambda n: (0, 0)),        # w3 stacked taps (bf16)
                pl.BlockSpec((C, C), lambda n: (0, 0)),            # w5 (bf16)
            ],
            out_specs=pl.BlockSpec((1, HW, C), lambda n: (n, 0, 0)),
            scratch_shapes=[pltpu.VMEM((HW, 9 * C), jnp.bfloat16)],   # K=9C operand
        ),
        compiler_params=pltpu.CompilerParams(
            dimension_semantics=("parallel",),   # independent samples -> megacore sharding
            vmem_limit_bytes=vmem_limit,
        ),
    )(x, w1b, w9b, w5b)
    return out


def resnet_block(x_nchw, params):
    """x_nchw: (N, C, H, W) float32; params = (w1, b1, w3, b3, w5, b5) with
    w1/w5: (Cin, Cout), w3: (3, 3, Cin, Cout) [ky, kx, ci, co], biases: (C,)."""
    N, C, H, W = x_nchw.shape
    x = jnp.transpose(x_nchw, (0, 2, 3, 1)).reshape(N, H * W, C).astype(jnp.float32)
    out = resnet_block_channels_last(x, params, H, W)
    return jnp.transpose(out.reshape(N, H, W, C), (0, 3, 1, 2))


# ------------------------------ pure-JAX references ---------------------------------
def _ref_instance_norm(t):  # t: (N, H, W, C)
    mean = jnp.mean(t, axis=(1, 2), keepdims=True)
    var = jnp.mean((t - mean) ** 2, axis=(1, 2), keepdims=True)
    return (t - mean) * lax.rsqrt(var + EPS)


def ref_resnet_block(x_nchw, params, matmul_dtype=jnp.float32):
    """Full-module reference (keeps the biases).  matmul_dtype=jnp.bfloat16 reproduces the
    kernel's MXU operand casts; the kernel drops the biases because InstanceNorm cancels
    them exactly, which this comparison verifies."""
    w1, b1, w3, b3, w5, b5 = params
    md = matmul_dtype
    x = jnp.transpose(x_nchw, (0, 2, 3, 1)).astype(jnp.float32)   # NHWC
    h = jnp.einsum("nhwc,cd->nhwd", x.astype(md), w1.astype(md),
                   preferred_element_type=jnp.float32) + b1
    h = jnp.maximum(_ref_instance_norm(h), 0.0)
    h = lax.conv_general_dilated(
        h.astype(md), w3.astype(md), window_strides=(1, 1), padding="SAME",
        dimension_numbers=("NHWC", "HWIO", "NHWC"),
        preferred_element_type=jnp.float32) + b3
    h = jnp.maximum(_ref_instance_norm(h), 0.0)
    h = jnp.einsum("nhwc,cd->nhwd", h.astype(md), w5.astype(md),
                   preferred_element_type=jnp.float32) + b5
    h = jnp.maximum(_ref_instance_norm(h), 0.0)
    return jnp.transpose(x + h, (0, 3, 1, 2))


if __name__ == "__main__":
    # Small but lane-dense config: C = 128 keeps the channel (lane) axis full.
    N, C, H, W = 2, 128, 16, 16
    key = jax.random.PRNGKey(0)
    kx, k1, kb1, k3, kb3, k5, kb5 = jax.random.split(key, 7)

    x = jax.random.normal(kx, (N, C, H, W), dtype=jnp.float32)

    s1 = 1.0 / jnp.sqrt(jnp.float32(C))
    s3 = 1.0 / jnp.sqrt(jnp.float32(9 * C))
    w1 = jax.random.normal(k1, (C, C), jnp.float32) * s1            # (Cin, Cout)
    b1 = jax.random.normal(kb1, (C,), jnp.float32) * 0.05
    w3 = jax.random.normal(k3, (3, 3, C, C), jnp.float32) * s3      # (ky, kx, Cin, Cout)
    b3 = jax.random.normal(kb3, (C,), jnp.float32) * 0.05
    w5 = jax.random.normal(k5, (C, C), jnp.float32) * s1
    b5 = jax.random.normal(kb5, (C,), jnp.float32) * 0.05
    params = (w1, b1, w3, b3, w5, b5)

    out = jax.block_until_ready(resnet_block(x, params))

    # Strict check vs a reference using the same bf16 MXU operand casts (and the biases,
    # which InstanceNorm cancels — verifying the dead-bias elimination).
    ref_matched = jax.block_until_ready(
        ref_resnet_block(x, params, matmul_dtype=jnp.bfloat16))
    # Loose check vs the pure-f32 module semantics (bounds the bf16 precision tradeoff).
    ref_f32 = jax.block_until_ready(
        ref_resnet_block(x, params, matmul_dtype=jnp.float32))

    assert out.shape == x.shape and out.dtype == jnp.float32
    err_m = float(jnp.max(jnp.abs(out - ref_matched)))
    err_f = float(jnp.max(jnp.abs(out - ref_f32)))
    assert jnp.allclose(out, ref_matched, atol=2e-3, rtol=2e-3), \
        f"matched-reference max abs err {err_m}"
    assert jnp.allclose(out, ref_f32, atol=1e-1, rtol=1e-1), \
        f"f32-reference max abs err {err_f}"
    print("KERNEL_OK")
</pallas_src>

<mosaic_0001>
module attributes {stable_mosaic.version = 11 : i64} {
  func.func @_resnet_block_kernel(%arg0: i32, %arg1: memref<1x256x128xf32, #tpu.memory_space<vmem>>, %arg2: memref<128x128xbf16, #tpu.memory_space<vmem>>, %arg3: memref<1152x128xbf16, #tpu.memory_space<vmem>>, %arg4: memref<128x128xbf16, #tpu.memory_space<vmem>>, %arg5: memref<1x256x128xf32, #tpu.memory_space<vmem>>, %arg6: memref<256x1152xbf16, #tpu.memory_space<vmem>>) attributes {dimension_semantics = [#tpu.dimension_semantics<parallel>], iteration_bounds = array<i64: 2>, scalar_prefetch = 0 : i64, scratch_operands = 1 : i64, tpu.core_type = #tpu.core_type<tc>, window_params = [{transform_indices = @transform_0, window_bounds = array<i64: 1, 256, 128>}, {pipeline_mode = #tpu.pipeline_mode<synchronous>, transform_indices = @transform_1, window_bounds = array<i64: 128, 128>}, {pipeline_mode = #tpu.pipeline_mode<synchronous>, transform_indices = @transform_2, window_bounds = array<i64: 1152, 128>}, {pipeline_mode = #tpu.pipeline_mode<synchronous>, transform_indices = @transform_3, window_bounds = array<i64: 128, 128>}, {transform_indices = @transform_4, window_bounds = array<i64: 1, 256, 128>}]} {
    %c0 = arith.constant 0 : index
    %c0_0 = arith.constant 0 : index
    %c0_1 = arith.constant 0 : index
    %0 = vector.load %arg1[%c0, %c0_0, %c0_1] : memref<1x256x128xf32, #tpu.memory_space<vmem>>, vector<1x256x128xf32>
    %1 = vector.shape_cast %0 : vector<1x256x128xf32> to vector<256x128xf32>
    %2 = arith.truncf %1 : vector<256x128xf32> to vector<256x128xbf16>
    %c0_2 = arith.constant 0 : index
    %c0_3 = arith.constant 0 : index
    %3 = vector.load %arg2[%c0_2, %c0_3] : memref<128x128xbf16, #tpu.memory_space<vmem>>, vector<128x128xbf16>
    %cst = arith.constant dense<0.000000e+00> : vector<256x128xf32>
    %4 = tpu.matmul %2, %3, %cst {dimension_numbers = #tpu.dot_dimension_numbers<[1], [0], [0], [1], [0, 0, 1, 1], [], []>} : vector<256x128xbf16>, vector<128x128xbf16>, vector<256x128xf32> -> vector<256x128xf32>
    %cst_4 = arith.constant dense<0.000000e+00> : vector<128xf32>
    %5 = vector.multi_reduction <add>, %4, %cst_4 [0] : vector<256x128xf32> to vector<128xf32>
    %6 = vector.shape_cast %5 : vector<128xf32> to vector<1x128xf32>
    %cst_5 = arith.constant 3.906250e-03 : f32
    %7 = vector.broadcast %cst_5 : f32 to vector<1x128xf32>
    %8 = arith.mulf %6, %7 : vector<1x128xf32>
    %9 = arith.mulf %4, %4 : vector<256x128xf32>
    %cst_6 = arith.constant dense<0.000000e+00> : vector<128xf32>
    %10 = vector.multi_reduction <add>, %9, %cst_6 [0] : vector<256x128xf32> to vector<128xf32>
    %11 = vector.shape_cast %10 : vector<128xf32> to vector<1x128xf32>
    %cst_7 = arith.constant 3.906250e-03 : f32
    %12 = vector.broadcast %cst_7 : f32 to vector<1x128xf32>
    %13 = arith.mulf %11, %12 : vector<1x128xf32>
    %14 = arith.mulf %8, %8 : vector<1x128xf32>
    %15 = arith.subf %13, %14 : vector<1x128xf32>
    %cst_8 = arith.constant 0.000000e+00 : f32
    %16 = vector.broadcast %cst_8 : f32 to vector<1x128xf32>
    %17 = arith.maximumf %15, %16 : vector<1x128xf32>
    %18 = vector.broadcast %8 : vector<1x128xf32> to vector<256x128xf32>
    %19 = arith.subf %4, %18 : vector<256x128xf32>
    %cst_9 = arith.constant 9.99999974E-6 : f32
    %20 = vector.broadcast %cst_9 : f32 to vector<1x128xf32>
    %21 = arith.addf %17, %20 : vector<1x128xf32>
    %22 = math.rsqrt %21 : vector<1x128xf32>
    %23 = vector.broadcast %22 : vector<1x128xf32> to vector<256x128xf32>
    %24 = arith.mulf %19, %23 : vector<256x128xf32>
    %cst_10 = arith.constant 0.000000e+00 : f32
    %25 = vector.broadcast %cst_10 : f32 to vector<256x128xf32>
    %26 = arith.maximumf %24, %25 : vector<256x128xf32>
    %27 = tpu.iota {dimensions = array<i32: 0>} : vector<256x1xi32>
    %c16_i32 = arith.constant 16 : i32
    %c0_i32 = arith.constant 0 : i32
    %28 = arith.cmpi eq, %c16_i32, %c0_i32 : i32
    %c1_i32 = arith.constant 1 : i32
    %29 = arith.select %28, %c1_i32, %c16_i32 : i32
    %30 = vector.broadcast %29 : i32 to vector<256x1xi32>
    %31 = arith.remsi %27, %30 : vector<256x1xi32>
    %c0_i32_11 = arith.constant 0 : i32
    %32 = vector.broadcast %c0_i32_11 : i32 to vector<256x1xi32>
    %33 = arith.cmpi ne, %31, %32 : vector<256x1xi32>
    %c0_i32_12 = arith.constant 0 : i32
    %34 = vector.broadcast %c0_i32_12 : i32 to vector<256x1xi32>
    %35 = arith.cmpi slt, %31, %34 : vector<256x1xi32>
    %c0_i32_13 = arith.constant 0 : i32
    %36 = arith.cmpi slt, %29, %c0_i32_13 : i32
    %37 = vector.broadcast %36 : i1 to vector<256x1xi1>
    %38 = vector.broadcast %37 : vector<256x1xi1> to vector<256x1xi1>
    %39 = arith.xori %35, %38 : vector<256x1xi1>
    %40 = arith.andi %39, %33 : vector<256x1xi1>
    %41 = vector.broadcast %29 : i32 to vector<256x1xi32>
    %42 = arith.addi %31, %41 : vector<256x1xi32>
    %43 = arith.select %40, %42, %31 : vector<256x1xi1>, vector<256x1xi32>
    %c16_i32_14 = arith.constant 16 : i32
    %44 = vector.broadcast %c16_i32_14 : i32 to vector<256x1xi32>
    %45 = arith.cmpi sge, %27, %44 : vector<256x1xi32>
    %c240_i32 = arith.constant 240 : i32
    %46 = vector.broadcast %c240_i32 : i32 to vector<256x1xi32>
    %47 = arith.cmpi slt, %27, %46 : vector<256x1xi32>
    %c0_i32_15 = arith.constant 0 : i32
    %48 = vector.broadcast %c0_i32_15 : i32 to vector<256x1xi32>
    %49 = arith.cmpi ne, %43, %48 : vector<256x1xi32>
    %c15_i32 = arith.constant 15 : i32
    %50 = vector.broadcast %c15_i32 : i32 to vector<256x1xi32>
    %51 = arith.cmpi ne, %43, %50 : vector<256x1xi32>
    %c17_i32 = arith.constant 17 : i32
    %52 = tpu.dynamic_rotate %26 by %c17_i32 dim 0 : vector<256x128xf32>, i32 -> vector<256x128xf32>
    %53 = arith.andi %45, %49 : vector<256x1xi1>
    %cst_16 = arith.constant 0.000000e+00 : f32
    %54 = vector.shape_cast %53 : vector<256x1xi1> to vector<256x1xi1>
    %55 = vector.broadcast %54 : vector<256x1xi1> to vector<256x128xi1>
    %56 = vector.broadcast %cst_16 : f32 to vector<256x128xf32>
    %57 = arith.select %55, %52, %56 : vector<256x128xi1>, vector<256x128xf32>
    %58 = arith.truncf %57 : vector<256x128xf32> to vector<256x128xbf16>
    %c0_17 = arith.constant 0 : index
    %c0_18 = arith.constant 0 : index
    %59 = vector.load %arg6[%c0_17, %c0_18] : memref<256x1152xbf16, #tpu.memory_space<vmem>>, vector<256x128xbf16>
    tpu.vector_store %arg6[%c0_17, %c0_18], %58 {strides = array<i32>} : memref<256x1152xbf16, #tpu.memory_space<vmem>>, vector<256x128xbf16>,
    %c16_i32_19 = arith.constant 16 : i32
    %60 = tpu.dynamic_rotate %26 by %c16_i32_19 dim 0 : vector<256x128xf32>, i32 -> vector<256x128xf32>
    %cst_20 = arith.constant 0.000000e+00 : f32
    %61 = vector.shape_cast %45 : vector<256x1xi1> to vector<256x1xi1>
    %62 = vector.broadcast %61 : vector<256x1xi1> to vector<256x128xi1>
    %63 = vector.broadcast %cst_20 : f32 to vector<256x128xf32>
    %64 = arith.select %62, %60, %63 : vector<256x128xi1>, vector<256x128xf32>
    %65 = arith.truncf %64 : vector<256x128xf32> to vector<256x128xbf16>
    %c0_21 = arith.constant 0 : index
    %c128 = arith.constant 128 : index
    %66 = vector.load %arg6[%c0_21, %c128] : memref<256x1152xbf16, #tpu.memory_space<vmem>>, vector<256x128xbf16>
    tpu.vector_store %arg6[%c0_21, %c128], %65 {strides = array<i32>} : memref<256x1152xbf16, #tpu.memory_space<vmem>>, vector<256x128xbf16>,
    %c15_i32_22 = arith.constant 15 : i32
    %67 = tpu.dynamic_rotate %26 by %c15_i32_22 dim 0 : vector<256x128xf32>, i32 -> vector<256x128xf32>
    %68 = arith.andi %45, %51 : vector<256x1xi1>
    %cst_23 = arith.constant 0.000000e+00 : f32
    %69 = vector.shape_cast %68 : vector<256x1xi1> to vector<256x1xi1>
    %70 = vector.broadcast %69 : vector<256x1xi1> to vector<256x128xi1>
    %71 = vector.broadcast %cst_23 : f32 to vector<256x128xf32>
    %72 = arith.select %70, %67, %71 : vector<256x128xi1>, vector<256x128xf32>
    %73 = arith.truncf %72 : vector<256x128xf32> to vector<256x128xbf16>
    %c0_24 = arith.constant 0 : index
    %c256 = arith.constant 256 : index
    %74 = vector.load %arg6[%c0_24, %c256] : memref<256x1152xbf16, #tpu.memory_space<vmem>>, vector<256x128xbf16>
    tpu.vector_store %arg6[%c0_24, %c256], %73 {strides = array<i32>} : memref<256x1152xbf16, #tpu.memory_space<vmem>>, vector<256x128xbf16>,
    %c1_i32_25 = arith.constant 1 : i32
    %75 = tpu.dynamic_rotate %26 by %c1_i32_25 dim 0 : vector<256x128xf32>, i32 -> vector<256x128xf32>
    %cst_26 = arith.constant 0.000000e+00 : f32
    %76 = vector.shape_cast %49 : vector<256x1xi1> to vector<256x1xi1>
    %77 = vector.broadcast %76 : vector<256x1xi1> to vector<256x128xi1>
    %78 = vector.broadcast %cst_26 : f32 to vector<256x128xf32>
    %79 = arith.select %77, %75, %78 : vector<256x128xi1>, vector<256x128xf32>
    %80 = arith.truncf %79 : vector<256x128xf32> to vector<256x128xbf16>
    %c0_27 = arith.constant 0 : index
    %c384 = arith.constant 384 : index
    %81 = vector.load %arg6[%c0_27, %c384] : memref<256x1152xbf16, #tpu.memory_space<vmem>>, vector<256x128xbf16>
    tpu.vector_store %arg6[%c0_27, %c384], %80 {strides = array<i32>} : memref<256x1152xbf16, #tpu.memory_space<vmem>>, vector<256x128xbf16>,
    %82 = arith.truncf %26 : vector<256x128xf32> to vector<256x128xbf16>
    %c0_28 = arith.constant 0 : index
    %c512 = arith.constant 512 : index
    %83 = vector.load %arg6[%c0_28, %c512] : memref<256x1152xbf16, #tpu.memory_space<vmem>>, vector<256x128xbf16>
    tpu.vector_store %arg6[%c0_28, %c512], %82 {strides = array<i32>} : memref<256x1152xbf16, #tpu.memory_space<vmem>>, vector<256x128xbf16>,
    %c255_i32 = arith.constant 255 : i32
    %84 = tpu.dynamic_rotate %26 by %c255_i32 dim 0 : vector<256x128xf32>, i32 -> vector<256x128xf32>
    %cst_29 = arith.constant 0.000000e+00 : f32
    %85 = vector.shape_cast %51 : vector<256x1xi1> to vector<256x1xi1>
    %86 = vector.broadcast %85 : vector<256x1xi1> to vector<256x128xi1>
    %87 = vector.broadcast %cst_29 : f32 to vector<256x128xf32>
    %88 = arith.select %86, %84, %87 : vector<256x128xi1>, vector<256x128xf32>
    %89 = arith.truncf %88 : vector<256x128xf32> to vector<256x128xbf16>
    %c0_30 = arith.constant 0 : index
    %c640 = arith.constant 640 : index
    %90 = vector.load %arg6[%c0_30, %c640] : memref<256x1152xbf16, #tpu.memory_space<vmem>>, vector<256x128xbf16>
    tpu.vector_store %arg6[%c0_30, %c640], %89 {strides = array<i32>} : memref<256x1152xbf16, #tpu.memory_space<vmem>>, vector<256x128xbf16>,
    %c241_i32 = arith.constant 241 : i32
    %91 = tpu.dynamic_rotate %26 by %c241_i32 dim 0 : vector<256x128xf32>, i32 -> vector<256x128xf32>
    %92 = arith.andi %47, %49 : vector<256x1xi1>
    %cst_31 = arith.constant 0.000000e+00 : f32
    %93 = vector.shape_cast %92 : vector<256x1xi1> to vector<256x1xi1>
    %94 = vector.broadcast %93 : vector<256x1xi1> to vector<256x128xi1>
    %95 = vector.broadcast %cst_31 : f32 to vector<256x128xf32>
    %96 = arith.select %94, %91, %95 : vector<256x128xi1>, vector<256x128xf32>
    %97 = arith.truncf %96 : vector<256x128xf32> to vector<256x128xbf16>
    %c0_32 = arith.constant 0 : index
    %c768 = arith.constant 768 : index
    %98 = vector.load %arg6[%c0_32, %c768] : memref<256x1152xbf16, #tpu.memory_space<vmem>>, vector<256x128xbf16>
    tpu.vector_store %arg6[%c0_32, %c768], %97 {strides = array<i32>} : memref<256x1152xbf16, #tpu.memory_space<vmem>>, vector<256x128xbf16>,
    %c240_i32_33 = arith.constant 240 : i32
    %99 = tpu.dynamic_rotate %26 by %c240_i32_33 dim 0 : vector<256x128xf32>, i32 -> vector<256x128xf32>
    %cst_34 = arith.constant 0.000000e+00 : f32
    %100 = vector.shape_cast %47 : vector<256x1xi1> to vector<256x1xi1>
    %101 = vector.broadcast %100 : vector<256x1xi1> to vector<256x128xi1>
    %102 = vector.broadcast %cst_34 : f32 to vector<256x128xf32>
    %103 = arith.select %101, %99, %102 : vector<256x128xi1>, vector<256x128xf32>
    %104 = arith.truncf %103 : vector<256x128xf32> to vector<256x128xbf16>
    %c0_35 = arith.constant 0 : index
    %c896 = arith.constant 896 : index
    %105 = vector.load %arg6[%c0_35, %c896] : memref<256x1152xbf16, #tpu.memory_space<vmem>>, vector<256x128xbf16>
    tpu.vector_store %arg6[%c0_35, %c896], %104 {strides = array<i32>} : memref<256x1152xbf16, #tpu.memory_space<vmem>>, vector<256x128xbf16>,
    %c239_i32 = arith.constant 239 : i32
    %106 = tpu.dynamic_rotate %26 by %c239_i32 dim 0 : vector<256x128xf32>, i32 -> vector<256x128xf32>
    %107 = arith.andi %47, %51 : vector<256x1xi1>
    %cst_36 = arith.constant 0.000000e+00 : f32
    %108 = vector.shape_cast %107 : vector<256x1xi1> to vector<256x1xi1>
    %109 = vector.broadcast %108 : vector<256x1xi1> to vector<256x128xi1>
    %110 = vector.broadcast %cst_36 : f32 to vector<256x128xf32>
    %111 = arith.select %109, %106, %110 : vector<256x128xi1>, vector<256x128xf32>
    %112 = arith.truncf %111 : vector<256x128xf32> to vector<256x128xbf16>
    %c0_37 = arith.constant 0 : index
    %c1024 = arith.constant 1024 : index
    %113 = vector.load %arg6[%c0_37, %c1024] : memref<256x1152xbf16, #tpu.memory_space<vmem>>, vector<256x128xbf16>
    tpu.vector_store %arg6[%c0_37, %c1024], %112 {strides = array<i32>} : memref<256x1152xbf16, #tpu.memory_space<vmem>>, vector<256x128xbf16>,
    %c0_38 = arith.constant 0 : index
    %c0_39 = arith.constant 0 : index
    %114 = vector.load %arg6[%c0_38, %c0_39] : memref<256x1152xbf16, #tpu.memory_space<vmem>>, vector<256x1152xbf16>
    %c0_40 = arith.constant 0 : index
    %c0_41 = arith.constant 0 : index
    %115 = vector.load %arg3[%c0_40, %c0_41] : memref<1152x128xbf16, #tpu.memory_space<vmem>>, vector<1152x128xbf16>
    %cst_42 = arith.constant dense<0.000000e+00> : vector<256x128xf32>
    %116 = tpu.matmul %114, %115, %cst_42 {dimension_numbers = #tpu.dot_dimension_numbers<[1], [0], [0], [1], [0, 0, 1, 1], [], []>} : vector<256x1152xbf16>, vector<1152x128xbf16>, vector<256x128xf32> -> vector<256x128xf32>
    %cst_43 = arith.constant dense<0.000000e+00> : vector<128xf32>
    %117 = vector.multi_reduction <add>, %116, %cst_43 [0] : vector<256x128xf32> to vector<128xf32>
    %118 = vector.shape_cast %117 : vector<128xf32> to vector<1x128xf32>
    %cst_44 = arith.constant 3.906250e-03 : f32
    %119 = vector.broadcast %cst_44 : f32 to vector<1x128xf32>
    %120 = arith.mulf %118, %119 : vector<1x128xf32>
    %121 = arith.mulf %116, %116 : vector<256x128xf32>
    %cst_45 = arith.constant dense<0.000000e+00> : vector<128xf32>
    %122 = vector.multi_reduction <add>, %121, %cst_45 [0] : vector<256x128xf32> to vector<128xf32>
    %123 = vector.shape_cast %122 : vector<128xf32> to vector<1x128xf32>
    %cst_46 = arith.constant 3.906250e-03 : f32
    %124 = vector.broadcast %cst_46 : f32 to vector<1x128xf32>
    %125 = arith.mulf %123, %124 : vector<1x128xf32>
    %126 = arith.mulf %120, %120 : vector<1x128xf32>
    %127 = arith.subf %125, %126 : vector<1x128xf32>
    %cst_47 = arith.constant 0.000000e+00 : f32
    %128 = vector.broadcast %cst_47 : f32 to vector<1x128xf32>
    %129 = arith.maximumf %127, %128 : vector<1x128xf32>
    %130 = vector.broadcast %120 : vector<1x128xf32> to vector<256x128xf32>
    %131 = arith.subf %116, %130 : vector<256x128xf32>
    %cst_48 = arith.constant 9.99999974E-6 : f32
    %132 = vector.broadcast %cst_48 : f32 to vector<1x128xf32>
    %133 = arith.addf %129, %132 : vector<1x128xf32>
    %134 = math.rsqrt %133 : vector<1x128xf32>
    %135 = vector.broadcast %134 : vector<1x128xf32> to vector<256x128xf32>
    %136 = arith.mulf %131, %135 : vector<256x128xf32>
    %cst_49 = arith.constant 0.000000e+00 : f32
    %137 = vector.broadcast %cst_49 : f32 to vector<256x128xf32>
    %138 = arith.maximumf %136, %137 : vector<256x128xf32>
    %139 = arith.truncf %138 : vector<256x128xf32> to vector<256x128xbf16>
    %c0_50 = arith.constant 0 : index
    %c0_51 = arith.constant 0 : index
    %140 = vector.load %arg4[%c0_50, %c0_51] : memref<128x128xbf16, #tpu.memory_space<vmem>>, vector<128x128xbf16>
    %cst_52 = arith.constant dense<0.000000e+00> : vector<256x128xf32>
    %141 = tpu.matmul %139, %140, %cst_52 {dimension_numbers = #tpu.dot_dimension_numbers<[1], [0], [0], [1], [0, 0, 1, 1], [], []>} : vector<256x128xbf16>, vector<128x128xbf16>, vector<256x128xf32> -> vector<256x128xf32>
    %cst_53 = arith.constant dense<0.000000e+00> : vector<128xf32>
    %142 = vector.multi_reduction <add>, %141, %cst_53 [0] : vector<256x128xf32> to vector<128xf32>
    %143 = vector.shape_cast %142 : vector<128xf32> to vector<1x128xf32>
    %cst_54 = arith.constant 3.906250e-03 : f32
    %144 = vector.broadcast %cst_54 : f32 to vector<1x128xf32>
    %145 = arith.mulf %143, %144 : vector<1x128xf32>
    %146 = arith.mulf %141, %141 : vector<256x128xf32>
    %cst_55 = arith.constant dense<0.000000e+00> : vector<128xf32>
    %147 = vector.multi_reduction <add>, %146, %cst_55 [0] : vector<256x128xf32> to vector<128xf32>
    %148 = vector.shape_cast %147 : vector<128xf32> to vector<1x128xf32>
    %cst_56 = arith.constant 3.906250e-03 : f32
    %149 = vector.broadcast %cst_56 : f32 to vector<1x128xf32>
    %150 = arith.mulf %148, %149 : vector<1x128xf32>
    %151 = arith.mulf %145, %145 : vector<1x128xf32>
    %152 = arith.subf %150, %151 : vector<1x128xf32>
    %cst_57 = arith.constant 0.000000e+00 : f32
    %153 = vector.broadcast %cst_57 : f32 to vector<1x128xf32>
    %154 = arith.maximumf %152, %153 : vector<1x128xf32>
    %155 = vector.broadcast %145 : vector<1x128xf32> to vector<256x128xf32>
    %156 = arith.subf %141, %155 : vector<256x128xf32>
    %cst_58 = arith.constant 9.99999974E-6 : f32
    %157 = vector.broadcast %cst_58 : f32 to vector<1x128xf32>
    %158 = arith.addf %154, %157 : vector<1x128xf32>
    %159 = math.rsqrt %158 : vector<1x128xf32>
    %160 = vector.broadcast %159 : vector<1x128xf32> to vector<256x128xf32>
    %161 = arith.mulf %156, %160 : vector<256x128xf32>
    %cst_59 = arith.constant 0.000000e+00 : f32
    %162 = vector.broadcast %cst_59 : f32 to vector<256x128xf32>
    %163 = arith.maximumf %161, %162 : vector<256x128xf32>
    %c0_60 = arith.constant 0 : index
    %c0_61 = arith.constant 0 : index
    %c0_62 = arith.constant 0 : index
    %164 = vector.load %arg1[%c0_60, %c0_61, %c0_62] : memref<1x256x128xf32, #tpu.memory_space<vmem>>, vector<1x256x128xf32>
    %165 = vector.shape_cast %164 : vector<1x256x128xf32> to vector<256x128xf32>
    %166 = arith.addf %165, %163 : vector<256x128xf32>
    %c0_63 = arith.constant 0 : index
    %c0_64 = arith.constant 0 : index
    %c0_65 = arith.constant 0 : index
    %167 = vector.load %arg5[%c0_63, %c0_64, %c0_65] : memref<1x256x128xf32, #tpu.memory_space<vmem>>, vector<1x256x128xf32>
    %168 = vector.shape_cast %167 : vector<1x256x128xf32> to vector<256x128xf32>
    %169 = vector.shape_cast %166 : vector<256x128xf32> to vector<1x256x128xf32>
    tpu.vector_store %arg5[%c0_63, %c0_64, %c0_65], %169 {strides = array<i32>} : memref<1x256x128xf32, #tpu.memory_space<vmem>>, vector<1x256x128xf32>,
    return
  }
  func.func @transform_0(%arg0: i32) -> (i32, i32, i32) {
    %c0_i32 = arith.constant 0 : i32
    %c0_i32_0 = arith.constant 0 : i32
    %c0_i32_1 = arith.constant 0 : i32
    return %arg0, %c0_i32, %c0_i32_0 : i32, i32, i32
  }
  func.func @transform_1(%arg0: i32) -> (i32, i32) {
    %c0_i32 = arith.constant 0 : i32
    %c0_i32_0 = arith.constant 0 : i32
    %c0_i32_1 = arith.constant 0 : i32
    return %c0_i32, %c0_i32_0 : i32, i32
  }
  func.func @transform_2(%arg0: i32) -> (i32, i32) {
    %c0_i32 = arith.constant 0 : i32
    %c0_i32_0 = arith.constant 0 : i32
    %c0_i32_1 = arith.constant 0 : i32
    return %c0_i32, %c0_i32_0 : i32, i32
  }
  func.func @transform_3(%arg0: i32) -> (i32, i32) {
    %c0_i32 = arith.constant 0 : i32
    %c0_i32_0 = arith.constant 0 : i32
    %c0_i32_1 = arith.constant 0 : i32
    return %c0_i32, %c0_i32_0 : i32, i32
  }
  func.func @transform_4(%arg0: i32) -> (i32, i32, i32) {
    %c0_i32 = arith.constant 0 : i32
    %c0_i32_0 = arith.constant 0 : i32
    %c0_i32_1 = arith.constant 0 : i32
    return %arg0, %c0_i32, %c0_i32_0 : i32, i32, i32
  }
}

</mosaic_0001>

<llo_original>
// kernel: tpu_custom_call.1
$region0: #{tpu_custom_call.1}
  #allocation0 [shape = 'u32[]', space=smem, size = 0x4, offset = 0x4, fixed_abs, tag = 'smem constant byte address 0x4 - core index']
  #allocation1 [shape = 'u32[144,128]{1,0:T(1,128)}', space=vmem, size = 0x12000, scoped, tag = 'internal scratch']
  #allocation2 [shape = 'bf16[256,1152]{1,0:T(8,128)(2,1)}', space=vmem, size = 0x90000, scoped, tag = 'scratch operand']
  %s0 = inlined_call_operand.hbm [shape: f32[2,256,128], index: 0, kind: input, shape index: {}]
  %s1 = inlined_call_operand.hbm [shape: bf16[128,128], index: 1, kind: input, shape index: {}]
  %s2 = inlined_call_operand.hbm [shape: bf16[1152,128], index: 2, kind: input, shape index: {}]
  %s3 = inlined_call_operand.hbm [shape: bf16[128,128], index: 3, kind: input, shape index: {}]
  %s4 = inlined_call_operand.hbm [shape: f32[2,256,128], index: 4, kind: output, shape index: {}]
  %s5 = sld [smem:[#allocation0]]
  $region65: #{tpu_custom_call.1} parent=0
    _
  %s7 = ssub.s32 1, %s5
  %s8 = scalar_select 0, %s7, %s5
  $region1: #{tpu_custom_call.1} parent=0
    #allocation3 [shape = 'u8[262144]{0}', space=vmem, size = 0x40000, scoped, tag = 'input window, operand 0']
    #allocation4 [shape = 's32[2]{0}', space=sflag, size = 0x8, scoped, tag = 'scoped memory for tpu_custom_call.1']
    #allocation5 [shape = 's32[2]{0}', space=sflag, size = 0x8, scoped, tag = 'scoped memory for tpu_custom_call.1']
    #allocation6 [shape = 'u8[32768]{0}', space=vmem, size = 0x8000, scoped, tag = 'input window, operand 1, single buffered']
    #allocation7 [shape = 's32[1]{0}', space=sflag, size = 0x4, scoped, tag = 'scoped memory for tpu_custom_call.1']
    #allocation8 [shape = 'u8[294912]{0}', space=vmem, size = 0x48000, scoped, tag = 'input window, operand 2, single buffered']
    #allocation9 [shape = 'u8[32768]{0}', space=vmem, size = 0x8000, scoped, tag = 'input window, operand 3, single buffered']
    #allocation10 [shape = 's32[1]{0}', space=sflag, size = 0x4, scoped, tag = 'scoped memory for tpu_custom_call.1']
    #allocation11 [shape = 'u8[262144]{0}', space=vmem, size = 0x40000, scoped, tag = 'output window, operand 0']
    %9 = vsyncpa [#allocation4], 0
    %s10 = scalar_lea.sflag [#allocation4], 1
    %11 = vsyncpa %s10, 0
    %12 = vsyncpa [#allocation7], 0
    %13 = vsyncpa [#allocation10], 0
    %14 = vsyncpa [#allocation5], 0
    %s15 = scalar_lea.sflag [#allocation5], 1
    %16 = vsyncpa %s15, 0
    loop: start=0, step=1, limit=4
    $region2: #{tpu_custom_call.1} parent=1 // loop_pre_header
      _
    $region3: #{tpu_custom_call.1} parent=1 // loop_header
      %s18 = sphi 0, %s22
      %p19 = scmp.ge.s32.totalorder %s18, 4
      %s28 = sphi 0, %s30
      %s31 = sphi 0, %s28
      %s32 = sphi 0, %s31
      %s48 = sphi 0, %s32
      %s52 = sphi 0, %s52
      %s54 = sphi 0, %s52
      %s55 = sphi 0, %s54
      %s69 = sphi 0, %s55
      %s73 = sphi 0, %s73
      %s75 = sphi 0, %s73
      %s76 = sphi 0, %s75
      %s90 = sphi 0, %s76
      %s94 = sphi 0, %s94
      %s96 = sphi 0, %s94
      %s97 = sphi 0, %s96
      %s111 = sphi 0, %s97
      %s117 = sphi 0, %s119
      %s120 = sphi 0, %s117
      %s121 = sphi 0, %s120
      %s137 = sphi 0, %s121
    $region4: #{tpu_custom_call.1} parent=1 // loop_header_branch
      %21 = sbr.rel (%p19) target = $region8
    $region5: #{tpu_custom_call.1} parent=1 // loop_body
      %s23 = ssub.s32 %s18, 1
      %s24 = ssub.s32 %s18, 2
      %s25 = sadd.s32 %s18, 1
      %s26 = ssub.s32 %s18, %s25
      %p27 = scmp.eq.s32.totalorder %s26, 0
      %s29 = sadd.s32 %s28, 1
      %s30 = scalar_select %p27, %s28, %s29
      %p33 = pneg %p27
      %p34 = scmp.eq.s32.totalorder %s18, 1
      %p35 = por %p33, %p34
      %p36 = scmp.ne.s32.totalorder %s28, %s31
      %p37 = scmp.eq.s32.totalorder %s18, 0
      %p38 = por %p36, %p37
      %p39 = scmp.ne.s32.totalorder %s28, %s31
      %p40 = scmp.eq.s32.totalorder %s23, 1
      %p41 = por %p39, %p40
      %p42 = scmp.ne.s32.totalorder %s31, %s32
      %p43 = scmp.eq.s32.totalorder %s23, 0
      %p44 = por %p42, %p43
      %p45 = scmp.ne.s32.totalorder %s31, %s32
      %p46 = scmp.eq.s32.totalorder %s24, 1
      %p47 = por %p45, %p46
      %p49 = scmp.ne.s32.totalorder %s32, %s48
      %p50 = scmp.eq.s32.totalorder %s24, 0
      %p51 = por %p49, %p50
      %s53 = sadd.s32 %s52, 1
      %p56 = scmp.eq.s32.totalorder %s18, 1
      %p57 = scmp.ne.s32.totalorder %s52, %s54
      %p58 = scmp.eq.s32.totalorder %s18, 0
      %p59 = por %p57, %p58
      %p60 = scmp.ne.s32.totalorder %s52, %s54
      %p61 = scmp.eq.s32.totalorder %s23, 1
      %p62 = por %p60, %p61
      %p63 = scmp.ne.s32.totalorder %s54, %s55
      %p64 = scmp.eq.s32.totalorder %s23, 0
      %p65 = por %p63, %p64
      %p66 = scmp.ne.s32.totalorder %s54, %s55
      %p67 = scmp.eq.s32.totalorder %s24, 1
      %p68 = por %p66, %p67
      %p70 = scmp.ne.s32.totalorder %s55, %s69
      %p71 = scmp.eq.s32.totalorder %s24, 0
      %p72 = por %p70, %p71
      %s74 = sadd.s32 %s73, 1
      %p77 = scmp.eq.s32.totalorder %s18, 1
      %p78 = scmp.ne.s32.totalorder %s73, %s75
      %p79 = scmp.eq.s32.totalorder %s18, 0
      %p80 = por %p78, %p79
      %p81 = scmp.ne.s32.totalorder %s73, %s75
      %p82 = scmp.eq.s32.totalorder %s23, 1
      %p83 = por %p81, %p82
      %p84 = scmp.ne.s32.totalorder %s75, %s76
      %p85 = scmp.eq.s32.totalorder %s23, 0
      %p86 = por %p84, %p85
      %p87 = scmp.ne.s32.totalorder %s75, %s76
      %p88 = scmp.eq.s32.totalorder %s24, 1
      %p89 = por %p87, %p88
      %p91 = scmp.ne.s32.totalorder %s76, %s90
      %p92 = scmp.eq.s32.totalorder %s24, 0
      %p93 = por %p91, %p92
      %s95 = sadd.s32 %s94, 1
      %p98 = scmp.eq.s32.totalorder %s18, 1
      %p99 = scmp.ne.s32.totalorder %s94, %s96
      %p100 = scmp.eq.s32.totalorder %s18, 0
      %p101 = por %p99, %p100
      %p102 = scmp.ne.s32.totalorder %s94, %s96
      %p103 = scmp.eq.s32.totalorder %s23, 1
      %p104 = por %p102, %p103
      %p105 = scmp.ne.s32.totalorder %s96, %s97
      %p106 = scmp.eq.s32.totalorder %s23, 0
      %p107 = por %p105, %p106
      %p108 = scmp.ne.s32.totalorder %s96, %s97
      %p109 = scmp.eq.s32.totalorder %s24, 1
      %p110 = por %p108, %p109
      %p112 = scmp.ne.s32.totalorder %s97, %s111
      %p113 = scmp.eq.s32.totalorder %s24, 0
      %p114 = por %p112, %p113
      %s115 = ssub.s32 %s18, %s25
      %p116 = scmp.eq.s32.totalorder %s115, 0
      %s118 = sadd.s32 %s117, 1
      %s119 = scalar_select %p116, %s117, %s118
      %p122 = pneg %p116
      %p123 = scmp.eq.s32.totalorder %s18, 1
      %p124 = por %p122, %p123
      %p125 = scmp.ne.s32.totalorder %s117, %s120
      %p126 = scmp.eq.s32.totalorder %s18, 0
      %p127 = por %p125, %p126
      %p128 = scmp.ne.s32.totalorder %s117, %s120
      %p129 = scmp.eq.s32.totalorder %s23, 1
      %p130 = por %p128, %p129
      %p131 = scmp.ne.s32.totalorder %s120, %s121
      %p132 = scmp.eq.s32.totalorder %s23, 0
      %p133 = por %p131, %p132
      %p134 = scmp.ne.s32.totalorder %s120, %s121
      %p135 = scmp.eq.s32.totalorder %s24, 1
      %p136 = por %p134, %p135
      %p138 = scmp.ne.s32.totalorder %s121, %s137
      %p139 = scmp.eq.s32.totalorder %s24, 0
      %p140 = por %p138, %p139
      %p141 = scmp.le.s32.totalorder 1, %s18
      %p142 = scmp.lt.s32.totalorder %s18, 3
      %p143 = pnand %p141, %p142
      %p144 = pneg %p143
      // Predicated region
      $region9: #{tpu_custom_call.1} parent=5 // pred_check
        _
      $region10: #{tpu_custom_call.1} parent=5 // pred_check_branch
        %146 = sbr.rel (%p143) target = $region12
      $region11: #{tpu_custom_call.1} parent=5 // pred_region
        %s147 = ssub.s32 %s18, 1
        // Predicated region
        $region13: #{tpu_custom_call.1} parent=11 // pred_check
          %p148 = pneg %p65
        $region14: #{tpu_custom_call.1} parent=11 // pred_check_branch
          %150 = sbr.rel (%p148) target = $region16
        $region15: #{tpu_custom_call.1} parent=11 // pred_region
          %s152 = ssub.s32 1024, 1024
          %153 = vsyncadd [#allocation7], %s152
          %s154 = sshll.u32 [#allocation6], 4
          %s155 = int_to_ptr.vmem [resolvable:$true] %s154
          %160 = dma.hbm_to_vmem [thread:$0]  %s1, 1024, %s155, [#allocation7], 64, 64, 4
        $region16: #{tpu_custom_call.1} parent=11 // pred_fallthru
          _
        // Predicated region
        $region17: #{tpu_custom_call.1} parent=11 // pred_check
          %p161 = pneg %p86
        $region18: #{tpu_custom_call.1} parent=11 // pred_check_branch
          %163 = sbr.rel (%p161) target = $region20
        $region19: #{tpu_custom_call.1} parent=11 // pred_region
          %s165 = ssub.s32 9216, 9216
          %166 = vsyncadd [#allocation7], %s165
          %s167 = sshll.u32 [#allocation8], 4
          %s168 = int_to_ptr.vmem [resolvable:$true] %s167
          %173 = dma.hbm_to_vmem [thread:$0]  %s2, 9216, %s168, [#allocation7], 64, 64, 4
        $region20: #{tpu_custom_call.1} parent=11 // pred_fallthru
          _
        // Predicated region
        $region21: #{tpu_custom_call.1} parent=11 // pred_check
          %p174 = pneg %p107
        $region22: #{tpu_custom_call.1} parent=11 // pred_check_branch
          %176 = sbr.rel (%p174) target = $region24
        $region23: #{tpu_custom_call.1} parent=11 // pred_region
          %s178 = ssub.s32 1024, 1024
          %179 = vsyncadd [#allocation10], %s178
          %s180 = sshll.u32 [#allocation9], 4
          %s181 = int_to_ptr.vmem [resolvable:$true] %s180
          %186 = dma.hbm_to_vmem [thread:$0]  %s3, 1024, %s181, [#allocation10], 64, 64, 4
        $region24: #{tpu_custom_call.1} parent=11 // pred_fallthru
          _
      $region12: #{tpu_custom_call.1} parent=5 // pred_fallthru
        _
      %p187 = scmp.lt.s32.totalorder %s18, 2
      // Predicated region
      $region25: #{tpu_custom_call.1} parent=5 // pred_check
        %p188 = pneg %p187
      $region26: #{tpu_custom_call.1} parent=5 // pred_check_branch
        %190 = sbr.rel (%p188) target = $region28
      $region27: #{tpu_custom_call.1} parent=5 // pred_region
        // Predicated region
        $region29: #{tpu_custom_call.1} parent=27 // pred_check
          %p191 = pneg %p38
        $region30: #{tpu_custom_call.1} parent=27 // pred_check_branch
          %193 = sbr.rel (%p191) target = $region32
        $region31: #{tpu_custom_call.1} parent=27 // pred_region
          %s194 = sand.u32 %s28, 1
          %s195 = scalar_lea.sflag [#allocation4], %s194
          %s196 = sand.u32 %s28, 1
          %s197 = smul.addr %s196, 256
          %s198 = scalar_lea.vmem [#allocation3], %s197
          %s200 = ssub.s32 4096, 4096
          %201 = vsyncadd %s195, %s200
          %s202 = smul.addr %s18, 32
          %s203 = smul.addr %s202, 128
          %s204 = scalar_lea.hbm %s0, %s203
          %s205 = sshll.u32 %s198, 4
          %s206 = int_to_ptr.vmem [resolvable:$true] %s205
          %211 = dma.hbm_to_vmem [thread:$0]  %s204, 4096, %s206, %s195, 128, 128, 8
        $region32: #{tpu_custom_call.1} parent=27 // pred_fallthru
          _
      $region28: #{tpu_custom_call.1} parent=5 // pred_fallthru
        _
      %p212 = scmp.le.s32.totalorder 1, %s18
      %p213 = scmp.lt.s32.totalorder %s18, 3
      %p214 = pnand %p212, %p213
      %p215 = pneg %p214
      // Predicated region
      $region33: #{tpu_custom_call.1} parent=5 // pred_check
        _
      $region34: #{tpu_custom_call.1} parent=5 // pred_check_branch
        %217 = sbr.rel (%p214) target = $region36
      $region35: #{tpu_custom_call.1} parent=5 // pred_region
        %s218 = ssub.s32 %s18, 1
        %s219 = sand.u32 %s31, 1
        %s220 = scalar_lea.sflag [#allocation4], %s219
        %s221 = sand.u32 %s31, 1
        %s222 = smul.addr %s221, 256
        %s223 = scalar_lea.vmem [#allocation3], %s222
        // Predicated region
        $region37: #{tpu_custom_call.1} parent=35 // pred_check
          %p224 = pneg %p44
        $region38: #{tpu_custom_call.1} parent=35 // pred_check_branch
          %226 = sbr.rel (%p224) target = $region40
        $region39: #{tpu_custom_call.1} parent=35 // pred_region
          %227 = dma.done %s220, 4096
        $region40: #{tpu_custom_call.1} parent=35 // pred_fallthru
          _
        // Predicated region
        $region41: #{tpu_custom_call.1} parent=35 // pred_check
          %p228 = pneg %p65
        $region42: #{tpu_custom_call.1} parent=35 // pred_check_branch
          %230 = sbr.rel (%p228) target = $region44
        $region43: #{tpu_custom_call.1} parent=35 // pred_region
          %231 = dma.done [#allocation7], 1024
        $region44: #{tpu_custom_call.1} parent=35 // pred_fallthru
          _
        // Predicated region
        $region45: #{tpu_custom_call.1} parent=35 // pred_check
          %p232 = pneg %p86
        $region46: #{tpu_custom_call.1} parent=35 // pred_check_branch
          %234 = sbr.rel (%p232) target = $region48
        $region47: #{tpu_custom_call.1} parent=35 // pred_region
          %235 = dma.done [#allocation7], 9216
        $region48: #{tpu_custom_call.1} parent=35 // pred_fallthru
          _
        // Predicated region
        $region49: #{tpu_custom_call.1} parent=35 // pred_check
          %p236 = pneg %p107
        $region50: #{tpu_custom_call.1} parent=35 // pred_check_branch
          %238 = sbr.rel (%p236) target = $region52
        $region51: #{tpu_custom_call.1} parent=35 // pred_region
          %239 = dma.done [#allocation10], 1024
        $region52: #{tpu_custom_call.1} parent=35 // pred_fallthru
          _
        %s240 = sand.u32 %s31, 1
        %s241 = scalar_lea.sflag [#allocation4], %s240
        %s242 = sand.u32 %s31, 1
        %s243 = smul.addr %s242, 256
        %s244 = scalar_lea.vmem [#allocation3], %s243
        %p245 = pneg %p44
        %p246 = pneg %p41
        %p247 = pneg %p65
        %p248 = pneg %p62
        %p249 = pneg %p86
        %p250 = pneg %p83
        %p251 = pneg %p107
        %p252 = pneg %p104
        %p253 = pneg %p133
        %p254 = pneg %p130
        %s255 = sand.u32 %s120, 1
        %s256 = scalar_lea.sflag [#allocation5], %s255
        %s257 = sand.u32 %s120, 1
        %s258 = smul.addr %s257, 256
        %s259 = scalar_lea.vmem [#allocation11], %s258
        %v261 = vld [vmem:[%s223] sm:$0xff]
        %v262 = vld [vmem:[%s223 + $0x8] sm:$0xff]
        %v263 = vld [vmem:[%s223 + $0x10] sm:$0xff]
        %v264 = vld [vmem:[%s223 + $0x18] sm:$0xff]
        %v265 = vld [vmem:[%s223 + $0x20] sm:$0xff]
        %v266 = vld [vmem:[%s223 + $0x28] sm:$0xff]
        %v267 = vld [vmem:[%s223 + $0x30] sm:$0xff]
        %v268 = vld [vmem:[%s223 + $0x38] sm:$0xff]
        %v269 = vld [vmem:[%s223 + $0x40] sm:$0xff]
        %v270 = vld [vmem:[%s223 + $0x48] sm:$0xff]
        %v271 = vld [vmem:[%s223 + $0x50] sm:$0xff]
        %v272 = vld [vmem:[%s223 + $0x58] sm:$0xff]
        %v273 = vld [vmem:[%s223 + $0x60] sm:$0xff]
        %v274 = vld [vmem:[%s223 + $0x68] sm:$0xff]
        %v275 = vld [vmem:[%s223 + $0x70] sm:$0xff]
        %v276 = vld [vmem:[%s223 + $0x78] sm:$0xff]
        %v277 = vld [vmem:[%s223 + $0x80] sm:$0xff]
        %v278 = vld [vmem:[%s223 + $0x88] sm:$0xff]
        %v279 = vld [vmem:[%s223 + $0x90] sm:$0xff]
        %v280 = vld [vmem:[%s223 + $0x98] sm:$0xff]
        %v281 = vld [vmem:[%s223 + $0xa0] sm:$0xff]
        %v282 = vld [vmem:[%s223 + $0xa8] sm:$0xff]
        %v283 = vld [vmem:[%s223 + $0xb0] sm:$0xff]
        %v284 = vld [vmem:[%s223 + $0xb8] sm:$0xff]
        %v285 = vld [vmem:[%s223 + $0xc0] sm:$0xff]
        %v286 = vld [vmem:[%s223 + $0xc8] sm:$0xff]
        %v287 = vld [vmem:[%s223 + $0xd0] sm:$0xff]
        %v288 = vld [vmem:[%s223 + $0xd8] sm:$0xff]
        %v289 = vld [vmem:[%s223 + $0xe0] sm:$0xff]
        %v290 = vld [vmem:[%s223 + $0xe8] sm:$0xff]
        %v291 = vld [vmem:[%s223 + $0xf0] sm:$0xff]
        %v292 = vld [vmem:[%s223 + $0xf8] sm:$0xff]
        %v293 = vpack.c.bf16 %v262, %v261
        %v294 = vpack.c.bf16 %v264, %v263
        %v295 = vpack.c.bf16 %v266, %v265
        %v296 = vpack.c.bf16 %v268, %v267
        %v297 = vpack.c.bf16 %v270, %v269
        %v298 = vpack.c.bf16 %v272, %v271
        %v299 = vpack.c.bf16 %v274, %v273
        %v300 = vpack.c.bf16 %v276, %v275
        %v301 = vpack.c.bf16 %v278, %v277
        %v302 = vpack.c.bf16 %v280, %v279
        %v303 = vpack.c.bf16 %v282, %v281
        %v304 = vpack.c.bf16 %v284, %v283
        %v305 = vpack.c.bf16 %v286, %v285
        %v306 = vpack.c.bf16 %v288, %v287
        %v307 = vpack.c.bf16 %v290, %v289
        %v308 = vpack.c.bf16 %v292, %v291
        %v309 = vld [vmem:[#allocation6] sm:$0xf]
        %v310 = vld [vmem:[#allocation6 + $0x4] sm:$0xf]
        %v311 = vld [vmem:[#allocation6 + $0x8] sm:$0xf]
        %v312 = vld [vmem:[#allocation6 + $0xc] sm:$0xf]
        %v313 = vld [vmem:[#allocation6 + $0x10] sm:$0xf]
        %v314 = vld [vmem:[#allocation6 + $0x14] sm:$0xf]
        %v315 = vld [vmem:[#allocation6 + $0x18] sm:$0xf]
        %v316 = vld [vmem:[#allocation6 + $0x1c] sm:$0xf]
        %v317 = vld [vmem:[#allocation6 + $0x20] sm:$0xf]
        %v318 = vld [vmem:[#allocation6 + $0x24] sm:$0xf]
        %v319 = vld [vmem:[#allocation6 + $0x28] sm:$0xf]
        %v320 = vld [vmem:[#allocation6 + $0x2c] sm:$0xf]
        %v321 = vld [vmem:[#allocation6 + $0x30] sm:$0xf]
        %v322 = vld [vmem:[#allocation6 + $0x34] sm:$0xf]
        %v323 = vld [vmem:[#allocation6 + $0x38] sm:$0xf]
        %v324 = vld [vmem:[#allocation6 + $0x3c] sm:$0xf]
        %v341 = vunpack.c.l.b16 %v309
        %v342 = vunpack.c.l.b16 %v310
        %v343 = vunpack.c.l.b16 %v311
        %v344 = vunpack.c.l.b16 %v312
        %v345 = vunpack.c.l.b16 %v313
        %v346 = vunpack.c.l.b16 %v314
        %v347 = vunpack.c.l.b16 %v315
        %v348 = vunpack.c.l.b16 %v316
        %v349 = vunpack.c.l.b16 %v317
        %v350 = vunpack.c.l.b16 %v318
        %v351 = vunpack.c.l.b16 %v319
        %v352 = vunpack.c.l.b16 %v320
        %v353 = vunpack.c.l.b16 %v321
        %v354 = vunpack.c.l.b16 %v322
        %v355 = vunpack.c.l.b16 %v323
        %v356 = vunpack.c.l.b16 %v324
        %v357 = vpack.c.b16 %v342, %v341
        %v358 = vpack.c.b16 %v344, %v343
        %v359 = vpack.c.b16 %v346, %v345
        %v360 = vpack.c.b16 %v348, %v347
        %v361 = vpack.c.b16 %v350, %v349
        %v362 = vpack.c.b16 %v352, %v351
        %v363 = vpack.c.b16 %v354, %v353
        %v364 = vpack.c.b16 %v356, %v355
        %373 = vmatprep.subr.bf16.mxu0 0
        %374 = vmatpush1.bf16.msra.mxu0 %v364
        %375 = vmatprep.subr.bf16.mxu0 0
        %376 = vmatpush1.bf16.msra.mxu0 %v363
        %377 = vmatprep.subr.bf16.mxu0 0
        %378 = vmatpush1.bf16.msra.mxu0 %v362
        %379 = vmatprep.subr.bf16.mxu0 0
        %380 = vmatpush1.bf16.msra.mxu0 %v361
        %381 = vmatprep.subr.bf16.mxu0 0
        %382 = vmatpush1.bf16.msra.mxu0 %v360
        %383 = vmatprep.subr.bf16.mxu0 0
        %384 = vmatpush1.bf16.msra.mxu0 %v359
        %385 = vmatprep.subr.bf16.mxu0 0
        %386 = vmatpush1.bf16.msra.mxu0 %v358
        %387 = vmatprep.subr.bf16.mxu0 0
        %388 = vmatpush1.bf16.msra.mxu0 %v357
        %389 = vmatprep.subr.bf16.mxu0 0
        %390 = vmatpush2.bf16.msra.mxu0 0
        %391 = vmatprep.subr.bf16.mxu0 0
        %392 = vmatpush2.bf16.msra.mxu0 0
        %393 = vmatprep.subr.bf16.mxu0 0
        %394 = vmatpush2.bf16.msra.mxu0 0
        %395 = vmatprep.subr.bf16.mxu0 0
        %396 = vmatpush2.bf16.msra.mxu0 0
        %397 = vmatprep.subr.bf16.mxu0 0
        %398 = vmatpush2.bf16.msra.mxu0 0
        %399 = vmatprep.subr.bf16.mxu0 0
        %400 = vmatpush2.bf16.msra.mxu0 0
        %401 = vmatprep.subr.bf16.mxu0 0
        %402 = vmatpush2.bf16.msra.mxu0 0
        %403 = vmatprep.subr.bf16.mxu0 0
        %404 = vmatpush2.bf16.msra.mxu0 0
        %405 = vmatprep.mubr.bf16.mxu0 0
        %406 = vmatmul.mubr.bf16.gmra.mxu0 %v293
        %v407 = vpop.f32.mrf.mxu0
        %v408 = vadd.f32 0.0, %v407
        %v409 = vpop.f32.mrf.mxu0
        %v410 = vpop.f32.mrf.mxu0
        %v411 = vadd.f32 0.0, %v410
        %v412 = vpop.f32.mrf.mxu0
        %413 = vmatprep.mubr.bf16.mxu0 0
        %414 = vmatmul.mubr.bf16.gmra.mxu0 %v294
        %v415 = vpop.f32.mrf.mxu0
        %v416 = vadd.f32 0.0, %v415
        %v417 = vpop.f32.mrf.mxu0
        %v418 = vpop.f32.mrf.mxu0
        %v419 = vadd.f32 0.0, %v418
        %v420 = vpop.f32.mrf.mxu0
        %421 = vmatprep.mubr.bf16.mxu0 0
        %422 = vmatmul.mubr.bf16.gmra.mxu0 %v295
        %v423 = vpop.f32.mrf.mxu0
        %v424 = vadd.f32 0.0, %v423
        %v425 = vpop.f32.mrf.mxu0
        %v426 = vpop.f32.mrf.mxu0
        %v427 = vadd.f32 0.0, %v426
        %v428 = vpop.f32.mrf.mxu0
        %429 = vmatprep.mubr.bf16.mxu0 0
        %430 = vmatmul.mubr.bf16.gmra.mxu0 %v296
        %v431 = vpop.f32.mrf.mxu0
        %v432 = vadd.f32 0.0, %v431
        %v433 = vpop.f32.mrf.mxu0
        %v434 = vpop.f32.mrf.mxu0
        %v435 = vadd.f32 0.0, %v434
        %v436 = vpop.f32.mrf.mxu0
        %437 = vmatprep.mubr.bf16.mxu0 0
        %438 = vmatmul.mubr.bf16.gmra.mxu0 %v297
        %v439 = vpop.f32.mrf.mxu0
        %v440 = vadd.f32 0.0, %v439
        %v441 = vpop.f32.mrf.mxu0
        %v442 = vpop.f32.mrf.mxu0
        %v443 = vadd.f32 0.0, %v442
        %v444 = vpop.f32.mrf.mxu0
        %445 = vmatprep.mubr.bf16.mxu0 0
        %446 = vmatmul.mubr.bf16.gmra.mxu0 %v298
        %v447 = vpop.f32.mrf.mxu0
        %v448 = vadd.f32 0.0, %v447
        %v449 = vpop.f32.mrf.mxu0
        %v450 = vpop.f32.mrf.mxu0
        %v451 = vadd.f32 0.0, %v450
        %v452 = vpop.f32.mrf.mxu0
        %453 = vmatprep.mubr.bf16.mxu0 0
        %454 = vmatmul.mubr.bf16.gmra.mxu0 %v299
        %v455 = vpop.f32.mrf.mxu0
        %v456 = vadd.f32 0.0, %v455
        %v457 = vpop.f32.mrf.mxu0
        %v458 = vpop.f32.mrf.mxu0
        %v459 = vadd.f32 0.0, %v458
        %v460 = vpop.f32.mrf.mxu0
        %461 = vmatprep.mubr.bf16.mxu0 0
        %462 = vmatmul.mubr.bf16.gmra.mxu0 %v300
        %v463 = vpop.f32.mrf.mxu0
        %v464 = vadd.f32 0.0, %v463
        %v465 = vpop.f32.mrf.mxu0
        %v466 = vpop.f32.mrf.mxu0
        %v467 = vadd.f32 0.0, %v466
        %v468 = vpop.f32.mrf.mxu0
        %469 = vmatprep.mubr.bf16.mxu0 0
        %470 = vmatmul.mubr.bf16.gmra.mxu0 %v301
        %v471 = vpop.f32.mrf.mxu0
        %v472 = vadd.f32 0.0, %v471
        %v473 = vpop.f32.mrf.mxu0
        %v474 = vpop.f32.mrf.mxu0
        %v475 = vadd.f32 0.0, %v474
        %v476 = vpop.f32.mrf.mxu0
        %477 = vmatprep.mubr.bf16.mxu0 0
        %478 = vmatmul.mubr.bf16.gmra.mxu0 %v302
        %v479 = vpop.f32.mrf.mxu0
        %v480 = vadd.f32 0.0, %v479
        %v481 = vpop.f32.mrf.mxu0
        %v482 = vpop.f32.mrf.mxu0
        %v483 = vadd.f32 0.0, %v482
        %v484 = vpop.f32.mrf.mxu0
        %485 = vmatprep.mubr.bf16.mxu0 0
        %486 = vmatmul.mubr.bf16.gmra.mxu0 %v303
        %v487 = vpop.f32.mrf.mxu0
        %v488 = vadd.f32 0.0, %v487
        %v489 = vpop.f32.mrf.mxu0
        %v490 = vpop.f32.mrf.mxu0
        %v491 = vadd.f32 0.0, %v490
        %v492 = vpop.f32.mrf.mxu0
        %493 = vmatprep.mubr.bf16.mxu0 0
        %494 = vmatmul.mubr.bf16.gmra.mxu0 %v304
        %v495 = vpop.f32.mrf.mxu0
        %v496 = vadd.f32 0.0, %v495
        %v497 = vpop.f32.mrf.mxu0
        %v498 = vpop.f32.mrf.mxu0
        %v499 = vadd.f32 0.0, %v498
        %v500 = vpop.f32.mrf.mxu0
        %501 = vmatprep.mubr.bf16.mxu0 0
        %502 = vmatmul.mubr.bf16.gmra.mxu0 %v305
        %v503 = vpop.f32.mrf.mxu0
        %v504 = vadd.f32 0.0, %v503
        %v505 = vpop.f32.mrf.mxu0
        %v506 = vpop.f32.mrf.mxu0
        %v507 = vadd.f32 0.0, %v506
        %v508 = vpop.f32.mrf.mxu0
        %509 = vmatprep.mubr.bf16.mxu0 0
        %510 = vmatmul.mubr.bf16.gmra.mxu0 %v306
        %v511 = vpop.f32.mrf.mxu0
        %v512 = vadd.f32 0.0, %v511
        %v513 = vpop.f32.mrf.mxu0
        %v514 = vpop.f32.mrf.mxu0
        %v515 = vadd.f32 0.0, %v514
        %v516 = vpop.f32.mrf.mxu0
        %517 = vmatprep.mubr.bf16.mxu0 0
        %518 = vmatmul.mubr.bf16.gmra.mxu0 %v307
        %v519 = vpop.f32.mrf.mxu0
        %v520 = vadd.f32 0.0, %v519
        %v521 = vpop.f32.mrf.mxu0
        %v522 = vpop.f32.mrf.mxu0
        %v523 = vadd.f32 0.0, %v522
        %v524 = vpop.f32.mrf.mxu0
        %525 = vmatprep.mubr.bf16.mxu0 0
        %526 = vmatmul.mubr.bf16.gmra.mxu0 %v308
        %v527 = vpop.f32.mrf.mxu0
        %v528 = vadd.f32 0.0, %v527
        %v529 = vpop.f32.mrf.mxu0
        %v530 = vpop.f32.mrf.mxu0
        %v531 = vadd.f32 0.0, %v530
        %v532 = vpop.f32.mrf.mxu0
        %533 = vdwg.mxu0
        %v534 = vadd.f32 %v408, %v411
        %v535 = vadd.f32 %v534, %v416
        %v536 = vadd.f32 %v535, %v419
        %v537 = vadd.f32 %v536, %v424
        %v538 = vadd.f32 %v537, %v427
        %v539 = vadd.f32 %v538, %v432
        %v540 = vadd.f32 %v539, %v435
        %v541 = vadd.f32 %v540, %v440
        %v542 = vadd.f32 %v541, %v443
        %v543 = vadd.f32 %v542, %v448
        %v544 = vadd.f32 %v543, %v451
        %v545 = vadd.f32 %v544, %v456
        %v546 = vadd.f32 %v545, %v459
        %v547 = vadd.f32 %v546, %v464
        %v548 = vadd.f32 %v547, %v467
        %v549 = vadd.f32 %v548, %v472
        %v550 = vadd.f32 %v549, %v475
        %v551 = vadd.f32 %v550, %v480
        %v552 = vadd.f32 %v551, %v483
        %v553 = vadd.f32 %v552, %v488
        %v554 = vadd.f32 %v553, %v491
        %v555 = vadd.f32 %v554, %v496
        %v556 = vadd.f32 %v555, %v499
        %v557 = vadd.f32 %v556, %v504
        %v558 = vadd.f32 %v557, %v507
        %v559 = vadd.f32 %v558, %v512
        %v560 = vadd.f32 %v559, %v515
        %v561 = vadd.f32 %v560, %v520
        %v562 = vadd.f32 %v561, %v523
        %v563 = vadd.f32 %v562, %v528
        %v564 = vadd.f32 %v563, %v531
        %v565 = vrot.slane %v564, 4
        %v566 = vadd.f32 %v564, %v565
        %v567 = vrot.slane %v566, 2
        %v568 = vadd.f32 %v566, %v567
        %v569 = vrot.slane %v568, 1
        %v570 = vadd.f32 %v568, %v569
        %v571 = vmul.f32 %v570, 0.00390625
        %v572 = vmul.f32 %v408, %v408
        %v573 = vmul.f32 %v411, %v411
        %v574 = vmul.f32 %v416, %v416
        %v575 = vmul.f32 %v419, %v419
        %v576 = vmul.f32 %v424, %v424
        %v577 = vmul.f32 %v427, %v427
        %v578 = vmul.f32 %v432, %v432
        %v579 = vmul.f32 %v435, %v435
        %v580 = vmul.f32 %v440, %v440
        %v581 = vmul.f32 %v443, %v443
        %v582 = vmul.f32 %v448, %v448
        %v583 = vmul.f32 %v451, %v451
        %v584 = vmul.f32 %v456, %v456
        %v585 = vmul.f32 %v459, %v459
        %v586 = vmul.f32 %v464, %v464
        %v587 = vmul.f32 %v467, %v467
        %v588 = vmul.f32 %v472, %v472
        %v589 = vmul.f32 %v475, %v475
        %v590 = vmul.f32 %v480, %v480
        %v591 = vmul.f32 %v483, %v483
        %v592 = vmul.f32 %v488, %v488
        %v593 = vmul.f32 %v491, %v491
        %v594 = vmul.f32 %v496, %v496
        %v595 = vmul.f32 %v499, %v499
        %v596 = vmul.f32 %v504, %v504
        %v597 = vmul.f32 %v507, %v507
        %v598 = vmul.f32 %v512, %v512
        %v599 = vmul.f32 %v515, %v515
        %v600 = vmul.f32 %v520, %v520
        %v601 = vmul.f32 %v523, %v523
        %v602 = vmul.f32 %v528, %v528
        %v603 = vmul.f32 %v531, %v531
        %v604 = vadd.f32 %v572, %v573
        %v605 = vadd.f32 %v604, %v574
        %v606 = vadd.f32 %v605, %v575
        %v607 = vadd.f32 %v606, %v576
        %v608 = vadd.f32 %v607, %v577
        %v609 = vadd.f32 %v608, %v578
        %v610 = vadd.f32 %v609, %v579
        %v611 = vadd.f32 %v610, %v580
        %v612 = vadd.f32 %v611, %v581
        %v613 = vadd.f32 %v612, %v582
        %v614 = vadd.f32 %v613, %v583
        %v615 = vadd.f32 %v614, %v584
        %v616 = vadd.f32 %v615, %v585
        %v617 = vadd.f32 %v616, %v586
        %v618 = vadd.f32 %v617, %v587
        %v619 = vadd.f32 %v618, %v588
        %v620 = vadd.f32 %v619, %v589
        %v621 = vadd.f32 %v620, %v590
        %v622 = vadd.f32 %v621, %v591
        %v623 = vadd.f32 %v622, %v592
        %v624 = vadd.f32 %v623, %v593
        %v625 = vadd.f32 %v624, %v594
        %v626 = vadd.f32 %v625, %v595
        %v627 = vadd.f32 %v626, %v596
        %v628 = vadd.f32 %v627, %v597
        %v629 = vadd.f32 %v628, %v598
        %v630 = vadd.f32 %v629, %v599
        %v631 = vadd.f32 %v630, %v600
        %v632 = vadd.f32 %v631, %v601
        %v633 = vadd.f32 %v632, %v602
        %v634 = vadd.f32 %v633, %v603
        %v635 = vrot.slane %v634, 4
        %v636 = vadd.f32 %v634, %v635
        %v637 = vrot.slane %v636, 2
        %v638 = vadd.f32 %v636, %v637
        %v639 = vrot.slane %v638, 1
        %v640 = vadd.f32 %v638, %v639
        %v641 = vmul.f32 %v640, 0.00390625
        %v642 = vmul.f32 %v571, %v571
        %v643 = vsub.f32 %v641, %v642
        %v644 = vmax.f32 %v643, 0.0
        %v645 = vsub.f32 %v408, %v571
        %v646 = vsub.f32 %v411, %v571
        %v647 = vsub.f32 %v416, %v571
        %v648 = vsub.f32 %v419, %v571
        %v649 = vsub.f32 %v424, %v571
        %v650 = vsub.f32 %v427, %v571
        %v651 = vsub.f32 %v432, %v571
        %v652 = vsub.f32 %v435, %v571
        %v653 = vsub.f32 %v440, %v571
        %v654 = vsub.f32 %v443, %v571
        %v655 = vsub.f32 %v448, %v571
        %v656 = vsub.f32 %v451, %v571
        %v657 = vsub.f32 %v456, %v571
        %v658 = vsub.f32 %v459, %v571
        %v659 = vsub.f32 %v464, %v571
        %v660 = vsub.f32 %v467, %v571
        %v661 = vsub.f32 %v472, %v571
        %v662 = vsub.f32 %v475, %v571
        %v663 = vsub.f32 %v480, %v571
        %v664 = vsub.f32 %v483, %v571
        %v665 = vsub.f32 %v488, %v571
        %v666 = vsub.f32 %v491, %v571
        %v667 = vsub.f32 %v496, %v571
        %v668 = vsub.f32 %v499, %v571
        %v669 = vsub.f32 %v504, %v571
        %v670 = vsub.f32 %v507, %v571
        %v671 = vsub.f32 %v512, %v571
        %v672 = vsub.f32 %v515, %v571
        %v673 = vsub.f32 %v520, %v571
        %v674 = vsub.f32 %v523, %v571
        %v675 = vsub.f32 %v528, %v571
        %v676 = vsub.f32 %v531, %v571
        %v677 = vadd.f32 %v644, 1e-05
        %v678 = vrsqrt.pop %v677
        %v679 = vmul.f32 %v645, %v678
        %v680 = vmul.f32 %v646, %v678
        %v681 = vmul.f32 %v647, %v678
        %v682 = vmul.f32 %v648, %v678
        %v683 = vmul.f32 %v649, %v678
        %v684 = vmul.f32 %v650, %v678
        %v685 = vmul.f32 %v651, %v678
        %v686 = vmul.f32 %v652, %v678
        %v687 = vmul.f32 %v653, %v678
        %v688 = vmul.f32 %v654, %v678
        %v689 = vmul.f32 %v655, %v678
        %v690 = vmul.f32 %v656, %v678
        %v691 = vmul.f32 %v657, %v678
        %v692 = vmul.f32 %v658, %v678
        %v693 = vmul.f32 %v659, %v678
        %v694 = vmul.f32 %v660, %v678
        %v695 = vmul.f32 %v661, %v678
        %v696 = vmul.f32 %v662, %v678
        %v697 = vmul.f32 %v663, %v678
        %v698 = vmul.f32 %v664, %v678
        %v699 = vmul.f32 %v665, %v678
        %v700 = vmul.f32 %v666, %v678
        %v701 = vmul.f32 %v667, %v678
        %v702 = vmul.f32 %v668, %v678
        %v703 = vmul.f32 %v669, %v678
        %v704 = vmul.f32 %v670, %v678
        %v705 = vmul.f32 %v671, %v678
        %v706 = vmul.f32 %v672, %v678
        %v707 = vmul.f32 %v673, %v678
        %v708 = vmul.f32 %v674, %v678
        %v709 = vmul.f32 %v675, %v678
        %v710 = vmul.f32 %v676, %v678
        %v711 = vmax.f32 %v679, 0.0
        %v712 = vmax.f32 %v680, 0.0
        %v713 = vmax.f32 %v681, 0.0
        %v714 = vmax.f32 %v682, 0.0
        %v715 = vmax.f32 %v683, 0.0
        %v716 = vmax.f32 %v684, 0.0
        %v717 = vmax.f32 %v685, 0.0
        %v718 = vmax.f32 %v686, 0.0
        %v719 = vmax.f32 %v687, 0.0
        %v720 = vmax.f32 %v688, 0.0
        %v721 = vmax.f32 %v689, 0.0
        %v722 = vmax.f32 %v690, 0.0
        %v723 = vmax.f32 %v691, 0.0
        %v724 = vmax.f32 %v692, 0.0
        %v725 = vmax.f32 %v693, 0.0
        %v726 = vmax.f32 %v694, 0.0
        %v727 = vmax.f32 %v695, 0.0
        %v728 = vmax.f32 %v696, 0.0
        %v729 = vmax.f32 %v697, 0.0
        %v730 = vmax.f32 %v698, 0.0
        %v731 = vmax.f32 %v699, 0.0
        %v732 = vmax.f32 %v700, 0.0
        %v733 = vmax.f32 %v701, 0.0
        %v734 = vmax.f32 %v702, 0.0
        %v735 = vmax.f32 %v703, 0.0
        %v736 = vmax.f32 %v704, 0.0
        %v737 = vmax.f32 %v705, 0.0
        %v738 = vmax.f32 %v706, 0.0
        %v739 = vmax.f32 %v707, 0.0
        %v740 = vmax.f32 %v708, 0.0
        %v741 = vmax.f32 %v709, 0.0
        %v742 = vmax.f32 %v710, 0.0
        %v743 = vlaneseq
        %v744 = vshrl.u32 %v743, 7
        %v745 = vadd.s32 %v744, 8
        %v746 = vadd.s32 %v744, 16
        %v747 = vadd.s32 %v744, 24
        %v748 = vadd.s32 %v744, 32
        %v749 = vadd.s32 %v744, 40
        %v750 = vadd.s32 %v744, 48
        %v751 = vadd.s32 %v744, 56
        %v752 = vadd.s32 %v744, 64
        %v753 = vadd.s32 %v744, 72
        %v754 = vadd.s32 %v744, 80
        %v755 = vadd.s32 %v744, 88
        %v756 = vadd.s32 %v744, 96
        %v757 = vadd.s32 %v744, 104
        %v758 = vadd.s32 %v744, 112
        %v759 = vadd.s32 %v744, 120
        %v760 = vadd.s32 %v744, 128
        %v761 = vadd.s32 %v744, 136
        %v762 = vadd.s32 %v744, 144
        %v763 = vadd.s32 %v744, 152
        %v764 = vadd.s32 %v744, 160
        %v765 = vadd.s32 %v744, 168
        %v766 = vadd.s32 %v744, 176
        %v767 = vadd.s32 %v744, 184
        %v768 = vadd.s32 %v744, 192
        %v769 = vadd.s32 %v744, 200
        %v770 = vadd.s32 %v744, 208
        %v771 = vadd.s32 %v744, 216
        %v772 = vadd.s32 %v744, 224
        %v773 = vadd.s32 %v744, 232
        %v774 = vadd.s32 %v744, 240
        %v775 = vadd.s32 %v744, 248
        %vm776 = vcmp.lt.s32.totalorder %v744, 0
        %v777 = vsub.s32 0, %v744
        %v778 = vsel %vm776, %v777, %v744
        %v779 = vshrl.u32 %v778, 4
        %v780 = vand.u32 %v778, 15
        %v781 = vsub.s32 0, %v780
        %v782 = vsel %vm776, %v781, %v780
        %vm783 = vcmp.lt.s32.totalorder %v745, 0
        %v784 = vsub.s32 0, %v745
        %v785 = vsel %vm783, %v784, %v745
        %v786 = vshrl.u32 %v785, 4
        %v787 = vand.u32 %v785, 15
        %v788 = vsub.s32 0, %v787
        %v789 = vsel %vm783, %v788, %v787
        %vm790 = vcmp.lt.s32.totalorder %v746, 0
        %v791 = vsub.s32 0, %v746
        %v792 = vsel %vm790, %v791, %v746
        %v793 = vshrl.u32 %v792, 4
        %v794 = vand.u32 %v792, 15
        %v795 = vsub.s32 0, %v794
        %v796 = vsel %vm790, %v795, %v794
        %vm797 = vcmp.lt.s32.totalorder %v747, 0
        %v798 = vsub.s32 0, %v747
        %v799 = vsel %vm797, %v798, %v747
        %v800 = vshrl.u32 %v799, 4
        %v801 = vand.u32 %v799, 15
        %v802 = vsub.s32 0, %v801
        %v803 = vsel %vm797, %v802, %v801
        %vm804 = vcmp.lt.s32.totalorder %v748, 0
        %v805 = vsub.s32 0, %v748
        %v806 = vsel %vm804, %v805, %v748
        %v807 = vshrl.u32 %v806, 4
        %v808 = vand.u32 %v806, 15
        %v809 = vsub.s32 0, %v808
        %v810 = vsel %vm804, %v809, %v808
        %vm811 = vcmp.lt.s32.totalorder %v749, 0
        %v812 = vsub.s32 0, %v749
        %v813 = vsel %vm811, %v812, %v749
        %v814 = vshrl.u32 %v813, 4
        %v815 = vand.u32 %v813, 15
        %v816 = vsub.s32 0, %v815
        %v817 = vsel %vm811, %v816, %v815
        %vm818 = vcmp.lt.s32.totalorder %v750, 0
        %v819 = vsub.s32 0, %v750
        %v820 = vsel %vm818, %v819, %v750
        %v821 = vshrl.u32 %v820, 4
        %v822 = vand.u32 %v820, 15
        %v823 = vsub.s32 0, %v822
        %v824 = vsel %vm818, %v823, %v822
        %vm825 = vcmp.lt.s32.totalorder %v751, 0
        %v826 = vsub.s32 0, %v751
        %v827 = vsel %vm825, %v826, %v751
        %v828 = vshrl.u32 %v827, 4
        %v829 = vand.u32 %v827, 15
        %v830 = vsub.s32 0, %v829
        %v831 = vsel %vm825, %v830, %v829
        %vm832 = vcmp.lt.s32.totalorder %v752, 0
        %v833 = vsub.s32 0, %v752
        %v834 = vsel %vm832, %v833, %v752
        %v835 = vshrl.u32 %v834, 4
        %v836 = vand.u32 %v834, 15
        %v837 = vsub.s32 0, %v836
        %v838 = vsel %vm832, %v837, %v836
        %vm839 = vcmp.lt.s32.totalorder %v753, 0
        %v840 = vsub.s32 0, %v753
        %v841 = vsel %vm839, %v840, %v753
        %v842 = vshrl.u32 %v841, 4
        %v843 = vand.u32 %v841, 15
        %v844 = vsub.s32 0, %v843
        %v845 = vsel %vm839, %v844, %v843
        %vm846 = vcmp.lt.s32.totalorder %v754, 0
        %v847 = vsub.s32 0, %v754
        %v848 = vsel %vm846, %v847, %v754
        %v849 = vshrl.u32 %v848, 4
        %v850 = vand.u32 %v848, 15
        %v851 = vsub.s32 0, %v850
        %v852 = vsel %vm846, %v851, %v850
        %vm853 = vcmp.lt.s32.totalorder %v755, 0
        %v854 = vsub.s32 0, %v755
        %v855 = vsel %vm853, %v854, %v755
        %v856 = vshrl.u32 %v855, 4
        %v857 = vand.u32 %v855, 15
        %v858 = vsub.s32 0, %v857
        %v859 = vsel %vm853, %v858, %v857
        %vm860 = vcmp.lt.s32.totalorder %v756, 0
        %v861 = vsub.s32 0, %v756
        %v862 = vsel %vm860, %v861, %v756
        %v863 = vshrl.u32 %v862, 4
        %v864 = vand.u32 %v862, 15
        %v865 = vsub.s32 0, %v864
        %v866 = vsel %vm860, %v865, %v864
        %vm867 = vcmp.lt.s32.totalorder %v757, 0
        %v868 = vsub.s32 0, %v757
        %v869 = vsel %vm867, %v868, %v757
        %v870 = vshrl.u32 %v869, 4
        %v871 = vand.u32 %v869, 15
        %v872 = vsub.s32 0, %v871
        %v873 = vsel %vm867, %v872, %v871
        %vm874 = vcmp.lt.s32.totalorder %v758, 0
        %v875 = vsub.s32 0, %v758
        %v876 = vsel %vm874, %v875, %v758
        %v877 = vshrl.u32 %v876, 4
        %v878 = vand.u32 %v876, 15
        %v879 = vsub.s32 0, %v878
        %v880 = vsel %vm874, %v879, %v878
        %vm881 = vcmp.lt.s32.totalorder %v759, 0
        %v882 = vsub.s32 0, %v759
        %v883 = vsel %vm881, %v882, %v759
        %v884 = vshrl.u32 %v883, 4
        %v885 = vand.u32 %v883, 15
        %v886 = vsub.s32 0, %v885
        %v887 = vsel %vm881, %v886, %v885
        %vm888 = vcmp.lt.s32.totalorder %v760, 0
        %v889 = vsub.s32 0, %v760
        %v890 = vsel %vm888, %v889, %v760
        %v891 = vshrl.u32 %v890, 4
        %v892 = vand.u32 %v890, 15
        %v893 = vsub.s32 0, %v892
        %v894 = vsel %vm888, %v893, %v892
        %vm895 = vcmp.lt.s32.totalorder %v761, 0
        %v896 = vsub.s32 0, %v761
        %v897 = vsel %vm895, %v896, %v761
        %v898 = vshrl.u32 %v897, 4
        %v899 = vand.u32 %v897, 15
        %v900 = vsub.s32 0, %v899
        %v901 = vsel %vm895, %v900, %v899
        %vm902 = vcmp.lt.s32.totalorder %v762, 0
        %v903 = vsub.s32 0, %v762
        %v904 = vsel %vm902, %v903, %v762
        %v905 = vshrl.u32 %v904, 4
        %v906 = vand.u32 %v904, 15
        %v907 = vsub.s32 0, %v906
        %v908 = vsel %vm902, %v907, %v906
        %vm909 = vcmp.lt.s32.totalorder %v763, 0
        %v910 = vsub.s32 0, %v763
        %v911 = vsel %vm909, %v910, %v763
        %v912 = vshrl.u32 %v911, 4
        %v913 = vand.u32 %v911, 15
        %v914 = vsub.s32 0, %v913
        %v915 = vsel %vm909, %v914, %v913
        %vm916 = vcmp.lt.s32.totalorder %v764, 0
        %v917 = vsub.s32 0, %v764
        %v918 = vsel %vm916, %v917, %v764
        %v919 = vshrl.u32 %v918, 4
        %v920 = vand.u32 %v918, 15
        %v921 = vsub.s32 0, %v920
        %v922 = vsel %vm916, %v921, %v920
        %vm923 = vcmp.lt.s32.totalorder %v765, 0
        %v924 = vsub.s32 0, %v765
        %v925 = vsel %vm923, %v924, %v765
        %v926 = vshrl.u32 %v925, 4
        %v927 = vand.u32 %v925, 15
        %v928 = vsub.s32 0, %v927
        %v929 = vsel %vm923, %v928, %v927
        %vm930 = vcmp.lt.s32.totalorder %v766, 0
        %v931 = vsub.s32 0, %v766
        %v932 = vsel %vm930, %v931, %v766
        %v933 = vshrl.u32 %v932, 4
        %v934 = vand.u32 %v932, 15
        %v935 = vsub.s32 0, %v934
        %v936 = vsel %vm930, %v935, %v934
        %vm937 = vcmp.lt.s32.totalorder %v767, 0
        %v938 = vsub.s32 0, %v767
        %v939 = vsel %vm937, %v938, %v767
        %v940 = vshrl.u32 %v939, 4
        %v941 = vand.u32 %v939, 15
        %v942 = vsub.s32 0, %v941
        %v943 = vsel %vm937, %v942, %v941
        %vm944 = vcmp.lt.s32.totalorder %v768, 0
        %v945 = vsub.s32 0, %v768
        %v946 = vsel %vm944, %v945, %v768
        %v947 = vshrl.u32 %v946, 4
        %v948 = vand.u32 %v946, 15
        %v949 = vsub.s32 0, %v948
        %v950 = vsel %vm944, %v949, %v948
        %vm951 = vcmp.lt.s32.totalorder %v769, 0
        %v952 = vsub.s32 0, %v769
        %v953 = vsel %vm951, %v952, %v769
        %v954 = vshrl.u32 %v953, 4
        %v955 = vand.u32 %v953, 15
        %v956 = vsub.s32 0, %v955
        %v957 = vsel %vm951, %v956, %v955
        %vm958 = vcmp.lt.s32.totalorder %v770, 0
        %v959 = vsub.s32 0, %v770
        %v960 = vsel %vm958, %v959, %v770
        %v961 = vshrl.u32 %v960, 4
        %v962 = vand.u32 %v960, 15
        %v963 = vsub.s32 0, %v962
        %v964 = vsel %vm958, %v963, %v962
        %vm965 = vcmp.lt.s32.totalorder %v771, 0
        %v966 = vsub.s32 0, %v771
        %v967 = vsel %vm965, %v966, %v771
        %v968 = vshrl.u32 %v967, 4
        %v969 = vand.u32 %v967, 15
        %v970 = vsub.s32 0, %v969
        %v971 = vsel %vm965, %v970, %v969
        %vm972 = vcmp.lt.s32.totalorder %v772, 0
        %v973 = vsub.s32 0, %v772
        %v974 = vsel %vm972, %v973, %v772
        %v975 = vshrl.u32 %v974, 4
        %v976 = vand.u32 %v974, 15
        %v977 = vsub.s32 0, %v976
        %v978 = vsel %vm972, %v977, %v976
        %vm979 = vcmp.lt.s32.totalorder %v773, 0
        %v980 = vsub.s32 0, %v773
        %v981 = vsel %vm979, %v980, %v773
        %v982 = vshrl.u32 %v981, 4
        %v983 = vand.u32 %v981, 15
        %v984 = vsub.s32 0, %v983
        %v985 = vsel %vm979, %v984, %v983
        %vm986 = vcmp.lt.s32.totalorder %v774, 0
        %v987 = vsub.s32 0, %v774
        %v988 = vsel %vm986, %v987, %v774
        %v989 = vshrl.u32 %v988, 4
        %v990 = vand.u32 %v988, 15
        %v991 = vsub.s32 0, %v990
        %v992 = vsel %vm986, %v991, %v990
        %vm993 = vcmp.lt.s32.totalorder %v775, 0
        %v994 = vsub.s32 0, %v775
        %v995 = vsel %vm993, %v994, %v775
        %v996 = vshrl.u32 %v995, 4
        %v997 = vand.u32 %v995, 15
        %v998 = vsub.s32 0, %v997
        %v999 = vsel %vm993, %v998, %v997
        %vm1000 = vcmp.ne.s32.totalorder %v782, 0
        %vm1001 = vcmp.ne.s32.totalorder %v789, 0
        %vm1002 = vcmp.ne.s32.totalorder %v796, 0
        %vm1003 = vcmp.ne.s32.totalorder %v803, 0
        %vm1004 = vcmp.ne.s32.totalorder %v810, 0
        %vm1005 = vcmp.ne.s32.totalorder %v817, 0
        %vm1006 = vcmp.ne.s32.totalorder %v824, 0
        %vm1007 = vcmp.ne.s32.totalorder %v831, 0
        %vm1008 = vcmp.ne.s32.totalorder %v838, 0
        %vm1009 = vcmp.ne.s32.totalorder %v845, 0
        %vm1010 = vcmp.ne.s32.totalorder %v852, 0
        %vm1011 = vcmp.ne.s32.totalorder %v859, 0
        %vm1012 = vcmp.ne.s32.totalorder %v866, 0
        %vm1013 = vcmp.ne.s32.totalorder %v873, 0
        %vm1014 = vcmp.ne.s32.totalorder %v880, 0
        %vm1015 = vcmp.ne.s32.totalorder %v887, 0
        %vm1016 = vcmp.ne.s32.totalorder %v894, 0
        %vm1017 = vcmp.ne.s32.totalorder %v901, 0
        %vm1018 = vcmp.ne.s32.totalorder %v908, 0
        %vm1019 = vcmp.ne.s32.totalorder %v915, 0
        %vm1020 = vcmp.ne.s32.totalorder %v922, 0
        %vm1021 = vcmp.ne.s32.totalorder %v929, 0
        %vm1022 = vcmp.ne.s32.totalorder %v936, 0
        %vm1023 = vcmp.ne.s32.totalorder %v943, 0
        %vm1024 = vcmp.ne.s32.totalorder %v950, 0
        %vm1025 = vcmp.ne.s32.totalorder %v957, 0
        %vm1026 = vcmp.ne.s32.totalorder %v964, 0
        %vm1027 = vcmp.ne.s32.totalorder %v971, 0
        %vm1028 = vcmp.ne.s32.totalorder %v978, 0
        %vm1029 = vcmp.ne.s32.totalorder %v985, 0
        %vm1030 = vcmp.ne.s32.totalorder %v992, 0
        %vm1031 = vcmp.ne.s32.totalorder %v999, 0
        %vm1032 = vcmp.lt.s32.totalorder %v782, 0
        %vm1033 = vcmp.lt.s32.totalorder %v789, 0
        %vm1034 = vcmp.lt.s32.totalorder %v796, 0
        %vm1035 = vcmp.lt.s32.totalorder %v803, 0
        %vm1036 = vcmp.lt.s32.totalorder %v810, 0
        %vm1037 = vcmp.lt.s32.totalorder %v817, 0
        %vm1038 = vcmp.lt.s32.totalorder %v824, 0
        %vm1039 = vcmp.lt.s32.totalorder %v831, 0
        %vm1040 = vcmp.lt.s32.totalorder %v838, 0
        %vm1041 = vcmp.lt.s32.totalorder %v845, 0
        %vm1042 = vcmp.lt.s32.totalorder %v852, 0
        %vm1043 = vcmp.lt.s32.totalorder %v859, 0
        %vm1044 = vcmp.lt.s32.totalorder %v866, 0
        %vm1045 = vcmp.lt.s32.totalorder %v873, 0
        %vm1046 = vcmp.lt.s32.totalorder %v880, 0
        %vm1047 = vcmp.lt.s32.totalorder %v887, 0
        %vm1048 = vcmp.lt.s32.totalorder %v894, 0
        %vm1049 = vcmp.lt.s32.totalorder %v901, 0
        %vm1050 = vcmp.lt.s32.totalorder %v908, 0
        %vm1051 = vcmp.lt.s32.totalorder %v915, 0
        %vm1052 = vcmp.lt.s32.totalorder %v922, 0
        %vm1053 = vcmp.lt.s32.totalorder %v929, 0
        %vm1054 = vcmp.lt.s32.totalorder %v936, 0
        %vm1055 = vcmp.lt.s32.totalorder %v943, 0
        %vm1056 = vcmp.lt.s32.totalorder %v950, 0
        %vm1057 = vcmp.lt.s32.totalorder %v957, 0
        %vm1058 = vcmp.lt.s32.totalorder %v964, 0
        %vm1059 = vcmp.lt.s32.totalorder %v971, 0
        %vm1060 = vcmp.lt.s32.totalorder %v978, 0
        %vm1061 = vcmp.lt.s32.totalorder %v985, 0
        %vm1062 = vcmp.lt.s32.totalorder %v992, 0
        %vm1063 = vcmp.lt.s32.totalorder %v999, 0
        %vm1064 = vmand %vm1032, %vm1000
        %vm1065 = vmand %vm1033, %vm1001
        %vm1066 = vmand %vm1034, %vm1002
        %vm1067 = vmand %vm1035, %vm1003
        %vm1068 = vmand %vm1036, %vm1004
        %vm1069 = vmand %vm1037, %vm1005
        %vm1070 = vmand %vm1038, %vm1006
        %vm1071 = vmand %vm1039, %vm1007
        %vm1072 = vmand %vm1040, %vm1008
        %vm1073 = vmand %vm1041, %vm1009
        %vm1074 = vmand %vm1042, %vm1010
        %vm1075 = vmand %vm1043, %vm1011
        %vm1076 = vmand %vm1044, %vm1012
        %vm1077 = vmand %vm1045, %vm1013
        %vm1078 = vmand %vm1046, %vm1014
        %vm1079 = vmand %vm1047, %vm1015
        %vm1080 = vmand %vm1048, %vm1016
        %vm1081 = vmand %vm1049, %vm1017
        %vm1082 = vmand %vm1050, %vm1018
        %vm1083 = vmand %vm1051, %vm1019
        %vm1084 = vmand %vm1052, %vm1020
        %vm1085 = vmand %vm1053, %vm1021
        %vm1086 = vmand %vm1054, %vm1022
        %vm1087 = vmand %vm1055, %vm1023
        %vm1088 = vmand %vm1056, %vm1024
        %vm1089 = vmand %vm1057, %vm1025
        %vm1090 = vmand %vm1058, %vm1026
        %vm1091 = vmand %vm1059, %vm1027
        %vm1092 = vmand %vm1060, %vm1028
        %vm1093 = vmand %vm1061, %vm1029
        %vm1094 = vmand %vm1062, %vm1030
        %vm1095 = vmand %vm1063, %vm1031
        %v1096 = vadd.s32 %v782, 16
        %v1097 = vadd.s32 %v789, 16
        %v1098 = vadd.s32 %v796, 16
        %v1099 = vadd.s32 %v803, 16
        %v1100 = vadd.s32 %v810, 16
        %v1101 = vadd.s32 %v817, 16
        %v1102 = vadd.s32 %v824, 16
        %v1103 = vadd.s32 %v831, 16
        %v1104 = vadd.s32 %v838, 16
        %v1105 = vadd.s32 %v845, 16
        %v1106 = vadd.s32 %v852, 16
        %v1107 = vadd.s32 %v859, 16
        %v1108 = vadd.s32 %v866, 16
        %v1109 = vadd.s32 %v873, 16
        %v1110 = vadd.s32 %v880, 16
        %v1111 = vadd.s32 %v887, 16
        %v1112 = vadd.s32 %v894, 16
        %v1113 = vadd.s32 %v901, 16
        %v1114 = vadd.s32 %v908, 16
        %v1115 = vadd.s32 %v915, 16
        %v1116 = vadd.s32 %v922, 16
        %v1117 = vadd.s32 %v929, 16
        %v1118 = vadd.s32 %v936, 16
        %v1119 = vadd.s32 %v943, 16
        %v1120 = vadd.s32 %v950, 16
        %v1121 = vadd.s32 %v957, 16
        %v1122 = vadd.s32 %v964, 16
        %v1123 = vadd.s32 %v971, 16
        %v1124 = vadd.s32 %v978, 16
        %v1125 = vadd.s32 %v985, 16
        %v1126 = vadd.s32 %v992, 16
        %v1127 = vadd.s32 %v999, 16
        %v1128 = vsel %vm1064, %v1096, %v782
        %v1129 = vsel %vm1065, %v1097, %v789
        %v1130 = vsel %vm1066, %v1098, %v796
        %v1131 = vsel %vm1067, %v1099, %v803
        %v1132 = vsel %vm1068, %v1100, %v810
        %v1133 = vsel %vm1069, %v1101, %v817
        %v1134 = vsel %vm1070, %v1102, %v824
        %v1135 = vsel %vm1071, %v1103, %v831
        %v1136 = vsel %vm1072, %v1104, %v838
        %v1137 = vsel %vm1073, %v1105, %v845
        %v1138 = vsel %vm1074, %v1106, %v852
        %v1139 = vsel %vm1075, %v1107, %v859
        %v1140 = vsel %vm1076, %v1108, %v866
        %v1141 = vsel %vm1077, %v1109, %v873
        %v1142 = vsel %vm1078, %v1110, %v880
        %v1143 = vsel %vm1079, %v1111, %v887
        %v1144 = vsel %vm1080, %v1112, %v894
        %v1145 = vsel %vm1081, %v1113, %v901
        %v1146 = vsel %vm1082, %v1114, %v908
        %v1147 = vsel %vm1083, %v1115, %v915
        %v1148 = vsel %vm1084, %v1116, %v922
        %v1149 = vsel %vm1085, %v1117, %v929
        %v1150 = vsel %vm1086, %v1118, %v936
        %v1151 = vsel %vm1087, %v1119, %v943
        %v1152 = vsel %vm1088, %v1120, %v950
        %v1153 = vsel %vm1089, %v1121, %v957
        %v1154 = vsel %vm1090, %v1122, %v964
        %v1155 = vsel %vm1091, %v1123, %v971
        %v1156 = vsel %vm1092, %v1124, %v978
        %v1157 = vsel %vm1093, %v1125, %v985
        %v1158 = vsel %vm1094, %v1126, %v992
        %v1159 = vsel %vm1095, %v1127, %v999
        %vm1160 = vcmp.ge.s32.totalorder %v744, 16
        %vm1161 = vcmp.ge.s32.totalorder %v745, 16
        %vm1162 = vcmp.ge.s32.totalorder %v746, 16
        %vm1163 = vcmp.ge.s32.totalorder %v747, 16
        %vm1164 = vcmp.ge.s32.totalorder %v748, 16
        %vm1165 = vcmp.ge.s32.totalorder %v749, 16
        %vm1166 = vcmp.ge.s32.totalorder %v750, 16
        %vm1167 = vcmp.ge.s32.totalorder %v751, 16
        %vm1168 = vcmp.ge.s32.totalorder %v752, 16
        %vm1169 = vcmp.ge.s32.totalorder %v753, 16
        %vm1170 = vcmp.ge.s32.totalorder %v754, 16
        %vm1171 = vcmp.ge.s32.totalorder %v755, 16
        %vm1172 = vcmp.ge.s32.totalorder %v756, 16
        %vm1173 = vcmp.ge.s32.totalorder %v757, 16
        %vm1174 = vcmp.ge.s32.totalorder %v758, 16
        %vm1175 = vcmp.ge.s32.totalorder %v759, 16
        %vm1176 = vcmp.ge.s32.totalorder %v760, 16
        %vm1177 = vcmp.ge.s32.totalorder %v761, 16
        %vm1178 = vcmp.ge.s32.totalorder %v762, 16
        %vm1179 = vcmp.ge.s32.totalorder %v763, 16
        %vm1180 = vcmp.ge.s32.totalorder %v764, 16
        %vm1181 = vcmp.ge.s32.totalorder %v765, 16
        %vm1182 = vcmp.ge.s32.totalorder %v766, 16
        %vm1183 = vcmp.ge.s32.totalorder %v767, 16
        %vm1184 = vcmp.ge.s32.totalorder %v768, 16
        %vm1185 = vcmp.ge.s32.totalorder %v769, 16
        %vm1186 = vcmp.ge.s32.totalorder %v770, 16
        %vm1187 = vcmp.ge.s32.totalorder %v771, 16
        %vm1188 = vcmp.ge.s32.totalorder %v772, 16
        %vm1189 = vcmp.ge.s32.totalorder %v773, 16
        %vm1190 = vcmp.ge.s32.totalorder %v774, 16
        %vm1191 = vcmp.ge.s32.totalorder %v775, 16
        %vm1192 = vcmp.lt.s32.totalorder %v744, 240
        %vm1193 = vcmp.lt.s32.totalorder %v745, 240
        %vm1194 = vcmp.lt.s32.totalorder %v746, 240
        %vm1195 = vcmp.lt.s32.totalorder %v747, 240
        %vm1196 = vcmp.lt.s32.totalorder %v748, 240
        %vm1197 = vcmp.lt.s32.totalorder %v749, 240
        %vm1198 = vcmp.lt.s32.totalorder %v750, 240
        %vm1199 = vcmp.lt.s32.totalorder %v751, 240
        %vm1200 = vcmp.lt.s32.totalorder %v752, 240
        %vm1201 = vcmp.lt.s32.totalorder %v753, 240
        %vm1202 = vcmp.lt.s32.totalorder %v754, 240
        %vm1203 = vcmp.lt.s32.totalorder %v755, 240
        %vm1204 = vcmp.lt.s32.totalorder %v756, 240
        %vm1205 = vcmp.lt.s32.totalorder %v757, 240
        %vm1206 = vcmp.lt.s32.totalorder %v758, 240
        %vm1207 = vcmp.lt.s32.totalorder %v759, 240
        %vm1208 = vcmp.lt.s32.totalorder %v760, 240
        %vm1209 = vcmp.lt.s32.totalorder %v761, 240
        %vm1210 = vcmp.lt.s32.totalorder %v762, 240
        %vm1211 = vcmp.lt.s32.totalorder %v763, 240
        %vm1212 = vcmp.lt.s32.totalorder %v764, 240
        %vm1213 = vcmp.lt.s32.totalorder %v765, 240
        %vm1214 = vcmp.lt.s32.totalorder %v766, 240
        %vm1215 = vcmp.lt.s32.totalorder %v767, 240
        %vm1216 = vcmp.lt.s32.totalorder %v768, 240
        %vm1217 = vcmp.lt.s32.totalorder %v769, 240
        %vm1218 = vcmp.lt.s32.totalorder %v770, 240
        %vm1219 = vcmp.lt.s32.totalorder %v771, 240
        %vm1220 = vcmp.lt.s32.totalorder %v772, 240
        %vm1221 = vcmp.lt.s32.totalorder %v773, 240
        %vm1222 = vcmp.lt.s32.totalorder %v774, 240
        %vm1223 = vcmp.lt.s32.totalorder %v775, 240
        %vm1224 = vcmp.ne.s32.totalorder %v1128, 0
        %vm1225 = vcmp.ne.s32.totalorder %v1129, 0
        %vm1226 = vcmp.ne.s32.totalorder %v1130, 0
        %vm1227 = vcmp.ne.s32.totalorder %v1131, 0
        %vm1228 = vcmp.ne.s32.totalorder %v1132, 0
        %vm1229 = vcmp.ne.s32.totalorder %v1133, 0
        %vm1230 = vcmp.ne.s32.totalorder %v1134, 0
        %vm1231 = vcmp.ne.s32.totalorder %v1135, 0
        %vm1232 = vcmp.ne.s32.totalorder %v1136, 0
        %vm1233 = vcmp.ne.s32.totalorder %v1137, 0
        %vm1234 = vcmp.ne.s32.totalorder %v1138, 0
        %vm1235 = vcmp.ne.s32.totalorder %v1139, 0
        %vm1236 = vcmp.ne.s32.totalorder %v1140, 0
        %vm1237 = vcmp.ne.s32.totalorder %v1141, 0
        %vm1238 = vcmp.ne.s32.totalorder %v1142, 0
        %vm1239 = vcmp.ne.s32.totalorder %v1143, 0
        %vm1240 = vcmp.ne.s32.totalorder %v1144, 0
        %vm1241 = vcmp.ne.s32.totalorder %v1145, 0
        %vm1242 = vcmp.ne.s32.totalorder %v1146, 0
        %vm1243 = vcmp.ne.s32.totalorder %v1147, 0
        %vm1244 = vcmp.ne.s32.totalorder %v1148, 0
        %vm1245 = vcmp.ne.s32.totalorder %v1149, 0
        %vm1246 = vcmp.ne.s32.totalorder %v1150, 0
        %vm1247 = vcmp.ne.s32.totalorder %v1151, 0
        %vm1248 = vcmp.ne.s32.totalorder %v1152, 0
        %vm1249 = vcmp.ne.s32.totalorder %v1153, 0
        %vm1250 = vcmp.ne.s32.totalorder %v1154, 0
        %vm1251 = vcmp.ne.s32.totalorder %v1155, 0
        %vm1252 = vcmp.ne.s32.totalorder %v1156, 0
        %vm1253 = vcmp.ne.s32.totalorder %v1157, 0
        %vm1254 = vcmp.ne.s32.totalorder %v1158, 0
        %vm1255 = vcmp.ne.s32.totalorder %v1159, 0
        %vm1256 = vcmp.ne.s32.totalorder %v1128, 15
        %vm1257 = vcmp.ne.s32.totalorder %v1129, 15
        %vm1258 = vcmp.ne.s32.totalorder %v1130, 15
        %vm1259 = vcmp.ne.s32.totalorder %v1131, 15
        %vm1260 = vcmp.ne.s32.totalorder %v1132, 15
        %vm1261 = vcmp.ne.s32.totalorder %v1133, 15
        %vm1262 = vcmp.ne.s32.totalorder %v1134, 15
        %vm1263 = vcmp.ne.s32.totalorder %v1135, 15
        %vm1264 = vcmp.ne.s32.totalorder %v1136, 15
        %vm1265 = vcmp.ne.s32.totalorder %v1137, 15
        %vm1266 = vcmp.ne.s32.totalorder %v1138, 15
        %vm1267 = vcmp.ne.s32.totalorder %v1139, 15
        %vm1268 = vcmp.ne.s32.totalorder %v1140, 15
        %vm1269 = vcmp.ne.s32.totalorder %v1141, 15
        %vm1270 = vcmp.ne.s32.totalorder %v1142, 15
        %vm1271 = vcmp.ne.s32.totalorder %v1143, 15
        %vm1272 = vcmp.ne.s32.totalorder %v1144, 15
        %vm1273 = vcmp.ne.s32.totalorder %v1145, 15
        %vm1274 = vcmp.ne.s32.totalorder %v1146, 15
        %vm1275 = vcmp.ne.s32.totalorder %v1147, 15
        %vm1276 = vcmp.ne.s32.totalorder %v1148, 15
        %vm1277 = vcmp.ne.s32.totalorder %v1149, 15
        %vm1278 = vcmp.ne.s32.totalorder %v1150, 15
        %vm1279 = vcmp.ne.s32.totalorder %v1151, 15
        %vm1280 = vcmp.ne.s32.totalorder %v1152, 15
        %vm1281 = vcmp.ne.s32.totalorder %v1153, 15
        %vm1282 = vcmp.ne.s32.totalorder %v1154, 15
        %vm1283 = vcmp.ne.s32.totalorder %v1155, 15
        %vm1284 = vcmp.ne.s32.totalorder %v1156, 15
        %vm1285 = vcmp.ne.s32.totalorder %v1157, 15
        %vm1286 = vcmp.ne.s32.totalorder %v1158, 15
        %vm1287 = vcmp.ne.s32.totalorder %v1159, 15
        %v1288 = vrot.slane %v711, 7
        %v1289 = vrot.slane %v712, 7
        %v1290 = vrot.slane %v713, 7
        %v1291 = vrot.slane %v714, 7
        %v1292 = vrot.slane %v715, 7
        %v1293 = vrot.slane %v716, 7
        %v1294 = vrot.slane %v717, 7
        %v1295 = vrot.slane %v718, 7
        %v1296 = vrot.slane %v719, 7
        %v1297 = vrot.slane %v720, 7
        %v1298 = vrot.slane %v721, 7
        %v1299 = vrot.slane %v722, 7
        %v1300 = vrot.slane %v723, 7
        %v1301 = vrot.slane %v724, 7
        %v1302 = vrot.slane %v725, 7
        %v1303 = vrot.slane %v726, 7
        %v1304 = vrot.slane %v727, 7
        %v1305 = vrot.slane %v728, 7
        %v1306 = vrot.slane %v729, 7
        %v1307 = vrot.slane %v730, 7
        %v1308 = vrot.slane %v731, 7
        %v1309 = vrot.slane %v732, 7
        %v1310 = vrot.slane %v733, 7
        %v1311 = vrot.slane %v734, 7
        %v1312 = vrot.slane %v735, 7
        %v1313 = vrot.slane %v736, 7
        %v1314 = vrot.slane %v737, 7
        %v1315 = vrot.slane %v738, 7
        %v1316 = vrot.slane %v739, 7
        %v1317 = vrot.slane %v740, 7
        %v1318 = vrot.slane %v741, 7
        %v1319 = vrot.slane %v742, 7
        %vm1320 = vcmp.lt.s32.totalorder %v744, 1
        %v1321 = vsel %vm1320, %v1318, %v1319
        %v1322 = vsel %vm1320, %v1317, %v1318
        %v1323 = vsel %vm1320, %v1316, %v1317
        %v1324 = vsel %vm1320, %v1315, %v1316
        %v1325 = vsel %vm1320, %v1314, %v1315
        %v1326 = vsel %vm1320, %v1313, %v1314
        %v1327 = vsel %vm1320, %v1312, %v1313
        %v1328 = vsel %vm1320, %v1311, %v1312
        %v1329 = vsel %vm1320, %v1310, %v1311
        %v1330 = vsel %vm1320, %v1309, %v1310
        %v1331 = vsel %vm1320, %v1308, %v1309
        %v1332 = vsel %vm1320, %v1307, %v1308
        %v1333 = vsel %vm1320, %v1306, %v1307
        %v1334 = vsel %vm1320, %v1305, %v1306
        %v1335 = vsel %vm1320, %v1304, %v1305
        %v1336 = vsel %vm1320, %v1303, %v1304
        %v1337 = vsel %vm1320, %v1302, %v1303
        %v1338 = vsel %vm1320, %v1301, %v1302
        %v1339 = vsel %vm1320, %v1300, %v1301
        %v1340 = vsel %vm1320, %v1299, %v1300
        %v1341 = vsel %vm1320, %v1298, %v1299
        %v1342 = vsel %vm1320, %v1297, %v1298
        %v1343 = vsel %vm1320, %v1296, %v1297
        %v1344 = vsel %vm1320, %v1295, %v1296
        %v1345 = vsel %vm1320, %v1294, %v1295
        %v1346 = vsel %vm1320, %v1293, %v1294
        %v1347 = vsel %vm1320, %v1292, %v1293
        %v1348 = vsel %vm1320, %v1291, %v1292
        %v1349 = vsel %vm1320, %v1290, %v1291
        %v1350 = vsel %vm1320, %v1289, %v1290
        %v1351 = vsel %vm1320, %v1288, %v1289
        %v1352 = vsel %vm1320, %v1319, %v1288
        %vm1353 = vmand %vm1160, %vm1224
        %vm1354 = vmand %vm1161, %vm1225
        %vm1355 = vmand %vm1162, %vm1226
        %vm1356 = vmand %vm1163, %vm1227
        %vm1357 = vmand %vm1164, %vm1228
        %vm1358 = vmand %vm1165, %vm1229
        %vm1359 = vmand %vm1166, %vm1230
        %vm1360 = vmand %vm1167, %vm1231
        %vm1361 = vmand %vm1168, %vm1232
        %vm1362 = vmand %vm1169, %vm1233
        %vm1363 = vmand %vm1170, %vm1234
        %vm1364 = vmand %vm1171, %vm1235
        %vm1365 = vmand %vm1172, %vm1236
        %vm1366 = vmand %vm1173, %vm1237
        %vm1367 = vmand %vm1174, %vm1238
        %vm1368 = vmand %vm1175, %vm1239
        %vm1369 = vmand %vm1176, %vm1240
        %vm1370 = vmand %vm1177, %vm1241
        %vm1371 = vmand %vm1178, %vm1242
        %vm1372 = vmand %vm1179, %vm1243
        %vm1373 = vmand %vm1180, %vm1244
        %vm1374 = vmand %vm1181, %vm1245
        %vm1375 = vmand %vm1182, %vm1246
        %vm1376 = vmand %vm1183, %vm1247
        %vm1377 = vmand %vm1184, %vm1248
        %vm1378 = vmand %vm1185, %vm1249
        %vm1379 = vmand %vm1186, %vm1250
        %vm1380 = vmand %vm1187, %vm1251
        %vm1381 = vmand %vm1188, %vm1252
        %vm1382 = vmand %vm1189, %vm1253
        %vm1383 = vmand %vm1190, %vm1254
        %vm1384 = vmand %vm1191, %vm1255
        %v1385 = vsel %vm1353, 1, 0
        %v1386 = vsel %vm1354, 1, 0
        %v1387 = vsel %vm1355, 1, 0
        %v1388 = vsel %vm1356, 1, 0
        %v1389 = vsel %vm1357, 1, 0
        %v1390 = vsel %vm1358, 1, 0
        %v1391 = vsel %vm1359, 1, 0
        %v1392 = vsel %vm1360, 1, 0
        %v1393 = vsel %vm1361, 1, 0
        %v1394 = vsel %vm1362, 1, 0
        %v1395 = vsel %vm1363, 1, 0
        %v1396 = vsel %vm1364, 1, 0
        %v1397 = vsel %vm1365, 1, 0
        %v1398 = vsel %vm1366, 1, 0
        %v1399 = vsel %vm1367, 1, 0
        %v1400 = vsel %vm1368, 1, 0
        %v1401 = vsel %vm1369, 1, 0
        %v1402 = vsel %vm1370, 1, 0
        %v1403 = vsel %vm1371, 1, 0
        %v1404 = vsel %vm1372, 1, 0
        %v1405 = vsel %vm1373, 1, 0
        %v1406 = vsel %vm1374, 1, 0
        %v1407 = vsel %vm1375, 1, 0
        %v1408 = vsel %vm1376, 1, 0
        %v1409 = vsel %vm1377, 1, 0
        %v1410 = vsel %vm1378, 1, 0
        %v1411 = vsel %vm1379, 1, 0
        %v1412 = vsel %vm1380, 1, 0
        %v1413 = vsel %vm1381, 1, 0
        %v1414 = vsel %vm1382, 1, 0
        %v1415 = vsel %vm1383, 1, 0
        %v1416 = vsel %vm1384, 1, 0
        %vm1417 = vcmp.eq.s32.totalorder %v1385, 1
        %vm1418 = vcmp.eq.s32.totalorder %v1386, 1
        %vm1419 = vcmp.eq.s32.totalorder %v1387, 1
        %vm1420 = vcmp.eq.s32.totalorder %v1388, 1
        %vm1421 = vcmp.eq.s32.totalorder %v1389, 1
        %vm1422 = vcmp.eq.s32.totalorder %v1390, 1
        %vm1423 = vcmp.eq.s32.totalorder %v1391, 1
        %vm1424 = vcmp.eq.s32.totalorder %v1392, 1
        %vm1425 = vcmp.eq.s32.totalorder %v1393, 1
        %vm1426 = vcmp.eq.s32.totalorder %v1394, 1
        %vm1427 = vcmp.eq.s32.totalorder %v1395, 1
        %vm1428 = vcmp.eq.s32.totalorder %v1396, 1
        %vm1429 = vcmp.eq.s32.totalorder %v1397, 1
        %vm1430 = vcmp.eq.s32.totalorder %v1398, 1
        %vm1431 = vcmp.eq.s32.totalorder %v1399, 1
        %vm1432 = vcmp.eq.s32.totalorder %v1400, 1
        %vm1433 = vcmp.eq.s32.totalorder %v1401, 1
        %vm1434 = vcmp.eq.s32.totalorder %v1402, 1
        %vm1435 = vcmp.eq.s32.totalorder %v1403, 1
        %vm1436 = vcmp.eq.s32.totalorder %v1404, 1
        %vm1437 = vcmp.eq.s32.totalorder %v1405, 1
        %vm1438 = vcmp.eq.s32.totalorder %v1406, 1
        %vm1439 = vcmp.eq.s32.totalorder %v1407, 1
        %vm1440 = vcmp.eq.s32.totalorder %v1408, 1
        %vm1441 = vcmp.eq.s32.totalorder %v1409, 1
        %vm1442 = vcmp.eq.s32.totalorder %v1410, 1
        %vm1443 = vcmp.eq.s32.totalorder %v1411, 1
        %vm1444 = vcmp.eq.s32.totalorder %v1412, 1
        %vm1445 = vcmp.eq.s32.totalorder %v1413, 1
        %vm1446 = vcmp.eq.s32.totalorder %v1414, 1
        %vm1447 = vcmp.eq.s32.totalorder %v1415, 1
        %vm1448 = vcmp.eq.s32.totalorder %v1416, 1
        %v1449 = vsel %vm1417, %v1322, 0.0
        %v1450 = vsel %vm1418, %v1321, 0.0
        %v1451 = vsel %vm1419, %v1352, 0.0
        %v1452 = vsel %vm1420, %v1351, 0.0
        %v1453 = vsel %vm1421, %v1350, 0.0
        %v1454 = vsel %vm1422, %v1349, 0.0
        %v1455 = vsel %vm1423, %v1348, 0.0
        %v1456 = vsel %vm1424, %v1347, 0.0
        %v1457 = vsel %vm1425, %v1346, 0.0
        %v1458 = vsel %vm1426, %v1345, 0.0
        %v1459 = vsel %vm1427, %v1344, 0.0
        %v1460 = vsel %vm1428, %v1343, 0.0
        %v1461 = vsel %vm1429, %v1342, 0.0
        %v1462 = vsel %vm1430, %v1341, 0.0
        %v1463 = vsel %vm1431, %v1340, 0.0
        %v1464 = vsel %vm1432, %v1339, 0.0
        %v1465 = vsel %vm1433, %v1338, 0.0
        %v1466 = vsel %vm1434, %v1337, 0.0
        %v1467 = vsel %vm1435, %v1336, 0.0
        %v1468 = vsel %vm1436, %v1335, 0.0
        %v1469 = vsel %vm1437, %v1334, 0.0
        %v1470 = vsel %vm1438, %v1333, 0.0
        %v1471 = vsel %vm1439, %v1332, 0.0
        %v1472 = vsel %vm1440, %v1331, 0.0
        %v1473 = vsel %vm1441, %v1330, 0.0
        %v1474 = vsel %vm1442, %v1329, 0.0
        %v1475 = vsel %vm1443, %v1328, 0.0
        %v1476 = vsel %vm1444, %v1327, 0.0
        %v1477 = vsel %vm1445, %v1326, 0.0
        %v1478 = vsel %vm1446, %v1325, 0.0
        %v1479 = vsel %vm1447, %v1324, 0.0
        %v1480 = vsel %vm1448, %v1323, 0.0
        %v1481 = vpack.c.bf16 %v1450, %v1449
        %v1482 = vpack.c.bf16 %v1452, %v1451
        %v1483 = vpack.c.bf16 %v1454, %v1453
        %v1484 = vpack.c.bf16 %v1456, %v1455
        %v1485 = vpack.c.bf16 %v1458, %v1457
        %v1486 = vpack.c.bf16 %v1460, %v1459
        %v1487 = vpack.c.bf16 %v1462, %v1461
        %v1488 = vpack.c.bf16 %v1464, %v1463
        %v1489 = vpack.c.bf16 %v1466, %v1465
        %v1490 = vpack.c.bf16 %v1468, %v1467
        %v1491 = vpack.c.bf16 %v1470, %v1469
        %v1492 = vpack.c.bf16 %v1472, %v1471
        %v1493 = vpack.c.bf16 %v1474, %v1473
        %v1494 = vpack.c.bf16 %v1476, %v1475
        %v1495 = vpack.c.bf16 %v1478, %v1477
        %v1496 = vpack.c.bf16 %v1480, %v1479
        %v1513 = vunpack.c.l.b16 %v1481
        %v1514 = vunpack.c.h.b16 %v1481
        %v1515 = vunpack.c.l.b16 %v1482
        %v1516 = vunpack.c.h.b16 %v1482
        %v1517 = vunpack.c.l.b16 %v1483
        %v1518 = vunpack.c.h.b16 %v1483
        %v1519 = vunpack.c.l.b16 %v1484
        %v1520 = vunpack.c.h.b16 %v1484
        %v1521 = vunpack.c.l.b16 %v1485
        %v1522 = vunpack.c.h.b16 %v1485
        %v1523 = vunpack.c.l.b16 %v1486
        %v1524 = vunpack.c.h.b16 %v1486
        %v1525 = vunpack.c.l.b16 %v1487
        %v1526 = vunpack.c.h.b16 %v1487
        %v1527 = vunpack.c.l.b16 %v1488
        %v1528 = vunpack.c.h.b16 %v1488
        %v1529 = vunpack.c.l.b16 %v1489
        %v1530 = vunpack.c.h.b16 %v1489
        %v1531 = vunpack.c.l.b16 %v1490
        %v1532 = vunpack.c.h.b16 %v1490
        %v1533 = vunpack.c.l.b16 %v1491
        %v1534 = vunpack.c.h.b16 %v1491
        %v1535 = vunpack.c.l.b16 %v1492
        %v1536 = vunpack.c.h.b16 %v1492
        %v1537 = vunpack.c.l.b16 %v1493
        %v1538 = vunpack.c.h.b16 %v1493
        %v1539 = vunpack.c.l.b16 %v1494
        %v1540 = vunpack.c.h.b16 %v1494
        %v1541 = vunpack.c.l.b16 %v1495
        %v1542 = vunpack.c.h.b16 %v1495
        %v1543 = vunpack.c.l.b16 %v1496
        %v1544 = vunpack.c.h.b16 %v1496
        %v1545 = vpack.c.b16 %v1513, %v1513
        %v1546 = vpack.c.b16 %v1514, %v1514
        %v1547 = vpack.c.b16 %v1515, %v1515
        %v1548 = vpack.c.b16 %v1516, %v1516
        %v1549 = vpack.c.b16 %v1517, %v1517
        %v1550 = vpack.c.b16 %v1518, %v1518
        %v1551 = vpack.c.b16 %v1519, %v1519
        %v1552 = vpack.c.b16 %v1520, %v1520
        %v1553 = vpack.c.b16 %v1521, %v1521
        %v1554 = vpack.c.b16 %v1522, %v1522
        %v1555 = vpack.c.b16 %v1523, %v1523
        %v1556 = vpack.c.b16 %v1524, %v1524
        %v1557 = vpack.c.b16 %v1525, %v1525
        %v1558 = vpack.c.b16 %v1526, %v1526
        %v1559 = vpack.c.b16 %v1527, %v1527
        %v1560 = vpack.c.b16 %v1528, %v1528
        %v1561 = vpack.c.b16 %v1529, %v1529
        %v1562 = vpack.c.b16 %v1530, %v1530
        %v1563 = vpack.c.b16 %v1531, %v1531
        %v1564 = vpack.c.b16 %v1532, %v1532
        %v1565 = vpack.c.b16 %v1533, %v1533
        %v1566 = vpack.c.b16 %v1534, %v1534
        %v1567 = vpack.c.b16 %v1535, %v1535
        %v1568 = vpack.c.b16 %v1536, %v1536
        %v1569 = vpack.c.b16 %v1537, %v1537
        %v1570 = vpack.c.b16 %v1538, %v1538
        %v1571 = vpack.c.b16 %v1539, %v1539
        %v1572 = vpack.c.b16 %v1540, %v1540
        %v1573 = vpack.c.b16 %v1541, %v1541
        %v1574 = vpack.c.b16 %v1542, %v1542
        %v1575 = vpack.c.b16 %v1543, %v1543
        %v1576 = vpack.c.b16 %v1544, %v1544
        %1609 = vst [vmem:[#allocation2] sm:$0xf] %v1545
        %1610 = vst [vmem:[#allocation2 + $0x24] sm:$0xf] %v1546
        %1611 = vst [vmem:[#allocation2 + $0x48] sm:$0xf] %v1547
        %1612 = vst [vmem:[#allocation2 + $0x6c] sm:$0xf] %v1548
        %1613 = vst [vmem:[#allocation2 + $0x90] sm:$0xf] %v1549
        %1614 = vst [vmem:[#allocation2 + $0xb4] sm:$0xf] %v1550
        %1615 = vst [vmem:[#allocation2 + $0xd8] sm:$0xf] %v1551
        %1616 = vst [vmem:[#allocation2 + $0xfc] sm:$0xf] %v1552
        %1617 = vst [vmem:[#allocation2 + $0x120] sm:$0xf] %v1553
        %1618 = vst [vmem:[#allocation2 + $0x144] sm:$0xf] %v1554
        %1619 = vst [vmem:[#allocation2 + $0x168] sm:$0xf] %v1555
        %1620 = vst [vmem:[#allocation2 + $0x18c] sm:$0xf] %v1556
        %1621 = vst [vmem:[#allocation2 + $0x1b0] sm:$0xf] %v1557
        %1622 = vst [vmem:[#allocation2 + $0x1d4] sm:$0xf] %v1558
        %1623 = vst [vmem:[#allocation2 + $0x1f8] sm:$0xf] %v1559
        %1624 = vst [vmem:[#allocation2 + $0x21c] sm:$0xf] %v1560
        %1625 = vst [vmem:[#allocation2 + $0x240] sm:$0xf] %v1561
        %1626 = vst [vmem:[#allocation2 + $0x264] sm:$0xf] %v1562
        %1627 = vst [vmem:[#allocation2 + $0x288] sm:$0xf] %v1563
        %1628 = vst [vmem:[#allocation2 + $0x2ac] sm:$0xf] %v1564
        %1629 = vst [vmem:[#allocation2 + $0x2d0] sm:$0xf] %v1565
        %1630 = vst [vmem:[#allocation2 + $0x2f4] sm:$0xf] %v1566
        %1631 = vst [vmem:[#allocation2 + $0x318] sm:$0xf] %v1567
        %1632 = vst [vmem:[#allocation2 + $0x33c] sm:$0xf] %v1568
        %1633 = vst [vmem:[#allocation2 + $0x360] sm:$0xf] %v1569
        %1634 = vst [vmem:[#allocation2 + $0x384] sm:$0xf] %v1570
        %1635 = vst [vmem:[#allocation2 + $0x3a8] sm:$0xf] %v1571
        %1636 = vst [vmem:[#allocation2 + $0x3cc] sm:$0xf] %v1572
        %1637 = vst [vmem:[#allocation2 + $0x3f0] sm:$0xf] %v1573
        %1638 = vst [vmem:[#allocation2 + $0x414] sm:$0xf] %v1574
        %1639 = vst [vmem:[#allocation2 + $0x438] sm:$0xf] %v1575
        %1640 = vst [vmem:[#allocation2 + $0x45c] sm:$0xf] %v1576
        %v1641 = vsel %vm1160, 1, 0
        %v1642 = vsel %vm1161, 1, 0
        %v1643 = vsel %vm1162, 1, 0
        %v1644 = vsel %vm1163, 1, 0
        %v1645 = vsel %vm1164, 1, 0
        %v1646 = vsel %vm1165, 1, 0
        %v1647 = vsel %vm1166, 1, 0
        %v1648 = vsel %vm1167, 1, 0
        %v1649 = vsel %vm1168, 1, 0
        %v1650 = vsel %vm1169, 1, 0
        %v1651 = vsel %vm1170, 1, 0
        %v1652 = vsel %vm1171, 1, 0
        %v1653 = vsel %vm1172, 1, 0
        %v1654 = vsel %vm1173, 1, 0
        %v1655 = vsel %vm1174, 1, 0
        %v1656 = vsel %vm1175, 1, 0
        %v1657 = vsel %vm1176, 1, 0
        %v1658 = vsel %vm1177, 1, 0
        %v1659 = vsel %vm1178, 1, 0
        %v1660 = vsel %vm1179, 1, 0
        %v1661 = vsel %vm1180, 1, 0
        %v1662 = vsel %vm1181, 1, 0
        %v1663 = vsel %vm1182, 1, 0
        %v1664 = vsel %vm1183, 1, 0
        %v1665 = vsel %vm1184, 1, 0
        %v1666 = vsel %vm1185, 1, 0
        %v1667 = vsel %vm1186, 1, 0
        %v1668 = vsel %vm1187, 1, 0
        %v1669 = vsel %vm1188, 1, 0
        %v1670 = vsel %vm1189, 1, 0
        %v1671 = vsel %vm1190, 1, 0
        %v1672 = vsel %vm1191, 1, 0
        %vm1673 = vcmp.eq.s32.totalorder %v1641, 1
        %vm1674 = vcmp.eq.s32.totalorder %v1642, 1
        %vm1675 = vcmp.eq.s32.totalorder %v1643, 1
        %vm1676 = vcmp.eq.s32.totalorder %v1644, 1
        %vm1677 = vcmp.eq.s32.totalorder %v1645, 1
        %vm1678 = vcmp.eq.s32.totalorder %v1646, 1
        %vm1679 = vcmp.eq.s32.totalorder %v1647, 1
        %vm1680 = vcmp.eq.s32.totalorder %v1648, 1
        %vm1681 = vcmp.eq.s32.totalorder %v1649, 1
        %vm1682 = vcmp.eq.s32.totalorder %v1650, 1
        %vm1683 = vcmp.eq.s32.totalorder %v1651, 1
        %vm1684 = vcmp.eq.s32.totalorder %v1652, 1
        %vm1685 = vcmp.eq.s32.totalorder %v1653, 1
        %vm1686 = vcmp.eq.s32.totalorder %v1654, 1
        %vm1687 = vcmp.eq.s32.totalorder %v1655, 1
        %vm1688 = vcmp.eq.s32.totalorder %v1656, 1
        %vm1689 = vcmp.eq.s32.totalorder %v1657, 1
        %vm1690 = vcmp.eq.s32.totalorder %v1658, 1
        %vm1691 = vcmp.eq.s32.totalorder %v1659, 1
        %vm1692 = vcmp.eq.s32.totalorder %v1660, 1
        %vm1693 = vcmp.eq.s32.totalorder %v1661, 1
        %vm1694 = vcmp.eq.s32.totalorder %v1662, 1
        %vm1695 = vcmp.eq.s32.totalorder %v1663, 1
        %vm1696 = vcmp.eq.s32.totalorder %v1664, 1
        %vm1697 = vcmp.eq.s32.totalorder %v1665, 1
        %vm1698 = vcmp.eq.s32.totalorder %v1666, 1
        %vm1699 = vcmp.eq.s32.totalorder %v1667, 1
        %vm1700 = vcmp.eq.s32.totalorder %v1668, 1
        %vm1701 = vcmp.eq.s32.totalorder %v1669, 1
        %vm1702 = vcmp.eq.s32.totalorder %v1670, 1
        %vm1703 = vcmp.eq.s32.totalorder %v1671, 1
        %vm1704 = vcmp.eq.s32.totalorder %v1672, 1
        %v1705 = vsel %vm1673, %v741, 0.0
        %v1706 = vsel %vm1674, %v742, 0.0
        %v1707 = vsel %vm1675, %v711, 0.0
        %v1708 = vsel %vm1676, %v712, 0.0
        %v1709 = vsel %vm1677, %v713, 0.0
        %v1710 = vsel %vm1678, %v714, 0.0
        %v1711 = vsel %vm1679, %v715, 0.0
        %v1712 = vsel %vm1680, %v716, 0.0
        %v1713 = vsel %vm1681, %v717, 0.0
        %v1714 = vsel %vm1682, %v718, 0.0
        %v1715 = vsel %vm1683, %v719, 0.0
        %v1716 = vsel %vm1684, %v720, 0.0
        %v1717 = vsel %vm1685, %v721, 0.0
        %v1718 = vsel %vm1686, %v722, 0.0
        %v1719 = vsel %vm1687, %v723, 0.0
        %v1720 = vsel %vm1688, %v724, 0.0
        %v1721 = vsel %vm1689, %v725, 0.0
        %v1722 = vsel %vm1690, %v726, 0.0
        %v1723 = vsel %vm1691, %v727, 0.0
        %v1724 = vsel %vm1692, %v728, 0.0
        %v1725 = vsel %vm1693, %v729, 0.0
        %v1726 = vsel %vm1694, %v730, 0.0
        %v1727 = vsel %vm1695, %v731, 0.0
        %v1728 = vsel %vm1696, %v732, 0.0
        %v1729 = vsel %vm1697, %v733, 0.0
        %v1730 = vsel %vm1698, %v734, 0.0
        %v1731 = vsel %vm1699, %v735, 0.0
        %v1732 = vsel %vm1700, %v736, 0.0
        %v1733 = vsel %vm1701, %v737, 0.0
        %v1734 = vsel %vm1702, %v738, 0.0
        %v1735 = vsel %vm1703, %v739, 0.0
        %v1736 = vsel %vm1704, %v740, 0.0
        %v1737 = vpack.c.bf16 %v1706, %v1705
        %v1738 = vpack.c.bf16 %v1708, %v1707
        %v1739 = vpack.c.bf16 %v1710, %v1709
        %v1740 = vpack.c.bf16 %v1712, %v1711
        %v1741 = vpack.c.bf16 %v1714, %v1713
        %v1742 = vpack.c.bf16 %v1716, %v1715
        %v1743 = vpack.c.bf16 %v1718, %v1717
        %v1744 = vpack.c.bf16 %v1720, %v1719
        %v1745 = vpack.c.bf16 %v1722, %v1721
        %v1746 = vpack.c.bf16 %v1724, %v1723
        %v1747 = vpack.c.bf16 %v1726, %v1725
        %v1748 = vpack.c.bf16 %v1728, %v1727
        %v1749 = vpack.c.bf16 %v1730, %v1729
        %v1750 = vpack.c.bf16 %v1732, %v1731
        %v1751 = vpack.c.bf16 %v1734, %v1733
        %v1752 = vpack.c.bf16 %v1736, %v1735
        %v1769 = vunpack.c.l.b16 %v1737
        %v1770 = vunpack.c.h.b16 %v1737
        %v1771 = vunpack.c.l.b16 %v1738
        %v1772 = vunpack.c.h.b16 %v1738
        %v1773 = vunpack.c.l.b16 %v1739
        %v1774 = vunpack.c.h.b16 %v1739
        %v1775 = vunpack.c.l.b16 %v1740
        %v1776 = vunpack.c.h.b16 %v1740
        %v1777 = vunpack.c.l.b16 %v1741
        %v1778 = vunpack.c.h.b16 %v1741
        %v1779 = vunpack.c.l.b16 %v1742
        %v1780 = vunpack.c.h.b16 %v1742
        %v1781 = vunpack.c.l.b16 %v1743
        %v1782 = vunpack.c.h.b16 %v1743
        %v1783 = vunpack.c.l.b16 %v1744
        %v1784 = vunpack.c.h.b16 %v1744
        %v1785 = vunpack.c.l.b16 %v1745
        %v1786 = vunpack.c.h.b16 %v1745
        %v1787 = vunpack.c.l.b16 %v1746
        %v1788 = vunpack.c.h.b16 %v1746
        %v1789 = vunpack.c.l.b16 %v1747
        %v1790 = vunpack.c.h.b16 %v1747
        %v1791 = vunpack.c.l.b16 %v1748
        %v1792 = vunpack.c.h.b16 %v1748
        %v1793 = vunpack.c.l.b16 %v1749
        %v1794 = vunpack.c.h.b16 %v1749
        %v1795 = vunpack.c.l.b16 %v1750
        %v1796 = vunpack.c.h.b16 %v1750
        %v1797 = vunpack.c.l.b16 %v1751
        %v1798 = vunpack.c.h.b16 %v1751
        %v1799 = vunpack.c.l.b16 %v1752
        %v1800 = vunpack.c.h.b16 %v1752
        %v1801 = vpack.c.b16 %v1769, %v1769
        %v1802 = vpack.c.b16 %v1770, %v1770
        %v1803 = vpack.c.b16 %v1771, %v1771
        %v1804 = vpack.c.b16 %v1772, %v1772
        %v1805 = vpack.c.b16 %v1773, %v1773
        %v1806 = vpack.c.b16 %v1774, %v1774
        %v1807 = vpack.c.b16 %v1775, %v1775
        %v1808 = vpack.c.b16 %v1776, %v1776
        %v1809 = vpack.c.b16 %v1777, %v1777
        %v1810 = vpack.c.b16 %v1778, %v1778
        %v1811 = vpack.c.b16 %v1779, %v1779
        %v1812 = vpack.c.b16 %v1780, %v1780
        %v1813 = vpack.c.b16 %v1781, %v1781
        %v1814 = vpack.c.b16 %v1782, %v1782
        %v1815 = vpack.c.b16 %v1783, %v1783
        %v1816 = vpack.c.b16 %v1784, %v1784
        %v1817 = vpack.c.b16 %v1785, %v1785
        %v1818 = vpack.c.b16 %v1786, %v1786
        %v1819 = vpack.c.b16 %v1787, %v1787
        %v1820 = vpack.c.b16 %v1788, %v1788
        %v1821 = vpack.c.b16 %v1789, %v1789
        %v1822 = vpack.c.b16 %v1790, %v1790
        %v1823 = vpack.c.b16 %v1791, %v1791
        %v1824 = vpack.c.b16 %v1792, %v1792
        %v1825 = vpack.c.b16 %v1793, %v1793
        %v1826 = vpack.c.b16 %v1794, %v1794
        %v1827 = vpack.c.b16 %v1795, %v1795
        %v1828 = vpack.c.b16 %v1796, %v1796
        %v1829 = vpack.c.b16 %v1797, %v1797
        %v1830 = vpack.c.b16 %v1798, %v1798
        %v1831 = vpack.c.b16 %v1799, %v1799
        %v1832 = vpack.c.b16 %v1800, %v1800
        %1865 = vst [vmem:[#allocation2 + $0x4] sm:$0xf] %v1801
        %1866 = vst [vmem:[#allocation2 + $0x28] sm:$0xf] %v1802
        %1867 = vst [vmem:[#allocation2 + $0x4c] sm:$0xf] %v1803
        %1868 = vst [vmem:[#allocation2 + $0x70] sm:$0xf] %v1804
        %1869 = vst [vmem:[#allocation2 + $0x94] sm:$0xf] %v1805
        %1870 = vst [vmem:[#allocation2 + $0xb8] sm:$0xf] %v1806
        %1871 = vst [vmem:[#allocation2 + $0xdc] sm:$0xf] %v1807
        %1872 = vst [vmem:[#allocation2 + $0x100] sm:$0xf] %v1808
        %1873 = vst [vmem:[#allocation2 + $0x124] sm:$0xf] %v1809
        %1874 = vst [vmem:[#allocation2 + $0x148] sm:$0xf] %v1810
        %1875 = vst [vmem:[#allocation2 + $0x16c] sm:$0xf] %v1811
        %1876 = vst [vmem:[#allocation2 + $0x190] sm:$0xf] %v1812
        %1877 = vst [vmem:[#allocation2 + $0x1b4] sm:$0xf] %v1813
        %1878 = vst [vmem:[#allocation2 + $0x1d8] sm:$0xf] %v1814
        %1879 = vst [vmem:[#allocation2 + $0x1fc] sm:$0xf] %v1815
        %1880 = vst [vmem:[#allocation2 + $0x220] sm:$0xf] %v1816
        %1881 = vst [vmem:[#allocation2 + $0x244] sm:$0xf] %v1817
        %1882 = vst [vmem:[#allocation2 + $0x268] sm:$0xf] %v1818
        %1883 = vst [vmem:[#allocation2 + $0x28c] sm:$0xf] %v1819
        %1884 = vst [vmem:[#allocation2 + $0x2b0] sm:$0xf] %v1820
        %1885 = vst [vmem:[#allocation2 + $0x2d4] sm:$0xf] %v1821
        %1886 = vst [vmem:[#allocation2 + $0x2f8] sm:$0xf] %v1822
        %1887 = vst [vmem:[#allocation2 + $0x31c] sm:$0xf] %v1823
        %1888 = vst [vmem:[#allocation2 + $0x340] sm:$0xf] %v1824
        %1889 = vst [vmem:[#allocation2 + $0x364] sm:$0xf] %v1825
        %1890 = vst [vmem:[#allocation2 + $0x388] sm:$0xf] %v1826
        %1891 = vst [vmem:[#allocation2 + $0x3ac] sm:$0xf] %v1827
        %1892 = vst [vmem:[#allocation2 + $0x3d0] sm:$0xf] %v1828
        %1893 = vst [vmem:[#allocation2 + $0x3f4] sm:$0xf] %v1829
        %1894 = vst [vmem:[#allocation2 + $0x418] sm:$0xf] %v1830
        %1895 = vst [vmem:[#allocation2 + $0x43c] sm:$0xf] %v1831
        %1896 = vst [vmem:[#allocation2 + $0x460] sm:$0xf] %v1832
        %v1897 = vrot.slane %v711, 1
        %v1898 = vrot.slane %v712, 1
        %v1899 = vrot.slane %v713, 1
        %v1900 = vrot.slane %v714, 1
        %v1901 = vrot.slane %v715, 1
        %v1902 = vrot.slane %v716, 1
        %v1903 = vrot.slane %v717, 1
        %v1904 = vrot.slane %v718, 1
        %v1905 = vrot.slane %v719, 1
        %v1906 = vrot.slane %v720, 1
        %v1907 = vrot.slane %v721, 1
        %v1908 = vrot.slane %v722, 1
        %v1909 = vrot.slane %v723, 1
        %v1910 = vrot.slane %v724, 1
        %v1911 = vrot.slane %v725, 1
        %v1912 = vrot.slane %v726, 1
        %v1913 = vrot.slane %v727, 1
        %v1914 = vrot.slane %v728, 1
        %v1915 = vrot.slane %v729, 1
        %v1916 = vrot.slane %v730, 1
        %v1917 = vrot.slane %v731, 1
        %v1918 = vrot.slane %v732, 1
        %v1919 = vrot.slane %v733, 1
        %v1920 = vrot.slane %v734, 1
        %v1921 = vrot.slane %v735, 1
        %v1922 = vrot.slane %v736, 1
        %v1923 = vrot.slane %v737, 1
        %v1924 = vrot.slane %v738, 1
        %v1925 = vrot.slane %v739, 1
        %v1926 = vrot.slane %v740, 1
        %v1927 = vrot.slane %v741, 1
        %v1928 = vrot.slane %v742, 1
        %vm1929 = vcmp.lt.s32.totalorder %v744, 7
        %v1930 = vsel %vm1929, %v1927, %v1928
        %v1931 = vsel %vm1929, %v1926, %v1927
        %v1932 = vsel %vm1929, %v1925, %v1926
        %v1933 = vsel %vm1929, %v1924, %v1925
        %v1934 = vsel %vm1929, %v1923, %v1924
        %v1935 = vsel %vm1929, %v1922, %v1923
        %v1936 = vsel %vm1929, %v1921, %v1922
        %v1937 = vsel %vm1929, %v1920, %v1921
        %v1938 = vsel %vm1929, %v1919, %v1920
        %v1939 = vsel %vm1929, %v1918, %v1919
        %v1940 = vsel %vm1929, %v1917, %v1918
        %v1941 = vsel %vm1929, %v1916, %v1917
        %v1942 = vsel %vm1929, %v1915, %v1916
        %v1943 = vsel %vm1929, %v1914, %v1915
        %v1944 = vsel %vm1929, %v1913, %v1914
        %v1945 = vsel %vm1929, %v1912, %v1913
        %v1946 = vsel %vm1929, %v1911, %v1912
        %v1947 = vsel %vm1929, %v1910, %v1911
        %v1948 = vsel %vm1929, %v1909, %v1910
        %v1949 = vsel %vm1929, %v1908, %v1909
        %v1950 = vsel %vm1929, %v1907, %v1908
        %v1951 = vsel %vm1929, %v1906, %v1907
        %v1952 = vsel %vm1929, %v1905, %v1906
        %v1953 = vsel %vm1929, %v1904, %v1905
        %v1954 = vsel %vm1929, %v1903, %v1904
        %v1955 = vsel %vm1929, %v1902, %v1903
        %v1956 = vsel %vm1929, %v1901, %v1902
        %v1957 = vsel %vm1929, %v1900, %v1901
        %v1958 = vsel %vm1929, %v1899, %v1900
        %v1959 = vsel %vm1929, %v1898, %v1899
        %v1960 = vsel %vm1929, %v1897, %v1898
        %v1961 = vsel %vm1929, %v1928, %v1897
        %vm1962 = vmand %vm1160, %vm1256
        %vm1963 = vmand %vm1161, %vm1257
        %vm1964 = vmand %vm1162, %vm1258
        %vm1965 = vmand %vm1163, %vm1259
        %vm1966 = vmand %vm1164, %vm1260
        %vm1967 = vmand %vm1165, %vm1261
        %vm1968 = vmand %vm1166, %vm1262
        %vm1969 = vmand %vm1167, %vm1263
        %vm1970 = vmand %vm1168, %vm1264
        %vm1971 = vmand %vm1169, %vm1265
        %vm1972 = vmand %vm1170, %vm1266
        %vm1973 = vmand %vm1171, %vm1267
        %vm1974 = vmand %vm1172, %vm1268
        %vm1975 = vmand %vm1173, %vm1269
        %vm1976 = vmand %vm1174, %vm1270
        %vm1977 = vmand %vm1175, %vm1271
        %vm1978 = vmand %vm1176, %vm1272
        %vm1979 = vmand %vm1177, %vm1273
        %vm1980 = vmand %vm1178, %vm1274
        %vm1981 = vmand %vm1179, %vm1275
        %vm1982 = vmand %vm1180, %vm1276
        %vm1983 = vmand %vm1181, %vm1277
        %vm1984 = vmand %vm1182, %vm1278
        %vm1985 = vmand %vm1183, %vm1279
        %vm1986 = vmand %vm1184, %vm1280
        %vm1987 = vmand %vm1185, %vm1281
        %vm1988 = vmand %vm1186, %vm1282
        %vm1989 = vmand %vm1187, %vm1283
        %vm1990 = vmand %vm1188, %vm1284
        %vm1991 = vmand %vm1189, %vm1285
        %vm1992 = vmand %vm1190, %vm1286
        %vm1993 = vmand %vm1191, %vm1287
        %v1994 = vsel %vm1962, 1, 0
        %v1995 = vsel %vm1963, 1, 0
        %v1996 = vsel %vm1964, 1, 0
        %v1997 = vsel %vm1965, 1, 0
        %v1998 = vsel %vm1966, 1, 0
        %v1999 = vsel %vm1967, 1, 0
        %v2000 = vsel %vm1968, 1, 0
        %v2001 = vsel %vm1969, 1, 0
        %v2002 = vsel %vm1970, 1, 0
        %v2003 = vsel %vm1971, 1, 0
        %v2004 = vsel %vm1972, 1, 0
        %v2005 = vsel %vm1973, 1, 0
        %v2006 = vsel %vm1974, 1, 0
        %v2007 = vsel %vm1975, 1, 0
        %v2008 = vsel %vm1976, 1, 0
        %v2009 = vsel %vm1977, 1, 0
        %v2010 = vsel %vm1978, 1, 0
        %v2011 = vsel %vm1979, 1, 0
        %v2012 = vsel %vm1980, 1, 0
        %v2013 = vsel %vm1981, 1, 0
        %v2014 = vsel %vm1982, 1, 0
        %v2015 = vsel %vm1983, 1, 0
        %v2016 = vsel %vm1984, 1, 0
        %v2017 = vsel %vm1985, 1, 0
        %v2018 = vsel %vm1986, 1, 0
        %v2019 = vsel %vm1987, 1, 0
        %v2020 = vsel %vm1988, 1, 0
        %v2021 = vsel %vm1989, 1, 0
        %v2022 = vsel %vm1990, 1, 0
        %v2023 = vsel %vm1991, 1, 0
        %v2024 = vsel %vm1992, 1, 0
        %v2025 = vsel %vm1993, 1, 0
        %vm2026 = vcmp.eq.s32.totalorder %v1994, 1
        %vm2027 = vcmp.eq.s32.totalorder %v1995, 1
        %vm2028 = vcmp.eq.s32.totalorder %v1996, 1
        %vm2029 = vcmp.eq.s32.totalorder %v1997, 1
        %vm2030 = vcmp.eq.s32.totalorder %v1998, 1
        %vm2031 = vcmp.eq.s32.totalorder %v1999, 1
        %vm2032 = vcmp.eq.s32.totalorder %v2000, 1
        %vm2033 = vcmp.eq.s32.totalorder %v2001, 1
        %vm2034 = vcmp.eq.s32.totalorder %v2002, 1
        %vm2035 = vcmp.eq.s32.totalorder %v2003, 1
        %vm2036 = vcmp.eq.s32.totalorder %v2004, 1
        %vm2037 = vcmp.eq.s32.totalorder %v2005, 1
        %vm2038 = vcmp.eq.s32.totalorder %v2006, 1
        %vm2039 = vcmp.eq.s32.totalorder %v2007, 1
        %vm2040 = vcmp.eq.s32.totalorder %v2008, 1
        %vm2041 = vcmp.eq.s32.totalorder %v2009, 1
        %vm2042 = vcmp.eq.s32.totalorder %v2010, 1
        %vm2043 = vcmp.eq.s32.totalorder %v2011, 1
        %vm2044 = vcmp.eq.s32.totalorder %v2012, 1
        %vm2045 = vcmp.eq.s32.totalorder %v2013, 1
        %vm2046 = vcmp.eq.s32.totalorder %v2014, 1
        %vm2047 = vcmp.eq.s32.totalorder %v2015, 1
        %vm2048 = vcmp.eq.s32.totalorder %v2016, 1
        %vm2049 = vcmp.eq.s32.totalorder %v2017, 1
        %vm2050 = vcmp.eq.s32.totalorder %v2018, 1
        %vm2051 = vcmp.eq.s32.totalorder %v2019, 1
        %vm2052 = vcmp.eq.s32.totalorder %v2020, 1
        %vm2053 = vcmp.eq.s32.totalorder %v2021, 1
        %vm2054 = vcmp.eq.s32.totalorder %v2022, 1
        %vm2055 = vcmp.eq.s32.totalorder %v2023, 1
        %vm2056 = vcmp.eq.s32.totalorder %v2024, 1
        %vm2057 = vcmp.eq.s32.totalorder %v2025, 1
        %v2058 = vsel %vm2026, %v1930, 0.0
        %v2059 = vsel %vm2027, %v1961, 0.0
        %v2060 = vsel %vm2028, %v1960, 0.0
        %v2061 = vsel %vm2029, %v1959, 0.0
        %v2062 = vsel %vm2030, %v1958, 0.0
        %v2063 = vsel %vm2031, %v1957, 0.0
        %v2064 = vsel %vm2032, %v1956, 0.0
        %v2065 = vsel %vm2033, %v1955, 0.0
        %v2066 = vsel %vm2034, %v1954, 0.0
        %v2067 = vsel %vm2035, %v1953, 0.0
        %v2068 = vsel %vm2036, %v1952, 0.0
        %v2069 = vsel %vm2037, %v1951, 0.0
        %v2070 = vsel %vm2038, %v1950, 0.0
        %v2071 = vsel %vm2039, %v1949, 0.0
        %v2072 = vsel %vm2040, %v1948, 0.0
        %v2073 = vsel %vm2041, %v1947, 0.0
        %v2074 = vsel %vm2042, %v1946, 0.0
        %v2075 = vsel %vm2043, %v1945, 0.0
        %v2076 = vsel %vm2044, %v1944, 0.0
        %v2077 = vsel %vm2045, %v1943, 0.0
        %v2078 = vsel %vm2046, %v1942, 0.0
        %v2079 = vsel %vm2047, %v1941, 0.0
        %v2080 = vsel %vm2048, %v1940, 0.0
        %v2081 = vsel %vm2049, %v1939, 0.0
        %v2082 = vsel %vm2050, %v1938, 0.0
        %v2083 = vsel %vm2051, %v1937, 0.0
        %v2084 = vsel %vm2052, %v1936, 0.0
        %v2085 = vsel %vm2053, %v1935, 0.0
        %v2086 = vsel %vm2054, %v1934, 0.0
        %v2087 = vsel %vm2055, %v1933, 0.0
        %v2088 = vsel %vm2056, %v1932, 0.0
        %v2089 = vsel %vm2057, %v1931, 0.0
        %v2090 = vpack.c.bf16 %v2059, %v2058
        %v2091 = vpack.c.bf16 %v2061, %v2060
        %v2092 = vpack.c.bf16 %v2063, %v2062
        %v2093 = vpack.c.bf16 %v2065, %v2064
        %v2094 = vpack.c.bf16 %v2067, %v2066
        %v2095 = vpack.c.bf16 %v2069, %v2068
        %v2096 = vpack.c.bf16 %v2071, %v2070
        %v2097 = vpack.c.bf16 %v2073, %v2072
        %v2098 = vpack.c.bf16 %v2075, %v2074
        %v2099 = vpack.c.bf16 %v2077, %v2076
        %v2100 = vpack.c.bf16 %v2079, %v2078
        %v2101 = vpack.c.bf16 %v2081, %v2080
        %v2102 = vpack.c.bf16 %v2083, %v2082
        %v2103 = vpack.c.bf16 %v2085, %v2084
        %v2104 = vpack.c.bf16 %v2087, %v2086
        %v2105 = vpack.c.bf16 %v2089, %v2088
        %v2122 = vunpack.c.l.b16 %v2090
        %v2123 = vunpack.c.h.b16 %v2090
        %v2124 = vunpack.c.l.b16 %v2091
        %v2125 = vunpack.c.h.b16 %v2091
        %v2126 = vunpack.c.l.b16 %v2092
        %v2127 = vunpack.c.h.b16 %v2092
        %v2128 = vunpack.c.l.b16 %v2093
        %v2129 = vunpack.c.h.b16 %v2093
        %v2130 = vunpack.c.l.b16 %v2094
        %v2131 = vunpack.c.h.b16 %v2094
        %v2132 = vunpack.c.l.b16 %v2095
        %v2133 = vunpack.c.h.b16 %v2095
        %v2134 = vunpack.c.l.b16 %v2096
        %v2135 = vunpack.c.h.b16 %v2096
        %v2136 = vunpack.c.l.b16 %v2097
        %v2137 = vunpack.c.h.b16 %v2097
        %v2138 = vunpack.c.l.b16 %v2098
        %v2139 = vunpack.c.h.b16 %v2098
        %v2140 = vunpack.c.l.b16 %v2099
        %v2141 = vunpack.c.h.b16 %v2099
        %v2142 = vunpack.c.l.b16 %v2100
        %v2143 = vunpack.c.h.b16 %v2100
        %v2144 = vunpack.c.l.b16 %v2101
        %v2145 = vunpack.c.h.b16 %v2101
        %v2146 = vunpack.c.l.b16 %v2102
        %v2147 = vunpack.c.h.b16 %v2102
        %v2148 = vunpack.c.l.b16 %v2103
        %v2149 = vunpack.c.h.b16 %v2103
        %v2150 = vunpack.c.l.b16 %v2104
        %v2151 = vunpack.c.h.b16 %v2104
        %v2152 = vunpack.c.l.b16 %v2105
        %v2153 = vunpack.c.h.b16 %v2105
        %v2154 = vpack.c.b16 %v2122, %v2122
        %v2155 = vpack.c.b16 %v2123, %v2123
        %v2156 = vpack.c.b16 %v2124, %v2124
        %v2157 = vpack.c.b16 %v2125, %v2125
        %v2158 = vpack.c.b16 %v2126, %v2126
        %v2159 = vpack.c.b16 %v2127, %v2127
        %v2160 = vpack.c.b16 %v2128, %v2128
        %v2161 = vpack.c.b16 %v2129, %v2129
        %v2162 = vpack.c.b16 %v2130, %v2130
        %v2163 = vpack.c.b16 %v2131, %v2131
        %v2164 = vpack.c.b16 %v2132, %v2132
        %v2165 = vpack.c.b16 %v2133, %v2133
        %v2166 = vpack.c.b16 %v2134, %v2134
        %v2167 = vpack.c.b16 %v2135, %v2135
        %v2168 = vpack.c.b16 %v2136, %v2136
        %v2169 = vpack.c.b16 %v2137, %v2137
        %v2170 = vpack.c.b16 %v2138, %v2138
        %v2171 = vpack.c.b16 %v2139, %v2139
        %v2172 = vpack.c.b16 %v2140, %v2140
        %v2173 = vpack.c.b16 %v2141, %v2141
        %v2174 = vpack.c.b16 %v2142, %v2142
        %v2175 = vpack.c.b16 %v2143, %v2143
        %v2176 = vpack.c.b16 %v2144, %v2144
        %v2177 = vpack.c.b16 %v2145, %v2145
        %v2178 = vpack.c.b16 %v2146, %v2146
        %v2179 = vpack.c.b16 %v2147, %v2147
        %v2180 = vpack.c.b16 %v2148, %v2148
        %v2181 = vpack.c.b16 %v2149, %v2149
        %v2182 = vpack.c.b16 %v2150, %v2150
        %v2183 = vpack.c.b16 %v2151, %v2151
        %v2184 = vpack.c.b16 %v2152, %v2152
        %v2185 = vpack.c.b16 %v2153, %v2153
        %2218 = vst [vmem:[#allocation2 + $0x8] sm:$0xf] %v2154
        %2219 = vst [vmem:[#allocation2 + $0x2c] sm:$0xf] %v2155
        %2220 = vst [vmem:[#allocation2 + $0x50] sm:$0xf] %v2156
        %2221 = vst [vmem:[#allocation2 + $0x74] sm:$0xf] %v2157
        %2222 = vst [vmem:[#allocation2 + $0x98] sm:$0xf] %v2158
        %2223 = vst [vmem:[#allocation2 + $0xbc] sm:$0xf] %v2159
        %2224 = vst [vmem:[#allocation2 + $0xe0] sm:$0xf] %v2160
        %2225 = vst [vmem:[#allocation2 + $0x104] sm:$0xf] %v2161
        %2226 = vst [vmem:[#allocation2 + $0x128] sm:$0xf] %v2162
        %2227 = vst [vmem:[#allocation2 + $0x14c] sm:$0xf] %v2163
        %2228 = vst [vmem:[#allocation2 + $0x170] sm:$0xf] %v2164
        %2229 = vst [vmem:[#allocation2 + $0x194] sm:$0xf] %v2165
        %2230 = vst [vmem:[#allocation2 + $0x1b8] sm:$0xf] %v2166
        %2231 = vst [vmem:[#allocation2 + $0x1dc] sm:$0xf] %v2167
        %2232 = vst [vmem:[#allocation2 + $0x200] sm:$0xf] %v2168
        %2233 = vst [vmem:[#allocation2 + $0x224] sm:$0xf] %v2169
        %2234 = vst [vmem:[#allocation2 + $0x248] sm:$0xf] %v2170
        %2235 = vst [vmem:[#allocation2 + $0x26c] sm:$0xf] %v2171
        %2236 = vst [vmem:[#allocation2 + $0x290] sm:$0xf] %v2172
        %2237 = vst [vmem:[#allocation2 + $0x2b4] sm:$0xf] %v2173
        %2238 = vst [vmem:[#allocation2 + $0x2d8] sm:$0xf] %v2174
        %2239 = vst [vmem:[#allocation2 + $0x2fc] sm:$0xf] %v2175
        %2240 = vst [vmem:[#allocation2 + $0x320] sm:$0xf] %v2176
        %2241 = vst [vmem:[#allocation2 + $0x344] sm:$0xf] %v2177
        %2242 = vst [vmem:[#allocation2 + $0x368] sm:$0xf] %v2178
        %2243 = vst [vmem:[#allocation2 + $0x38c] sm:$0xf] %v2179
        %2244 = vst [vmem:[#allocation2 + $0x3b0] sm:$0xf] %v2180
        %2245 = vst [vmem:[#allocation2 + $0x3d4] sm:$0xf] %v2181
        %2246 = vst [vmem:[#allocation2 + $0x3f8] sm:$0xf] %v2182
        %2247 = vst [vmem:[#allocation2 + $0x41c] sm:$0xf] %v2183
        %2248 = vst [vmem:[#allocation2 + $0x440] sm:$0xf] %v2184
        %2249 = vst [vmem:[#allocation2 + $0x464] sm:$0xf] %v2185
        %v2250 = vsel %vm1224, 1, 0
        %v2251 = vsel %vm1225, 1, 0
        %v2252 = vsel %vm1226, 1, 0
        %v2253 = vsel %vm1227, 1, 0
        %v2254 = vsel %vm1228, 1, 0
        %v2255 = vsel %vm1229, 1, 0
        %v2256 = vsel %vm1230, 1, 0
        %v2257 = vsel %vm1231, 1, 0
        %v2258 = vsel %vm1232, 1, 0
        %v2259 = vsel %vm1233, 1, 0
        %v2260 = vsel %vm1234, 1, 0
        %v2261 = vsel %vm1235, 1, 0
        %v2262 = vsel %vm1236, 1, 0
        %v2263 = vsel %vm1237, 1, 0
        %v2264 = vsel %vm1238, 1, 0
        %v2265 = vsel %vm1239, 1, 0
        %v2266 = vsel %vm1240, 1, 0
        %v2267 = vsel %vm1241, 1, 0
        %v2268 = vsel %vm1242, 1, 0
        %v2269 = vsel %vm1243, 1, 0
        %v2270 = vsel %vm1244, 1, 0
        %v2271 = vsel %vm1245, 1, 0
        %v2272 = vsel %vm1246, 1, 0
        %v2273 = vsel %vm1247, 1, 0
        %v2274 = vsel %vm1248, 1, 0
        %v2275 = vsel %vm1249, 1, 0
        %v2276 = vsel %vm1250, 1, 0
        %v2277 = vsel %vm1251, 1, 0
        %v2278 = vsel %vm1252, 1, 0
        %v2279 = vsel %vm1253, 1, 0
        %v2280 = vsel %vm1254, 1, 0
        %v2281 = vsel %vm1255, 1, 0
        %vm2282 = vcmp.eq.s32.totalorder %v2250, 1
        %vm2283 = vcmp.eq.s32.totalorder %v2251, 1
        %vm2284 = vcmp.eq.s32.totalorder %v2252, 1
        %vm2285 = vcmp.eq.s32.totalorder %v2253, 1
        %vm2286 = vcmp.eq.s32.totalorder %v2254, 1
        %vm2287 = vcmp.eq.s32.totalorder %v2255, 1
        %vm2288 = vcmp.eq.s32.totalorder %v2256, 1
        %vm2289 = vcmp.eq.s32.totalorder %v2257, 1
        %vm2290 = vcmp.eq.s32.totalorder %v2258, 1
        %vm2291 = vcmp.eq.s32.totalorder %v2259, 1
        %vm2292 = vcmp.eq.s32.totalorder %v2260, 1
        %vm2293 = vcmp.eq.s32.totalorder %v2261, 1
        %vm2294 = vcmp.eq.s32.totalorder %v2262, 1
        %vm2295 = vcmp.eq.s32.totalorder %v2263, 1
        %vm2296 = vcmp.eq.s32.totalorder %v2264, 1
        %vm2297 = vcmp.eq.s32.totalorder %v2265, 1
        %vm2298 = vcmp.eq.s32.totalorder %v2266, 1
        %vm2299 = vcmp.eq.s32.totalorder %v2267, 1
        %vm2300 = vcmp.eq.s32.totalorder %v2268, 1
        %vm2301 = vcmp.eq.s32.totalorder %v2269, 1
        %vm2302 = vcmp.eq.s32.totalorder %v2270, 1
        %vm2303 = vcmp.eq.s32.totalorder %v2271, 1
        %vm2304 = vcmp.eq.s32.totalorder %v2272, 1
        %vm2305 = vcmp.eq.s32.totalorder %v2273, 1
        %vm2306 = vcmp.eq.s32.totalorder %v2274, 1
        %vm2307 = vcmp.eq.s32.totalorder %v2275, 1
        %vm2308 = vcmp.eq.s32.totalorder %v2276, 1
        %vm2309 = vcmp.eq.s32.totalorder %v2277, 1
        %vm2310 = vcmp.eq.s32.totalorder %v2278, 1
        %vm2311 = vcmp.eq.s32.totalorder %v2279, 1
        %vm2312 = vcmp.eq.s32.totalorder %v2280, 1
        %vm2313 = vcmp.eq.s32.totalorder %v2281, 1
        %v2314 = vsel %vm2282, %v1352, 0.0
        %v2315 = vsel %vm2283, %v1351, 0.0
        %v2316 = vsel %vm2284, %v1350, 0.0
        %v2317 = vsel %vm2285, %v1349, 0.0
        %v2318 = vsel %vm2286, %v1348, 0.0
        %v2319 = vsel %vm2287, %v1347, 0.0
        %v2320 = vsel %vm2288, %v1346, 0.0
        %v2321 = vsel %vm2289, %v1345, 0.0
        %v2322 = vsel %vm2290, %v1344, 0.0
        %v2323 = vsel %vm2291, %v1343, 0.0
        %v2324 = vsel %vm2292, %v1342, 0.0
        %v2325 = vsel %vm2293, %v1341, 0.0
        %v2326 = vsel %vm2294, %v1340, 0.0
        %v2327 = vsel %vm2295, %v1339, 0.0
        %v2328 = vsel %vm2296, %v1338, 0.0
        %v2329 = vsel %vm2297, %v1337, 0.0
        %v2330 = vsel %vm2298, %v1336, 0.0
        %v2331 = vsel %vm2299, %v1335, 0.0
        %v2332 = vsel %vm2300, %v1334, 0.0
        %v2333 = vsel %vm2301, %v1333, 0.0
        %v2334 = vsel %vm2302, %v1332, 0.0
        %v2335 = vsel %vm2303, %v1331, 0.0
        %v2336 = vsel %vm2304, %v1330, 0.0
        %v2337 = vsel %vm2305, %v1329, 0.0
        %v2338 = vsel %vm2306, %v1328, 0.0
        %v2339 = vsel %vm2307, %v1327, 0.0
        %v2340 = vsel %vm2308, %v1326, 0.0
        %v2341 = vsel %vm2309, %v1325, 0.0
        %v2342 = vsel %vm2310, %v1324, 0.0
        %v2343 = vsel %vm2311, %v1323, 0.0
        %v2344 = vsel %vm2312, %v1322, 0.0
        %v2345 = vsel %vm2313, %v1321, 0.0
        %v2346 = vpack.c.bf16 %v2315, %v2314
        %v2347 = vpack.c.bf16 %v2317, %v2316
        %v2348 = vpack.c.bf16 %v2319, %v2318
        %v2349 = vpack.c.bf16 %v2321, %v2320
        %v2350 = vpack.c.bf16 %v2323, %v2322
        %v2351 = vpack.c.bf16 %v2325, %v2324
        %v2352 = vpack.c.bf16 %v2327, %v2326
        %v2353 = vpack.c.bf16 %v2329, %v2328
        %v2354 = vpack.c.bf16 %v2331, %v2330
        %v2355 = vpack.c.bf16 %v2333, %v2332
        %v2356 = vpack.c.bf16 %v2335, %v2334
        %v2357 = vpack.c.bf16 %v2337, %v2336
        %v2358 = vpack.c.bf16 %v2339, %v2338
        %v2359 = vpack.c.bf16 %v2341, %v2340
        %v2360 = vpack.c.bf16 %v2343, %v2342
        %v2361 = vpack.c.bf16 %v2345, %v2344
        %v2378 = vunpack.c.l.b16 %v2346
        %v2379 = vunpack.c.h.b16 %v2346
        %v2380 = vunpack.c.l.b16 %v2347
        %v2381 = vunpack.c.h.b16 %v2347
        %v2382 = vunpack.c.l.b16 %v2348
        %v2383 = vunpack.c.h.b16 %v2348
        %v2384 = vunpack.c.l.b16 %v2349
        %v2385 = vunpack.c.h.b16 %v2349
        %v2386 = vunpack.c.l.b16 %v2350
        %v2387 = vunpack.c.h.b16 %v2350
        %v2388 = vunpack.c.l.b16 %v2351
        %v2389 = vunpack.c.h.b16 %v2351
        %v2390 = vunpack.c.l.b16 %v2352
        %v2391 = vunpack.c.h.b16 %v2352
        %v2392 = vunpack.c.l.b16 %v2353
        %v2393 = vunpack.c.h.b16 %v2353
        %v2394 = vunpack.c.l.b16 %v2354
        %v2395 = vunpack.c.h.b16 %v2354
        %v2396 = vunpack.c.l.b16 %v2355
        %v2397 = vunpack.c.h.b16 %v2355
        %v2398 = vunpack.c.l.b16 %v2356
        %v2399 = vunpack.c.h.b16 %v2356
        %v2400 = vunpack.c.l.b16 %v2357
        %v2401 = vunpack.c.h.b16 %v2357
        %v2402 = vunpack.c.l.b16 %v2358
        %v2403 = vunpack.c.h.b16 %v2358
        %v2404 = vunpack.c.l.b16 %v2359
        %v2405 = vunpack.c.h.b16 %v2359
        %v2406 = vunpack.c.l.b16 %v2360
        %v2407 = vunpack.c.h.b16 %v2360
        %v2408 = vunpack.c.l.b16 %v2361
        %v2409 = vunpack.c.h.b16 %v2361
        %v2410 = vpack.c.b16 %v2378, %v2378
        %v2411 = vpack.c.b16 %v2379, %v2379
        %v2412 = vpack.c.b16 %v2380, %v2380
        %v2413 = vpack.c.b16 %v2381, %v2381
        %v2414 = vpack.c.b16 %v2382, %v2382
        %v2415 = vpack.c.b16 %v2383, %v2383
        %v2416 = vpack.c.b16 %v2384, %v2384
        %v2417 = vpack.c.b16 %v2385, %v2385
        %v2418 = vpack.c.b16 %v2386, %v2386
        %v2419 = vpack.c.b16 %v2387, %v2387
        %v2420 = vpack.c.b16 %v2388, %v2388
        %v2421 = vpack.c.b16 %v2389, %v2389
        %v2422 = vpack.c.b16 %v2390, %v2390
        %v2423 = vpack.c.b16 %v2391, %v2391
        %v2424 = vpack.c.b16 %v2392, %v2392
        %v2425 = vpack.c.b16 %v2393, %v2393
        %v2426 = vpack.c.b16 %v2394, %v2394
        %v2427 = vpack.c.b16 %v2395, %v2395
        %v2428 = vpack.c.b16 %v2396, %v2396
        %v2429 = vpack.c.b16 %v2397, %v2397
        %v2430 = vpack.c.b16 %v2398, %v2398
        %v2431 = vpack.c.b16 %v2399, %v2399
        %v2432 = vpack.c.b16 %v2400, %v2400
        %v2433 = vpack.c.b16 %v2401, %v2401
        %v2434 = vpack.c.b16 %v2402, %v2402
        %v2435 = vpack.c.b16 %v2403, %v2403
        %v2436 = vpack.c.b16 %v2404, %v2404
        %v2437 = vpack.c.b16 %v2405, %v2405
        %v2438 = vpack.c.b16 %v2406, %v2406
        %v2439 = vpack.c.b16 %v2407, %v2407
        %v2440 = vpack.c.b16 %v2408, %v2408
        %v2441 = vpack.c.b16 %v2409, %v2409
        %2474 = vst [vmem:[#allocation2 + $0xc] sm:$0xf] %v2410
        %2475 = vst [vmem:[#allocation2 + $0x30] sm:$0xf] %v2411
        %2476 = vst [vmem:[#allocation2 + $0x54] sm:$0xf] %v2412
        %2477 = vst [vmem:[#allocation2 + $0x78] sm:$0xf] %v2413
        %2478 = vst [vmem:[#allocation2 + $0x9c] sm:$0xf] %v2414
        %2479 = vst [vmem:[#allocation2 + $0xc0] sm:$0xf] %v2415
        %2480 = vst [vmem:[#allocation2 + $0xe4] sm:$0xf] %v2416
        %2481 = vst [vmem:[#allocation2 + $0x108] sm:$0xf] %v2417
        %2482 = vst [vmem:[#allocation2 + $0x12c] sm:$0xf] %v2418
        %2483 = vst [vmem:[#allocation2 + $0x150] sm:$0xf] %v2419
        %2484 = vst [vmem:[#allocation2 + $0x174] sm:$0xf] %v2420
        %2485 = vst [vmem:[#allocation2 + $0x198] sm:$0xf] %v2421
        %2486 = vst [vmem:[#allocation2 + $0x1bc] sm:$0xf] %v2422
        %2487 = vst [vmem:[#allocation2 + $0x1e0] sm:$0xf] %v2423
        %2488 = vst [vmem:[#allocation2 + $0x204] sm:$0xf] %v2424
        %2489 = vst [vmem:[#allocation2 + $0x228] sm:$0xf] %v2425
        %2490 = vst [vmem:[#allocation2 + $0x24c] sm:$0xf] %v2426
        %2491 = vst [vmem:[#allocation2 + $0x270] sm:$0xf] %v2427
        %2492 = vst [vmem:[#allocation2 + $0x294] sm:$0xf] %v2428
        %2493 = vst [vmem:[#allocation2 + $0x2b8] sm:$0xf] %v2429
        %2494 = vst [vmem:[#allocation2 + $0x2dc] sm:$0xf] %v2430
        %2495 = vst [vmem:[#allocation2 + $0x300] sm:$0xf] %v2431
        %2496 = vst [vmem:[#allocation2 + $0x324] sm:$0xf] %v2432
        %2497 = vst [vmem:[#allocation2 + $0x348] sm:$0xf] %v2433
        %2498 = vst [vmem:[#allocation2 + $0x36c] sm:$0xf] %v2434
        %2499 = vst [vmem:[#allocation2 + $0x390] sm:$0xf] %v2435
        %2500 = vst [vmem:[#allocation2 + $0x3b4] sm:$0xf] %v2436
        %2501 = vst [vmem:[#allocation2 + $0x3d8] sm:$0xf] %v2437
        %2502 = vst [vmem:[#allocation2 + $0x3fc] sm:$0xf] %v2438
        %2503 = vst [vmem:[#allocation2 + $0x420] sm:$0xf] %v2439
        %2504 = vst [vmem:[#allocation2 + $0x444] sm:$0xf] %v2440
        %2505 = vst [vmem:[#allocation2 + $0x468] sm:$0xf] %v2441
        %v2506 = vpack.c.bf16 %v712, %v711
        %v2507 = vpack.c.bf16 %v714, %v713
        %v2508 = vpack.c.bf16 %v716, %v715
        %v2509 = vpack.c.bf16 %v718, %v717
        %v2510 = vpack.c.bf16 %v720, %v719
        %v2511 = vpack.c.bf16 %v722, %v721
        %v2512 = vpack.c.bf16 %v724, %v723
        %v2513 = vpack.c.bf16 %v726, %v725
        %v2514 = vpack.c.bf16 %v728, %v727
        %v2515 = vpack.c.bf16 %v730, %v729
        %v2516 = vpack.c.bf16 %v732, %v731
        %v2517 = vpack.c.bf16 %v734, %v733
        %v2518 = vpack.c.bf16 %v736, %v735
        %v2519 = vpack.c.bf16 %v738, %v737
        %v2520 = vpack.c.bf16 %v740, %v739
        %v2521 = vpack.c.bf16 %v742, %v741
        %v2538 = vunpack.c.l.b16 %v2506
        %v2539 = vunpack.c.h.b16 %v2506
        %v2540 = vunpack.c.l.b16 %v2507
        %v2541 = vunpack.c.h.b16 %v2507
        %v2542 = vunpack.c.l.b16 %v2508
        %v2543 = vunpack.c.h.b16 %v2508
        %v2544 = vunpack.c.l.b16 %v2509
        %v2545 = vunpack.c.h.b16 %v2509
        %v2546 = vunpack.c.l.b16 %v2510
        %v2547 = vunpack.c.h.b16 %v2510
        %v2548 = vunpack.c.l.b16 %v2511
        %v2549 = vunpack.c.h.b16 %v2511
        %v2550 = vunpack.c.l.b16 %v2512
        %v2551 = vunpack.c.h.b16 %v2512
        %v2552 = vunpack.c.l.b16 %v2513
        %v2553 = vunpack.c.h.b16 %v2513
        %v2554 = vunpack.c.l.b16 %v2514
        %v2555 = vunpack.c.h.b16 %v2514
        %v2556 = vunpack.c.l.b16 %v2515
        %v2557 = vunpack.c.h.b16 %v2515
        %v2558 = vunpack.c.l.b16 %v2516
        %v2559 = vunpack.c.h.b16 %v2516
        %v2560 = vunpack.c.l.b16 %v2517
        %v2561 = vunpack.c.h.b16 %v2517
        %v2562 = vunpack.c.l.b16 %v2518
        %v2563 = vunpack.c.h.b16 %v2518
        %v2564 = vunpack.c.l.b16 %v2519
        %v2565 = vunpack.c.h.b16 %v2519
        %v2566 = vunpack.c.l.b16 %v2520
        %v2567 = vunpack.c.h.b16 %v2520
        %v2568 = vunpack.c.l.b16 %v2521
        %v2569 = vunpack.c.h.b16 %v2521
        %v2570 = vpack.c.b16 %v2538, %v2538
        %v2571 = vpack.c.b16 %v2539, %v2539
        %v2572 = vpack.c.b16 %v2540, %v2540
        %v2573 = vpack.c.b16 %v2541, %v2541
        %v2574 = vpack.c.b16 %v2542, %v2542
        %v2575 = vpack.c.b16 %v2543, %v2543
        %v2576 = vpack.c.b16 %v2544, %v2544
        %v2577 = vpack.c.b16 %v2545, %v2545
        %v2578 = vpack.c.b16 %v2546, %v2546
        %v2579 = vpack.c.b16 %v2547, %v2547
        %v2580 = vpack.c.b16 %v2548, %v2548
        %v2581 = vpack.c.b16 %v2549, %v2549
        %v2582 = vpack.c.b16 %v2550, %v2550
        %v2583 = vpack.c.b16 %v2551, %v2551
        %v2584 = vpack.c.b16 %v2552, %v2552
        %v2585 = vpack.c.b16 %v2553, %v2553
        %v2586 = vpack.c.b16 %v2554, %v2554
        %v2587 = vpack.c.b16 %v2555, %v2555
        %v2588 = vpack.c.b16 %v2556, %v2556
        %v2589 = vpack.c.b16 %v2557, %v2557
        %v2590 = vpack.c.b16 %v2558, %v2558
        %v2591 = vpack.c.b16 %v2559, %v2559
        %v2592 = vpack.c.b16 %v2560, %v2560
        %v2593 = vpack.c.b16 %v2561, %v2561
        %v2594 = vpack.c.b16 %v2562, %v2562
        %v2595 = vpack.c.b16 %v2563, %v2563
        %v2596 = vpack.c.b16 %v2564, %v2564
        %v2597 = vpack.c.b16 %v2565, %v2565
        %v2598 = vpack.c.b16 %v2566, %v2566
        %v2599 = vpack.c.b16 %v2567, %v2567
        %v2600 = vpack.c.b16 %v2568, %v2568
        %v2601 = vpack.c.b16 %v2569, %v2569
        %2634 = vst [vmem:[#allocation2 + $0x10] sm:$0xf] %v2570
        %2635 = vst [vmem:[#allocation2 + $0x34] sm:$0xf] %v2571
        %2636 = vst [vmem:[#allocation2 + $0x58] sm:$0xf] %v2572
        %2637 = vst [vmem:[#allocation2 + $0x7c] sm:$0xf] %v2573
        %2638 = vst [vmem:[#allocation2 + $0xa0] sm:$0xf] %v2574
        %2639 = vst [vmem:[#allocation2 + $0xc4] sm:$0xf] %v2575
        %2640 = vst [vmem:[#allocation2 + $0xe8] sm:$0xf] %v2576
        %2641 = vst [vmem:[#allocation2 + $0x10c] sm:$0xf] %v2577
        %2642 = vst [vmem:[#allocation2 + $0x130] sm:$0xf] %v2578
        %2643 = vst [vmem:[#allocation2 + $0x154] sm:$0xf] %v2579
        %2644 = vst [vmem:[#allocation2 + $0x178] sm:$0xf] %v2580
        %2645 = vst [vmem:[#allocation2 + $0x19c] sm:$0xf] %v2581
        %2646 = vst [vmem:[#allocation2 + $0x1c0] sm:$0xf] %v2582
        %2647 = vst [vmem:[#allocation2 + $0x1e4] sm:$0xf] %v2583
        %2648 = vst [vmem:[#allocation2 + $0x208] sm:$0xf] %v2584
        %2649 = vst [vmem:[#allocation2 + $0x22c] sm:$0xf] %v2585
        %2650 = vst [vmem:[#allocation2 + $0x250] sm:$0xf] %v2586
        %2651 = vst [vmem:[#allocation2 + $0x274] sm:$0xf] %v2587
        %2652 = vst [vmem:[#allocation2 + $0x298] sm:$0xf] %v2588
        %2653 = vst [vmem:[#allocation2 + $0x2bc] sm:$0xf] %v2589
        %2654 = vst [vmem:[#allocation2 + $0x2e0] sm:$0xf] %v2590
        %2655 = vst [vmem:[#allocation2 + $0x304] sm:$0xf] %v2591
        %2656 = vst [vmem:[#allocation2 + $0x328] sm:$0xf] %v2592
        %2657 = vst [vmem:[#allocation2 + $0x34c] sm:$0xf] %v2593
        %2658 = vst [vmem:[#allocation2 + $0x370] sm:$0xf] %v2594
        %2659 = vst [vmem:[#allocation2 + $0x394] sm:$0xf] %v2595
        %2660 = vst [vmem:[#allocation2 + $0x3b8] sm:$0xf] %v2596
        %2661 = vst [vmem:[#allocation2 + $0x3dc] sm:$0xf] %v2597
        %2662 = vst [vmem:[#allocation2 + $0x400] sm:$0xf] %v2598
        %2663 = vst [vmem:[#allocation2 + $0x424] sm:$0xf] %v2599
        %2664 = vst [vmem:[#allocation2 + $0x448] sm:$0xf] %v2600
        %2665 = vst [vmem:[#allocation2 + $0x46c] sm:$0xf] %v2601
        %v2666 = vsel %vm1256, 1, 0
        %v2667 = vsel %vm1257, 1, 0
        %v2668 = vsel %vm1258, 1, 0
        %v2669 = vsel %vm1259, 1, 0
        %v2670 = vsel %vm1260, 1, 0
        %v2671 = vsel %vm1261, 1, 0
        %v2672 = vsel %vm1262, 1, 0
        %v2673 = vsel %vm1263, 1, 0
        %v2674 = vsel %vm1264, 1, 0
        %v2675 = vsel %vm1265, 1, 0
        %v2676 = vsel %vm1266, 1, 0
        %v2677 = vsel %vm1267, 1, 0
        %v2678 = vsel %vm1268, 1, 0
        %v2679 = vsel %vm1269, 1, 0
        %v2680 = vsel %vm1270, 1, 0
        %v2681 = vsel %vm1271, 1, 0
        %v2682 = vsel %vm1272, 1, 0
        %v2683 = vsel %vm1273, 1, 0
        %v2684 = vsel %vm1274, 1, 0
        %v2685 = vsel %vm1275, 1, 0
        %v2686 = vsel %vm1276, 1, 0
        %v2687 = vsel %vm1277, 1, 0
        %v2688 = vsel %vm1278, 1, 0
        %v2689 = vsel %vm1279, 1, 0
        %v2690 = vsel %vm1280, 1, 0
        %v2691 = vsel %vm1281, 1, 0
        %v2692 = vsel %vm1282, 1, 0
        %v2693 = vsel %vm1283, 1, 0
        %v2694 = vsel %vm1284, 1, 0
        %v2695 = vsel %vm1285, 1, 0
        %v2696 = vsel %vm1286, 1, 0
        %v2697 = vsel %vm1287, 1, 0
        %vm2698 = vcmp.eq.s32.totalorder %v2666, 1
        %vm2699 = vcmp.eq.s32.totalorder %v2667, 1
        %vm2700 = vcmp.eq.s32.totalorder %v2668, 1
        %vm2701 = vcmp.eq.s32.totalorder %v2669, 1
        %vm2702 = vcmp.eq.s32.totalorder %v2670, 1
        %vm2703 = vcmp.eq.s32.totalorder %v2671, 1
        %vm2704 = vcmp.eq.s32.totalorder %v2672, 1
        %vm2705 = vcmp.eq.s32.totalorder %v2673, 1
        %vm2706 = vcmp.eq.s32.totalorder %v2674, 1
        %vm2707 = vcmp.eq.s32.totalorder %v2675, 1
        %vm2708 = vcmp.eq.s32.totalorder %v2676, 1
        %vm2709 = vcmp.eq.s32.totalorder %v2677, 1
        %vm2710 = vcmp.eq.s32.totalorder %v2678, 1
        %vm2711 = vcmp.eq.s32.totalorder %v2679, 1
        %vm2712 = vcmp.eq.s32.totalorder %v2680, 1
        %vm2713 = vcmp.eq.s32.totalorder %v2681, 1
        %vm2714 = vcmp.eq.s32.totalorder %v2682, 1
        %vm2715 = vcmp.eq.s32.totalorder %v2683, 1
        %vm2716 = vcmp.eq.s32.totalorder %v2684, 1
        %vm2717 = vcmp.eq.s32.totalorder %v2685, 1
        %vm2718 = vcmp.eq.s32.totalorder %v2686, 1
        %vm2719 = vcmp.eq.s32.totalorder %v2687, 1
        %vm2720 = vcmp.eq.s32.totalorder %v2688, 1
        %vm2721 = vcmp.eq.s32.totalorder %v2689, 1
        %vm2722 = vcmp.eq.s32.totalorder %v2690, 1
        %vm2723 = vcmp.eq.s32.totalorder %v2691, 1
        %vm2724 = vcmp.eq.s32.totalorder %v2692, 1
        %vm2725 = vcmp.eq.s32.totalorder %v2693, 1
        %vm2726 = vcmp.eq.s32.totalorder %v2694, 1
        %vm2727 = vcmp.eq.s32.totalorder %v2695, 1
        %vm2728 = vcmp.eq.s32.totalorder %v2696, 1
        %vm2729 = vcmp.eq.s32.totalorder %v2697, 1
        %v2730 = vsel %vm2698, %v1960, 0.0
        %v2731 = vsel %vm2699, %v1959, 0.0
        %v2732 = vsel %vm2700, %v1958, 0.0
        %v2733 = vsel %vm2701, %v1957, 0.0
        %v2734 = vsel %vm2702, %v1956, 0.0
        %v2735 = vsel %vm2703, %v1955, 0.0
        %v2736 = vsel %vm2704, %v1954, 0.0
        %v2737 = vsel %vm2705, %v1953, 0.0
        %v2738 = vsel %vm2706, %v1952, 0.0
        %v2739 = vsel %vm2707, %v1951, 0.0
        %v2740 = vsel %vm2708, %v1950, 0.0
        %v2741 = vsel %vm2709, %v1949, 0.0
        %v2742 = vsel %vm2710, %v1948, 0.0
        %v2743 = vsel %vm2711, %v1947, 0.0
        %v2744 = vsel %vm2712, %v1946, 0.0
        %v2745 = vsel %vm2713, %v1945, 0.0
        %v2746 = vsel %vm2714, %v1944, 0.0
        %v2747 = vsel %vm2715, %v1943, 0.0
        %v2748 = vsel %vm2716, %v1942, 0.0
        %v2749 = vsel %vm2717, %v1941, 0.0
        %v2750 = vsel %vm2718, %v1940, 0.0
        %v2751 = vsel %vm2719, %v1939, 0.0
        %v2752 = vsel %vm2720, %v1938, 0.0
        %v2753 = vsel %vm2721, %v1937, 0.0
        %v2754 = vsel %vm2722, %v1936, 0.0
        %v2755 = vsel %vm2723, %v1935, 0.0
        %v2756 = vsel %vm2724, %v1934, 0.0
        %v2757 = vsel %vm2725, %v1933, 0.0
        %v2758 = vsel %vm2726, %v1932, 0.0
        %v2759 = vsel %vm2727, %v1931, 0.0
        %v2760 = vsel %vm2728, %v1930, 0.0
        %v2761 = vsel %vm2729, %v1961, 0.0
        %v2762 = vpack.c.bf16 %v2731, %v2730
        %v2763 = vpack.c.bf16 %v2733, %v2732
        %v2764 = vpack.c.bf16 %v2735, %v2734
        %v2765 = vpack.c.bf16 %v2737, %v2736
        %v2766 = vpack.c.bf16 %v2739, %v2738
        %v2767 = vpack.c.bf16 %v2741, %v2740
        %v2768 = vpack.c.bf16 %v2743, %v2742
        %v2769 = vpack.c.bf16 %v2745, %v2744
        %v2770 = vpack.c.bf16 %v2747, %v2746
        %v2771 = vpack.c.bf16 %v2749, %v2748
        %v2772 = vpack.c.bf16 %v2751, %v2750
        %v2773 = vpack.c.bf16 %v2753, %v2752
        %v2774 = vpack.c.bf16 %v2755, %v2754
        %v2775 = vpack.c.bf16 %v2757, %v2756
        %v2776 = vpack.c.bf16 %v2759, %v2758
        %v2777 = vpack.c.bf16 %v2761, %v2760
        %v2794 = vunpack.c.l.b16 %v2762
        %v2795 = vunpack.c.h.b16 %v2762
        %v2796 = vunpack.c.l.b16 %v2763
        %v2797 = vunpack.c.h.b16 %v2763
        %v2798 = vunpack.c.l.b16 %v2764
        %v2799 = vunpack.c.h.b16 %v2764
        %v2800 = vunpack.c.l.b16 %v2765
        %v2801 = vunpack.c.h.b16 %v2765
        %v2802 = vunpack.c.l.b16 %v2766
        %v2803 = vunpack.c.h.b16 %v2766
        %v2804 = vunpack.c.l.b16 %v2767
        %v2805 = vunpack.c.h.b16 %v2767
        %v2806 = vunpack.c.l.b16 %v2768
        %v2807 = vunpack.c.h.b16 %v2768
        %v2808 = vunpack.c.l.b16 %v2769
        %v2809 = vunpack.c.h.b16 %v2769
        %v2810 = vunpack.c.l.b16 %v2770
        %v2811 = vunpack.c.h.b16 %v2770
        %v2812 = vunpack.c.l.b16 %v2771
        %v2813 = vunpack.c.h.b16 %v2771
        %v2814 = vunpack.c.l.b16 %v2772
        %v2815 = vunpack.c.h.b16 %v2772
        %v2816 = vunpack.c.l.b16 %v2773
        %v2817 = vunpack.c.h.b16 %v2773
        %v2818 = vunpack.c.l.b16 %v2774
        %v2819 = vunpack.c.h.b16 %v2774
        %v2820 = vunpack.c.l.b16 %v2775
        %v2821 = vunpack.c.h.b16 %v2775
        %v2822 = vunpack.c.l.b16 %v2776
        %v2823 = vunpack.c.h.b16 %v2776
        %v2824 = vunpack.c.l.b16 %v2777
        %v2825 = vunpack.c.h.b16 %v2777
        %v2826 = vpack.c.b16 %v2794, %v2794
        %v2827 = vpack.c.b16 %v2795, %v2795
        %v2828 = vpack.c.b16 %v2796, %v2796
        %v2829 = vpack.c.b16 %v2797, %v2797
        %v2830 = vpack.c.b16 %v2798, %v2798
        %v2831 = vpack.c.b16 %v2799, %v2799
        %v2832 = vpack.c.b16 %v2800, %v2800
        %v2833 = vpack.c.b16 %v2801, %v2801
        %v2834 = vpack.c.b16 %v2802, %v2802
        %v2835 = vpack.c.b16 %v2803, %v2803
        %v2836 = vpack.c.b16 %v2804, %v2804
        %v2837 = vpack.c.b16 %v2805, %v2805
        %v2838 = vpack.c.b16 %v2806, %v2806
        %v2839 = vpack.c.b16 %v2807, %v2807
        %v2840 = vpack.c.b16 %v2808, %v2808
        %v2841 = vpack.c.b16 %v2809, %v2809
        %v2842 = vpack.c.b16 %v2810, %v2810
        %v2843 = vpack.c.b16 %v2811, %v2811
        %v2844 = vpack.c.b16 %v2812, %v2812
        %v2845 = vpack.c.b16 %v2813, %v2813
        %v2846 = vpack.c.b16 %v2814, %v2814
        %v2847 = vpack.c.b16 %v2815, %v2815
        %v2848 = vpack.c.b16 %v2816, %v2816
        %v2849 = vpack.c.b16 %v2817, %v2817
        %v2850 = vpack.c.b16 %v2818, %v2818
        %v2851 = vpack.c.b16 %v2819, %v2819
        %v2852 = vpack.c.b16 %v2820, %v2820
        %v2853 = vpack.c.b16 %v2821, %v2821
        %v2854 = vpack.c.b16 %v2822, %v2822
        %v2855 = vpack.c.b16 %v2823, %v2823
        %v2856 = vpack.c.b16 %v2824, %v2824
        %v2857 = vpack.c.b16 %v2825, %v2825
        %2890 = vst [vmem:[#allocation2 + $0x14] sm:$0xf] %v2826
        %2891 = vst [vmem:[#allocation2 + $0x38] sm:$0xf] %v2827
        %2892 = vst [vmem:[#allocation2 + $0x5c] sm:$0xf] %v2828
        %2893 = vst [vmem:[#allocation2 + $0x80] sm:$0xf] %v2829
        %2894 = vst [vmem:[#allocation2 + $0xa4] sm:$0xf] %v2830
        %2895 = vst [vmem:[#allocation2 + $0xc8] sm:$0xf] %v2831
        %2896 = vst [vmem:[#allocation2 + $0xec] sm:$0xf] %v2832
        %2897 = vst [vmem:[#allocation2 + $0x110] sm:$0xf] %v2833
        %2898 = vst [vmem:[#allocation2 + $0x134] sm:$0xf] %v2834
        %2899 = vst [vmem:[#allocation2 + $0x158] sm:$0xf] %v2835
        %2900 = vst [vmem:[#allocation2 + $0x17c] sm:$0xf] %v2836
        %2901 = vst [vmem:[#allocation2 + $0x1a0] sm:$0xf] %v2837
        %2902 = vst [vmem:[#allocation2 + $0x1c4] sm:$0xf] %v2838
        %2903 = vst [vmem:[#allocation2 + $0x1e8] sm:$0xf] %v2839
        %2904 = vst [vmem:[#allocation2 + $0x20c] sm:$0xf] %v2840
        %2905 = vst [vmem:[#allocation2 + $0x230] sm:$0xf] %v2841
        %2906 = vst [vmem:[#allocation2 + $0x254] sm:$0xf] %v2842
        %2907 = vst [vmem:[#allocation2 + $0x278] sm:$0xf] %v2843
        %2908 = vst [vmem:[#allocation2 + $0x29c] sm:$0xf] %v2844
        %2909 = vst [vmem:[#allocation2 + $0x2c0] sm:$0xf] %v2845
        %2910 = vst [vmem:[#allocation2 + $0x2e4] sm:$0xf] %v2846
        %2911 = vst [vmem:[#allocation2 + $0x308] sm:$0xf] %v2847
        %2912 = vst [vmem:[#allocation2 + $0x32c] sm:$0xf] %v2848
        %2913 = vst [vmem:[#allocation2 + $0x350] sm:$0xf] %v2849
        %2914 = vst [vmem:[#allocation2 + $0x374] sm:$0xf] %v2850
        %2915 = vst [vmem:[#allocation2 + $0x398] sm:$0xf] %v2851
        %2916 = vst [vmem:[#allocation2 + $0x3bc] sm:$0xf] %v2852
        %2917 = vst [vmem:[#allocation2 + $0x3e0] sm:$0xf] %v2853
        %2918 = vst [vmem:[#allocation2 + $0x404] sm:$0xf] %v2854
        %2919 = vst [vmem:[#allocation2 + $0x428] sm:$0xf] %v2855
        %2920 = vst [vmem:[#allocation2 + $0x44c] sm:$0xf] %v2856
        %2921 = vst [vmem:[#allocation2 + $0x470] sm:$0xf] %v2857
        %vm2922 = vmand %vm1192, %vm1224
        %vm2923 = vmand %vm1193, %vm1225
        %vm2924 = vmand %vm1194, %vm1226
        %vm2925 = vmand %vm1195, %vm1227
        %vm2926 = vmand %vm1196, %vm1228
        %vm2927 = vmand %vm1197, %vm1229
        %vm2928 = vmand %vm1198, %vm1230
        %vm2929 = vmand %vm1199, %vm1231
        %vm2930 = vmand %vm1200, %vm1232
        %vm2931 = vmand %vm1201, %vm1233
        %vm2932 = vmand %vm1202, %vm1234
        %vm2933 = vmand %vm1203, %vm1235
        %vm2934 = vmand %vm1204, %vm1236
        %vm2935 = vmand %vm1205, %vm1237
        %vm2936 = vmand %vm1206, %vm1238
        %vm2937 = vmand %vm1207, %vm1239
        %vm2938 = vmand %vm1208, %vm1240
        %vm2939 = vmand %vm1209, %vm1241
        %vm2940 = vmand %vm1210, %vm1242
        %vm2941 = vmand %vm1211, %vm1243
        %vm2942 = vmand %vm1212, %vm1244
        %vm2943 = vmand %vm1213, %vm1245
        %vm2944 = vmand %vm1214, %vm1246
        %vm2945 = vmand %vm1215, %vm1247
        %vm2946 = vmand %vm1216, %vm1248
        %vm2947 = vmand %vm1217, %vm1249
        %vm2948 = vmand %vm1218, %vm1250
        %vm2949 = vmand %vm1219, %vm1251
        %vm2950 = vmand %vm1220, %vm1252
        %vm2951 = vmand %vm1221, %vm1253
        %vm2952 = vmand %vm1222, %vm1254
        %vm2953 = vmand %vm1223, %vm1255
        %v2954 = vsel %vm2922, 1, 0
        %v2955 = vsel %vm2923, 1, 0
        %v2956 = vsel %vm2924, 1, 0
        %v2957 = vsel %vm2925, 1, 0
        %v2958 = vsel %vm2926, 1, 0
        %v2959 = vsel %vm2927, 1, 0
        %v2960 = vsel %vm2928, 1, 0
        %v2961 = vsel %vm2929, 1, 0
        %v2962 = vsel %vm2930, 1, 0
        %v2963 = vsel %vm2931, 1, 0
        %v2964 = vsel %vm2932, 1, 0
        %v2965 = vsel %vm2933, 1, 0
        %v2966 = vsel %vm2934, 1, 0
        %v2967 = vsel %vm2935, 1, 0
        %v2968 = vsel %vm2936, 1, 0
        %v2969 = vsel %vm2937, 1, 0
        %v2970 = vsel %vm2938, 1, 0
        %v2971 = vsel %vm2939, 1, 0
        %v2972 = vsel %vm2940, 1, 0
        %v2973 = vsel %vm2941, 1, 0
        %v2974 = vsel %vm2942, 1, 0
        %v2975 = vsel %vm2943, 1, 0
        %v2976 = vsel %vm2944, 1, 0
        %v2977 = vsel %vm2945, 1, 0
        %v2978 = vsel %vm2946, 1, 0
        %v2979 = vsel %vm2947, 1, 0
        %v2980 = vsel %vm2948, 1, 0
        %v2981 = vsel %vm2949, 1, 0
        %v2982 = vsel %vm2950, 1, 0
        %v2983 = vsel %vm2951, 1, 0
        %v2984 = vsel %vm2952, 1, 0
        %v2985 = vsel %vm2953, 1, 0
        %vm2986 = vcmp.eq.s32.totalorder %v2954, 1
        %vm2987 = vcmp.eq.s32.totalorder %v2955, 1
        %vm2988 = vcmp.eq.s32.totalorder %v2956, 1
        %vm2989 = vcmp.eq.s32.totalorder %v2957, 1
        %vm2990 = vcmp.eq.s32.totalorder %v2958, 1
        %vm2991 = vcmp.eq.s32.totalorder %v2959, 1
        %vm2992 = vcmp.eq.s32.totalorder %v2960, 1
        %vm2993 = vcmp.eq.s32.totalorder %v2961, 1
        %vm2994 = vcmp.eq.s32.totalorder %v2962, 1
        %vm2995 = vcmp.eq.s32.totalorder %v2963, 1
        %vm2996 = vcmp.eq.s32.totalorder %v2964, 1
        %vm2997 = vcmp.eq.s32.totalorder %v2965, 1
        %vm2998 = vcmp.eq.s32.totalorder %v2966, 1
        %vm2999 = vcmp.eq.s32.totalorder %v2967, 1
        %vm3000 = vcmp.eq.s32.totalorder %v2968, 1
        %vm3001 = vcmp.eq.s32.totalorder %v2969, 1
        %vm3002 = vcmp.eq.s32.totalorder %v2970, 1
        %vm3003 = vcmp.eq.s32.totalorder %v2971, 1
        %vm3004 = vcmp.eq.s32.totalorder %v2972, 1
        %vm3005 = vcmp.eq.s32.totalorder %v2973, 1
        %vm3006 = vcmp.eq.s32.totalorder %v2974, 1
        %vm3007 = vcmp.eq.s32.totalorder %v2975, 1
        %vm3008 = vcmp.eq.s32.totalorder %v2976, 1
        %vm3009 = vcmp.eq.s32.totalorder %v2977, 1
        %vm3010 = vcmp.eq.s32.totalorder %v2978, 1
        %vm3011 = vcmp.eq.s32.totalorder %v2979, 1
        %vm3012 = vcmp.eq.s32.totalorder %v2980, 1
        %vm3013 = vcmp.eq.s32.totalorder %v2981, 1
        %vm3014 = vcmp.eq.s32.totalorder %v2982, 1
        %vm3015 = vcmp.eq.s32.totalorder %v2983, 1
        %vm3016 = vcmp.eq.s32.totalorder %v2984, 1
        %vm3017 = vcmp.eq.s32.totalorder %v2985, 1
        %v3018 = vsel %vm2986, %v1350, 0.0
        %v3019 = vsel %vm2987, %v1349, 0.0
        %v3020 = vsel %vm2988, %v1348, 0.0
        %v3021 = vsel %vm2989, %v1347, 0.0
        %v3022 = vsel %vm2990, %v1346, 0.0
        %v3023 = vsel %vm2991, %v1345, 0.0
        %v3024 = vsel %vm2992, %v1344, 0.0
        %v3025 = vsel %vm2993, %v1343, 0.0
        %v3026 = vsel %vm2994, %v1342, 0.0
        %v3027 = vsel %vm2995, %v1341, 0.0
        %v3028 = vsel %vm2996, %v1340, 0.0
        %v3029 = vsel %vm2997, %v1339, 0.0
        %v3030 = vsel %vm2998, %v1338, 0.0
        %v3031 = vsel %vm2999, %v1337, 0.0
        %v3032 = vsel %vm3000, %v1336, 0.0
        %v3033 = vsel %vm3001, %v1335, 0.0
        %v3034 = vsel %vm3002, %v1334, 0.0
        %v3035 = vsel %vm3003, %v1333, 0.0
        %v3036 = vsel %vm3004, %v1332, 0.0
        %v3037 = vsel %vm3005, %v1331, 0.0
        %v3038 = vsel %vm3006, %v1330, 0.0
        %v3039 = vsel %vm3007, %v1329, 0.0
        %v3040 = vsel %vm3008, %v1328, 0.0
        %v3041 = vsel %vm3009, %v1327, 0.0
        %v3042 = vsel %vm3010, %v1326, 0.0
        %v3043 = vsel %vm3011, %v1325, 0.0
        %v3044 = vsel %vm3012, %v1324, 0.0
        %v3045 = vsel %vm3013, %v1323, 0.0
        %v3046 = vsel %vm3014, %v1322, 0.0
        %v3047 = vsel %vm3015, %v1321, 0.0
        %v3048 = vsel %vm3016, %v1352, 0.0
        %v3049 = vsel %vm3017, %v1351, 0.0
        %v3050 = vpack.c.bf16 %v3019, %v3018
        %v3051 = vpack.c.bf16 %v3021, %v3020
        %v3052 = vpack.c.bf16 %v3023, %v3022
        %v3053 = vpack.c.bf16 %v3025, %v3024
        %v3054 = vpack.c.bf16 %v3027, %v3026
        %v3055 = vpack.c.bf16 %v3029, %v3028
        %v3056 = vpack.c.bf16 %v3031, %v3030
        %v3057 = vpack.c.bf16 %v3033, %v3032
        %v3058 = vpack.c.bf16 %v3035, %v3034
        %v3059 = vpack.c.bf16 %v3037, %v3036
        %v3060 = vpack.c.bf16 %v3039, %v3038
        %v3061 = vpack.c.bf16 %v3041, %v3040
        %v3062 = vpack.c.bf16 %v3043, %v3042
        %v3063 = vpack.c.bf16 %v3045, %v3044
        %v3064 = vpack.c.bf16 %v3047, %v3046
        %v3065 = vpack.c.bf16 %v3049, %v3048
        %v3082 = vunpack.c.l.b16 %v3050
        %v3083 = vunpack.c.h.b16 %v3050
        %v3084 = vunpack.c.l.b16 %v3051
        %v3085 = vunpack.c.h.b16 %v3051
        %v3086 = vunpack.c.l.b16 %v3052
        %v3087 = vunpack.c.h.b16 %v3052
        %v3088 = vunpack.c.l.b16 %v3053
        %v3089 = vunpack.c.h.b16 %v3053
        %v3090 = vunpack.c.l.b16 %v3054
        %v3091 = vunpack.c.h.b16 %v3054
        %v3092 = vunpack.c.l.b16 %v3055
        %v3093 = vunpack.c.h.b16 %v3055
        %v3094 = vunpack.c.l.b16 %v3056
        %v3095 = vunpack.c.h.b16 %v3056
        %v3096 = vunpack.c.l.b16 %v3057
        %v3097 = vunpack.c.h.b16 %v3057
        %v3098 = vunpack.c.l.b16 %v3058
        %v3099 = vunpack.c.h.b16 %v3058
        %v3100 = vunpack.c.l.b16 %v3059
        %v3101 = vunpack.c.h.b16 %v3059
        %v3102 = vunpack.c.l.b16 %v3060
        %v3103 = vunpack.c.h.b16 %v3060
        %v3104 = vunpack.c.l.b16 %v3061
        %v3105 = vunpack.c.h.b16 %v3061
        %v3106 = vunpack.c.l.b16 %v3062
        %v3107 = vunpack.c.h.b16 %v3062
        %v3108 = vunpack.c.l.b16 %v3063
        %v3109 = vunpack.c.h.b16 %v3063
        %v3110 = vunpack.c.l.b16 %v3064
        %v3111 = vunpack.c.h.b16 %v3064
        %v3112 = vunpack.c.l.b16 %v3065
        %v3113 = vunpack.c.h.b16 %v3065
        %v3114 = vpack.c.b16 %v3082, %v3082
        %v3115 = vpack.c.b16 %v3083, %v3083
        %v3116 = vpack.c.b16 %v3084, %v3084
        %v3117 = vpack.c.b16 %v3085, %v3085
        %v3118 = vpack.c.b16 %v3086, %v3086
        %v3119 = vpack.c.b16 %v3087, %v3087
        %v3120 = vpack.c.b16 %v3088, %v3088
        %v3121 = vpack.c.b16 %v3089, %v3089
        %v3122 = vpack.c.b16 %v3090, %v3090
        %v3123 = vpack.c.b16 %v3091, %v3091
        %v3124 = vpack.c.b16 %v3092, %v3092
        %v3125 = vpack.c.b16 %v3093, %v3093
        %v3126 = vpack.c.b16 %v3094, %v3094
        %v3127 = vpack.c.b16 %v3095, %v3095
        %v3128 = vpack.c.b16 %v3096, %v3096
        %v3129 = vpack.c.b16 %v3097, %v3097
        %v3130 = vpack.c.b16 %v3098, %v3098
        %v3131 = vpack.c.b16 %v3099, %v3099
        %v3132 = vpack.c.b16 %v3100, %v3100
        %v3133 = vpack.c.b16 %v3101, %v3101
        %v3134 = vpack.c.b16 %v3102, %v3102
        %v3135 = vpack.c.b16 %v3103, %v3103
        %v3136 = vpack.c.b16 %v3104, %v3104
        %v3137 = vpack.c.b16 %v3105, %v3105
        %v3138 = vpack.c.b16 %v3106, %v3106
        %v3139 = vpack.c.b16 %v3107, %v3107
        %v3140 = vpack.c.b16 %v3108, %v3108
        %v3141 = vpack.c.b16 %v3109, %v3109
        %v3142 = vpack.c.b16 %v3110, %v3110
        %v3143 = vpack.c.b16 %v3111, %v3111
        %v3144 = vpack.c.b16 %v3112, %v3112
        %v3145 = vpack.c.b16 %v3113, %v3113
        %3178 = vst [vmem:[#allocation2 + $0x18] sm:$0xf] %v3114
        %3179 = vst [vmem:[#allocation2 + $0x3c] sm:$0xf] %v3115
        %3180 = vst [vmem:[#allocation2 + $0x60] sm:$0xf] %v3116
        %3181 = vst [vmem:[#allocation2 + $0x84] sm:$0xf] %v3117
        %3182 = vst [vmem:[#allocation2 + $0xa8] sm:$0xf] %v3118
        %3183 = vst [vmem:[#allocation2 + $0xcc] sm:$0xf] %v3119
        %3184 = vst [vmem:[#allocation2 + $0xf0] sm:$0xf] %v3120
        %3185 = vst [vmem:[#allocation2 + $0x114] sm:$0xf] %v3121
        %3186 = vst [vmem:[#allocation2 + $0x138] sm:$0xf] %v3122
        %3187 = vst [vmem:[#allocation2 + $0x15c] sm:$0xf] %v3123
        %3188 = vst [vmem:[#allocation2 + $0x180] sm:$0xf] %v3124
        %3189 = vst [vmem:[#allocation2 + $0x1a4] sm:$0xf] %v3125
        %3190 = vst [vmem:[#allocation2 + $0x1c8] sm:$0xf] %v3126
        %3191 = vst [vmem:[#allocation2 + $0x1ec] sm:$0xf] %v3127
        %3192 = vst [vmem:[#allocation2 + $0x210] sm:$0xf] %v3128
        %3193 = vst [vmem:[#allocation2 + $0x234] sm:$0xf] %v3129
        %3194 = vst [vmem:[#allocation2 + $0x258] sm:$0xf] %v3130
        %3195 = vst [vmem:[#allocation2 + $0x27c] sm:$0xf] %v3131
        %3196 = vst [vmem:[#allocation2 + $0x2a0] sm:$0xf] %v3132
        %3197 = vst [vmem:[#allocation2 + $0x2c4] sm:$0xf] %v3133
        %3198 = vst [vmem:[#allocation2 + $0x2e8] sm:$0xf] %v3134
        %3199 = vst [vmem:[#allocation2 + $0x30c] sm:$0xf] %v3135
        %3200 = vst [vmem:[#allocation2 + $0x330] sm:$0xf] %v3136
        %3201 = vst [vmem:[#allocation2 + $0x354] sm:$0xf] %v3137
        %3202 = vst [vmem:[#allocation2 + $0x378] sm:$0xf] %v3138
        %3203 = vst [vmem:[#allocation2 + $0x39c] sm:$0xf] %v3139
        %3204 = vst [vmem:[#allocation2 + $0x3c0] sm:$0xf] %v3140
        %3205 = vst [vmem:[#allocation2 + $0x3e4] sm:$0xf] %v3141
        %3206 = vst [vmem:[#allocation2 + $0x408] sm:$0xf] %v3142
        %3207 = vst [vmem:[#allocation2 + $0x42c] sm:$0xf] %v3143
        %3208 = vst [vmem:[#allocation2 + $0x450] sm:$0xf] %v3144
        %3209 = vst [vmem:[#allocation2 + $0x474] sm:$0xf] %v3145
        %v3210 = vsel %vm1192, 1, 0
        %v3211 = vsel %vm1193, 1, 0
        %v3212 = vsel %vm1194, 1, 0
        %v3213 = vsel %vm1195, 1, 0
        %v3214 = vsel %vm1196, 1, 0
        %v3215 = vsel %vm1197, 1, 0
        %v3216 = vsel %vm1198, 1, 0
        %v3217 = vsel %vm1199, 1, 0
        %v3218 = vsel %vm1200, 1, 0
        %v3219 = vsel %vm1201, 1, 0
        %v3220 = vsel %vm1202, 1, 0
        %v3221 = vsel %vm1203, 1, 0
        %v3222 = vsel %vm1204, 1, 0
        %v3223 = vsel %vm1205, 1, 0
        %v3224 = vsel %vm1206, 1, 0
        %v3225 = vsel %vm1207, 1, 0
        %v3226 = vsel %vm1208, 1, 0
        %v3227 = vsel %vm1209, 1, 0
        %v3228 = vsel %vm1210, 1, 0
        %v3229 = vsel %vm1211, 1, 0
        %v3230 = vsel %vm1212, 1, 0
        %v3231 = vsel %vm1213, 1, 0
        %v3232 = vsel %vm1214, 1, 0
        %v3233 = vsel %vm1215, 1, 0
        %v3234 = vsel %vm1216, 1, 0
        %v3235 = vsel %vm1217, 1, 0
        %v3236 = vsel %vm1218, 1, 0
        %v3237 = vsel %vm1219, 1, 0
        %v3238 = vsel %vm1220, 1, 0
        %v3239 = vsel %vm1221, 1, 0
        %v3240 = vsel %vm1222, 1, 0
        %v3241 = vsel %vm1223, 1, 0
        %vm3242 = vcmp.eq.s32.totalorder %v3210, 1
        %vm3243 = vcmp.eq.s32.totalorder %v3211, 1
        %vm3244 = vcmp.eq.s32.totalorder %v3212, 1
        %vm3245 = vcmp.eq.s32.totalorder %v3213, 1
        %vm3246 = vcmp.eq.s32.totalorder %v3214, 1
        %vm3247 = vcmp.eq.s32.totalorder %v3215, 1
        %vm3248 = vcmp.eq.s32.totalorder %v3216, 1
        %vm3249 = vcmp.eq.s32.totalorder %v3217, 1
        %vm3250 = vcmp.eq.s32.totalorder %v3218, 1
        %vm3251 = vcmp.eq.s32.totalorder %v3219, 1
        %vm3252 = vcmp.eq.s32.totalorder %v3220, 1
        %vm3253 = vcmp.eq.s32.totalorder %v3221, 1
        %vm3254 = vcmp.eq.s32.totalorder %v3222, 1
        %vm3255 = vcmp.eq.s32.totalorder %v3223, 1
        %vm3256 = vcmp.eq.s32.totalorder %v3224, 1
        %vm3257 = vcmp.eq.s32.totalorder %v3225, 1
        %vm3258 = vcmp.eq.s32.totalorder %v3226, 1
        %vm3259 = vcmp.eq.s32.totalorder %v3227, 1
        %vm3260 = vcmp.eq.s32.totalorder %v3228, 1
        %vm3261 = vcmp.eq.s32.totalorder %v3229, 1
        %vm3262 = vcmp.eq.s32.totalorder %v3230, 1
        %vm3263 = vcmp.eq.s32.totalorder %v3231, 1
        %vm3264 = vcmp.eq.s32.totalorder %v3232, 1
        %vm3265 = vcmp.eq.s32.totalorder %v3233, 1
        %vm3266 = vcmp.eq.s32.totalorder %v3234, 1
        %vm3267 = vcmp.eq.s32.totalorder %v3235, 1
        %vm3268 = vcmp.eq.s32.totalorder %v3236, 1
        %vm3269 = vcmp.eq.s32.totalorder %v3237, 1
        %vm3270 = vcmp.eq.s32.totalorder %v3238, 1
        %vm3271 = vcmp.eq.s32.totalorder %v3239, 1
        %vm3272 = vcmp.eq.s32.totalorder %v3240, 1
        %vm3273 = vcmp.eq.s32.totalorder %v3241, 1
        %v3274 = vsel %vm3242, %v713, 0.0
        %v3275 = vsel %vm3243, %v714, 0.0
        %v3276 = vsel %vm3244, %v715, 0.0
        %v3277 = vsel %vm3245, %v716, 0.0
        %v3278 = vsel %vm3246, %v717, 0.0
        %v3279 = vsel %vm3247, %v718, 0.0
        %v3280 = vsel %vm3248, %v719, 0.0
        %v3281 = vsel %vm3249, %v720, 0.0
        %v3282 = vsel %vm3250, %v721, 0.0
        %v3283 = vsel %vm3251, %v722, 0.0
        %v3284 = vsel %vm3252, %v723, 0.0
        %v3285 = vsel %vm3253, %v724, 0.0
        %v3286 = vsel %vm3254, %v725, 0.0
        %v3287 = vsel %vm3255, %v726, 0.0
        %v3288 = vsel %vm3256, %v727, 0.0
        %v3289 = vsel %vm3257, %v728, 0.0
        %v3290 = vsel %vm3258, %v729, 0.0
        %v3291 = vsel %vm3259, %v730, 0.0
        %v3292 = vsel %vm3260, %v731, 0.0
        %v3293 = vsel %vm3261, %v732, 0.0
        %v3294 = vsel %vm3262, %v733, 0.0
        %v3295 = vsel %vm3263, %v734, 0.0
        %v3296 = vsel %vm3264, %v735, 0.0
        %v3297 = vsel %vm3265, %v736, 0.0
        %v3298 = vsel %vm3266, %v737, 0.0
        %v3299 = vsel %vm3267, %v738, 0.0
        %v3300 = vsel %vm3268, %v739, 0.0
        %v3301 = vsel %vm3269, %v740, 0.0
        %v3302 = vsel %vm3270, %v741, 0.0
        %v3303 = vsel %vm3271, %v742, 0.0
        %v3304 = vsel %vm3272, %v711, 0.0
        %v3305 = vsel %vm3273, %v712, 0.0
        %v3306 = vpack.c.bf16 %v3275, %v3274
        %v3307 = vpack.c.bf16 %v3277, %v3276
        %v3308 = vpack.c.bf16 %v3279, %v3278
        %v3309 = vpack.c.bf16 %v3281, %v3280
        %v3310 = vpack.c.bf16 %v3283, %v3282
        %v3311 = vpack.c.bf16 %v3285, %v3284
        %v3312 = vpack.c.bf16 %v3287, %v3286
        %v3313 = vpack.c.bf16 %v3289, %v3288
        %v3314 = vpack.c.bf16 %v3291, %v3290
        %v3315 = vpack.c.bf16 %v3293, %v3292
        %v3316 = vpack.c.bf16 %v3295, %v3294
        %v3317 = vpack.c.bf16 %v3297, %v3296
        %v3318 = vpack.c.bf16 %v3299, %v3298
        %v3319 = vpack.c.bf16 %v3301, %v3300
        %v3320 = vpack.c.bf16 %v3303, %v3302
        %v3321 = vpack.c.bf16 %v3305, %v3304
        %v3338 = vunpack.c.l.b16 %v3306
        %v3339 = vunpack.c.h.b16 %v3306
        %v3340 = vunpack.c.l.b16 %v3307
        %v3341 = vunpack.c.h.b16 %v3307
        %v3342 = vunpack.c.l.b16 %v3308
        %v3343 = vunpack.c.h.b16 %v3308
        %v3344 = vunpack.c.l.b16 %v3309
        %v3345 = vunpack.c.h.b16 %v3309
        %v3346 = vunpack.c.l.b16 %v3310
        %v3347 = vunpack.c.h.b16 %v3310
        %v3348 = vunpack.c.l.b16 %v3311
        %v3349 = vunpack.c.h.b16 %v3311
        %v3350 = vunpack.c.l.b16 %v3312
        %v3351 = vunpack.c.h.b16 %v3312
        %v3352 = vunpack.c.l.b16 %v3313
        %v3353 = vunpack.c.h.b16 %v3313
        %v3354 = vunpack.c.l.b16 %v3314
        %v3355 = vunpack.c.h.b16 %v3314
        %v3356 = vunpack.c.l.b16 %v3315
        %v3357 = vunpack.c.h.b16 %v3315
        %v3358 = vunpack.c.l.b16 %v3316
        %v3359 = vunpack.c.h.b16 %v3316
        %v3360 = vunpack.c.l.b16 %v3317
        %v3361 = vunpack.c.h.b16 %v3317
        %v3362 = vunpack.c.l.b16 %v3318
        %v3363 = vunpack.c.h.b16 %v3318
        %v3364 = vunpack.c.l.b16 %v3319
        %v3365 = vunpack.c.h.b16 %v3319
        %v3366 = vunpack.c.l.b16 %v3320
        %v3367 = vunpack.c.h.b16 %v3320
        %v3368 = vunpack.c.l.b16 %v3321
        %v3369 = vunpack.c.h.b16 %v3321
        %v3370 = vpack.c.b16 %v3338, %v3338
        %v3371 = vpack.c.b16 %v3339, %v3339
        %v3372 = vpack.c.b16 %v3340, %v3340
        %v3373 = vpack.c.b16 %v3341, %v3341
        %v3374 = vpack.c.b16 %v3342, %v3342
        %v3375 = vpack.c.b16 %v3343, %v3343
        %v3376 = vpack.c.b16 %v3344, %v3344
        %v3377 = vpack.c.b16 %v3345, %v3345
        %v3378 = vpack.c.b16 %v3346, %v3346
        %v3379 = vpack.c.b16 %v3347, %v3347
        %v3380 = vpack.c.b16 %v3348, %v3348
        %v3381 = vpack.c.b16 %v3349, %v3349
        %v3382 = vpack.c.b16 %v3350, %v3350
        %v3383 = vpack.c.b16 %v3351, %v3351
        %v3384 = vpack.c.b16 %v3352, %v3352
        %v3385 = vpack.c.b16 %v3353, %v3353
        %v3386 = vpack.c.b16 %v3354, %v3354
        %v3387 = vpack.c.b16 %v3355, %v3355
        %v3388 = vpack.c.b16 %v3356, %v3356
        %v3389 = vpack.c.b16 %v3357, %v3357
        %v3390 = vpack.c.b16 %v3358, %v3358
        %v3391 = vpack.c.b16 %v3359, %v3359
        %v3392 = vpack.c.b16 %v3360, %v3360
        %v3393 = vpack.c.b16 %v3361, %v3361
        %v3394 = vpack.c.b16 %v3362, %v3362
        %v3395 = vpack.c.b16 %v3363, %v3363
        %v3396 = vpack.c.b16 %v3364, %v3364
        %v3397 = vpack.c.b16 %v3365, %v3365
        %v3398 = vpack.c.b16 %v3366, %v3366
        %v3399 = vpack.c.b16 %v3367, %v3367
        %v3400 = vpack.c.b16 %v3368, %v3368
        %v3401 = vpack.c.b16 %v3369, %v3369
        %3434 = vst [vmem:[#allocation2 + $0x1c] sm:$0xf] %v3370
        %3435 = vst [vmem:[#allocation2 + $0x40] sm:$0xf] %v3371
        %3436 = vst [vmem:[#allocation2 + $0x64] sm:$0xf] %v3372
        %3437 = vst [vmem:[#allocation2 + $0x88] sm:$0xf] %v3373
        %3438 = vst [vmem:[#allocation2 + $0xac] sm:$0xf] %v3374
        %3439 = vst [vmem:[#allocation2 + $0xd0] sm:$0xf] %v3375
        %3440 = vst [vmem:[#allocation2 + $0xf4] sm:$0xf] %v3376
        %3441 = vst [vmem:[#allocation2 + $0x118] sm:$0xf] %v3377
        %3442 = vst [vmem:[#allocation2 + $0x13c] sm:$0xf] %v3378
        %3443 = vst [vmem:[#allocation2 + $0x160] sm:$0xf] %v3379
        %3444 = vst [vmem:[#allocation2 + $0x184] sm:$0xf] %v3380
        %3445 = vst [vmem:[#allocation2 + $0x1a8] sm:$0xf] %v3381
        %3446 = vst [vmem:[#allocation2 + $0x1cc] sm:$0xf] %v3382
        %3447 = vst [vmem:[#allocation2 + $0x1f0] sm:$0xf] %v3383
        %3448 = vst [vmem:[#allocation2 + $0x214] sm:$0xf] %v3384
        %3449 = vst [vmem:[#allocation2 + $0x238] sm:$0xf] %v3385
        %3450 = vst [vmem:[#allocation2 + $0x25c] sm:$0xf] %v3386
        %3451 = vst [vmem:[#allocation2 + $0x280] sm:$0xf] %v3387
        %3452 = vst [vmem:[#allocation2 + $0x2a4] sm:$0xf] %v3388
        %3453 = vst [vmem:[#allocation2 + $0x2c8] sm:$0xf] %v3389
        %3454 = vst [vmem:[#allocation2 + $0x2ec] sm:$0xf] %v3390
        %3455 = vst [vmem:[#allocation2 + $0x310] sm:$0xf] %v3391
        %3456 = vst [vmem:[#allocation2 + $0x334] sm:$0xf] %v3392
        %3457 = vst [vmem:[#allocation2 + $0x358] sm:$0xf] %v3393
        %3458 = vst [vmem:[#allocation2 + $0x37c] sm:$0xf] %v3394
        %3459 = vst [vmem:[#allocation2 + $0x3a0] sm:$0xf] %v3395
        %3460 = vst [vmem:[#allocation2 + $0x3c4] sm:$0xf] %v3396
        %3461 = vst [vmem:[#allocation2 + $0x3e8] sm:$0xf] %v3397
        %3462 = vst [vmem:[#allocation2 + $0x40c] sm:$0xf] %v3398
        %3463 = vst [vmem:[#allocation2 + $0x430] sm:$0xf] %v3399
        %3464 = vst [vmem:[#allocation2 + $0x454] sm:$0xf] %v3400
        %3465 = vst [vmem:[#allocation2 + $0x478] sm:$0xf] %v3401
        %vm3466 = vmand %vm1192, %vm1256
        %vm3467 = vmand %vm1193, %vm1257
        %vm3468 = vmand %vm1194, %vm1258
        %vm3469 = vmand %vm1195, %vm1259
        %vm3470 = vmand %vm1196, %vm1260
        %vm3471 = vmand %vm1197, %vm1261
        %vm3472 = vmand %vm1198, %vm1262
        %vm3473 = vmand %vm1199, %vm1263
        %vm3474 = vmand %vm1200, %vm1264
        %vm3475 = vmand %vm1201, %vm1265
        %vm3476 = vmand %vm1202, %vm1266
        %vm3477 = vmand %vm1203, %vm1267
        %vm3478 = vmand %vm1204, %vm1268
        %vm3479 = vmand %vm1205, %vm1269
        %vm3480 = vmand %vm1206, %vm1270
        %vm3481 = vmand %vm1207, %vm1271
        %vm3482 = vmand %vm1208, %vm1272
        %vm3483 = vmand %vm1209, %vm1273
        %vm3484 = vmand %vm1210, %vm1274
        %vm3485 = vmand %vm1211, %vm1275
        %vm3486 = vmand %vm1212, %vm1276
        %vm3487 = vmand %vm1213, %vm1277
        %vm3488 = vmand %vm1214, %vm1278
        %vm3489 = vmand %vm1215, %vm1279
        %vm3490 = vmand %vm1216, %vm1280
        %vm3491 = vmand %vm1217, %vm1281
        %vm3492 = vmand %vm1218, %vm1282
        %vm3493 = vmand %vm1219, %vm1283
        %vm3494 = vmand %vm1220, %vm1284
        %vm3495 = vmand %vm1221, %vm1285
        %vm3496 = vmand %vm1222, %vm1286
        %vm3497 = vmand %vm1223, %vm1287
        %v3498 = vsel %vm3466, 1, 0
        %v3499 = vsel %vm3467, 1, 0
        %v3500 = vsel %vm3468, 1, 0
        %v3501 = vsel %vm3469, 1, 0
        %v3502 = vsel %vm3470, 1, 0
        %v3503 = vsel %vm3471, 1, 0
        %v3504 = vsel %vm3472, 1, 0
        %v3505 = vsel %vm3473, 1, 0
        %v3506 = vsel %vm3474, 1, 0
        %v3507 = vsel %vm3475, 1, 0
        %v3508 = vsel %vm3476, 1, 0
        %v3509 = vsel %vm3477, 1, 0
        %v3510 = vsel %vm3478, 1, 0
        %v3511 = vsel %vm3479, 1, 0
        %v3512 = vsel %vm3480, 1, 0
        %v3513 = vsel %vm3481, 1, 0
        %v3514 = vsel %vm3482, 1, 0
        %v3515 = vsel %vm3483, 1, 0
        %v3516 = vsel %vm3484, 1, 0
        %v3517 = vsel %vm3485, 1, 0
        %v3518 = vsel %vm3486, 1, 0
        %v3519 = vsel %vm3487, 1, 0
        %v3520 = vsel %vm3488, 1, 0
        %v3521 = vsel %vm3489, 1, 0
        %v3522 = vsel %vm3490, 1, 0
        %v3523 = vsel %vm3491, 1, 0
        %v3524 = vsel %vm3492, 1, 0
        %v3525 = vsel %vm3493, 1, 0
        %v3526 = vsel %vm3494, 1, 0
        %v3527 = vsel %vm3495, 1, 0
        %v3528 = vsel %vm3496, 1, 0
        %v3529 = vsel %vm3497, 1, 0
        %vm3530 = vcmp.eq.s32.totalorder %v3498, 1
        %vm3531 = vcmp.eq.s32.totalorder %v3499, 1
        %vm3532 = vcmp.eq.s32.totalorder %v3500, 1
        %vm3533 = vcmp.eq.s32.totalorder %v3501, 1
        %vm3534 = vcmp.eq.s32.totalorder %v3502, 1
        %vm3535 = vcmp.eq.s32.totalorder %v3503, 1
        %vm3536 = vcmp.eq.s32.totalorder %v3504, 1
        %vm3537 = vcmp.eq.s32.totalorder %v3505, 1
        %vm3538 = vcmp.eq.s32.totalorder %v3506, 1
        %vm3539 = vcmp.eq.s32.totalorder %v3507, 1
        %vm3540 = vcmp.eq.s32.totalorder %v3508, 1
        %vm3541 = vcmp.eq.s32.totalorder %v3509, 1
        %vm3542 = vcmp.eq.s32.totalorder %v3510, 1
        %vm3543 = vcmp.eq.s32.totalorder %v3511, 1
        %vm3544 = vcmp.eq.s32.totalorder %v3512, 1
        %vm3545 = vcmp.eq.s32.totalorder %v3513, 1
        %vm3546 = vcmp.eq.s32.totalorder %v3514, 1
        %vm3547 = vcmp.eq.s32.totalorder %v3515, 1
        %vm3548 = vcmp.eq.s32.totalorder %v3516, 1
        %vm3549 = vcmp.eq.s32.totalorder %v3517, 1
        %vm3550 = vcmp.eq.s32.totalorder %v3518, 1
        %vm3551 = vcmp.eq.s32.totalorder %v3519, 1
        %vm3552 = vcmp.eq.s32.totalorder %v3520, 1
        %vm3553 = vcmp.eq.s32.totalorder %v3521, 1
        %vm3554 = vcmp.eq.s32.totalorder %v3522, 1
        %vm3555 = vcmp.eq.s32.totalorder %v3523, 1
        %vm3556 = vcmp.eq.s32.totalorder %v3524, 1
        %vm3557 = vcmp.eq.s32.totalorder %v3525, 1
        %vm3558 = vcmp.eq.s32.totalorder %v3526, 1
        %vm3559 = vcmp.eq.s32.totalorder %v3527, 1
        %vm3560 = vcmp.eq.s32.totalorder %v3528, 1
        %vm3561 = vcmp.eq.s32.totalorder %v3529, 1
        %v3562 = vsel %vm3530, %v1958, 0.0
        %v3563 = vsel %vm3531, %v1957, 0.0
        %v3564 = vsel %vm3532, %v1956, 0.0
        %v3565 = vsel %vm3533, %v1955, 0.0
        %v3566 = vsel %vm3534, %v1954, 0.0
        %v3567 = vsel %vm3535, %v1953, 0.0
        %v3568 = vsel %vm3536, %v1952, 0.0
        %v3569 = vsel %vm3537, %v1951, 0.0
        %v3570 = vsel %vm3538, %v1950, 0.0
        %v3571 = vsel %vm3539, %v1949, 0.0
        %v3572 = vsel %vm3540, %v1948, 0.0
        %v3573 = vsel %vm3541, %v1947, 0.0
        %v3574 = vsel %vm3542, %v1946, 0.0
        %v3575 = vsel %vm3543, %v1945, 0.0
        %v3576 = vsel %vm3544, %v1944, 0.0
        %v3577 = vsel %vm3545, %v1943, 0.0
        %v3578 = vsel %vm3546, %v1942, 0.0
        %v3579 = vsel %vm3547, %v1941, 0.0
        %v3580 = vsel %vm3548, %v1940, 0.0
        %v3581 = vsel %vm3549, %v1939, 0.0
        %v3582 = vsel %vm3550, %v1938, 0.0
        %v3583 = vsel %vm3551, %v1937, 0.0
        %v3584 = vsel %vm3552, %v1936, 0.0
        %v3585 = vsel %vm3553, %v1935, 0.0
        %v3586 = vsel %vm3554, %v1934, 0.0
        %v3587 = vsel %vm3555, %v1933, 0.0
        %v3588 = vsel %vm3556, %v1932, 0.0
        %v3589 = vsel %vm3557, %v1931, 0.0
        %v3590 = vsel %vm3558, %v1930, 0.0
        %v3591 = vsel %vm3559, %v1961, 0.0
        %v3592 = vsel %vm3560, %v1960, 0.0
        %v3593 = vsel %vm3561, %v1959, 0.0
        %v3594 = vpack.c.bf16 %v3563, %v3562
        %v3595 = vpack.c.bf16 %v3565, %v3564
        %v3596 = vpack.c.bf16 %v3567, %v3566
        %v3597 = vpack.c.bf16 %v3569, %v3568
        %v3598 = vpack.c.bf16 %v3571, %v3570
        %v3599 = vpack.c.bf16 %v3573, %v3572
        %v3600 = vpack.c.bf16 %v3575, %v3574
        %v3601 = vpack.c.bf16 %v3577, %v3576
        %v3602 = vpack.c.bf16 %v3579, %v3578
        %v3603 = vpack.c.bf16 %v3581, %v3580
        %v3604 = vpack.c.bf16 %v3583, %v3582
        %v3605 = vpack.c.bf16 %v3585, %v3584
        %v3606 = vpack.c.bf16 %v3587, %v3586
        %v3607 = vpack.c.bf16 %v3589, %v3588
        %v3608 = vpack.c.bf16 %v3591, %v3590
        %v3609 = vpack.c.bf16 %v3593, %v3592
        %v3626 = vunpack.c.l.b16 %v3594
        %v3627 = vunpack.c.h.b16 %v3594
        %v3628 = vunpack.c.l.b16 %v3595
        %v3629 = vunpack.c.h.b16 %v3595
        %v3630 = vunpack.c.l.b16 %v3596
        %v3631 = vunpack.c.h.b16 %v3596
        %v3632 = vunpack.c.l.b16 %v3597
        %v3633 = vunpack.c.h.b16 %v3597
        %v3634 = vunpack.c.l.b16 %v3598
        %v3635 = vunpack.c.h.b16 %v3598
        %v3636 = vunpack.c.l.b16 %v3599
        %v3637 = vunpack.c.h.b16 %v3599
        %v3638 = vunpack.c.l.b16 %v3600
        %v3639 = vunpack.c.h.b16 %v3600
        %v3640 = vunpack.c.l.b16 %v3601
        %v3641 = vunpack.c.h.b16 %v3601
        %v3642 = vunpack.c.l.b16 %v3602
        %v3643 = vunpack.c.h.b16 %v3602
        %v3644 = vunpack.c.l.b16 %v3603
        %v3645 = vunpack.c.h.b16 %v3603
        %v3646 = vunpack.c.l.b16 %v3604
        %v3647 = vunpack.c.h.b16 %v3604
        %v3648 = vunpack.c.l.b16 %v3605
        %v3649 = vunpack.c.h.b16 %v3605
        %v3650 = vunpack.c.l.b16 %v3606
        %v3651 = vunpack.c.h.b16 %v3606
        %v3652 = vunpack.c.l.b16 %v3607
        %v3653 = vunpack.c.h.b16 %v3607
        %v3654 = vunpack.c.l.b16 %v3608
        %v3655 = vunpack.c.h.b16 %v3608
        %v3656 = vunpack.c.l.b16 %v3609
        %v3657 = vunpack.c.h.b16 %v3609
        %v3658 = vpack.c.b16 %v3626, %v3626
        %v3659 = vpack.c.b16 %v3627, %v3627
        %v3660 = vpack.c.b16 %v3628, %v3628
        %v3661 = vpack.c.b16 %v3629, %v3629
        %v3662 = vpack.c.b16 %v3630, %v3630
        %v3663 = vpack.c.b16 %v3631, %v3631
        %v3664 = vpack.c.b16 %v3632, %v3632
        %v3665 = vpack.c.b16 %v3633, %v3633
        %v3666 = vpack.c.b16 %v3634, %v3634
        %v3667 = vpack.c.b16 %v3635, %v3635
        %v3668 = vpack.c.b16 %v3636, %v3636
        %v3669 = vpack.c.b16 %v3637, %v3637
        %v3670 = vpack.c.b16 %v3638, %v3638
        %v3671 = vpack.c.b16 %v3639, %v3639
        %v3672 = vpack.c.b16 %v3640, %v3640
        %v3673 = vpack.c.b16 %v3641, %v3641
        %v3674 = vpack.c.b16 %v3642, %v3642
        %v3675 = vpack.c.b16 %v3643, %v3643
        %v3676 = vpack.c.b16 %v3644, %v3644
        %v3677 = vpack.c.b16 %v3645, %v3645
        %v3678 = vpack.c.b16 %v3646, %v3646
        %v3679 = vpack.c.b16 %v3647, %v3647
        %v3680 = vpack.c.b16 %v3648, %v3648
        %v3681 = vpack.c.b16 %v3649, %v3649
        %v3682 = vpack.c.b16 %v3650, %v3650
        %v3683 = vpack.c.b16 %v3651, %v3651
        %v3684 = vpack.c.b16 %v3652, %v3652
        %v3685 = vpack.c.b16 %v3653, %v3653
        %v3686 = vpack.c.b16 %v3654, %v3654
        %v3687 = vpack.c.b16 %v3655, %v3655
        %v3688 = vpack.c.b16 %v3656, %v3656
        %v3689 = vpack.c.b16 %v3657, %v3657
        %3722 = vst [vmem:[#allocation2 + $0x20] sm:$0xf] %v3658
        %3723 = vst [vmem:[#allocation2 + $0x44] sm:$0xf] %v3659
        %3724 = vst [vmem:[#allocation2 + $0x68] sm:$0xf] %v3660
        %3725 = vst [vmem:[#allocation2 + $0x8c] sm:$0xf] %v3661
        %3726 = vst [vmem:[#allocation2 + $0xb0] sm:$0xf] %v3662
        %3727 = vst [vmem:[#allocation2 + $0xd4] sm:$0xf] %v3663
        %3728 = vst [vmem:[#allocation2 + $0xf8] sm:$0xf] %v3664
        %3729 = vst [vmem:[#allocation2 + $0x11c] sm:$0xf] %v3665
        %3730 = vst [vmem:[#allocation2 + $0x140] sm:$0xf] %v3666
        %3731 = vst [vmem:[#allocation2 + $0x164] sm:$0xf] %v3667
        %3732 = vst [vmem:[#allocation2 + $0x188] sm:$0xf] %v3668
        %3733 = vst [vmem:[#allocation2 + $0x1ac] sm:$0xf] %v3669
        %3734 = vst [vmem:[#allocation2 + $0x1d0] sm:$0xf] %v3670
        %3735 = vst [vmem:[#allocation2 + $0x1f4] sm:$0xf] %v3671
        %3736 = vst [vmem:[#allocation2 + $0x218] sm:$0xf] %v3672
        %3737 = vst [vmem:[#allocation2 + $0x23c] sm:$0xf] %v3673
        %3738 = vst [vmem:[#allocation2 + $0x260] sm:$0xf] %v3674
        %3739 = vst [vmem:[#allocation2 + $0x284] sm:$0xf] %v3675
        %3740 = vst [vmem:[#allocation2 + $0x2a8] sm:$0xf] %v3676
        %3741 = vst [vmem:[#allocation2 + $0x2cc] sm:$0xf] %v3677
        %3742 = vst [vmem:[#allocation2 + $0x2f0] sm:$0xf] %v3678
        %3743 = vst [vmem:[#allocation2 + $0x314] sm:$0xf] %v3679
        %3744 = vst [vmem:[#allocation2 + $0x338] sm:$0xf] %v3680
        %3745 = vst [vmem:[#allocation2 + $0x35c] sm:$0xf] %v3681
        %3746 = vst [vmem:[#allocation2 + $0x380] sm:$0xf] %v3682
        %3747 = vst [vmem:[#allocation2 + $0x3a4] sm:$0xf] %v3683
        %3748 = vst [vmem:[#allocation2 + $0x3c8] sm:$0xf] %v3684
        %3749 = vst [vmem:[#allocation2 + $0x3ec] sm:$0xf] %v3685
        %3750 = vst [vmem:[#allocation2 + $0x410] sm:$0xf] %v3686
        %3751 = vst [vmem:[#allocation2 + $0x434] sm:$0xf] %v3687
        %3752 = vst [vmem:[#allocation2 + $0x458] sm:$0xf] %v3688
        %3753 = vst [vmem:[#allocation2 + $0x47c] sm:$0xf] %v3689
        %v3754 = vld [vmem:[#allocation2] sm:$0xff]
        %v3755 = vld [vmem:[#allocation2 + $0x8] sm:$0xff]
        %v3756 = vld [vmem:[#allocation2 + $0x10] sm:$0xff]
        %v3757 = vld [vmem:[#allocation2 + $0x18] sm:$0xff]
        %v3758 = vld [vmem:[#allocation2 + $0x20] sm:$0xf]
        %v3759 = vld [vmem:[#allocation2 + $0x24] sm:$0xff]
        %v3760 = vld [vmem:[#allocation2 + $0x2c] sm:$0xff]
        %v3761 = vld [vmem:[#allocation2 + $0x34] sm:$0xff]
        %v3762 = vld [vmem:[#allocation2 + $0x3c] sm:$0xff]
        %v3763 = vld [vmem:[#allocation2 + $0x44] sm:$0xf]
        %v3764 = vld [vmem:[#allocation2 + $0x48] sm:$0xff]
        %v3765 = vld [vmem:[#allocation2 + $0x50] sm:$0xff]
        %v3766 = vld [vmem:[#allocation2 + $0x58] sm:$0xff]
        %v3767 = vld [vmem:[#allocation2 + $0x60] sm:$0xff]
        %v3768 = vld [vmem:[#allocation2 + $0x68] sm:$0xf]
        %v3769 = vld [vmem:[#allocation2 + $0x6c] sm:$0xff]
        %v3770 = vld [vmem:[#allocation2 + $0x74] sm:$0xff]
        %v3771 = vld [vmem:[#allocation2 + $0x7c] sm:$0xff]
        %v3772 = vld [vmem:[#allocation2 + $0x84] sm:$0xff]
        %v3773 = vld [vmem:[#allocation2 + $0x8c] sm:$0xf]
        %v3774 = vld [vmem:[#allocation2 + $0x90] sm:$0xff]
        %v3775 = vld [vmem:[#allocation2 + $0x98] sm:$0xff]
        %v3776 = vld [vmem:[#allocation2 + $0xa0] sm:$0xff]
        %v3777 = vld [vmem:[#allocation2 + $0xa8] sm:$0xff]
        %v3778 = vld [vmem:[#allocation2 + $0xb0] sm:$0xf]
        %v3779 = vld [vmem:[#allocation2 + $0xb4] sm:$0xff]
        %v3780 = vld [vmem:[#allocation2 + $0xbc] sm:$0xff]
        %v3781 = vld [vmem:[#allocation2 + $0xc4] sm:$0xff]
        %v3782 = vld [vmem:[#allocation2 + $0xcc] sm:$0xff]
        %v3783 = vld [vmem:[#allocation2 + $0xd4] sm:$0xf]
        %v3784 = vld [vmem:[#allocation2 + $0xd8] sm:$0xff]
        %v3785 = vld [vmem:[#allocation2 + $0xe0] sm:$0xff]
        %v3786 = vld [vmem:[#allocation2 + $0xe8] sm:$0xff]
        %v3787 = vld [vmem:[#allocation2 + $0xf0] sm:$0xff]
        %v3788 = vld [vmem:[#allocation2 + $0xf8] sm:$0xf]
        %v3789 = vld [vmem:[#allocation2 + $0xfc] sm:$0xff]
        %v3790 = vld [vmem:[#allocation2 + $0x104] sm:$0xff]
        %v3791 = vld [vmem:[#allocation2 + $0x10c] sm:$0xff]
        %v3792 = vld [vmem:[#allocation2 + $0x114] sm:$0xff]
        %v3793 = vld [vmem:[#allocation2 + $0x11c] sm:$0xf]
        %v3794 = vld [vmem:[#allocation2 + $0x120] sm:$0xff]
        %v3795 = vld [vmem:[#allocation2 + $0x128] sm:$0xff]
        %v3796 = vld [vmem:[#allocation2 + $0x130] sm:$0xff]
        %v3797 = vld [vmem:[#allocation2 + $0x138] sm:$0xff]
        %v3798 = vld [vmem:[#allocation2 + $0x140] sm:$0xf]
        %v3799 = vld [vmem:[#allocation2 + $0x144] sm:$0xff]
        %v3800 = vld [vmem:[#allocation2 + $0x14c] sm:$0xff]
        %v3801 = vld [vmem:[#allocation2 + $0x154] sm:$0xff]
        %v3802 = vld [vmem:[#allocation2 + $0x15c] sm:$0xff]
        %v3803 = vld [vmem:[#allocation2 + $0x164] sm:$0xf]
        %v3804 = vld [vmem:[#allocation2 + $0x168] sm:$0xff]
        %v3805 = vld [vmem:[#allocation2 + $0x170] sm:$0xff]
        %v3806 = vld [vmem:[#allocation2 + $0x178] sm:$0xff]
        %v3807 = vld [vmem:[#allocation2 + $0x180] sm:$0xff]
        %v3808 = vld [vmem:[#allocation2 + $0x188] sm:$0xf]
        %v3809 = vld [vmem:[#allocation2 + $0x18c] sm:$0xff]
        %v3810 = vld [vmem:[#allocation2 + $0x194] sm:$0xff]
        %v3811 = vld [vmem:[#allocation2 + $0x19c] sm:$0xff]
        %v3812 = vld [vmem:[#allocation2 + $0x1a4] sm:$0xff]
        %v3813 = vld [vmem:[#allocation2 + $0x1ac] sm:$0xf]
        %v3814 = vld [vmem:[#allocation2 + $0x1b0] sm:$0xff]
        %v3815 = vld [vmem:[#allocation2 + $0x1b8] sm:$0xff]
        %v3816 = vld [vmem:[#allocation2 + $0x1c0] sm:$0xff]
        %v3817 = vld [vmem:[#allocation2 + $0x1c8] sm:$0xff]
        %v3818 = vld [vmem:[#allocation2 + $0x1d0] sm:$0xf]
        %v3819 = vld [vmem:[#allocation2 + $0x1d4] sm:$0xff]
        %v3820 = vld [vmem:[#allocation2 + $0x1dc] sm:$0xff]
        %v3821 = vld [vmem:[#allocation2 + $0x1e4] sm:$0xff]
        %v3822 = vld [vmem:[#allocation2 + $0x1ec] sm:$0xff]
        %v3823 = vld [vmem:[#allocation2 + $0x1f4] sm:$0xf]
        %v3824 = vld [vmem:[#allocation2 + $0x1f8] sm:$0xff]
        %v3825 = vld [vmem:[#allocation2 + $0x200] sm:$0xff]
        %v3826 = vld [vmem:[#allocation2 + $0x208] sm:$0xff]
        %v3827 = vld [vmem:[#allocation2 + $0x210] sm:$0xff]
        %v3828 = vld [vmem:[#allocation2 + $0x218] sm:$0xf]
        %v3829 = vld [vmem:[#allocation2 + $0x21c] sm:$0xff]
        %v3830 = vld [vmem:[#allocation2 + $0x224] sm:$0xff]
        %v3831 = vld [vmem:[#allocation2 + $0x22c] sm:$0xff]
        %v3832 = vld [vmem:[#allocation2 + $0x234] sm:$0xff]
        %v3833 = vld [vmem:[#allocation2 + $0x23c] sm:$0xf]
        %v3834 = vld [vmem:[#allocation2 + $0x240] sm:$0xff]
        %v3835 = vld [vmem:[#allocation2 + $0x248] sm:$0xff]
        %v3836 = vld [vmem:[#allocation2 + $0x250] sm:$0xff]
        %v3837 = vld [vmem:[#allocation2 + $0x258] sm:$0xff]
        %v3838 = vld [vmem:[#allocation2 + $0x260] sm:$0xf]
        %v3839 = vld [vmem:[#allocation2 + $0x264] sm:$0xff]
        %v3840 = vld [vmem:[#allocation2 + $0x26c] sm:$0xff]
        %v3841 = vld [vmem:[#allocation2 + $0x274] sm:$0xff]
        %v3842 = vld [vmem:[#allocation2 + $0x27c] sm:$0xff]
        %v3843 = vld [vmem:[#allocation2 + $0x284] sm:$0xf]
        %v3844 = vld [vmem:[#allocation2 + $0x288] sm:$0xff]
        %v3845 = vld [vmem:[#allocation2 + $0x290] sm:$0xff]
        %v3846 = vld [vmem:[#allocation2 + $0x298] sm:$0xff]
        %v3847 = vld [vmem:[#allocation2 + $0x2a0] sm:$0xff]
        %v3848 = vld [vmem:[#allocation2 + $0x2a8] sm:$0xf]
        %v3849 = vld [vmem:[#allocation2 + $0x2ac] sm:$0xff]
        %v3850 = vld [vmem:[#allocation2 + $0x2b4] sm:$0xff]
        %v3851 = vld [vmem:[#allocation2 + $0x2bc] sm:$0xff]
        %v3852 = vld [vmem:[#allocation2 + $0x2c4] sm:$0xff]
        %v3853 = vld [vmem:[#allocation2 + $0x2cc] sm:$0xf]
        %v3854 = vld [vmem:[#allocation2 + $0x2d0] sm:$0xff]
        %v3855 = vld [vmem:[#allocation2 + $0x2d8] sm:$0xff]
        %v3856 = vld [vmem:[#allocation2 + $0x2e0] sm:$0xff]
        %v3857 = vld [vmem:[#allocation2 + $0x2e8] sm:$0xff]
        %v3858 = vld [vmem:[#allocation2 + $0x2f0] sm:$0xf]
        %v3859 = vld [vmem:[#allocation2 + $0x2f4] sm:$0xff]
        %v3860 = vld [vmem:[#allocation2 + $0x2fc] sm:$0xff]
        %v3861 = vld [vmem:[#allocation2 + $0x304] sm:$0xff]
        %v3862 = vld [vmem:[#allocation2 + $0x30c] sm:$0xff]
        %v3863 = vld [vmem:[#allocation2 + $0x314] sm:$0xf]
        %v3864 = vld [vmem:[#allocation2 + $0x318] sm:$0xff]
        %v3865 = vld [vmem:[#allocation2 + $0x320] sm:$0xff]
        %v3866 = vld [vmem:[#allocation2 + $0x328] sm:$0xff]
        %v3867 = vld [vmem:[#allocation2 + $0x330] sm:$0xff]
        %v3868 = vld [vmem:[#allocation2 + $0x338] sm:$0xf]
        %v3869 = vld [vmem:[#allocation2 + $0x33c] sm:$0xff]
        %v3870 = vld [vmem:[#allocation2 + $0x344] sm:$0xff]
        %v3871 = vld [vmem:[#allocation2 + $0x34c] sm:$0xff]
        %v3872 = vld [vmem:[#allocation2 + $0x354] sm:$0xff]
        %v3873 = vld [vmem:[#allocation2 + $0x35c] sm:$0xf]
        %v3874 = vld [vmem:[#allocation2 + $0x360] sm:$0xff]
        %v3875 = vld [vmem:[#allocation2 + $0x368] sm:$0xff]
        %v3876 = vld [vmem:[#allocation2 + $0x370] sm:$0xff]
        %v3877 = vld [vmem:[#allocation2 + $0x378] sm:$0xff]
        %v3878 = vld [vmem:[#allocation2 + $0x380] sm:$0xf]
        %v3879 = vld [vmem:[#allocation2 + $0x384] sm:$0xff]
        %v3880 = vld [vmem:[#allocation2 + $0x38c] sm:$0xff]
        %v3881 = vld [vmem:[#allocation2 + $0x394] sm:$0xff]
        %v3882 = vld [vmem:[#allocation2 + $0x39c] sm:$0xff]
        %v3883 = vld [vmem:[#allocation2 + $0x3a4] sm:$0xf]
        %v3884 = vld [vmem:[#allocation2 + $0x3a8] sm:$0xff]
        %v3885 = vld [vmem:[#allocation2 + $0x3b0] sm:$0xff]
        %v3886 = vld [vmem:[#allocation2 + $0x3b8] sm:$0xff]
        %v3887 = vld [vmem:[#allocation2 + $0x3c0] sm:$0xff]
        %v3888 = vld [vmem:[#allocation2 + $0x3c8] sm:$0xf]
        %v3889 = vld [vmem:[#allocation2 + $0x3cc] sm:$0xff]
        %v3890 = vld [vmem:[#allocation2 + $0x3d4] sm:$0xff]
        %v3891 = vld [vmem:[#allocation2 + $0x3dc] sm:$0xff]
        %v3892 = vld [vmem:[#allocation2 + $0x3e4] sm:$0xff]
        %v3893 = vld [vmem:[#allocation2 + $0x3ec] sm:$0xf]
        %v3894 = vld [vmem:[#allocation2 + $0x3f0] sm:$0xff]
        %v3895 = vld [vmem:[#allocation2 + $0x3f8] sm:$0xff]
        %v3896 = vld [vmem:[#allocation2 + $0x400] sm:$0xff]
        %v3897 = vld [vmem:[#allocation2 + $0x408] sm:$0xff]
        %v3898 = vld [vmem:[#allocation2 + $0x410] sm:$0xf]
        %v3899 = vld [vmem:[#allocation2 + $0x414] sm:$0xff]
        %v3900 = vld [vmem:[#allocation2 + $0x41c] sm:$0xff]
        %v3901 = vld [vmem:[#allocation2 + $0x424] sm:$0xff]
        %v3902 = vld [vmem:[#allocation2 + $0x42c] sm:$0xff]
        %v3903 = vld [vmem:[#allocation2 + $0x434] sm:$0xf]
        %v3904 = vld [vmem:[#allocation2 + $0x438] sm:$0xff]
        %v3905 = vld [vmem:[#allocation2 + $0x440] sm:$0xff]
        %v3906 = vld [vmem:[#allocation2 + $0x448] sm:$0xff]
        %v3907 = vld [vmem:[#allocation2 + $0x450] sm:$0xff]
        %v3908 = vld [vmem:[#allocation2 + $0x458] sm:$0xf]
        %v3909 = vld [vmem:[#allocation2 + $0x45c] sm:$0xff]
        %v3910 = vld [vmem:[#allocation2 + $0x464] sm:$0xff]
        %v3911 = vld [vmem:[#allocation2 + $0x46c] sm:$0xff]
        %v3912 = vld [vmem:[#allocation2 + $0x474] sm:$0xff]
        %v3913 = vld [vmem:[#allocation2 + $0x47c] sm:$0xf]
        %v3914 = vld [vmem:[#allocation8] sm:$0xf]
        %v3915 = vld [vmem:[#allocation8 + $0x4] sm:$0xf]
        %v3916 = vld [vmem:[#allocation8 + $0x8] sm:$0xf]
        %v3917 = vld [vmem:[#allocation8 + $0xc] sm:$0xf]
        %v3918 = vld [vmem:[#allocation8 + $0x10] sm:$0xf]
        %v3919 = vld [vmem:[#allocation8 + $0x14] sm:$0xf]
        %v3920 = vld [vmem:[#allocation8 + $0x18] sm:$0xf]
        %v3921 = vld [vmem:[#allocation8 + $0x1c] sm:$0xf]
        %v3922 = vld [vmem:[#allocation8 + $0x20] sm:$0xf]
        %v3923 = vld [vmem:[#allocation8 + $0x24] sm:$0xf]
        %v3924 = vld [vmem:[#allocation8 + $0x28] sm:$0xf]
        %v3925 = vld [vmem:[#allocation8 + $0x2c] sm:$0xf]
        %v3926 = vld [vmem:[#allocation8 + $0x30] sm:$0xf]
        %v3927 = vld [vmem:[#allocation8 + $0x34] sm:$0xf]
        %v3928 = vld [vmem:[#allocation8 + $0x38] sm:$0xf]
        %v3929 = vld [vmem:[#allocation8 + $0x3c] sm:$0xf]
        %v3930 = vld [vmem:[#allocation8 + $0x40] sm:$0xf]
        %v3931 = vld [vmem:[#allocation8 + $0x44] sm:$0xf]
        %v3932 = vld [vmem:[#allocation8 + $0x48] sm:$0xf]
        %v3933 = vld [vmem:[#allocation8 + $0x4c] sm:$0xf]
        %v3934 = vld [vmem:[#allocation8 + $0x50] sm:$0xf]
        %v3935 = vld [vmem:[#allocation8 + $0x54] sm:$0xf]
        %v3936 = vld [vmem:[#allocation8 + $0x58] sm:$0xf]
        %v3937 = vld [vmem:[#allocation8 + $0x5c] sm:$0xf]
        %v3938 = vld [vmem:[#allocation8 + $0x60] sm:$0xf]
        %v3939 = vld [vmem:[#allocation8 + $0x64] sm:$0xf]
        %v3940 = vld [vmem:[#allocation8 + $0x68] sm:$0xf]
        %v3941 = vld [vmem:[#allocation8 + $0x6c] sm:$0xf]
        %v3942 = vld [vmem:[#allocation8 + $0x70] sm:$0xf]
        %v3943 = vld [vmem:[#allocation8 + $0x74] sm:$0xf]
        %v3944 = vld [vmem:[#allocation8 + $0x78] sm:$0xf]
        %v3945 = vld [vmem:[#allocation8 + $0x7c] sm:$0xf]
        %v3946 = vld [vmem:[#allocation8 + $0x80] sm:$0xf]
        %v3947 = vld [vmem:[#allocation8 + $0x84] sm:$0xf]
        %v3948 = vld [vmem:[#allocation8 + $0x88] sm:$0xf]
        %v3949 = vld [vmem:[#allocation8 + $0x8c] sm:$0xf]
        %v3950 = vld [vmem:[#allocation8 + $0x90] sm:$0xf]
        %v3951 = vld [vmem:[#allocation8 + $0x94] sm:$0xf]
        %v3952 = vld [vmem:[#allocation8 + $0x98] sm:$0xf]
        %v3953 = vld [vmem:[#allocation8 + $0x9c] sm:$0xf]
        %v3954 = vld [vmem:[#allocation8 + $0xa0] sm:$0xf]
        %v3955 = vld [vmem:[#allocation8 + $0xa4] sm:$0xf]
        %v3956 = vld [vmem:[#allocation8 + $0xa8] sm:$0xf]
        %v3957 = vld [vmem:[#allocation8 + $0xac] sm:$0xf]
        %v3958 = vld [vmem:[#allocation8 + $0xb0] sm:$0xf]
        %v3959 = vld [vmem:[#allocation8 + $0xb4] sm:$0xf]
        %v3960 = vld [vmem:[#allocation8 + $0xb8] sm:$0xf]
        %v3961 = vld [vmem:[#allocation8 + $0xbc] sm:$0xf]
        %v3962 = vld [vmem:[#allocation8 + $0xc0] sm:$0xf]
        %v3963 = vld [vmem:[#allocation8 + $0xc4] sm:$0xf]
        %v3964 = vld [vmem:[#allocation8 + $0xc8] sm:$0xf]
        %v3965 = vld [vmem:[#allocation8 + $0xcc] sm:$0xf]
        %v3966 = vld [vmem:[#allocation8 + $0xd0] sm:$0xf]
        %v3967 = vld [vmem:[#allocation8 + $0xd4] sm:$0xf]
        %v3968 = vld [vmem:[#allocation8 + $0xd8] sm:$0xf]
        %v3969 = vld [vmem:[#allocation8 + $0xdc] sm:$0xf]
        %v3970 = vld [vmem:[#allocation8 + $0xe0] sm:$0xf]
        %v3971 = vld [vmem:[#allocation8 + $0xe4] sm:$0xf]
        %v3972 = vld [vmem:[#allocation8 + $0xe8] sm:$0xf]
        %v3973 = vld [vmem:[#allocation8 + $0xec] sm:$0xf]
        %v3974 = vld [vmem:[#allocation8 + $0xf0] sm:$0xf]
        %v3975 = vld [vmem:[#allocation8 + $0xf4] sm:$0xf]
        %v3976 = vld [vmem:[#allocation8 + $0xf8] sm:$0xf]
        %v3977 = vld [vmem:[#allocation8 + $0xfc] sm:$0xf]
        %v3978 = vld [vmem:[#allocation8 + $0x100] sm:$0xf]
        %v3979 = vld [vmem:[#allocation8 + $0x104] sm:$0xf]
        %v3980 = vld [vmem:[#allocation8 + $0x108] sm:$0xf]
        %v3981 = vld [vmem:[#allocation8 + $0x10c] sm:$0xf]
        %v3982 = vld [vmem:[#allocation8 + $0x110] sm:$0xf]
        %v3983 = vld [vmem:[#allocation8 + $0x114] sm:$0xf]
        %v3984 = vld [vmem:[#allocation8 + $0x118] sm:$0xf]
        %v3985 = vld [vmem:[#allocation8 + $0x11c] sm:$0xf]
        %v3986 = vld [vmem:[#allocation8 + $0x120] sm:$0xf]
        %v3987 = vld [vmem:[#allocation8 + $0x124] sm:$0xf]
        %v3988 = vld [vmem:[#allocation8 + $0x128] sm:$0xf]
        %v3989 = vld [vmem:[#allocation8 + $0x12c] sm:$0xf]
        %v3990 = vld [vmem:[#allocation8 + $0x130] sm:$0xf]
        %v3991 = vld [vmem:[#allocation8 + $0x134] sm:$0xf]
        %v3992 = vld [vmem:[#allocation8 + $0x138] sm:$0xf]
        %v3993 = vld [vmem:[#allocation8 + $0x13c] sm:$0xf]
        %v3994 = vld [vmem:[#allocation8 + $0x140] sm:$0xf]
        %v3995 = vld [vmem:[#allocation8 + $0x144] sm:$0xf]
        %v3996 = vld [vmem:[#allocation8 + $0x148] sm:$0xf]
        %v3997 = vld [vmem:[#allocation8 + $0x14c] sm:$0xf]
        %v3998 = vld [vmem:[#allocation8 + $0x150] sm:$0xf]
        %v3999 = vld [vmem:[#allocation8 + $0x154] sm:$0xf]
        %v4000 = vld [vmem:[#allocation8 + $0x158] sm:$0xf]
        %v4001 = vld [vmem:[#allocation8 + $0x15c] sm:$0xf]
        %v4002 = vld [vmem:[#allocation8 + $0x160] sm:$0xf]
        %v4003 = vld [vmem:[#allocation8 + $0x164] sm:$0xf]
        %v4004 = vld [vmem:[#allocation8 + $0x168] sm:$0xf]
        %v4005 = vld [vmem:[#allocation8 + $0x16c] sm:$0xf]
        %v4006 = vld [vmem:[#allocation8 + $0x170] sm:$0xf]
        %v4007 = vld [vmem:[#allocation8 + $0x174] sm:$0xf]
        %v4008 = vld [vmem:[#allocation8 + $0x178] sm:$0xf]
        %v4009 = vld [vmem:[#allocation8 + $0x17c] sm:$0xf]
        %v4010 = vld [vmem:[#allocation8 + $0x180] sm:$0xf]
        %v4011 = vld [vmem:[#allocation8 + $0x184] sm:$0xf]
        %v4012 = vld [vmem:[#allocation8 + $0x188] sm:$0xf]
        %v4013 = vld [vmem:[#allocation8 + $0x18c] sm:$0xf]
        %v4014 = vld [vmem:[#allocation8 + $0x190] sm:$0xf]
        %v4015 = vld [vmem:[#allocation8 + $0x194] sm:$0xf]
        %v4016 = vld [vmem:[#allocation8 + $0x198] sm:$0xf]
        %v4017 = vld [vmem:[#allocation8 + $0x19c] sm:$0xf]
        %v4018 = vld [vmem:[#allocation8 + $0x1a0] sm:$0xf]
        %v4019 = vld [vmem:[#allocation8 + $0x1a4] sm:$0xf]
        %v4020 = vld [vmem:[#allocation8 + $0x1a8] sm:$0xf]
        %v4021 = vld [vmem:[#allocation8 + $0x1ac] sm:$0xf]
        %v4022 = vld [vmem:[#allocation8 + $0x1b0] sm:$0xf]
        %v4023 = vld [vmem:[#allocation8 + $0x1b4] sm:$0xf]
        %v4024 = vld [vmem:[#allocation8 + $0x1b8] sm:$0xf]
        %v4025 = vld [vmem:[#allocation8 + $0x1bc] sm:$0xf]
        %v4026 = vld [vmem:[#allocation8 + $0x1c0] sm:$0xf]
        %v4027 = vld [vmem:[#allocation8 + $0x1c4] sm:$0xf]
        %v4028 = vld [vmem:[#allocation8 + $0x1c8] sm:$0xf]
        %v4029 = vld [vmem:[#allocation8 + $0x1cc] sm:$0xf]
        %v4030 = vld [vmem:[#allocation8 + $0x1d0] sm:$0xf]
        %v4031 = vld [vmem:[#allocation8 + $0x1d4] sm:$0xf]
        %v4032 = vld [vmem:[#allocation8 + $0x1d8] sm:$0xf]
        %v4033 = vld [vmem:[#allocation8 + $0x1dc] sm:$0xf]
        %v4034 = vld [vmem:[#allocation8 + $0x1e0] sm:$0xf]
        %v4035 = vld [vmem:[#allocation8 + $0x1e4] sm:$0xf]
        %v4036 = vld [vmem:[#allocation8 + $0x1e8] sm:$0xf]
        %v4037 = vld [vmem:[#allocation8 + $0x1ec] sm:$0xf]
        %v4038 = vld [vmem:[#allocation8 + $0x1f0] sm:$0xf]
        %v4039 = vld [vmem:[#allocation8 + $0x1f4] sm:$0xf]
        %v4040 = vld [vmem:[#allocation8 + $0x1f8] sm:$0xf]
        %v4041 = vld [vmem:[#allocation8 + $0x1fc] sm:$0xf]
        %v4042 = vld [vmem:[#allocation8 + $0x200] sm:$0xf]
        %v4043 = vld [vmem:[#allocation8 + $0x204] sm:$0xf]
        %v4044 = vld [vmem:[#allocation8 + $0x208] sm:$0xf]
        %v4045 = vld [vmem:[#allocation8 + $0x20c] sm:$0xf]
        %v4046 = vld [vmem:[#allocation8 + $0x210] sm:$0xf]
        %v4047 = vld [vmem:[#allocation8 + $0x214] sm:$0xf]
        %v4048 = vld [vmem:[#allocation8 + $0x218] sm:$0xf]
        %v4049 = vld [vmem:[#allocation8 + $0x21c] sm:$0xf]
        %v4050 = vld [vmem:[#allocation8 + $0x220] sm:$0xf]
        %v4051 = vld [vmem:[#allocation8 + $0x224] sm:$0xf]
        %v4052 = vld [vmem:[#allocation8 + $0x228] sm:$0xf]
        %v4053 = vld [vmem:[#allocation8 + $0x22c] sm:$0xf]
        %v4054 = vld [vmem:[#allocation8 + $0x230] sm:$0xf]
        %v4055 = vld [vmem:[#allocation8 + $0x234] sm:$0xf]
        %v4056 = vld [vmem:[#allocation8 + $0x238] sm:$0xf]
        %v4057 = vld [vmem:[#allocation8 + $0x23c] sm:$0xf]
        %v4218 = vunpack.c.l.b16 %v3754
        %v4219 = vunpack.c.h.b16 %v3754
        %v4220 = vunpack.c.l.b16 %v3755
        %v4221 = vunpack.c.h.b16 %v3755
        %v4222 = vunpack.c.l.b16 %v3756
        %v4223 = vunpack.c.h.b16 %v3756
        %v4224 = vunpack.c.l.b16 %v3757
        %v4225 = vunpack.c.h.b16 %v3757
        %v4226 = vunpack.c.l.b16 %v3758
        %v4227 = vunpack.c.l.b16 %v3759
        %v4228 = vunpack.c.h.b16 %v3759
        %v4229 = vunpack.c.l.b16 %v3760
        %v4230 = vunpack.c.h.b16 %v3760
        %v4231 = vunpack.c.l.b16 %v3761
        %v4232 = vunpack.c.h.b16 %v3761
        %v4233 = vunpack.c.l.b16 %v3762
        %v4234 = vunpack.c.h.b16 %v3762
        %v4235 = vunpack.c.l.b16 %v3763
        %v4236 = vunpack.c.l.b16 %v3764
        %v4237 = vunpack.c.h.b16 %v3764
        %v4238 = vunpack.c.l.b16 %v3765
        %v4239 = vunpack.c.h.b16 %v3765
        %v4240 = vunpack.c.l.b16 %v3766
        %v4241 = vunpack.c.h.b16 %v3766
        %v4242 = vunpack.c.l.b16 %v3767
        %v4243 = vunpack.c.h.b16 %v3767
        %v4244 = vunpack.c.l.b16 %v3768
        %v4245 = vunpack.c.l.b16 %v3769
        %v4246 = vunpack.c.h.b16 %v3769
        %v4247 = vunpack.c.l.b16 %v3770
        %v4248 = vunpack.c.h.b16 %v3770
        %v4249 = vunpack.c.l.b16 %v3771
        %v4250 = vunpack.c.h.b16 %v3771
        %v4251 = vunpack.c.l.b16 %v3772
        %v4252 = vunpack.c.h.b16 %v3772
        %v4253 = vunpack.c.l.b16 %v3773
        %v4254 = vunpack.c.l.b16 %v3774
        %v4255 = vunpack.c.h.b16 %v3774
        %v4256 = vunpack.c.l.b16 %v3775
        %v4257 = vunpack.c.h.b16 %v3775
        %v4258 = vunpack.c.l.b16 %v3776
        %v4259 = vunpack.c.h.b16 %v3776
        %v4260 = vunpack.c.l.b16 %v3777
        %v4261 = vunpack.c.h.b16 %v3777
        %v4262 = vunpack.c.l.b16 %v3778
        %v4263 = vunpack.c.l.b16 %v3779
        %v4264 = vunpack.c.h.b16 %v3779
        %v4265 = vunpack.c.l.b16 %v3780
        %v4266 = vunpack.c.h.b16 %v3780
        %v4267 = vunpack.c.l.b16 %v3781
        %v4268 = vunpack.c.h.b16 %v3781
        %v4269 = vunpack.c.l.b16 %v3782
        %v4270 = vunpack.c.h.b16 %v3782
        %v4271 = vunpack.c.l.b16 %v3783
        %v4272 = vunpack.c.l.b16 %v3784
        %v4273 = vunpack.c.h.b16 %v3784
        %v4274 = vunpack.c.l.b16 %v3785
        %v4275 = vunpack.c.h.b16 %v3785
        %v4276 = vunpack.c.l.b16 %v3786
        %v4277 = vunpack.c.h.b16 %v3786
        %v4278 = vunpack.c.l.b16 %v3787
        %v4279 = vunpack.c.h.b16 %v3787
        %v4280 = vunpack.c.l.b16 %v3788
        %v4281 = vunpack.c.l.b16 %v3789
        %v4282 = vunpack.c.h.b16 %v3789
        %v4283 = vunpack.c.l.b16 %v3790
        %v4284 = vunpack.c.h.b16 %v3790
        %v4285 = vunpack.c.l.b16 %v3791
        %v4286 = vunpack.c.h.b16 %v3791
        %v4287 = vunpack.c.l.b16 %v3792
        %v4288 = vunpack.c.h.b16 %v3792
        %v4289 = vunpack.c.l.b16 %v3793
        %v4290 = vunpack.c.l.b16 %v3794
        %v4291 = vunpack.c.h.b16 %v3794
        %v4292 = vunpack.c.l.b16 %v3795
        %v4293 = vunpack.c.h.b16 %v3795
        %v4294 = vunpack.c.l.b16 %v3796
        %v4295 = vunpack.c.h.b16 %v3796
        %v4296 = vunpack.c.l.b16 %v3797
        %v4297 = vunpack.c.h.b16 %v3797
        %v4298 = vunpack.c.l.b16 %v3798
        %v4299 = vunpack.c.l.b16 %v3799
        %v4300 = vunpack.c.h.b16 %v3799
        %v4301 = vunpack.c.l.b16 %v3800
        %v4302 = vunpack.c.h.b16 %v3800
        %v4303 = vunpack.c.l.b16 %v3801
        %v4304 = vunpack.c.h.b16 %v3801
        %v4305 = vunpack.c.l.b16 %v3802
        %v4306 = vunpack.c.h.b16 %v3802
        %v4307 = vunpack.c.l.b16 %v3803
        %v4308 = vunpack.c.l.b16 %v3804
        %v4309 = vunpack.c.h.b16 %v3804
        %v4310 = vunpack.c.l.b16 %v3805
        %v4311 = vunpack.c.h.b16 %v3805
        %v4312 = vunpack.c.l.b16 %v3806
        %v4313 = vunpack.c.h.b16 %v3806
        %v4314 = vunpack.c.l.b16 %v3807
        %v4315 = vunpack.c.h.b16 %v3807
        %v4316 = vunpack.c.l.b16 %v3808
        %v4317 = vunpack.c.l.b16 %v3809
        %v4318 = vunpack.c.h.b16 %v3809
        %v4319 = vunpack.c.l.b16 %v3810
        %v4320 = vunpack.c.h.b16 %v3810
        %v4321 = vunpack.c.l.b16 %v3811
        %v4322 = vunpack.c.h.b16 %v3811
        %v4323 = vunpack.c.l.b16 %v3812
        %v4324 = vunpack.c.h.b16 %v3812
        %v4325 = vunpack.c.l.b16 %v3813
        %v4326 = vunpack.c.l.b16 %v3814
        %v4327 = vunpack.c.h.b16 %v3814
        %v4328 = vunpack.c.l.b16 %v3815
        %v4329 = vunpack.c.h.b16 %v3815
        %v4330 = vunpack.c.l.b16 %v3816
        %v4331 = vunpack.c.h.b16 %v3816
        %v4332 = vunpack.c.l.b16 %v3817
        %v4333 = vunpack.c.h.b16 %v3817
        %v4334 = vunpack.c.l.b16 %v3818
        %v4335 = vunpack.c.l.b16 %v3819
        %v4336 = vunpack.c.h.b16 %v3819
        %v4337 = vunpack.c.l.b16 %v3820
        %v4338 = vunpack.c.h.b16 %v3820
        %v4339 = vunpack.c.l.b16 %v3821
        %v4340 = vunpack.c.h.b16 %v3821
        %v4341 = vunpack.c.l.b16 %v3822
        %v4342 = vunpack.c.h.b16 %v3822
        %v4343 = vunpack.c.l.b16 %v3823
        %v4344 = vunpack.c.l.b16 %v3824
        %v4345 = vunpack.c.h.b16 %v3824
        %v4346 = vunpack.c.l.b16 %v3825
        %v4347 = vunpack.c.h.b16 %v3825
        %v4348 = vunpack.c.l.b16 %v3826
        %v4349 = vunpack.c.h.b16 %v3826
        %v4350 = vunpack.c.l.b16 %v3827
        %v4351 = vunpack.c.h.b16 %v3827
        %v4352 = vunpack.c.l.b16 %v3828
        %v4353 = vunpack.c.l.b16 %v3829
        %v4354 = vunpack.c.h.b16 %v3829
        %v4355 = vunpack.c.l.b16 %v3830
        %v4356 = vunpack.c.h.b16 %v3830
        %v4357 = vunpack.c.l.b16 %v3831
        %v4358 = vunpack.c.h.b16 %v3831
        %v4359 = vunpack.c.l.b16 %v3832
        %v4360 = vunpack.c.h.b16 %v3832
        %v4361 = vunpack.c.l.b16 %v3833
        %v4362 = vunpack.c.l.b16 %v3834
        %v4363 = vunpack.c.h.b16 %v3834
        %v4364 = vunpack.c.l.b16 %v3835
        %v4365 = vunpack.c.h.b16 %v3835
        %v4366 = vunpack.c.l.b16 %v3836
        %v4367 = vunpack.c.h.b16 %v3836
        %v4368 = vunpack.c.l.b16 %v3837
        %v4369 = vunpack.c.h.b16 %v3837
        %v4370 = vunpack.c.l.b16 %v3838
        %v4371 = vunpack.c.l.b16 %v3839
        %v4372 = vunpack.c.h.b16 %v3839
        %v4373 = vunpack.c.l.b16 %v3840
        %v4374 = vunpack.c.h.b16 %v3840
        %v4375 = vunpack.c.l.b16 %v3841
        %v4376 = vunpack.c.h.b16 %v3841
        %v4377 = vunpack.c.l.b16 %v3842
        %v4378 = vunpack.c.h.b16 %v3842
        %v4379 = vunpack.c.l.b16 %v3843
        %v4380 = vunpack.c.l.b16 %v3844
        %v4381 = vunpack.c.h.b16 %v3844
        %v4382 = vunpack.c.l.b16 %v3845
        %v4383 = vunpack.c.h.b16 %v3845
        %v4384 = vunpack.c.l.b16 %v3846
        %v4385 = vunpack.c.h.b16 %v3846
        %v4386 = vunpack.c.l.b16 %v3847
        %v4387 = vunpack.c.h.b16 %v3847
        %v4388 = vunpack.c.l.b16 %v3848
        %v4389 = vunpack.c.l.b16 %v3849
        %v4390 = vunpack.c.h.b16 %v3849
        %v4391 = vunpack.c.l.b16 %v3850
        %v4392 = vunpack.c.h.b16 %v3850
        %v4393 = vunpack.c.l.b16 %v3851
        %v4394 = vunpack.c.h.b16 %v3851
        %v4395 = vunpack.c.l.b16 %v3852
        %v4396 = vunpack.c.h.b16 %v3852
        %v4397 = vunpack.c.l.b16 %v3853
        %v4398 = vunpack.c.l.b16 %v3854
        %v4399 = vunpack.c.h.b16 %v3854
        %v4400 = vunpack.c.l.b16 %v3855
        %v4401 = vunpack.c.h.b16 %v3855
        %v4402 = vunpack.c.l.b16 %v3856
        %v4403 = vunpack.c.h.b16 %v3856
        %v4404 = vunpack.c.l.b16 %v3857
        %v4405 = vunpack.c.h.b16 %v3857
        %v4406 = vunpack.c.l.b16 %v3858
        %v4407 = vunpack.c.l.b16 %v3859
        %v4408 = vunpack.c.h.b16 %v3859
        %v4409 = vunpack.c.l.b16 %v3860
        %v4410 = vunpack.c.h.b16 %v3860
        %v4411 = vunpack.c.l.b16 %v3861
        %v4412 = vunpack.c.h.b16 %v3861
        %v4413 = vunpack.c.l.b16 %v3862
        %v4414 = vunpack.c.h.b16 %v3862
        %v4415 = vunpack.c.l.b16 %v3863
        %v4416 = vunpack.c.l.b16 %v3864
        %v4417 = vunpack.c.h.b16 %v3864
        %v4418 = vunpack.c.l.b16 %v3865
        %v4419 = vunpack.c.h.b16 %v3865
        %v4420 = vunpack.c.l.b16 %v3866
        %v4421 = vunpack.c.h.b16 %v3866
        %v4422 = vunpack.c.l.b16 %v3867
        %v4423 = vunpack.c.h.b16 %v3867
        %v4424 = vunpack.c.l.b16 %v3868
        %v4425 = vunpack.c.l.b16 %v3869
        %v4426 = vunpack.c.h.b16 %v3869
        %v4427 = vunpack.c.l.b16 %v3870
        %v4428 = vunpack.c.h.b16 %v3870
        %v4429 = vunpack.c.l.b16 %v3871
        %v4430 = vunpack.c.h.b16 %v3871
        %v4431 = vunpack.c.l.b16 %v3872
        %v4432 = vunpack.c.h.b16 %v3872
        %v4433 = vunpack.c.l.b16 %v3873
        %v4434 = vunpack.c.l.b16 %v3874
        %v4435 = vunpack.c.h.b16 %v3874
        %v4436 = vunpack.c.l.b16 %v3875
        %v4437 = vunpack.c.h.b16 %v3875
        %v4438 = vunpack.c.l.b16 %v3876
        %v4439 = vunpack.c.h.b16 %v3876
        %v4440 = vunpack.c.l.b16 %v3877
        %v4441 = vunpack.c.h.b16 %v3877
        %v4442 = vunpack.c.l.b16 %v3878
        %v4443 = vunpack.c.l.b16 %v3879
        %v4444 = vunpack.c.h.b16 %v3879
        %v4445 = vunpack.c.l.b16 %v3880
        %v4446 = vunpack.c.h.b16 %v3880
        %v4447 = vunpack.c.l.b16 %v3881
        %v4448 = vunpack.c.h.b16 %v3881
        %v4449 = vunpack.c.l.b16 %v3882
        %v4450 = vunpack.c.h.b16 %v3882
        %v4451 = vunpack.c.l.b16 %v3883
        %v4452 = vunpack.c.l.b16 %v3884
        %v4453 = vunpack.c.h.b16 %v3884
        %v4454 = vunpack.c.l.b16 %v3885
        %v4455 = vunpack.c.h.b16 %v3885
        %v4456 = vunpack.c.l.b16 %v3886
        %v4457 = vunpack.c.h.b16 %v3886
        %v4458 = vunpack.c.l.b16 %v3887
        %v4459 = vunpack.c.h.b16 %v3887
        %v4460 = vunpack.c.l.b16 %v3888
        %v4461 = vunpack.c.l.b16 %v3889
        %v4462 = vunpack.c.h.b16 %v3889
        %v4463 = vunpack.c.l.b16 %v3890
        %v4464 = vunpack.c.h.b16 %v3890
        %v4465 = vunpack.c.l.b16 %v3891
        %v4466 = vunpack.c.h.b16 %v3891
        %v4467 = vunpack.c.l.b16 %v3892
        %v4468 = vunpack.c.h.b16 %v3892
        %v4469 = vunpack.c.l.b16 %v3893
        %v4470 = vunpack.c.l.b16 %v3894
        %v4471 = vunpack.c.h.b16 %v3894
        %v4472 = vunpack.c.l.b16 %v3895
        %v4473 = vunpack.c.h.b16 %v3895
        %v4474 = vunpack.c.l.b16 %v3896
        %v4475 = vunpack.c.h.b16 %v3896
        %v4476 = vunpack.c.l.b16 %v3897
        %v4477 = vunpack.c.h.b16 %v3897
        %v4478 = vunpack.c.l.b16 %v3898
        %v4479 = vunpack.c.l.b16 %v3899
        %v4480 = vunpack.c.h.b16 %v3899
        %v4481 = vunpack.c.l.b16 %v3900
        %v4482 = vunpack.c.h.b16 %v3900
        %v4483 = vunpack.c.l.b16 %v3901
        %v4484 = vunpack.c.h.b16 %v3901
        %v4485 = vunpack.c.l.b16 %v3902
        %v4486 = vunpack.c.h.b16 %v3902
        %v4487 = vunpack.c.l.b16 %v3903
        %v4488 = vunpack.c.l.b16 %v3904
        %v4489 = vunpack.c.h.b16 %v3904
        %v4490 = vunpack.c.l.b16 %v3905
        %v4491 = vunpack.c.h.b16 %v3905
        %v4492 = vunpack.c.l.b16 %v3906
        %v4493 = vunpack.c.h.b16 %v3906
        %v4494 = vunpack.c.l.b16 %v3907
        %v4495 = vunpack.c.h.b16 %v3907
        %v4496 = vunpack.c.l.b16 %v3908
        %v4497 = vunpack.c.l.b16 %v3909
        %v4498 = vunpack.c.h.b16 %v3909
        %v4499 = vunpack.c.l.b16 %v3910
        %v4500 = vunpack.c.h.b16 %v3910
        %v4501 = vunpack.c.l.b16 %v3911
        %v4502 = vunpack.c.h.b16 %v3911
        %v4503 = vunpack.c.l.b16 %v3912
        %v4504 = vunpack.c.h.b16 %v3912
        %v4505 = vunpack.c.l.b16 %v3913
        %v4506 = vpack.c.b16 %v4227, %v4218
        %v4507 = vpack.c.b16 %v4228, %v4219
        %v4508 = vpack.c.b16 %v4229, %v4220
        %v4509 = vpack.c.b16 %v4230, %v4221
        %v4510 = vpack.c.b16 %v4231, %v4222
        %v4511 = vpack.c.b16 %v4232, %v4223
        %v4512 = vpack.c.b16 %v4233, %v4224
        %v4513 = vpack.c.b16 %v4234, %v4225
        %v4514 = vpack.c.b16 %v4235, %v4226
        %v4515 = vpack.c.b16 %v4245, %v4236
        %v4516 = vpack.c.b16 %v4246, %v4237
        %v4517 = vpack.c.b16 %v4247, %v4238
        %v4518 = vpack.c.b16 %v4248, %v4239
        %v4519 = vpack.c.b16 %v4249, %v4240
        %v4520 = vpack.c.b16 %v4250, %v4241
        %v4521 = vpack.c.b16 %v4251, %v4242
        %v4522 = vpack.c.b16 %v4252, %v4243
        %v4523 = vpack.c.b16 %v4253, %v4244
        %v4524 = vpack.c.b16 %v4263, %v4254
        %v4525 = vpack.c.b16 %v4264, %v4255
        %v4526 = vpack.c.b16 %v4265, %v4256
        %v4527 = vpack.c.b16 %v4266, %v4257
        %v4528 = vpack.c.b16 %v4267, %v4258
        %v4529 = vpack.c.b16 %v4268, %v4259
        %v4530 = vpack.c.b16 %v4269, %v4260
        %v4531 = vpack.c.b16 %v4270, %v4261
        %v4532 = vpack.c.b16 %v4271, %v4262
        %v4533 = vpack.c.b16 %v4281, %v4272
        %v4534 = vpack.c.b16 %v4282, %v4273
        %v4535 = vpack.c.b16 %v4283, %v4274
        %v4536 = vpack.c.b16 %v4284, %v4275
        %v4537 = vpack.c.b16 %v4285, %v4276
        %v4538 = vpack.c.b16 %v4286, %v4277
        %v4539 = vpack.c.b16 %v4287, %v4278
        %v4540 = vpack.c.b16 %v4288, %v4279
        %v4541 = vpack.c.b16 %v4289, %v4280
        %v4542 = vpack.c.b16 %v4299, %v4290
        %v4543 = vpack.c.b16 %v4300, %v4291
        %v4544 = vpack.c.b16 %v4301, %v4292
        %v4545 = vpack.c.b16 %v4302, %v4293
        %v4546 = vpack.c.b16 %v4303, %v4294
        %v4547 = vpack.c.b16 %v4304, %v4295
        %v4548 = vpack.c.b16 %v4305, %v4296
        %v4549 = vpack.c.b16 %v4306, %v4297
        %v4550 = vpack.c.b16 %v4307, %v4298
        %v4551 = vpack.c.b16 %v4317, %v4308
        %v4552 = vpack.c.b16 %v4318, %v4309
        %v4553 = vpack.c.b16 %v4319, %v4310
        %v4554 = vpack.c.b16 %v4320, %v4311
        %v4555 = vpack.c.b16 %v4321, %v4312
        %v4556 = vpack.c.b16 %v4322, %v4313
        %v4557 = vpack.c.b16 %v4323, %v4314
        %v4558 = vpack.c.b16 %v4324, %v4315
        %v4559 = vpack.c.b16 %v4325, %v4316
        %v4560 = vpack.c.b16 %v4335, %v4326
        %v4561 = vpack.c.b16 %v4336, %v4327
        %v4562 = vpack.c.b16 %v4337, %v4328
        %v4563 = vpack.c.b16 %v4338, %v4329
        %v4564 = vpack.c.b16 %v4339, %v4330
        %v4565 = vpack.c.b16 %v4340, %v4331
        %v4566 = vpack.c.b16 %v4341, %v4332
        %v4567 = vpack.c.b16 %v4342, %v4333
        %v4568 = vpack.c.b16 %v4343, %v4334
        %v4569 = vpack.c.b16 %v4353, %v4344
        %v4570 = vpack.c.b16 %v4354, %v4345
        %v4571 = vpack.c.b16 %v4355, %v4346
        %v4572 = vpack.c.b16 %v4356, %v4347
        %v4573 = vpack.c.b16 %v4357, %v4348
        %v4574 = vpack.c.b16 %v4358, %v4349
        %v4575 = vpack.c.b16 %v4359, %v4350
        %v4576 = vpack.c.b16 %v4360, %v4351
        %v4577 = vpack.c.b16 %v4361, %v4352
        %v4578 = vpack.c.b16 %v4371, %v4362
        %v4579 = vpack.c.b16 %v4372, %v4363
        %v4580 = vpack.c.b16 %v4373, %v4364
        %v4581 = vpack.c.b16 %v4374, %v4365
        %v4582 = vpack.c.b16 %v4375, %v4366
        %v4583 = vpack.c.b16 %v4376, %v4367
        %v4584 = vpack.c.b16 %v4377, %v4368
        %v4585 = vpack.c.b16 %v4378, %v4369
        %v4586 = vpack.c.b16 %v4379, %v4370
        %v4587 = vpack.c.b16 %v4389, %v4380
        %v4588 = vpack.c.b16 %v4390, %v4381
        %v4589 = vpack.c.b16 %v4391, %v4382
        %v4590 = vpack.c.b16 %v4392, %v4383
        %v4591 = vpack.c.b16 %v4393, %v4384
        %v4592 = vpack.c.b16 %v4394, %v4385
        %v4593 = vpack.c.b16 %v4395, %v4386
        %v4594 = vpack.c.b16 %v4396, %v4387
        %v4595 = vpack.c.b16 %v4397, %v4388
        %v4596 = vpack.c.b16 %v4407, %v4398
        %v4597 = vpack.c.b16 %v4408, %v4399
        %v4598 = vpack.c.b16 %v4409, %v4400
        %v4599 = vpack.c.b16 %v4410, %v4401
        %v4600 = vpack.c.b16 %v4411, %v4402
        %v4601 = vpack.c.b16 %v4412, %v4403
        %v4602 = vpack.c.b16 %v4413, %v4404
        %v4603 = vpack.c.b16 %v4414, %v4405
        %v4604 = vpack.c.b16 %v4415, %v4406
        %v4605 = vpack.c.b16 %v4425, %v4416
        %v4606 = vpack.c.b16 %v4426, %v4417
        %v4607 = vpack.c.b16 %v4427, %v4418
        %v4608 = vpack.c.b16 %v4428, %v4419
        %v4609 = vpack.c.b16 %v4429, %v4420
        %v4610 = vpack.c.b16 %v4430, %v4421
        %v4611 = vpack.c.b16 %v4431, %v4422
        %v4612 = vpack.c.b16 %v4432, %v4423
        %v4613 = vpack.c.b16 %v4433, %v4424
        %v4614 = vpack.c.b16 %v4443, %v4434
        %v4615 = vpack.c.b16 %v4444, %v4435
        %v4616 = vpack.c.b16 %v4445, %v4436
        %v4617 = vpack.c.b16 %v4446, %v4437
        %v4618 = vpack.c.b16 %v4447, %v4438
        %v4619 = vpack.c.b16 %v4448, %v4439
        %v4620 = vpack.c.b16 %v4449, %v4440
        %v4621 = vpack.c.b16 %v4450, %v4441
        %v4622 = vpack.c.b16 %v4451, %v4442
        %v4623 = vpack.c.b16 %v4461, %v4452
        %v4624 = vpack.c.b16 %v4462, %v4453
        %v4625 = vpack.c.b16 %v4463, %v4454
        %v4626 = vpack.c.b16 %v4464, %v4455
        %v4627 = vpack.c.b16 %v4465, %v4456
        %v4628 = vpack.c.b16 %v4466, %v4457
        %v4629 = vpack.c.b16 %v4467, %v4458
        %v4630 = vpack.c.b16 %v4468, %v4459
        %v4631 = vpack.c.b16 %v4469, %v4460
        %v4632 = vpack.c.b16 %v4479, %v4470
        %v4633 = vpack.c.b16 %v4480, %v4471
        %v4634 = vpack.c.b16 %v4481, %v4472
        %v4635 = vpack.c.b16 %v4482, %v4473
        %v4636 = vpack.c.b16 %v4483, %v4474
        %v4637 = vpack.c.b16 %v4484, %v4475
        %v4638 = vpack.c.b16 %v4485, %v4476
        %v4639 = vpack.c.b16 %v4486, %v4477
        %v4640 = vpack.c.b16 %v4487, %v4478
        %v4641 = vpack.c.b16 %v4497, %v4488
        %v4642 = vpack.c.b16 %v4498, %v4489
        %v4643 = vpack.c.b16 %v4499, %v4490
        %v4644 = vpack.c.b16 %v4500, %v4491
        %v4645 = vpack.c.b16 %v4501, %v4492
        %v4646 = vpack.c.b16 %v4502, %v4493
        %v4647 = vpack.c.b16 %v4503, %v4494
        %v4648 = vpack.c.b16 %v4504, %v4495
        %v4649 = vpack.c.b16 %v4505, %v4496
        %v4938 = vunpack.c.l.b16 %v3914
        %v4939 = vunpack.c.l.b16 %v3915
        %v4940 = vunpack.c.l.b16 %v3916
        %v4941 = vunpack.c.l.b16 %v3917
        %v4942 = vunpack.c.l.b16 %v3918
        %v4943 = vunpack.c.l.b16 %v3919
        %v4944 = vunpack.c.l.b16 %v3920
        %v4945 = vunpack.c.l.b16 %v3921
        %v4946 = vunpack.c.l.b16 %v3922
        %v4947 = vunpack.c.l.b16 %v3923
        %v4948 = vunpack.c.l.b16 %v3924
        %v4949 = vunpack.c.l.b16 %v3925
        %v4950 = vunpack.c.l.b16 %v3926
        %v4951 = vunpack.c.l.b16 %v3927
        %v4952 = vunpack.c.l.b16 %v3928
        %v4953 = vunpack.c.l.b16 %v3929
        %v4954 = vunpack.c.l.b16 %v3930
        %v4955 = vunpack.c.l.b16 %v3931
        %v4956 = vunpack.c.l.b16 %v3932
        %v4957 = vunpack.c.l.b16 %v3933
        %v4958 = vunpack.c.l.b16 %v3934
        %v4959 = vunpack.c.l.b16 %v3935
        %v4960 = vunpack.c.l.b16 %v3936
        %v4961 = vunpack.c.l.b16 %v3937
        %v4962 = vunpack.c.l.b16 %v3938
        %v4963 = vunpack.c.l.b16 %v3939
        %v4964 = vunpack.c.l.b16 %v3940
        %v4965 = vunpack.c.l.b16 %v3941
        %v4966 = vunpack.c.l.b16 %v3942
        %v4967 = vunpack.c.l.b16 %v3943
        %v4968 = vunpack.c.l.b16 %v3944
        %v4969 = vunpack.c.l.b16 %v3945
        %v4970 = vunpack.c.l.b16 %v3946
        %v4971 = vunpack.c.l.b16 %v3947
        %v4972 = vunpack.c.l.b16 %v3948
        %v4973 = vunpack.c.l.b16 %v3949
        %v4974 = vunpack.c.l.b16 %v3950
        %v4975 = vunpack.c.l.b16 %v3951
        %v4976 = vunpack.c.l.b16 %v3952
        %v4977 = vunpack.c.l.b16 %v3953
        %v4978 = vunpack.c.l.b16 %v3954
        %v4979 = vunpack.c.l.b16 %v3955
        %v4980 = vunpack.c.l.b16 %v3956
        %v4981 = vunpack.c.l.b16 %v3957
        %v4982 = vunpack.c.l.b16 %v3958
        %v4983 = vunpack.c.l.b16 %v3959
        %v4984 = vunpack.c.l.b16 %v3960
        %v4985 = vunpack.c.l.b16 %v3961
        %v4986 = vunpack.c.l.b16 %v3962
        %v4987 = vunpack.c.l.b16 %v3963
        %v4988 = vunpack.c.l.b16 %v3964
        %v4989 = vunpack.c.l.b16 %v3965
        %v4990 = vunpack.c.l.b16 %v3966
        %v4991 = vunpack.c.l.b16 %v3967
        %v4992 = vunpack.c.l.b16 %v3968
        %v4993 = vunpack.c.l.b16 %v3969
        %v4994 = vunpack.c.l.b16 %v3970
        %v4995 = vunpack.c.l.b16 %v3971
        %v4996 = vunpack.c.l.b16 %v3972
        %v4997 = vunpack.c.l.b16 %v3973
        %v4998 = vunpack.c.l.b16 %v3974
        %v4999 = vunpack.c.l.b16 %v3975
        %v5000 = vunpack.c.l.b16 %v3976
        %v5001 = vunpack.c.l.b16 %v3977
        %v5002 = vunpack.c.l.b16 %v3978
        %v5003 = vunpack.c.l.b16 %v3979
        %v5004 = vunpack.c.l.b16 %v3980
        %v5005 = vunpack.c.l.b16 %v3981
        %v5006 = vunpack.c.l.b16 %v3982
        %v5007 = vunpack.c.l.b16 %v3983
        %v5008 = vunpack.c.l.b16 %v3984
        %v5009 = vunpack.c.l.b16 %v3985
        %v5010 = vunpack.c.l.b16 %v3986
        %v5011 = vunpack.c.l.b16 %v3987
        %v5012 = vunpack.c.l.b16 %v3988
        %v5013 = vunpack.c.l.b16 %v3989
        %v5014 = vunpack.c.l.b16 %v3990
        %v5015 = vunpack.c.l.b16 %v3991
        %v5016 = vunpack.c.l.b16 %v3992
        %v5017 = vunpack.c.l.b16 %v3993
        %v5018 = vunpack.c.l.b16 %v3994
        %v5019 = vunpack.c.l.b16 %v3995
        %v5020 = vunpack.c.l.b16 %v3996
        %v5021 = vunpack.c.l.b16 %v3997
        %v5022 = vunpack.c.l.b16 %v3998
        %v5023 = vunpack.c.l.b16 %v3999
        %v5024 = vunpack.c.l.b16 %v4000
        %v5025 = vunpack.c.l.b16 %v4001
        %v5026 = vunpack.c.l.b16 %v4002
        %v5027 = vunpack.c.l.b16 %v4003
        %v5028 = vunpack.c.l.b16 %v4004
        %v5029 = vunpack.c.l.b16 %v4005
        %v5030 = vunpack.c.l.b16 %v4006
        %v5031 = vunpack.c.l.b16 %v4007
        %v5032 = vunpack.c.l.b16 %v4008
        %v5033 = vunpack.c.l.b16 %v4009
        %v5034 = vunpack.c.l.b16 %v4010
        %v5035 = vunpack.c.l.b16 %v4011
        %v5036 = vunpack.c.l.b16 %v4012
        %v5037 = vunpack.c.l.b16 %v4013
        %v5038 = vunpack.c.l.b16 %v4014
        %v5039 = vunpack.c.l.b16 %v4015
        %v5040 = vunpack.c.l.b16 %v4016
        %v5041 = vunpack.c.l.b16 %v4017
        %v5042 = vunpack.c.l.b16 %v4018
        %v5043 = vunpack.c.l.b16 %v4019
        %v5044 = vunpack.c.l.b16 %v4020
        %v5045 = vunpack.c.l.b16 %v4021
        %v5046 = vunpack.c.l.b16 %v4022
        %v5047 = vunpack.c.l.b16 %v4023
        %v5048 = vunpack.c.l.b16 %v4024
        %v5049 = vunpack.c.l.b16 %v4025
        %v5050 = vunpack.c.l.b16 %v4026
        %v5051 = vunpack.c.l.b16 %v4027
        %v5052 = vunpack.c.l.b16 %v4028
        %v5053 = vunpack.c.l.b16 %v4029
        %v5054 = vunpack.c.l.b16 %v4030
        %v5055 = vunpack.c.l.b16 %v4031
        %v5056 = vunpack.c.l.b16 %v4032
        %v5057 = vunpack.c.l.b16 %v4033
        %v5058 = vunpack.c.l.b16 %v4034
        %v5059 = vunpack.c.l.b16 %v4035
        %v5060 = vunpack.c.l.b16 %v4036
        %v5061 = vunpack.c.l.b16 %v4037
        %v5062 = vunpack.c.l.b16 %v4038
        %v5063 = vunpack.c.l.b16 %v4039
        %v5064 = vunpack.c.l.b16 %v4040
        %v5065 = vunpack.c.l.b16 %v4041
        %v5066 = vunpack.c.l.b16 %v4042
        %v5067 = vunpack.c.l.b16 %v4043
        %v5068 = vunpack.c.l.b16 %v4044
        %v5069 = vunpack.c.l.b16 %v4045
        %v5070 = vunpack.c.l.b16 %v4046
        %v5071 = vunpack.c.l.b16 %v4047
        %v5072 = vunpack.c.l.b16 %v4048
        %v5073 = vunpack.c.l.b16 %v4049
        %v5074 = vunpack.c.l.b16 %v4050
        %v5075 = vunpack.c.l.b16 %v4051
        %v5076 = vunpack.c.l.b16 %v4052
        %v5077 = vunpack.c.l.b16 %v4053
        %v5078 = vunpack.c.l.b16 %v4054
        %v5079 = vunpack.c.l.b16 %v4055
        %v5080 = vunpack.c.l.b16 %v4056
        %v5081 = vunpack.c.l.b16 %v4057
        %v5082 = vpack.c.b16 %v4939, %v4938
        %v5083 = vpack.c.b16 %v4941, %v4940
        %v5084 = vpack.c.b16 %v4943, %v4942
        %v5085 = vpack.c.b16 %v4945, %v4944
        %v5086 = vpack.c.b16 %v4947, %v4946
        %v5087 = vpack.c.b16 %v4949, %v4948
        %v5088 = vpack.c.b16 %v4951, %v4950
        %v5089 = vpack.c.b16 %v4953, %v4952
        %v5090 = vpack.c.b16 %v4955, %v4954
        %v5091 = vpack.c.b16 %v4957, %v4956
        %v5092 = vpack.c.b16 %v4959, %v4958
        %v5093 = vpack.c.b16 %v4961, %v4960
        %v5094 = vpack.c.b16 %v4963, %v4962
        %v5095 = vpack.c.b16 %v4965, %v4964
        %v5096 = vpack.c.b16 %v4967, %v4966
        %v5097 = vpack.c.b16 %v4969, %v4968
        %v5098 = vpack.c.b16 %v4971, %v4970
        %v5099 = vpack.c.b16 %v4973, %v4972
        %v5100 = vpack.c.b16 %v4975, %v4974
        %v5101 = vpack.c.b16 %v4977, %v4976
        %v5102 = vpack.c.b16 %v4979, %v4978
        %v5103 = vpack.c.b16 %v4981, %v4980
        %v5104 = vpack.c.b16 %v4983, %v4982
        %v5105 = vpack.c.b16 %v4985, %v4984
        %v5106 = vpack.c.b16 %v4987, %v4986
        %v5107 = vpack.c.b16 %v4989, %v4988
        %v5108 = vpack.c.b16 %v4991, %v4990
        %v5109 = vpack.c.b16 %v4993, %v4992
        %v5110 = vpack.c.b16 %v4995, %v4994
        %v5111 = vpack.c.b16 %v4997, %v4996
        %v5112 = vpack.c.b16 %v4999, %v4998
        %v5113 = vpack.c.b16 %v5001, %v5000
        %v5114 = vpack.c.b16 %v5003, %v5002
        %v5115 = vpack.c.b16 %v5005, %v5004
        %v5116 = vpack.c.b16 %v5007, %v5006
        %v5117 = vpack.c.b16 %v5009, %v5008
        %v5118 = vpack.c.b16 %v5011, %v5010
        %v5119 = vpack.c.b16 %v5013, %v5012
        %v5120 = vpack.c.b16 %v5015, %v5014
        %v5121 = vpack.c.b16 %v5017, %v5016
        %v5122 = vpack.c.b16 %v5019, %v5018
        %v5123 = vpack.c.b16 %v5021, %v5020
        %v5124 = vpack.c.b16 %v5023, %v5022
        %v5125 = vpack.c.b16 %v5025, %v5024
        %v5126 = vpack.c.b16 %v5027, %v5026
        %v5127 = vpack.c.b16 %v5029, %v5028
        %v5128 = vpack.c.b16 %v5031, %v5030
        %v5129 = vpack.c.b16 %v5033, %v5032
        %v5130 = vpack.c.b16 %v5035, %v5034
        %v5131 = vpack.c.b16 %v5037, %v5036
        %v5132 = vpack.c.b16 %v5039, %v5038
        %v5133 = vpack.c.b16 %v5041, %v5040
        %v5134 = vpack.c.b16 %v5043, %v5042
        %v5135 = vpack.c.b16 %v5045, %v5044
        %v5136 = vpack.c.b16 %v5047, %v5046
        %v5137 = vpack.c.b16 %v5049, %v5048
        %v5138 = vpack.c.b16 %v5051, %v5050
        %v5139 = vpack.c.b16 %v5053, %v5052
        %v5140 = vpack.c.b16 %v5055, %v5054
        %v5141 = vpack.c.b16 %v5057, %v5056
        %v5142 = vpack.c.b16 %v5059, %v5058
        %v5143 = vpack.c.b16 %v5061, %v5060
        %v5144 = vpack.c.b16 %v5063, %v5062
        %v5145 = vpack.c.b16 %v5065, %v5064
        %v5146 = vpack.c.b16 %v5067, %v5066
        %v5147 = vpack.c.b16 %v5069, %v5068
        %v5148 = vpack.c.b16 %v5071, %v5070
        %v5149 = vpack.c.b16 %v5073, %v5072
        %v5150 = vpack.c.b16 %v5075, %v5074
        %v5151 = vpack.c.b16 %v5077, %v5076
        %v5152 = vpack.c.b16 %v5079, %v5078
        %v5153 = vpack.c.b16 %v5081, %v5080
        %5226 = vmatprep.subr.bf16.mxu0 0
        %5227 = vmatpush1.bf16.msra.mxu0 %v5089
        %5228 = vmatprep.subr.bf16.mxu0 0
        %5229 = vmatpush1.bf16.msra.mxu0 %v5088
        %5230 = vmatprep.subr.bf16.mxu0 0
        %5231 = vmatpush1.bf16.msra.mxu0 %v5087
        %5232 = vmatprep.subr.bf16.mxu0 0
        %5233 = vmatpush1.bf16.msra.mxu0 %v5086
        %5234 = vmatprep.subr.bf16.mxu0 0
        %5235 = vmatpush1.bf16.msra.mxu0 %v5085
        %5236 = vmatprep.subr.bf16.mxu0 0
        %5237 = vmatpush1.bf16.msra.mxu0 %v5084
        %5238 = vmatprep.subr.bf16.mxu0 0
        %5239 = vmatpush1.bf16.msra.mxu0 %v5083
        %5240 = vmatprep.subr.bf16.mxu0 0
        %5241 = vmatpush1.bf16.msra.mxu0 %v5082
        %5242 = vmatprep.subr.bf16.mxu0 0
        %5243 = vmatpush2.bf16.msra.mxu0 %v5097
        %5244 = vmatprep.subr.bf16.mxu0 0
        %5245 = vmatpush2.bf16.msra.mxu0 %v5096
        %5246 = vmatprep.subr.bf16.mxu0 0
        %5247 = vmatpush2.bf16.msra.mxu0 %v5095
        %5248 = vmatprep.subr.bf16.mxu0 0
        %5249 = vmatpush2.bf16.msra.mxu0 %v5094
        %5250 = vmatprep.subr.bf16.mxu0 0
        %5251 = vmatpush2.bf16.msra.mxu0 %v5093
        %5252 = vmatprep.subr.bf16.mxu0 0
        %5253 = vmatpush2.bf16.msra.mxu0 %v5092
        %5254 = vmatprep.subr.bf16.mxu0 0
        %5255 = vmatpush2.bf16.msra.mxu0 %v5091
        %5256 = vmatprep.subr.bf16.mxu0 0
        %5257 = vmatpush2.bf16.msra.mxu0 %v5090
        %5258 = vmatprep.mubr.bf16.mxu0 %v4507
        %5259 = vmatmul.mubr.bf16.gmra.mxu0 %v4506
        %v5260 = vpop.f32.mrf.mxu0
        %v5261 = vadd.f32 0.0, %v5260
        %v5262 = vpop.f32.mrf.mxu0
        %v5263 = vpop.f32.mrf.mxu0
        %v5264 = vadd.f32 0.0, %v5263
        %v5265 = vpop.f32.mrf.mxu0
        %5266 = vmatprep.mubr.bf16.mxu0 %v4516
        %5267 = vmatmul.mubr.bf16.gmra.mxu0 %v4515
        %v5268 = vpop.f32.mrf.mxu0
        %v5269 = vadd.f32 0.0, %v5268
        %v5270 = vpop.f32.mrf.mxu0
        %v5271 = vpop.f32.mrf.mxu0
        %v5272 = vadd.f32 0.0, %v5271
        %v5273 = vpop.f32.mrf.mxu0
        %5274 = vmatprep.mubr.bf16.mxu0 %v4525
        %5275 = vmatmul.mubr.bf16.gmra.mxu0 %v4524
        %v5276 = vpop.f32.mrf.mxu0
        %v5277 = vadd.f32 0.0, %v5276
        %v5278 = vpop.f32.mrf.mxu0
        %v5279 = vpop.f32.mrf.mxu0
        %v5280 = vadd.f32 0.0, %v5279
        %v5281 = vpop.f32.mrf.mxu0
        %5282 = vmatprep.mubr.bf16.mxu0 %v4534
        %5283 = vmatmul.mubr.bf16.gmra.mxu0 %v4533
        %v5284 = vpop.f32.mrf.mxu0
        %v5285 = vadd.f32 0.0, %v5284
        %v5286 = vpop.f32.mrf.mxu0
        %v5287 = vpop.f32.mrf.mxu0
        %v5288 = vadd.f32 0.0, %v5287
        %v5289 = vpop.f32.mrf.mxu0
        %5290 = vmatprep.mubr.bf16.mxu0 %v4543
        %5291 = vmatmul.mubr.bf16.gmra.mxu0 %v4542
        %v5292 = vpop.f32.mrf.mxu0
        %v5293 = vadd.f32 0.0, %v5292
        %v5294 = vpop.f32.mrf.mxu0
        %v5295 = vpop.f32.mrf.mxu0
        %v5296 = vadd.f32 0.0, %v5295
        %v5297 = vpop.f32.mrf.mxu0
        %5298 = vmatprep.mubr.bf16.mxu0 %v4552
        %5299 = vmatmul.mubr.bf16.gmra.mxu0 %v4551
        %v5300 = vpop.f32.mrf.mxu0
        %v5301 = vadd.f32 0.0, %v5300
        %v5302 = vpop.f32.mrf.mxu0
        %v5303 = vpop.f32.mrf.mxu0
        %v5304 = vadd.f32 0.0, %v5303
        %v5305 = vpop.f32.mrf.mxu0
        %5306 = vmatprep.mubr.bf16.mxu0 %v4561
        %5307 = vmatmul.mubr.bf16.gmra.mxu0 %v4560
        %v5308 = vpop.f32.mrf.mxu0
        %v5309 = vadd.f32 0.0, %v5308
        %v5310 = vpop.f32.mrf.mxu0
        %v5311 = vpop.f32.mrf.mxu0
        %v5312 = vadd.f32 0.0, %v5311
        %v5313 = vpop.f32.mrf.mxu0
        %5314 = vmatprep.mubr.bf16.mxu0 %v4570
        %5315 = vmatmul.mubr.bf16.gmra.mxu0 %v4569
        %v5316 = vpop.f32.mrf.mxu0
        %v5317 = vadd.f32 0.0, %v5316
        %v5318 = vpop.f32.mrf.mxu0
        %v5319 = vpop.f32.mrf.mxu0
        %v5320 = vadd.f32 0.0, %v5319
        %v5321 = vpop.f32.mrf.mxu0
        %5322 = vmatprep.mubr.bf16.mxu0 %v4579
        %5323 = vmatmul.mubr.bf16.gmra.mxu0 %v4578
        %v5324 = vpop.f32.mrf.mxu0
        %v5325 = vadd.f32 0.0, %v5324
        %v5326 = vpop.f32.mrf.mxu0
        %v5327 = vpop.f32.mrf.mxu0
        %v5328 = vadd.f32 0.0, %v5327
        %v5329 = vpop.f32.mrf.mxu0
        %5330 = vmatprep.mubr.bf16.mxu0 %v4588
        %5331 = vmatmul.mubr.bf16.gmra.mxu0 %v4587
        %v5332 = vpop.f32.mrf.mxu0
        %v5333 = vadd.f32 0.0, %v5332
        %v5334 = vpop.f32.mrf.mxu0
        %v5335 = vpop.f32.mrf.mxu0
        %v5336 = vadd.f32 0.0, %v5335
        %v5337 = vpop.f32.mrf.mxu0
        %5338 = vmatprep.mubr.bf16.mxu0 %v4597
        %5339 = vmatmul.mubr.bf16.gmra.mxu0 %v4596
        %v5340 = vpop.f32.mrf.mxu0
        %v5341 = vadd.f32 0.0, %v5340
        %v5342 = vpop.f32.mrf.mxu0
        %v5343 = vpop.f32.mrf.mxu0
        %v5344 = vadd.f32 0.0, %v5343
        %v5345 = vpop.f32.mrf.mxu0
        %5346 = vmatprep.mubr.bf16.mxu0 %v4606
        %5347 = vmatmul.mubr.bf16.gmra.mxu0 %v4605
        %v5348 = vpop.f32.mrf.mxu0
        %v5349 = vadd.f32 0.0, %v5348
        %v5350 = vpop.f32.mrf.mxu0
        %v5351 = vpop.f32.mrf.mxu0
        %v5352 = vadd.f32 0.0, %v5351
        %v5353 = vpop.f32.mrf.mxu0
        %5354 = vmatprep.mubr.bf16.mxu0 %v4615
        %5355 = vmatmul.mubr.bf16.gmra.mxu0 %v4614
        %v5356 = vpop.f32.mrf.mxu0
        %v5357 = vadd.f32 0.0, %v5356
        %v5358 = vpop.f32.mrf.mxu0
        %v5359 = vpop.f32.mrf.mxu0
        %v5360 = vadd.f32 0.0, %v5359
        %v5361 = vpop.f32.mrf.mxu0
        %5362 = vmatprep.mubr.bf16.mxu0 %v4624
        %5363 = vmatmul.mubr.bf16.gmra.mxu0 %v4623
        %v5364 = vpop.f32.mrf.mxu0
        %v5365 = vadd.f32 0.0, %v5364
        %v5366 = vpop.f32.mrf.mxu0
        %v5367 = vpop.f32.mrf.mxu0
        %v5368 = vadd.f32 0.0, %v5367
        %v5369 = vpop.f32.mrf.mxu0
        %5370 = vmatprep.mubr.bf16.mxu0 %v4633
        %5371 = vmatmul.mubr.bf16.gmra.mxu0 %v4632
        %v5372 = vpop.f32.mrf.mxu0
        %v5373 = vadd.f32 0.0, %v5372
        %v5374 = vpop.f32.mrf.mxu0
        %v5375 = vpop.f32.mrf.mxu0
        %v5376 = vadd.f32 0.0, %v5375
        %v5377 = vpop.f32.mrf.mxu0
        %5378 = vmatprep.mubr.bf16.mxu0 %v4642
        %5379 = vmatmul.mubr.bf16.gmra.mxu0 %v4641
        %v5380 = vpop.f32.mrf.mxu0
        %v5381 = vadd.f32 0.0, %v5380
        %v5382 = vpop.f32.mrf.mxu0
        %v5383 = vpop.f32.mrf.mxu0
        %v5384 = vadd.f32 0.0, %v5383
        %v5385 = vpop.f32.mrf.mxu0
        %5386 = vdwg.mxu0
        %5387 = vmatprep.subr.bf16.mxu0 0
        %5388 = vmatpush1.bf16.msra.mxu0 %v5105
        %5389 = vmatprep.subr.bf16.mxu0 0
        %5390 = vmatpush1.bf16.msra.mxu0 %v5104
        %5391 = vmatprep.subr.bf16.mxu0 0
        %5392 = vmatpush1.bf16.msra.mxu0 %v5103
        %5393 = vmatprep.subr.bf16.mxu0 0
        %5394 = vmatpush1.bf16.msra.mxu0 %v5102
        %5395 = vmatprep.subr.bf16.mxu0 0
        %5396 = vmatpush1.bf16.msra.mxu0 %v5101
        %5397 = vmatprep.subr.bf16.mxu0 0
        %5398 = vmatpush1.bf16.msra.mxu0 %v5100
        %5399 = vmatprep.subr.bf16.mxu0 0
        %5400 = vmatpush1.bf16.msra.mxu0 %v5099
        %5401 = vmatprep.subr.bf16.mxu0 0
        %5402 = vmatpush1.bf16.msra.mxu0 %v5098
        %5403 = vmatprep.subr.bf16.mxu0 0
        %5404 = vmatpush2.bf16.msra.mxu0 %v5113
        %5405 = vmatprep.subr.bf16.mxu0 0
        %5406 = vmatpush2.bf16.msra.mxu0 %v5112
        %5407 = vmatprep.subr.bf16.mxu0 0
        %5408 = vmatpush2.bf16.msra.mxu0 %v5111
        %5409 = vmatprep.subr.bf16.mxu0 0
        %5410 = vmatpush2.bf16.msra.mxu0 %v5110
        %5411 = vmatprep.subr.bf16.mxu0 0
        %5412 = vmatpush2.bf16.msra.mxu0 %v5109
        %5413 = vmatprep.subr.bf16.mxu0 0
        %5414 = vmatpush2.bf16.msra.mxu0 %v5108
        %5415 = vmatprep.subr.bf16.mxu0 0
        %5416 = vmatpush2.bf16.msra.mxu0 %v5107
        %5417 = vmatprep.subr.bf16.mxu0 0
        %5418 = vmatpush2.bf16.msra.mxu0 %v5106
        %5419 = vmatprep.mubr.bf16.mxu0 %v4509
        %5420 = vmatmul.mubr.bf16.gmra.mxu0 %v4508
        %v5421 = vpop.f32.mrf.mxu0
        %v5422 = vadd.f32 %v5261, %v5421
        %v5423 = vpop.f32.mrf.mxu0
        %v5424 = vpop.f32.mrf.mxu0
        %v5425 = vadd.f32 %v5264, %v5424
        %v5426 = vpop.f32.mrf.mxu0
        %5427 = vmatprep.mubr.bf16.mxu0 %v4518
        %5428 = vmatmul.mubr.bf16.gmra.mxu0 %v4517
        %v5429 = vpop.f32.mrf.mxu0
        %v5430 = vadd.f32 %v5269, %v5429
        %v5431 = vpop.f32.mrf.mxu0
        %v5432 = vpop.f32.mrf.mxu0
        %v5433 = vadd.f32 %v5272, %v5432
        %v5434 = vpop.f32.mrf.mxu0
        %5435 = vmatprep.mubr.bf16.mxu0 %v4527
        %5436 = vmatmul.mubr.bf16.gmra.mxu0 %v4526
        %v5437 = vpop.f32.mrf.mxu0
        %v5438 = vadd.f32 %v5277, %v5437
        %v5439 = vpop.f32.mrf.mxu0
        %v5440 = vpop.f32.mrf.mxu0
        %v5441 = vadd.f32 %v5280, %v5440
        %v5442 = vpop.f32.mrf.mxu0
        %5443 = vmatprep.mubr.bf16.mxu0 %v4536
        %5444 = vmatmul.mubr.bf16.gmra.mxu0 %v4535
        %v5445 = vpop.f32.mrf.mxu0
        %v5446 = vadd.f32 %v5285, %v5445
        %v5447 = vpop.f32.mrf.mxu0
        %v5448 = vpop.f32.mrf.mxu0
        %v5449 = vadd.f32 %v5288, %v5448
        %v5450 = vpop.f32.mrf.mxu0
        %5451 = vmatprep.mubr.bf16.mxu0 %v4545
        %5452 = vmatmul.mubr.bf16.gmra.mxu0 %v4544
        %v5453 = vpop.f32.mrf.mxu0
        %v5454 = vadd.f32 %v5293, %v5453
        %v5455 = vpop.f32.mrf.mxu0
        %v5456 = vpop.f32.mrf.mxu0
        %v5457 = vadd.f32 %v5296, %v5456
        %v5458 = vpop.f32.mrf.mxu0
        %5459 = vmatprep.mubr.bf16.mxu0 %v4554
        %5460 = vmatmul.mubr.bf16.gmra.mxu0 %v4553
        %v5461 = vpop.f32.mrf.mxu0
        %v5462 = vadd.f32 %v5301, %v5461
        %v5463 = vpop.f32.mrf.mxu0
        %v5464 = vpop.f32.mrf.mxu0
        %v5465 = vadd.f32 %v5304, %v5464
        %v5466 = vpop.f32.mrf.mxu0
        %5467 = vmatprep.mubr.bf16.mxu0 %v4563
        %5468 = vmatmul.mubr.bf16.gmra.mxu0 %v4562
        %v5469 = vpop.f32.mrf.mxu0
        %v5470 = vadd.f32 %v5309, %v5469
        %v5471 = vpop.f32.mrf.mxu0
        %v5472 = vpop.f32.mrf.mxu0
        %v5473 = vadd.f32 %v5312, %v5472
        %v5474 = vpop.f32.mrf.mxu0
        %5475 = vmatprep.mubr.bf16.mxu0 %v4572
        %5476 = vmatmul.mubr.bf16.gmra.mxu0 %v4571
        %v5477 = vpop.f32.mrf.mxu0
        %v5478 = vadd.f32 %v5317, %v5477
        %v5479 = vpop.f32.mrf.mxu0
        %v5480 = vpop.f32.mrf.mxu0
        %v5481 = vadd.f32 %v5320, %v5480
        %v5482 = vpop.f32.mrf.mxu0
        %5483 = vmatprep.mubr.bf16.mxu0 %v4581
        %5484 = vmatmul.mubr.bf16.gmra.mxu0 %v4580
        %v5485 = vpop.f32.mrf.mxu0
        %v5486 = vadd.f32 %v5325, %v5485
        %v5487 = vpop.f32.mrf.mxu0
        %v5488 = vpop.f32.mrf.mxu0
        %v5489 = vadd.f32 %v5328, %v5488
        %v5490 = vpop.f32.mrf.mxu0
        %5491 = vmatprep.mubr.bf16.mxu0 %v4590
        %5492 = vmatmul.mubr.bf16.gmra.mxu0 %v4589
        %v5493 = vpop.f32.mrf.mxu0
        %v5494 = vadd.f32 %v5333, %v5493
        %v5495 = vpop.f32.mrf.mxu0
        %v5496 = vpop.f32.mrf.mxu0
        %v5497 = vadd.f32 %v5336, %v5496
        %v5498 = vpop.f32.mrf.mxu0
        %5499 = vmatprep.mubr.bf16.mxu0 %v4599
        %5500 = vmatmul.mubr.bf16.gmra.mxu0 %v4598
        %v5501 = vpop.f32.mrf.mxu0
        %v5502 = vadd.f32 %v5341, %v5501
        %v5503 = vpop.f32.mrf.mxu0
        %v5504 = vpop.f32.mrf.mxu0
        %v5505 = vadd.f32 %v5344, %v5504
        %v5506 = vpop.f32.mrf.mxu0
        %5507 = vmatprep.mubr.bf16.mxu0 %v4608
        %5508 = vmatmul.mubr.bf16.gmra.mxu0 %v4607
        %v5509 = vpop.f32.mrf.mxu0
        %v5510 = vadd.f32 %v5349, %v5509
        %v5511 = vpop.f32.mrf.mxu0
        %v5512 = vpop.f32.mrf.mxu0
        %v5513 = vadd.f32 %v5352, %v5512
        %v5514 = vpop.f32.mrf.mxu0
        %5515 = vmatprep.mubr.bf16.mxu0 %v4617
        %5516 = vmatmul.mubr.bf16.gmra.mxu0 %v4616
        %v5517 = vpop.f32.mrf.mxu0
        %v5518 = vadd.f32 %v5357, %v5517
        %v5519 = vpop.f32.mrf.mxu0
        %v5520 = vpop.f32.mrf.mxu0
        %v5521 = vadd.f32 %v5360, %v5520
        %v5522 = vpop.f32.mrf.mxu0
        %5523 = vmatprep.mubr.bf16.mxu0 %v4626
        %5524 = vmatmul.mubr.bf16.gmra.mxu0 %v4625
        %v5525 = vpop.f32.mrf.mxu0
        %v5526 = vadd.f32 %v5365, %v5525
        %v5527 = vpop.f32.mrf.mxu0
        %v5528 = vpop.f32.mrf.mxu0
        %v5529 = vadd.f32 %v5368, %v5528
        %v5530 = vpop.f32.mrf.mxu0
        %5531 = vmatprep.mubr.bf16.mxu0 %v4635
        %5532 = vmatmul.mubr.bf16.gmra.mxu0 %v4634
        %v5533 = vpop.f32.mrf.mxu0
        %v5534 = vadd.f32 %v5373, %v5533
        %v5535 = vpop.f32.mrf.mxu0
        %v5536 = vpop.f32.mrf.mxu0
        %v5537 = vadd.f32 %v5376, %v5536
        %v5538 = vpop.f32.mrf.mxu0
        %5539 = vmatprep.mubr.bf16.mxu0 %v4644
        %5540 = vmatmul.mubr.bf16.gmra.mxu0 %v4643
        %v5541 = vpop.f32.mrf.mxu0
        %v5542 = vadd.f32 %v5381, %v5541
        %v5543 = vpop.f32.mrf.mxu0
        %v5544 = vpop.f32.mrf.mxu0
        %v5545 = vadd.f32 %v5384, %v5544
        %v5546 = vpop.f32.mrf.mxu0
        %5547 = vdwg.mxu0
        %5548 = vmatprep.subr.bf16.mxu0 0
        %5549 = vmatpush1.bf16.msra.mxu0 %v5121
        %5550 = vmatprep.subr.bf16.mxu0 0
        %5551 = vmatpush1.bf16.msra.mxu0 %v5120
        %5552 = vmatprep.subr.bf16.mxu0 0
        %5553 = vmatpush1.bf16.msra.mxu0 %v5119
        %5554 = vmatprep.subr.bf16.mxu0 0
        %5555 = vmatpush1.bf16.msra.mxu0 %v5118
        %5556 = vmatprep.subr.bf16.mxu0 0
        %5557 = vmatpush1.bf16.msra.mxu0 %v5117
        %5558 = vmatprep.subr.bf16.mxu0 0
        %5559 = vmatpush1.bf16.msra.mxu0 %v5116
        %5560 = vmatprep.subr.bf16.mxu0 0
        %5561 = vmatpush1.bf16.msra.mxu0 %v5115
        %5562 = vmatprep.subr.bf16.mxu0 0
        %5563 = vmatpush1.bf16.msra.mxu0 %v5114
        %5564 = vmatprep.subr.bf16.mxu0 0
        %5565 = vmatpush2.bf16.msra.mxu0 %v5129
        %5566 = vmatprep.subr.bf16.mxu0 0
        %5567 = vmatpush2.bf16.msra.mxu0 %v5128
        %5568 = vmatprep.subr.bf16.mxu0 0
        %5569 = vmatpush2.bf16.msra.mxu0 %v5127
        %5570 = vmatprep.subr.bf16.mxu0 0
        %5571 = vmatpush2.bf16.msra.mxu0 %v5126
        %5572 = vmatprep.subr.bf16.mxu0 0
        %5573 = vmatpush2.bf16.msra.mxu0 %v5125
        %5574 = vmatprep.subr.bf16.mxu0 0
        %5575 = vmatpush2.bf16.msra.mxu0 %v5124
        %5576 = vmatprep.subr.bf16.mxu0 0
        %5577 = vmatpush2.bf16.msra.mxu0 %v5123
        %5578 = vmatprep.subr.bf16.mxu0 0
        %5579 = vmatpush2.bf16.msra.mxu0 %v5122
        %5580 = vmatprep.mubr.bf16.mxu0 %v4511
        %5581 = vmatmul.mubr.bf16.gmra.mxu0 %v4510
        %v5582 = vpop.f32.mrf.mxu0
        %v5583 = vadd.f32 %v5422, %v5582
        %v5584 = vpop.f32.mrf.mxu0
        %v5585 = vpop.f32.mrf.mxu0
        %v5586 = vadd.f32 %v5425, %v5585
        %v5587 = vpop.f32.mrf.mxu0
        %5588 = vmatprep.mubr.bf16.mxu0 %v4520
        %5589 = vmatmul.mubr.bf16.gmra.mxu0 %v4519
        %v5590 = vpop.f32.mrf.mxu0
        %v5591 = vadd.f32 %v5430, %v5590
        %v5592 = vpop.f32.mrf.mxu0
        %v5593 = vpop.f32.mrf.mxu0
        %v5594 = vadd.f32 %v5433, %v5593
        %v5595 = vpop.f32.mrf.mxu0
        %5596 = vmatprep.mubr.bf16.mxu0 %v4529
        %5597 = vmatmul.mubr.bf16.gmra.mxu0 %v4528
        %v5598 = vpop.f32.mrf.mxu0
        %v5599 = vadd.f32 %v5438, %v5598
        %v5600 = vpop.f32.mrf.mxu0
        %v5601 = vpop.f32.mrf.mxu0
        %v5602 = vadd.f32 %v5441, %v5601
        %v5603 = vpop.f32.mrf.mxu0
        %5604 = vmatprep.mubr.bf16.mxu0 %v4538
        %5605 = vmatmul.mubr.bf16.gmra.mxu0 %v4537
        %v5606 = vpop.f32.mrf.mxu0
        %v5607 = vadd.f32 %v5446, %v5606
        %v5608 = vpop.f32.mrf.mxu0
        %v5609 = vpop.f32.mrf.mxu0
        %v5610 = vadd.f32 %v5449, %v5609
        %v5611 = vpop.f32.mrf.mxu0
        %5612 = vmatprep.mubr.bf16.mxu0 %v4547
        %5613 = vmatmul.mubr.bf16.gmra.mxu0 %v4546
        %v5614 = vpop.f32.mrf.mxu0
        %v5615 = vadd.f32 %v5454, %v5614
        %v5616 = vpop.f32.mrf.mxu0
        %v5617 = vpop.f32.mrf.mxu0
        %v5618 = vadd.f32 %v5457, %v5617
        %v5619 = vpop.f32.mrf.mxu0
        %5620 = vmatprep.mubr.bf16.mxu0 %v4556
        %5621 = vmatmul.mubr.bf16.gmra.mxu0 %v4555
        %v5622 = vpop.f32.mrf.mxu0
        %v5623 = vadd.f32 %v5462, %v5622
        %v5624 = vpop.f32.mrf.mxu0
        %v5625 = vpop.f32.mrf.mxu0
        %v5626 = vadd.f32 %v5465, %v5625
        %v5627 = vpop.f32.mrf.mxu0
        %5628 = vmatprep.mubr.bf16.mxu0 %v4565
        %5629 = vmatmul.mubr.bf16.gmra.mxu0 %v4564
        %v5630 = vpop.f32.mrf.mxu0
        %v5631 = vadd.f32 %v5470, %v5630
        %v5632 = vpop.f32.mrf.mxu0
        %v5633 = vpop.f32.mrf.mxu0
        %v5634 = vadd.f32 %v5473, %v5633
        %v5635 = vpop.f32.mrf.mxu0
        %5636 = vmatprep.mubr.bf16.mxu0 %v4574
        %5637 = vmatmul.mubr.bf16.gmra.mxu0 %v4573
        %v5638 = vpop.f32.mrf.mxu0
        %v5639 = vadd.f32 %v5478, %v5638
        %v5640 = vpop.f32.mrf.mxu0
        %v5641 = vpop.f32.mrf.mxu0
        %v5642 = vadd.f32 %v5481, %v5641
        %v5643 = vpop.f32.mrf.mxu0
        %5644 = vmatprep.mubr.bf16.mxu0 %v4583
        %5645 = vmatmul.mubr.bf16.gmra.mxu0 %v4582
        %v5646 = vpop.f32.mrf.mxu0
        %v5647 = vadd.f32 %v5486, %v5646
        %v5648 = vpop.f32.mrf.mxu0
        %v5649 = vpop.f32.mrf.mxu0
        %v5650 = vadd.f32 %v5489, %v5649
        %v5651 = vpop.f32.mrf.mxu0
        %5652 = vmatprep.mubr.bf16.mxu0 %v4592
        %5653 = vmatmul.mubr.bf16.gmra.mxu0 %v4591
        %v5654 = vpop.f32.mrf.mxu0
        %v5655 = vadd.f32 %v5494, %v5654
        %v5656 = vpop.f32.mrf.mxu0
        %v5657 = vpop.f32.mrf.mxu0
        %v5658 = vadd.f32 %v5497, %v5657
        %v5659 = vpop.f32.mrf.mxu0
        %5660 = vmatprep.mubr.bf16.mxu0 %v4601
        %5661 = vmatmul.mubr.bf16.gmra.mxu0 %v4600
        %v5662 = vpop.f32.mrf.mxu0
        %v5663 = vadd.f32 %v5502, %v5662
        %v5664 = vpop.f32.mrf.mxu0
        %v5665 = vpop.f32.mrf.mxu0
        %v5666 = vadd.f32 %v5505, %v5665
        %v5667 = vpop.f32.mrf.mxu0
        %5668 = vmatprep.mubr.bf16.mxu0 %v4610
        %5669 = vmatmul.mubr.bf16.gmra.mxu0 %v4609
        %v5670 = vpop.f32.mrf.mxu0
        %v5671 = vadd.f32 %v5510, %v5670
        %v5672 = vpop.f32.mrf.mxu0
        %v5673 = vpop.f32.mrf.mxu0
        %v5674 = vadd.f32 %v5513, %v5673
        %v5675 = vpop.f32.mrf.mxu0
        %5676 = vmatprep.mubr.bf16.mxu0 %v4619
        %5677 = vmatmul.mubr.bf16.gmra.mxu0 %v4618
        %v5678 = vpop.f32.mrf.mxu0
        %v5679 = vadd.f32 %v5518, %v5678
        %v5680 = vpop.f32.mrf.mxu0
        %v5681 = vpop.f32.mrf.mxu0
        %v5682 = vadd.f32 %v5521, %v5681
        %v5683 = vpop.f32.mrf.mxu0
        %5684 = vmatprep.mubr.bf16.mxu0 %v4628
        %5685 = vmatmul.mubr.bf16.gmra.mxu0 %v4627
        %v5686 = vpop.f32.mrf.mxu0
        %v5687 = vadd.f32 %v5526, %v5686
        %v5688 = vpop.f32.mrf.mxu0
        %v5689 = vpop.f32.mrf.mxu0
        %v5690 = vadd.f32 %v5529, %v5689
        %v5691 = vpop.f32.mrf.mxu0
        %5692 = vmatprep.mubr.bf16.mxu0 %v4637
        %5693 = vmatmul.mubr.bf16.gmra.mxu0 %v4636
        %v5694 = vpop.f32.mrf.mxu0
        %v5695 = vadd.f32 %v5534, %v5694
        %v5696 = vpop.f32.mrf.mxu0
        %v5697 = vpop.f32.mrf.mxu0
        %v5698 = vadd.f32 %v5537, %v5697
        %v5699 = vpop.f32.mrf.mxu0
        %5700 = vmatprep.mubr.bf16.mxu0 %v4646
        %5701 = vmatmul.mubr.bf16.gmra.mxu0 %v4645
        %v5702 = vpop.f32.mrf.mxu0
        %v5703 = vadd.f32 %v5542, %v5702
        %v5704 = vpop.f32.mrf.mxu0
        %v5705 = vpop.f32.mrf.mxu0
        %v5706 = vadd.f32 %v5545, %v5705
        %v5707 = vpop.f32.mrf.mxu0
        %5708 = vdwg.mxu0
        %5709 = vmatprep.subr.bf16.mxu0 0
        %5710 = vmatpush1.bf16.msra.mxu0 %v5137
        %5711 = vmatprep.subr.bf16.mxu0 0
        %5712 = vmatpush1.bf16.msra.mxu0 %v5136
        %5713 = vmatprep.subr.bf16.mxu0 0
        %5714 = vmatpush1.bf16.msra.mxu0 %v5135
        %5715 = vmatprep.subr.bf16.mxu0 0
        %5716 = vmatpush1.bf16.msra.mxu0 %v5134
        %5717 = vmatprep.subr.bf16.mxu0 0
        %5718 = vmatpush1.bf16.msra.mxu0 %v5133
        %5719 = vmatprep.subr.bf16.mxu0 0
        %5720 = vmatpush1.bf16.msra.mxu0 %v5132
        %5721 = vmatprep.subr.bf16.mxu0 0
        %5722 = vmatpush1.bf16.msra.mxu0 %v5131
        %5723 = vmatprep.subr.bf16.mxu0 0
        %5724 = vmatpush1.bf16.msra.mxu0 %v5130
        %5725 = vmatprep.subr.bf16.mxu0 0
        %5726 = vmatpush2.bf16.msra.mxu0 %v5145
        %5727 = vmatprep.subr.bf16.mxu0 0
        %5728 = vmatpush2.bf16.msra.mxu0 %v5144
        %5729 = vmatprep.subr.bf16.mxu0 0
        %5730 = vmatpush2.bf16.msra.mxu0 %v5143
        %5731 = vmatprep.subr.bf16.mxu0 0
        %5732 = vmatpush2.bf16.msra.mxu0 %v5142
        %5733 = vmatprep.subr.bf16.mxu0 0
        %5734 = vmatpush2.bf16.msra.mxu0 %v5141
        %5735 = vmatprep.subr.bf16.mxu0 0
        %5736 = vmatpush2.bf16.msra.mxu0 %v5140
        %5737 = vmatprep.subr.bf16.mxu0 0
        %5738 = vmatpush2.bf16.msra.mxu0 %v5139
        %5739 = vmatprep.subr.bf16.mxu0 0
        %5740 = vmatpush2.bf16.msra.mxu0 %v5138
        %5741 = vmatprep.mubr.bf16.mxu0 %v4513
        %5742 = vmatmul.mubr.bf16.gmra.mxu0 %v4512
        %v5743 = vpop.f32.mrf.mxu0
        %v5744 = vadd.f32 %v5583, %v5743
        %v5745 = vpop.f32.mrf.mxu0
        %v5746 = vpop.f32.mrf.mxu0
        %v5747 = vadd.f32 %v5586, %v5746
        %v5748 = vpop.f32.mrf.mxu0
        %5749 = vmatprep.mubr.bf16.mxu0 %v4522
        %5750 = vmatmul.mubr.bf16.gmra.mxu0 %v4521
        %v5751 = vpop.f32.mrf.mxu0
        %v5752 = vadd.f32 %v5591, %v5751
        %v5753 = vpop.f32.mrf.mxu0
        %v5754 = vpop.f32.mrf.mxu0
        %v5755 = vadd.f32 %v5594, %v5754
        %v5756 = vpop.f32.mrf.mxu0
        %5757 = vmatprep.mubr.bf16.mxu0 %v4531
        %5758 = vmatmul.mubr.bf16.gmra.mxu0 %v4530
        %v5759 = vpop.f32.mrf.mxu0
        %v5760 = vadd.f32 %v5599, %v5759
        %v5761 = vpop.f32.mrf.mxu0
        %v5762 = vpop.f32.mrf.mxu0
        %v5763 = vadd.f32 %v5602, %v5762
        %v5764 = vpop.f32.mrf.mxu0
        %5765 = vmatprep.mubr.bf16.mxu0 %v4540
        %5766 = vmatmul.mubr.bf16.gmra.mxu0 %v4539
        %v5767 = vpop.f32.mrf.mxu0
        %v5768 = vadd.f32 %v5607, %v5767
        %v5769 = vpop.f32.mrf.mxu0
        %v5770 = vpop.f32.mrf.mxu0
        %v5771 = vadd.f32 %v5610, %v5770
        %v5772 = vpop.f32.mrf.mxu0
        %5773 = vmatprep.mubr.bf16.mxu0 %v4549
        %5774 = vmatmul.mubr.bf16.gmra.mxu0 %v4548
        %v5775 = vpop.f32.mrf.mxu0
        %v5776 = vadd.f32 %v5615, %v5775
        %v5777 = vpop.f32.mrf.mxu0
        %v5778 = vpop.f32.mrf.mxu0
        %v5779 = vadd.f32 %v5618, %v5778
        %v5780 = vpop.f32.mrf.mxu0
        %5781 = vmatprep.mubr.bf16.mxu0 %v4558
        %5782 = vmatmul.mubr.bf16.gmra.mxu0 %v4557
        %v5783 = vpop.f32.mrf.mxu0
        %v5784 = vadd.f32 %v5623, %v5783
        %v5785 = vpop.f32.mrf.mxu0
        %v5786 = vpop.f32.mrf.mxu0
        %v5787 = vadd.f32 %v5626, %v5786
        %v5788 = vpop.f32.mrf.mxu0
        %5789 = vmatprep.mubr.bf16.mxu0 %v4567
        %5790 = vmatmul.mubr.bf16.gmra.mxu0 %v4566
        %v5791 = vpop.f32.mrf.mxu0
        %v5792 = vadd.f32 %v5631, %v5791
        %v5793 = vpop.f32.mrf.mxu0
        %v5794 = vpop.f32.mrf.mxu0
        %v5795 = vadd.f32 %v5634, %v5794
        %v5796 = vpop.f32.mrf.mxu0
        %5797 = vmatprep.mubr.bf16.mxu0 %v4576
        %5798 = vmatmul.mubr.bf16.gmra.mxu0 %v4575
        %v5799 = vpop.f32.mrf.mxu0
        %v5800 = vadd.f32 %v5639, %v5799
        %v5801 = vpop.f32.mrf.mxu0
        %v5802 = vpop.f32.mrf.mxu0
        %v5803 = vadd.f32 %v5642, %v5802
        %v5804 = vpop.f32.mrf.mxu0
        %5805 = vmatprep.mubr.bf16.mxu0 %v4585
        %5806 = vmatmul.mubr.bf16.gmra.mxu0 %v4584
        %v5807 = vpop.f32.mrf.mxu0
        %v5808 = vadd.f32 %v5647, %v5807
        %v5809 = vpop.f32.mrf.mxu0
        %v5810 = vpop.f32.mrf.mxu0
        %v5811 = vadd.f32 %v5650, %v5810
        %v5812 = vpop.f32.mrf.mxu0
        %5813 = vmatprep.mubr.bf16.mxu0 %v4594
        %5814 = vmatmul.mubr.bf16.gmra.mxu0 %v4593
        %v5815 = vpop.f32.mrf.mxu0
        %v5816 = vadd.f32 %v5655, %v5815
        %v5817 = vpop.f32.mrf.mxu0
        %v5818 = vpop.f32.mrf.mxu0
        %v5819 = vadd.f32 %v5658, %v5818
        %v5820 = vpop.f32.mrf.mxu0
        %5821 = vmatprep.mubr.bf16.mxu0 %v4603
        %5822 = vmatmul.mubr.bf16.gmra.mxu0 %v4602
        %v5823 = vpop.f32.mrf.mxu0
        %v5824 = vadd.f32 %v5663, %v5823
        %v5825 = vpop.f32.mrf.mxu0
        %v5826 = vpop.f32.mrf.mxu0
        %v5827 = vadd.f32 %v5666, %v5826
        %v5828 = vpop.f32.mrf.mxu0
        %5829 = vmatprep.mubr.bf16.mxu0 %v4612
        %5830 = vmatmul.mubr.bf16.gmra.mxu0 %v4611
        %v5831 = vpop.f32.mrf.mxu0
        %v5832 = vadd.f32 %v5671, %v5831
        %v5833 = vpop.f32.mrf.mxu0
        %v5834 = vpop.f32.mrf.mxu0
        %v5835 = vadd.f32 %v5674, %v5834
        %v5836 = vpop.f32.mrf.mxu0
        %5837 = vmatprep.mubr.bf16.mxu0 %v4621
        %5838 = vmatmul.mubr.bf16.gmra.mxu0 %v4620
        %v5839 = vpop.f32.mrf.mxu0
        %v5840 = vadd.f32 %v5679, %v5839
        %v5841 = vpop.f32.mrf.mxu0
        %v5842 = vpop.f32.mrf.mxu0
        %v5843 = vadd.f32 %v5682, %v5842
        %v5844 = vpop.f32.mrf.mxu0
        %5845 = vmatprep.mubr.bf16.mxu0 %v4630
        %5846 = vmatmul.mubr.bf16.gmra.mxu0 %v4629
        %v5847 = vpop.f32.mrf.mxu0
        %v5848 = vadd.f32 %v5687, %v5847
        %v5849 = vpop.f32.mrf.mxu0
        %v5850 = vpop.f32.mrf.mxu0
        %v5851 = vadd.f32 %v5690, %v5850
        %v5852 = vpop.f32.mrf.mxu0
        %5853 = vmatprep.mubr.bf16.mxu0 %v4639
        %5854 = vmatmul.mubr.bf16.gmra.mxu0 %v4638
        %v5855 = vpop.f32.mrf.mxu0
        %v5856 = vadd.f32 %v5695, %v5855
        %v5857 = vpop.f32.mrf.mxu0
        %v5858 = vpop.f32.mrf.mxu0
        %v5859 = vadd.f32 %v5698, %v5858
        %v5860 = vpop.f32.mrf.mxu0
        %5861 = vmatprep.mubr.bf16.mxu0 %v4648
        %5862 = vmatmul.mubr.bf16.gmra.mxu0 %v4647
        %v5863 = vpop.f32.mrf.mxu0
        %v5864 = vadd.f32 %v5703, %v5863
        %v5865 = vpop.f32.mrf.mxu0
        %v5866 = vpop.f32.mrf.mxu0
        %v5867 = vadd.f32 %v5706, %v5866
        %v5868 = vpop.f32.mrf.mxu0
        %5869 = vdwg.mxu0
        %5870 = vmatprep.subr.bf16.mxu0 0
        %5871 = vmatpush1.bf16.msra.mxu0 %v5153
        %5872 = vmatprep.subr.bf16.mxu0 0
        %5873 = vmatpush1.bf16.msra.mxu0 %v5152
        %5874 = vmatprep.subr.bf16.mxu0 0
        %5875 = vmatpush1.bf16.msra.mxu0 %v5151
        %5876 = vmatprep.subr.bf16.mxu0 0
        %5877 = vmatpush1.bf16.msra.mxu0 %v5150
        %5878 = vmatprep.subr.bf16.mxu0 0
        %5879 = vmatpush1.bf16.msra.mxu0 %v5149
        %5880 = vmatprep.subr.bf16.mxu0 0
        %5881 = vmatpush1.bf16.msra.mxu0 %v5148
        %5882 = vmatprep.subr.bf16.mxu0 0
        %5883 = vmatpush1.bf16.msra.mxu0 %v5147
        %5884 = vmatprep.subr.bf16.mxu0 0
        %5885 = vmatpush1.bf16.msra.mxu0 %v5146
        %5886 = vmatprep.subr.bf16.mxu0 0
        %5887 = vmatpush2.bf16.msra.mxu0 0
        %5888 = vmatprep.subr.bf16.mxu0 0
        %5889 = vmatpush2.bf16.msra.mxu0 0
        %5890 = vmatprep.subr.bf16.mxu0 0
        %5891 = vmatpush2.bf16.msra.mxu0 0
        %5892 = vmatprep.subr.bf16.mxu0 0
        %5893 = vmatpush2.bf16.msra.mxu0 0
        %5894 = vmatprep.subr.bf16.mxu0 0
        %5895 = vmatpush2.bf16.msra.mxu0 0
        %5896 = vmatprep.subr.bf16.mxu0 0
        %5897 = vmatpush2.bf16.msra.mxu0 0
        %5898 = vmatprep.subr.bf16.mxu0 0
        %5899 = vmatpush2.bf16.msra.mxu0 0
        %5900 = vmatprep.subr.bf16.mxu0 0
        %5901 = vmatpush2.bf16.msra.mxu0 0
        %5902 = vmatprep.mubr.bf16.mxu0 0
        %5903 = vmatmul.mubr.bf16.gmra.mxu0 %v4514
        %v5904 = vpop.f32.mrf.mxu0
        %v5905 = vadd.f32 %v5744, %v5904
        %v5906 = vpop.f32.mrf.mxu0
        %v5907 = vpop.f32.mrf.mxu0
        %v5908 = vadd.f32 %v5747, %v5907
        %v5909 = vpop.f32.mrf.mxu0
        %5910 = vmatprep.mubr.bf16.mxu0 0
        %5911 = vmatmul.mubr.bf16.gmra.mxu0 %v4523
        %v5912 = vpop.f32.mrf.mxu0
        %v5913 = vadd.f32 %v5752, %v5912
        %v5914 = vpop.f32.mrf.mxu0
        %v5915 = vpop.f32.mrf.mxu0
        %v5916 = vadd.f32 %v5755, %v5915
        %v5917 = vpop.f32.mrf.mxu0
        %5918 = vmatprep.mubr.bf16.mxu0 0
        %5919 = vmatmul.mubr.bf16.gmra.mxu0 %v4532
        %v5920 = vpop.f32.mrf.mxu0
        %v5921 = vadd.f32 %v5760, %v5920
        %v5922 = vpop.f32.mrf.mxu0
        %v5923 = vpop.f32.mrf.mxu0
        %v5924 = vadd.f32 %v5763, %v5923
        %v5925 = vpop.f32.mrf.mxu0
        %5926 = vmatprep.mubr.bf16.mxu0 0
        %5927 = vmatmul.mubr.bf16.gmra.mxu0 %v4541
        %v5928 = vpop.f32.mrf.mxu0
        %v5929 = vadd.f32 %v5768, %v5928
        %v5930 = vpop.f32.mrf.mxu0
        %v5931 = vpop.f32.mrf.mxu0
        %v5932 = vadd.f32 %v5771, %v5931
        %v5933 = vpop.f32.mrf.mxu0
        %5934 = vmatprep.mubr.bf16.mxu0 0
        %5935 = vmatmul.mubr.bf16.gmra.mxu0 %v4550
        %v5936 = vpop.f32.mrf.mxu0
        %v5937 = vadd.f32 %v5776, %v5936
        %v5938 = vpop.f32.mrf.mxu0
        %v5939 = vpop.f32.mrf.mxu0
        %v5940 = vadd.f32 %v5779, %v5939
        %v5941 = vpop.f32.mrf.mxu0
        %5942 = vmatprep.mubr.bf16.mxu0 0
        %5943 = vmatmul.mubr.bf16.gmra.mxu0 %v4559
        %v5944 = vpop.f32.mrf.mxu0
        %v5945 = vadd.f32 %v5784, %v5944
        %v5946 = vpop.f32.mrf.mxu0
        %v5947 = vpop.f32.mrf.mxu0
        %v5948 = vadd.f32 %v5787, %v5947
        %v5949 = vpop.f32.mrf.mxu0
        %5950 = vmatprep.mubr.bf16.mxu0 0
        %5951 = vmatmul.mubr.bf16.gmra.mxu0 %v4568
        %v5952 = vpop.f32.mrf.mxu0
        %v5953 = vadd.f32 %v5792, %v5952
        %v5954 = vpop.f32.mrf.mxu0
        %v5955 = vpop.f32.mrf.mxu0
        %v5956 = vadd.f32 %v5795, %v5955
        %v5957 = vpop.f32.mrf.mxu0
        %5958 = vmatprep.mubr.bf16.mxu0 0
        %5959 = vmatmul.mubr.bf16.gmra.mxu0 %v4577
        %v5960 = vpop.f32.mrf.mxu0
        %v5961 = vadd.f32 %v5800, %v5960
        %v5962 = vpop.f32.mrf.mxu0
        %v5963 = vpop.f32.mrf.mxu0
        %v5964 = vadd.f32 %v5803, %v5963
        %v5965 = vpop.f32.mrf.mxu0
        %5966 = vmatprep.mubr.bf16.mxu0 0
        %5967 = vmatmul.mubr.bf16.gmra.mxu0 %v4586
        %v5968 = vpop.f32.mrf.mxu0
        %v5969 = vadd.f32 %v5808, %v5968
        %v5970 = vpop.f32.mrf.mxu0
        %v5971 = vpop.f32.mrf.mxu0
        %v5972 = vadd.f32 %v5811, %v5971
        %v5973 = vpop.f32.mrf.mxu0
        %5974 = vmatprep.mubr.bf16.mxu0 0
        %5975 = vmatmul.mubr.bf16.gmra.mxu0 %v4595
        %v5976 = vpop.f32.mrf.mxu0
        %v5977 = vadd.f32 %v5816, %v5976
        %v5978 = vpop.f32.mrf.mxu0
        %v5979 = vpop.f32.mrf.mxu0
        %v5980 = vadd.f32 %v5819, %v5979
        %v5981 = vpop.f32.mrf.mxu0
        %5982 = vmatprep.mubr.bf16.mxu0 0
        %5983 = vmatmul.mubr.bf16.gmra.mxu0 %v4604
        %v5984 = vpop.f32.mrf.mxu0
        %v5985 = vadd.f32 %v5824, %v5984
        %v5986 = vpop.f32.mrf.mxu0
        %v5987 = vpop.f32.mrf.mxu0
        %v5988 = vadd.f32 %v5827, %v5987
        %v5989 = vpop.f32.mrf.mxu0
        %5990 = vmatprep.mubr.bf16.mxu0 0
        %5991 = vmatmul.mubr.bf16.gmra.mxu0 %v4613
        %v5992 = vpop.f32.mrf.mxu0
        %v5993 = vadd.f32 %v5832, %v5992
        %v5994 = vpop.f32.mrf.mxu0
        %v5995 = vpop.f32.mrf.mxu0
        %v5996 = vadd.f32 %v5835, %v5995
        %v5997 = vpop.f32.mrf.mxu0
        %5998 = vmatprep.mubr.bf16.mxu0 0
        %5999 = vmatmul.mubr.bf16.gmra.mxu0 %v4622
        %v6000 = vpop.f32.mrf.mxu0
        %v6001 = vadd.f32 %v5840, %v6000
        %v6002 = vpop.f32.mrf.mxu0
        %v6003 = vpop.f32.mrf.mxu0
        %v6004 = vadd.f32 %v5843, %v6003
        %v6005 = vpop.f32.mrf.mxu0
        %6006 = vmatprep.mubr.bf16.mxu0 0
        %6007 = vmatmul.mubr.bf16.gmra.mxu0 %v4631
        %v6008 = vpop.f32.mrf.mxu0
        %v6009 = vadd.f32 %v5848, %v6008
        %v6010 = vpop.f32.mrf.mxu0
        %v6011 = vpop.f32.mrf.mxu0
        %v6012 = vadd.f32 %v5851, %v6011
        %v6013 = vpop.f32.mrf.mxu0
        %6014 = vmatprep.mubr.bf16.mxu0 0
        %6015 = vmatmul.mubr.bf16.gmra.mxu0 %v4640
        %v6016 = vpop.f32.mrf.mxu0
        %v6017 = vadd.f32 %v5856, %v6016
        %v6018 = vpop.f32.mrf.mxu0
        %v6019 = vpop.f32.mrf.mxu0
        %v6020 = vadd.f32 %v5859, %v6019
        %v6021 = vpop.f32.mrf.mxu0
        %6022 = vmatprep.mubr.bf16.mxu0 0
        %6023 = vmatmul.mubr.bf16.gmra.mxu0 %v4649
        %v6024 = vpop.f32.mrf.mxu0
        %v6025 = vadd.f32 %v5864, %v6024
        %v6026 = vpop.f32.mrf.mxu0
        %v6027 = vpop.f32.mrf.mxu0
        %v6028 = vadd.f32 %v5867, %v6027
        %v6029 = vpop.f32.mrf.mxu0
        %6030 = vdwg.mxu0
        %v6031 = vadd.f32 %v5905, %v5908
        %v6032 = vadd.f32 %v6031, %v5913
        %v6033 = vadd.f32 %v6032, %v5916
        %v6034 = vadd.f32 %v6033, %v5921
        %v6035 = vadd.f32 %v6034, %v5924
        %v6036 = vadd.f32 %v6035, %v5929
        %v6037 = vadd.f32 %v6036, %v5932
        %v6038 = vadd.f32 %v6037, %v5937
        %v6039 = vadd.f32 %v6038, %v5940
        %v6040 = vadd.f32 %v6039, %v5945
        %v6041 = vadd.f32 %v6040, %v5948
        %v6042 = vadd.f32 %v6041, %v5953
        %v6043 = vadd.f32 %v6042, %v5956
        %v6044 = vadd.f32 %v6043, %v5961
        %v6045 = vadd.f32 %v6044, %v5964
        %v6046 = vadd.f32 %v6045, %v5969
        %v6047 = vadd.f32 %v6046, %v5972
        %v6048 = vadd.f32 %v6047, %v5977
        %v6049 = vadd.f32 %v6048, %v5980
        %v6050 = vadd.f32 %v6049, %v5985
        %v6051 = vadd.f32 %v6050, %v5988
        %v6052 = vadd.f32 %v6051, %v5993
        %v6053 = vadd.f32 %v6052, %v5996
        %v6054 = vadd.f32 %v6053, %v6001
        %v6055 = vadd.f32 %v6054, %v6004
        %v6056 = vadd.f32 %v6055, %v6009
        %v6057 = vadd.f32 %v6056, %v6012
        %v6058 = vadd.f32 %v6057, %v6017
        %v6059 = vadd.f32 %v6058, %v6020
        %v6060 = vadd.f32 %v6059, %v6025
        %v6061 = vadd.f32 %v6060, %v6028
        %v6062 = vrot.slane %v6061, 4
        %v6063 = vadd.f32 %v6061, %v6062
        %v6064 = vrot.slane %v6063, 2
        %v6065 = vadd.f32 %v6063, %v6064
        %v6066 = vrot.slane %v6065, 1
        %v6067 = vadd.f32 %v6065, %v6066
        %v6068 = vmul.f32 %v6067, 0.00390625
        %v6069 = vmul.f32 %v5905, %v5905
        %v6070 = vmul.f32 %v5908, %v5908
        %v6071 = vmul.f32 %v5913, %v5913
        %v6072 = vmul.f32 %v5916, %v5916
        %v6073 = vmul.f32 %v5921, %v5921
        %v6074 = vmul.f32 %v5924, %v5924
        %v6075 = vmul.f32 %v5929, %v5929
        %v6076 = vmul.f32 %v5932, %v5932
        %v6077 = vmul.f32 %v5937, %v5937
        %v6078 = vmul.f32 %v5940, %v5940
        %v6079 = vmul.f32 %v5945, %v5945
        %v6080 = vmul.f32 %v5948, %v5948
        %v6081 = vmul.f32 %v5953, %v5953
        %v6082 = vmul.f32 %v5956, %v5956
        %v6083 = vmul.f32 %v5961, %v5961
        %v6084 = vmul.f32 %v5964, %v5964
        %v6085 = vmul.f32 %v5969, %v5969
        %v6086 = vmul.f32 %v5972, %v5972
        %v6087 = vmul.f32 %v5977, %v5977
        %v6088 = vmul.f32 %v5980, %v5980
        %v6089 = vmul.f32 %v5985, %v5985
        %v6090 = vmul.f32 %v5988, %v5988
        %v6091 = vmul.f32 %v5993, %v5993
        %v6092 = vmul.f32 %v5996, %v5996
        %v6093 = vmul.f32 %v6001, %v6001
        %v6094 = vmul.f32 %v6004, %v6004
        %v6095 = vmul.f32 %v6009, %v6009
        %v6096 = vmul.f32 %v6012, %v6012
        %v6097 = vmul.f32 %v6017, %v6017
        %v6098 = vmul.f32 %v6020, %v6020
        %v6099 = vmul.f32 %v6025, %v6025
        %v6100 = vmul.f32 %v6028, %v6028
        %v6101 = vadd.f32 %v6069, %v6070
        %v6102 = vadd.f32 %v6101, %v6071
        %v6103 = vadd.f32 %v6102, %v6072
        %v6104 = vadd.f32 %v6103, %v6073
        %v6105 = vadd.f32 %v6104, %v6074
        %v6106 = vadd.f32 %v6105, %v6075
        %v6107 = vadd.f32 %v6106, %v6076
        %v6108 = vadd.f32 %v6107, %v6077
        %v6109 = vadd.f32 %v6108, %v6078
        %v6110 = vadd.f32 %v6109, %v6079
        %v6111 = vadd.f32 %v6110, %v6080
        %v6112 = vadd.f32 %v6111, %v6081
        %v6113 = vadd.f32 %v6112, %v6082
        %v6114 = vadd.f32 %v6113, %v6083
        %v6115 = vadd.f32 %v6114, %v6084
        %v6116 = vadd.f32 %v6115, %v6085
        %v6117 = vadd.f32 %v6116, %v6086
        %v6118 = vadd.f32 %v6117, %v6087
        %v6119 = vadd.f32 %v6118, %v6088
        %v6120 = vadd.f32 %v6119, %v6089
        %v6121 = vadd.f32 %v6120, %v6090
        %v6122 = vadd.f32 %v6121, %v6091
        %v6123 = vadd.f32 %v6122, %v6092
        %v6124 = vadd.f32 %v6123, %v6093
        %v6125 = vadd.f32 %v6124, %v6094
        %v6126 = vadd.f32 %v6125, %v6095
        %v6127 = vadd.f32 %v6126, %v6096
        %v6128 = vadd.f32 %v6127, %v6097
        %v6129 = vadd.f32 %v6128, %v6098
        %v6130 = vadd.f32 %v6129, %v6099
        %v6131 = vadd.f32 %v6130, %v6100
        %v6132 = vrot.slane %v6131, 4
        %v6133 = vadd.f32 %v6131, %v6132
        %v6134 = vrot.slane %v6133, 2
        %v6135 = vadd.f32 %v6133, %v6134
        %v6136 = vrot.slane %v6135, 1
        %v6137 = vadd.f32 %v6135, %v6136
        %v6138 = vmul.f32 %v6137, 0.00390625
        %v6139 = vmul.f32 %v6068, %v6068
        %v6140 = vsub.f32 %v6138, %v6139
        %v6141 = vmax.f32 %v6140, 0.0
        %v6142 = vsub.f32 %v5905, %v6068
        %v6143 = vsub.f32 %v5908, %v6068
        %v6144 = vsub.f32 %v5913, %v6068
        %v6145 = vsub.f32 %v5916, %v6068
        %v6146 = vsub.f32 %v5921, %v6068
        %v6147 = vsub.f32 %v5924, %v6068
        %v6148 = vsub.f32 %v5929, %v6068
        %v6149 = vsub.f32 %v5932, %v6068
        %v6150 = vsub.f32 %v5937, %v6068
        %v6151 = vsub.f32 %v5940, %v6068
        %v6152 = vsub.f32 %v5945, %v6068
        %v6153 = vsub.f32 %v5948, %v6068
        %v6154 = vsub.f32 %v5953, %v6068
        %v6155 = vsub.f32 %v5956, %v6068
        %v6156 = vsub.f32 %v5961, %v6068
        %v6157 = vsub.f32 %v5964, %v6068
        %v6158 = vsub.f32 %v5969, %v6068
        %v6159 = vsub.f32 %v5972, %v6068
        %v6160 = vsub.f32 %v5977, %v6068
        %v6161 = vsub.f32 %v5980, %v6068
        %v6162 = vsub.f32 %v5985, %v6068
        %v6163 = vsub.f32 %v5988, %v6068
        %v6164 = vsub.f32 %v5993, %v6068
        %v6165 = vsub.f32 %v5996, %v6068
        %v6166 = vsub.f32 %v6001, %v6068
        %v6167 = vsub.f32 %v6004, %v6068
        %v6168 = vsub.f32 %v6009, %v6068
        %v6169 = vsub.f32 %v6012, %v6068
        %v6170 = vsub.f32 %v6017, %v6068
        %v6171 = vsub.f32 %v6020, %v6068
        %v6172 = vsub.f32 %v6025, %v6068
        %v6173 = vsub.f32 %v6028, %v6068
        %v6174 = vadd.f32 %v6141, 1e-05
        %v6175 = vrsqrt.pop %v6174
        %v6176 = vmul.f32 %v6142, %v6175
        %v6177 = vmul.f32 %v6143, %v6175
        %v6178 = vmul.f32 %v6144, %v6175
        %v6179 = vmul.f32 %v6145, %v6175
        %v6180 = vmul.f32 %v6146, %v6175
        %v6181 = vmul.f32 %v6147, %v6175
        %v6182 = vmul.f32 %v6148, %v6175
        %v6183 = vmul.f32 %v6149, %v6175
        %v6184 = vmul.f32 %v6150, %v6175
        %v6185 = vmul.f32 %v6151, %v6175
        %v6186 = vmul.f32 %v6152, %v6175
        %v6187 = vmul.f32 %v6153, %v6175
        %v6188 = vmul.f32 %v6154, %v6175
        %v6189 = vmul.f32 %v6155, %v6175
        %v6190 = vmul.f32 %v6156, %v6175
        %v6191 = vmul.f32 %v6157, %v6175
        %v6192 = vmul.f32 %v6158, %v6175
        %v6193 = vmul.f32 %v6159, %v6175
        %v6194 = vmul.f32 %v6160, %v6175
        %v6195 = vmul.f32 %v6161, %v6175
        %v6196 = vmul.f32 %v6162, %v6175
        %v6197 = vmul.f32 %v6163, %v6175
        %v6198 = vmul.f32 %v6164, %v6175
        %v6199 = vmul.f32 %v6165, %v6175
        %v6200 = vmul.f32 %v6166, %v6175
        %v6201 = vmul.f32 %v6167, %v6175
        %v6202 = vmul.f32 %v6168, %v6175
        %v6203 = vmul.f32 %v6169, %v6175
        %v6204 = vmul.f32 %v6170, %v6175
        %v6205 = vmul.f32 %v6171, %v6175
        %v6206 = vmul.f32 %v6172, %v6175
        %v6207 = vmul.f32 %v6173, %v6175
        %v6208 = vmax.f32 %v6176, 0.0
        %v6209 = vmax.f32 %v6177, 0.0
        %v6210 = vmax.f32 %v6178, 0.0
        %v6211 = vmax.f32 %v6179, 0.0
        %v6212 = vmax.f32 %v6180, 0.0
        %v6213 = vmax.f32 %v6181, 0.0
        %v6214 = vmax.f32 %v6182, 0.0
        %v6215 = vmax.f32 %v6183, 0.0
        %v6216 = vmax.f32 %v6184, 0.0
        %v6217 = vmax.f32 %v6185, 0.0
        %v6218 = vmax.f32 %v6186, 0.0
        %v6219 = vmax.f32 %v6187, 0.0
        %v6220 = vmax.f32 %v6188, 0.0
        %v6221 = vmax.f32 %v6189, 0.0
        %v6222 = vmax.f32 %v6190, 0.0
        %v6223 = vmax.f32 %v6191, 0.0
        %v6224 = vmax.f32 %v6192, 0.0
        %v6225 = vmax.f32 %v6193, 0.0
        %v6226 = vmax.f32 %v6194, 0.0
        %v6227 = vmax.f32 %v6195, 0.0
        %v6228 = vmax.f32 %v6196, 0.0
        %v6229 = vmax.f32 %v6197, 0.0
        %v6230 = vmax.f32 %v6198, 0.0
        %v6231 = vmax.f32 %v6199, 0.0
        %v6232 = vmax.f32 %v6200, 0.0
        %v6233 = vmax.f32 %v6201, 0.0
        %v6234 = vmax.f32 %v6202, 0.0
        %v6235 = vmax.f32 %v6203, 0.0
        %v6236 = vmax.f32 %v6204, 0.0
        %v6237 = vmax.f32 %v6205, 0.0
        %v6238 = vmax.f32 %v6206, 0.0
        %v6239 = vmax.f32 %v6207, 0.0
        %v6240 = vpack.c.bf16 %v6209, %v6208
        %v6241 = vpack.c.bf16 %v6211, %v6210
        %v6242 = vpack.c.bf16 %v6213, %v6212
        %v6243 = vpack.c.bf16 %v6215, %v6214
        %v6244 = vpack.c.bf16 %v6217, %v6216
        %v6245 = vpack.c.bf16 %v6219, %v6218
        %v6246 = vpack.c.bf16 %v6221, %v6220
        %v6247 = vpack.c.bf16 %v6223, %v6222
        %v6248 = vpack.c.bf16 %v6225, %v6224
        %v6249 = vpack.c.bf16 %v6227, %v6226
        %v6250 = vpack.c.bf16 %v6229, %v6228
        %v6251 = vpack.c.bf16 %v6231, %v6230
        %v6252 = vpack.c.bf16 %v6233, %v6232
        %v6253 = vpack.c.bf16 %v6235, %v6234
        %v6254 = vpack.c.bf16 %v6237, %v6236
        %v6255 = vpack.c.bf16 %v6239, %v6238
        %v6256 = vld [vmem:[#allocation9] sm:$0xf]
        %v6257 = vld [vmem:[#allocation9 + $0x4] sm:$0xf]
        %v6258 = vld [vmem:[#allocation9 + $0x8] sm:$0xf]
        %v6259 = vld [vmem:[#allocation9 + $0xc] sm:$0xf]
        %v6260 = vld [vmem:[#allocation9 + $0x10] sm:$0xf]
        %v6261 = vld [vmem:[#allocation9 + $0x14] sm:$0xf]
        %v6262 = vld [vmem:[#allocation9 + $0x18] sm:$0xf]
        %v6263 = vld [vmem:[#allocation9 + $0x1c] sm:$0xf]
        %v6264 = vld [vmem:[#allocation9 + $0x20] sm:$0xf]
        %v6265 = vld [vmem:[#allocation9 + $0x24] sm:$0xf]
        %v6266 = vld [vmem:[#allocation9 + $0x28] sm:$0xf]
        %v6267 = vld [vmem:[#allocation9 + $0x2c] sm:$0xf]
        %v6268 = vld [vmem:[#allocation9 + $0x30] sm:$0xf]
        %v6269 = vld [vmem:[#allocation9 + $0x34] sm:$0xf]
        %v6270 = vld [vmem:[#allocation9 + $0x38] sm:$0xf]
        %v6271 = vld [vmem:[#allocation9 + $0x3c] sm:$0xf]
        %v6288 = vunpack.c.l.b16 %v6256
        %v6289 = vunpack.c.l.b16 %v6257
        %v6290 = vunpack.c.l.b16 %v6258
        %v6291 = vunpack.c.l.b16 %v6259
        %v6292 = vunpack.c.l.b16 %v6260
        %v6293 = vunpack.c.l.b16 %v6261
        %v6294 = vunpack.c.l.b16 %v6262
        %v6295 = vunpack.c.l.b16 %v6263
        %v6296 = vunpack.c.l.b16 %v6264
        %v6297 = vunpack.c.l.b16 %v6265
        %v6298 = vunpack.c.l.b16 %v6266
        %v6299 = vunpack.c.l.b16 %v6267
        %v6300 = vunpack.c.l.b16 %v6268
        %v6301 = vunpack.c.l.b16 %v6269
        %v6302 = vunpack.c.l.b16 %v6270
        %v6303 = vunpack.c.l.b16 %v6271
        %v6304 = vpack.c.b16 %v6289, %v6288
        %v6305 = vpack.c.b16 %v6291, %v6290
        %v6306 = vpack.c.b16 %v6293, %v6292
        %v6307 = vpack.c.b16 %v6295, %v6294
        %v6308 = vpack.c.b16 %v6297, %v6296
        %v6309 = vpack.c.b16 %v6299, %v6298
        %v6310 = vpack.c.b16 %v6301, %v6300
        %v6311 = vpack.c.b16 %v6303, %v6302
        %6320 = vmatprep.subr.bf16.mxu0 0
        %6321 = vmatpush1.bf16.msra.mxu0 %v6311
        %6322 = vmatprep.subr.bf16.mxu0 0
        %6323 = vmatpush1.bf16.msra.mxu0 %v6310
        %6324 = vmatprep.subr.bf16.mxu0 0
        %6325 = vmatpush1.bf16.msra.mxu0 %v6309
        %6326 = vmatprep.subr.bf16.mxu0 0
        %6327 = vmatpush1.bf16.msra.mxu0 %v6308
        %6328 = vmatprep.subr.bf16.mxu0 0
        %6329 = vmatpush1.bf16.msra.mxu0 %v6307
        %6330 = vmatprep.subr.bf16.mxu0 0
        %6331 = vmatpush1.bf16.msra.mxu0 %v6306
        %6332 = vmatprep.subr.bf16.mxu0 0
        %6333 = vmatpush1.bf16.msra.mxu0 %v6305
        %6334 = vmatprep.subr.bf16.mxu0 0
        %6335 = vmatpush1.bf16.msra.mxu0 %v6304
        %6336 = vmatprep.subr.bf16.mxu0 0
        %6337 = vmatpush2.bf16.msra.mxu0 0
        %6338 = vmatprep.subr.bf16.mxu0 0
        %6339 = vmatpush2.bf16.msra.mxu0 0
        %6340 = vmatprep.subr.bf16.mxu0 0
        %6341 = vmatpush2.bf16.msra.mxu0 0
        %6342 = vmatprep.subr.bf16.mxu0 0
        %6343 = vmatpush2.bf16.msra.mxu0 0
        %6344 = vmatprep.subr.bf16.mxu0 0
        %6345 = vmatpush2.bf16.msra.mxu0 0
        %6346 = vmatprep.subr.bf16.mxu0 0
        %6347 = vmatpush2.bf16.msra.mxu0 0
        %6348 = vmatprep.subr.bf16.mxu0 0
        %6349 = vmatpush2.bf16.msra.mxu0 0
        %6350 = vmatprep.subr.bf16.mxu0 0
        %6351 = vmatpush2.bf16.msra.mxu0 0
        %6352 = vmatprep.mubr.bf16.mxu0 0
        %6353 = vmatmul.mubr.bf16.gmra.mxu0 %v6240
        %v6354 = vpop.f32.mrf.mxu0
        %v6355 = vadd.f32 0.0, %v6354
        %v6356 = vpop.f32.mrf.mxu0
        %v6357 = vpop.f32.mrf.mxu0
        %v6358 = vadd.f32 0.0, %v6357
        %v6359 = vpop.f32.mrf.mxu0
        %6360 = vmatprep.mubr.bf16.mxu0 0
        %6361 = vmatmul.mubr.bf16.gmra.mxu0 %v6241
        %v6362 = vpop.f32.mrf.mxu0
        %v6363 = vadd.f32 0.0, %v6362
        %v6364 = vpop.f32.mrf.mxu0
        %v6365 = vpop.f32.mrf.mxu0
        %v6366 = vadd.f32 0.0, %v6365
        %v6367 = vpop.f32.mrf.mxu0
        %6368 = vmatprep.mubr.bf16.mxu0 0
        %6369 = vmatmul.mubr.bf16.gmra.mxu0 %v6242
        %v6370 = vpop.f32.mrf.mxu0
        %v6371 = vadd.f32 0.0, %v6370
        %v6372 = vpop.f32.mrf.mxu0
        %v6373 = vpop.f32.mrf.mxu0
        %v6374 = vadd.f32 0.0, %v6373
        %v6375 = vpop.f32.mrf.mxu0
        %6376 = vmatprep.mubr.bf16.mxu0 0
        %6377 = vmatmul.mubr.bf16.gmra.mxu0 %v6243
        %v6378 = vpop.f32.mrf.mxu0
        %v6379 = vadd.f32 0.0, %v6378
        %v6380 = vpop.f32.mrf.mxu0
        %v6381 = vpop.f32.mrf.mxu0
        %v6382 = vadd.f32 0.0, %v6381
        %v6383 = vpop.f32.mrf.mxu0
        %6384 = vmatprep.mubr.bf16.mxu0 0
        %6385 = vmatmul.mubr.bf16.gmra.mxu0 %v6244
        %v6386 = vpop.f32.mrf.mxu0
        %v6387 = vadd.f32 0.0, %v6386
        %v6388 = vpop.f32.mrf.mxu0
        %v6389 = vpop.f32.mrf.mxu0
        %v6390 = vadd.f32 0.0, %v6389
        %v6391 = vpop.f32.mrf.mxu0
        %6392 = vmatprep.mubr.bf16.mxu0 0
        %6393 = vmatmul.mubr.bf16.gmra.mxu0 %v6245
        %v6394 = vpop.f32.mrf.mxu0
        %v6395 = vadd.f32 0.0, %v6394
        %v6396 = vpop.f32.mrf.mxu0
        %v6397 = vpop.f32.mrf.mxu0
        %v6398 = vadd.f32 0.0, %v6397
        %v6399 = vpop.f32.mrf.mxu0
        %6400 = vmatprep.mubr.bf16.mxu0 0
        %6401 = vmatmul.mubr.bf16.gmra.mxu0 %v6246
        %v6402 = vpop.f32.mrf.mxu0
        %v6403 = vadd.f32 0.0, %v6402
        %v6404 = vpop.f32.mrf.mxu0
        %v6405 = vpop.f32.mrf.mxu0
        %v6406 = vadd.f32 0.0, %v6405
        %v6407 = vpop.f32.mrf.mxu0
        %6408 = vmatprep.mubr.bf16.mxu0 0
        %6409 = vmatmul.mubr.bf16.gmra.mxu0 %v6247
        %v6410 = vpop.f32.mrf.mxu0
        %v6411 = vadd.f32 0.0, %v6410
        %v6412 = vpop.f32.mrf.mxu0
        %v6413 = vpop.f32.mrf.mxu0
        %v6414 = vadd.f32 0.0, %v6413
        %v6415 = vpop.f32.mrf.mxu0
        %6416 = vmatprep.mubr.bf16.mxu0 0
        %6417 = vmatmul.mubr.bf16.gmra.mxu0 %v6248
        %v6418 = vpop.f32.mrf.mxu0
        %v6419 = vadd.f32 0.0, %v6418
        %v6420 = vpop.f32.mrf.mxu0
        %v6421 = vpop.f32.mrf.mxu0
        %v6422 = vadd.f32 0.0, %v6421
        %v6423 = vpop.f32.mrf.mxu0
        %6424 = vmatprep.mubr.bf16.mxu0 0
        %6425 = vmatmul.mubr.bf16.gmra.mxu0 %v6249
        %v6426 = vpop.f32.mrf.mxu0
        %v6427 = vadd.f32 0.0, %v6426
        %v6428 = vpop.f32.mrf.mxu0
        %v6429 = vpop.f32.mrf.mxu0
        %v6430 = vadd.f32 0.0, %v6429
        %v6431 = vpop.f32.mrf.mxu0
        %6432 = vmatprep.mubr.bf16.mxu0 0
        %6433 = vmatmul.mubr.bf16.gmra.mxu0 %v6250
        %v6434 = vpop.f32.mrf.mxu0
        %v6435 = vadd.f32 0.0, %v6434
        %v6436 = vpop.f32.mrf.mxu0
        %v6437 = vpop.f32.mrf.mxu0
        %v6438 = vadd.f32 0.0, %v6437
        %v6439 = vpop.f32.mrf.mxu0
        %6440 = vmatprep.mubr.bf16.mxu0 0
        %6441 = vmatmul.mubr.bf16.gmra.mxu0 %v6251
        %v6442 = vpop.f32.mrf.mxu0
        %v6443 = vadd.f32 0.0, %v6442
        %v6444 = vpop.f32.mrf.mxu0
        %v6445 = vpop.f32.mrf.mxu0
        %v6446 = vadd.f32 0.0, %v6445
        %v6447 = vpop.f32.mrf.mxu0
        %6448 = vmatprep.mubr.bf16.mxu0 0
        %6449 = vmatmul.mubr.bf16.gmra.mxu0 %v6252
        %v6450 = vpop.f32.mrf.mxu0
        %v6451 = vadd.f32 0.0, %v6450
        %v6452 = vpop.f32.mrf.mxu0
        %v6453 = vpop.f32.mrf.mxu0
        %v6454 = vadd.f32 0.0, %v6453
        %v6455 = vpop.f32.mrf.mxu0
        %6456 = vmatprep.mubr.bf16.mxu0 0
        %6457 = vmatmul.mubr.bf16.gmra.mxu0 %v6253
        %v6458 = vpop.f32.mrf.mxu0
        %v6459 = vadd.f32 0.0, %v6458
        %v6460 = vpop.f32.mrf.mxu0
        %v6461 = vpop.f32.mrf.mxu0
        %v6462 = vadd.f32 0.0, %v6461
        %v6463 = vpop.f32.mrf.mxu0
        %6464 = vmatprep.mubr.bf16.mxu0 0
        %6465 = vmatmul.mubr.bf16.gmra.mxu0 %v6254
        %v6466 = vpop.f32.mrf.mxu0
        %v6467 = vadd.f32 0.0, %v6466
        %v6468 = vpop.f32.mrf.mxu0
        %v6469 = vpop.f32.mrf.mxu0
        %v6470 = vadd.f32 0.0, %v6469
        %v6471 = vpop.f32.mrf.mxu0
        %6472 = vmatprep.mubr.bf16.mxu0 0
        %6473 = vmatmul.mubr.bf16.gmra.mxu0 %v6255
        %v6474 = vpop.f32.mrf.mxu0
        %v6475 = vadd.f32 0.0, %v6474
        %v6476 = vpop.f32.mrf.mxu0
        %v6477 = vpop.f32.mrf.mxu0
        %v6478 = vadd.f32 0.0, %v6477
        %v6479 = vpop.f32.mrf.mxu0
        %6480 = vdwg.mxu0
        %v6481 = vadd.f32 %v6355, %v6358
        %v6482 = vadd.f32 %v6481, %v6363
        %v6483 = vadd.f32 %v6482, %v6366
        %v6484 = vadd.f32 %v6483, %v6371
        %v6485 = vadd.f32 %v6484, %v6374
        %v6486 = vadd.f32 %v6485, %v6379
        %v6487 = vadd.f32 %v6486, %v6382
        %v6488 = vadd.f32 %v6487, %v6387
        %v6489 = vadd.f32 %v6488, %v6390
        %v6490 = vadd.f32 %v6489, %v6395
        %v6491 = vadd.f32 %v6490, %v6398
        %v6492 = vadd.f32 %v6491, %v6403
        %v6493 = vadd.f32 %v6492, %v6406
        %v6494 = vadd.f32 %v6493, %v6411
        %v6495 = vadd.f32 %v6494, %v6414
        %v6496 = vadd.f32 %v6495, %v6419
        %v6497 = vadd.f32 %v6496, %v6422
        %v6498 = vadd.f32 %v6497, %v6427
        %v6499 = vadd.f32 %v6498, %v6430
        %v6500 = vadd.f32 %v6499, %v6435
        %v6501 = vadd.f32 %v6500, %v6438
        %v6502 = vadd.f32 %v6501, %v6443
        %v6503 = vadd.f32 %v6502, %v6446
        %v6504 = vadd.f32 %v6503, %v6451
        %v6505 = vadd.f32 %v6504, %v6454
        %v6506 = vadd.f32 %v6505, %v6459
        %v6507 = vadd.f32 %v6506, %v6462
        %v6508 = vadd.f32 %v6507, %v6467
        %v6509 = vadd.f32 %v6508, %v6470
        %v6510 = vadd.f32 %v6509, %v6475
        %v6511 = vadd.f32 %v6510, %v6478
        %v6512 = vrot.slane %v6511, 4
        %v6513 = vadd.f32 %v6511, %v6512
        %v6514 = vrot.slane %v6513, 2
        %v6515 = vadd.f32 %v6513, %v6514
        %v6516 = vrot.slane %v6515, 1
        %v6517 = vadd.f32 %v6515, %v6516
        %v6518 = vmul.f32 %v6517, 0.00390625
        %v6519 = vmul.f32 %v6355, %v6355
        %v6520 = vmul.f32 %v6358, %v6358
        %v6521 = vmul.f32 %v6363, %v6363
        %v6522 = vmul.f32 %v6366, %v6366
        %v6523 = vmul.f32 %v6371, %v6371
        %v6524 = vmul.f32 %v6374, %v6374
        %v6525 = vmul.f32 %v6379, %v6379
        %v6526 = vmul.f32 %v6382, %v6382
        %v6527 = vmul.f32 %v6387, %v6387
        %v6528 = vmul.f32 %v6390, %v6390
        %v6529 = vmul.f32 %v6395, %v6395
        %v6530 = vmul.f32 %v6398, %v6398
        %v6531 = vmul.f32 %v6403, %v6403
        %v6532 = vmul.f32 %v6406, %v6406
        %v6533 = vmul.f32 %v6411, %v6411
        %v6534 = vmul.f32 %v6414, %v6414
        %v6535 = vmul.f32 %v6419, %v6419
        %v6536 = vmul.f32 %v6422, %v6422
        %v6537 = vmul.f32 %v6427, %v6427
        %v6538 = vmul.f32 %v6430, %v6430
        %v6539 = vmul.f32 %v6435, %v6435
        %v6540 = vmul.f32 %v6438, %v6438
        %v6541 = vmul.f32 %v6443, %v6443
        %v6542 = vmul.f32 %v6446, %v6446
        %v6543 = vmul.f32 %v6451, %v6451
        %v6544 = vmul.f32 %v6454, %v6454
        %v6545 = vmul.f32 %v6459, %v6459
        %v6546 = vmul.f32 %v6462, %v6462
        %v6547 = vmul.f32 %v6467, %v6467
        %v6548 = vmul.f32 %v6470, %v6470
        %v6549 = vmul.f32 %v6475, %v6475
        %v6550 = vmul.f32 %v6478, %v6478
        %v6551 = vadd.f32 %v6519, %v6520
        %v6552 = vadd.f32 %v6551, %v6521
        %v6553 = vadd.f32 %v6552, %v6522
        %v6554 = vadd.f32 %v6553, %v6523
        %v6555 = vadd.f32 %v6554, %v6524
        %v6556 = vadd.f32 %v6555, %v6525
        %v6557 = vadd.f32 %v6556, %v6526
        %v6558 = vadd.f32 %v6557, %v6527
        %v6559 = vadd.f32 %v6558, %v6528
        %v6560 = vadd.f32 %v6559, %v6529
        %v6561 = vadd.f32 %v6560, %v6530
        %v6562 = vadd.f32 %v6561, %v6531
        %v6563 = vadd.f32 %v6562, %v6532
        %v6564 = vadd.f32 %v6563, %v6533
        %v6565 = vadd.f32 %v6564, %v6534
        %v6566 = vadd.f32 %v6565, %v6535
        %v6567 = vadd.f32 %v6566, %v6536
        %v6568 = vadd.f32 %v6567, %v6537
        %v6569 = vadd.f32 %v6568, %v6538
        %v6570 = vadd.f32 %v6569, %v6539
        %v6571 = vadd.f32 %v6570, %v6540
        %v6572 = vadd.f32 %v6571, %v6541
        %v6573 = vadd.f32 %v6572, %v6542
        %v6574 = vadd.f32 %v6573, %v6543
        %v6575 = vadd.f32 %v6574, %v6544
        %v6576 = vadd.f32 %v6575, %v6545
        %v6577 = vadd.f32 %v6576, %v6546
        %v6578 = vadd.f32 %v6577, %v6547
        %v6579 = vadd.f32 %v6578, %v6548
        %v6580 = vadd.f32 %v6579, %v6549
        %v6581 = vadd.f32 %v6580, %v6550
        %v6582 = vrot.slane %v6581, 4
        %v6583 = vadd.f32 %v6581, %v6582
        %v6584 = vrot.slane %v6583, 2
        %v6585 = vadd.f32 %v6583, %v6584
        %v6586 = vrot.slane %v6585, 1
        %v6587 = vadd.f32 %v6585, %v6586
        %v6588 = vmul.f32 %v6587, 0.00390625
        %v6589 = vmul.f32 %v6518, %v6518
        %v6590 = vsub.f32 %v6588, %v6589
        %v6591 = vmax.f32 %v6590, 0.0
        %v6592 = vsub.f32 %v6355, %v6518
        %v6593 = vsub.f32 %v6358, %v6518
        %v6594 = vsub.f32 %v6363, %v6518
        %v6595 = vsub.f32 %v6366, %v6518
        %v6596 = vsub.f32 %v6371, %v6518
        %v6597 = vsub.f32 %v6374, %v6518
        %v6598 = vsub.f32 %v6379, %v6518
        %v6599 = vsub.f32 %v6382, %v6518
        %v6600 = vsub.f32 %v6387, %v6518
        %v6601 = vsub.f32 %v6390, %v6518
        %v6602 = vsub.f32 %v6395, %v6518
        %v6603 = vsub.f32 %v6398, %v6518
        %v6604 = vsub.f32 %v6403, %v6518
        %v6605 = vsub.f32 %v6406, %v6518
        %v6606 = vsub.f32 %v6411, %v6518
        %v6607 = vsub.f32 %v6414, %v6518
        %v6608 = vsub.f32 %v6419, %v6518
        %v6609 = vsub.f32 %v6422, %v6518
        %v6610 = vsub.f32 %v6427, %v6518
        %v6611 = vsub.f32 %v6430, %v6518
        %v6612 = vsub.f32 %v6435, %v6518
        %v6613 = vsub.f32 %v6438, %v6518
        %v6614 = vsub.f32 %v6443, %v6518
        %v6615 = vsub.f32 %v6446, %v6518
        %v6616 = vsub.f32 %v6451, %v6518
        %v6617 = vsub.f32 %v6454, %v6518
        %v6618 = vsub.f32 %v6459, %v6518
        %v6619 = vsub.f32 %v6462, %v6518
        %v6620 = vsub.f32 %v6467, %v6518
        %v6621 = vsub.f32 %v6470, %v6518
        %v6622 = vsub.f32 %v6475, %v6518
        %v6623 = vsub.f32 %v6478, %v6518
        %v6624 = vadd.f32 %v6591, 1e-05
        %v6625 = vrsqrt.pop %v6624
        %v6626 = vmul.f32 %v6592, %v6625
        %v6627 = vmul.f32 %v6593, %v6625
        %v6628 = vmul.f32 %v6594, %v6625
        %v6629 = vmul.f32 %v6595, %v6625
        %v6630 = vmul.f32 %v6596, %v6625
        %v6631 = vmul.f32 %v6597, %v6625
        %v6632 = vmul.f32 %v6598, %v6625
        %v6633 = vmul.f32 %v6599, %v6625
        %v6634 = vmul.f32 %v6600, %v6625
        %v6635 = vmul.f32 %v6601, %v6625
        %v6636 = vmul.f32 %v6602, %v6625
        %v6637 = vmul.f32 %v6603, %v6625
        %v6638 = vmul.f32 %v6604, %v6625
        %v6639 = vmul.f32 %v6605, %v6625
        %v6640 = vmul.f32 %v6606, %v6625
        %v6641 = vmul.f32 %v6607, %v6625
        %v6642 = vmul.f32 %v6608, %v6625
        %v6643 = vmul.f32 %v6609, %v6625
        %v6644 = vmul.f32 %v6610, %v6625
        %v6645 = vmul.f32 %v6611, %v6625
        %v6646 = vmul.f32 %v6612, %v6625
        %v6647 = vmul.f32 %v6613, %v6625
        %v6648 = vmul.f32 %v6614, %v6625
        %v6649 = vmul.f32 %v6615, %v6625
        %v6650 = vmul.f32 %v6616, %v6625
        %v6651 = vmul.f32 %v6617, %v6625
        %v6652 = vmul.f32 %v6618, %v6625
        %v6653 = vmul.f32 %v6619, %v6625
        %v6654 = vmul.f32 %v6620, %v6625
        %v6655 = vmul.f32 %v6621, %v6625
        %v6656 = vmul.f32 %v6622, %v6625
        %v6657 = vmul.f32 %v6623, %v6625
        %v6658 = vmax.f32 %v6626, 0.0
        %v6659 = vmax.f32 %v6627, 0.0
        %v6660 = vmax.f32 %v6628, 0.0
        %v6661 = vmax.f32 %v6629, 0.0
        %v6662 = vmax.f32 %v6630, 0.0
        %v6663 = vmax.f32 %v6631, 0.0
        %v6664 = vmax.f32 %v6632, 0.0
        %v6665 = vmax.f32 %v6633, 0.0
        %v6666 = vmax.f32 %v6634, 0.0
        %v6667 = vmax.f32 %v6635, 0.0
        %v6668 = vmax.f32 %v6636, 0.0
        %v6669 = vmax.f32 %v6637, 0.0
        %v6670 = vmax.f32 %v6638, 0.0
        %v6671 = vmax.f32 %v6639, 0.0
        %v6672 = vmax.f32 %v6640, 0.0
        %v6673 = vmax.f32 %v6641, 0.0
        %v6674 = vmax.f32 %v6642, 0.0
        %v6675 = vmax.f32 %v6643, 0.0
        %v6676 = vmax.f32 %v6644, 0.0
        %v6677 = vmax.f32 %v6645, 0.0
        %v6678 = vmax.f32 %v6646, 0.0
        %v6679 = vmax.f32 %v6647, 0.0
        %v6680 = vmax.f32 %v6648, 0.0
        %v6681 = vmax.f32 %v6649, 0.0
        %v6682 = vmax.f32 %v6650, 0.0
        %v6683 = vmax.f32 %v6651, 0.0
        %v6684 = vmax.f32 %v6652, 0.0
        %v6685 = vmax.f32 %v6653, 0.0
        %v6686 = vmax.f32 %v6654, 0.0
        %v6687 = vmax.f32 %v6655, 0.0
        %v6688 = vmax.f32 %v6656, 0.0
        %v6689 = vmax.f32 %v6657, 0.0
        %v6690 = vld [vmem:[%s223] sm:$0xff]
        %v6691 = vld [vmem:[%s223 + $0x8] sm:$0xff]
        %v6692 = vld [vmem:[%s223 + $0x10] sm:$0xff]
        %v6693 = vld [vmem:[%s223 + $0x18] sm:$0xff]
        %v6694 = vld [vmem:[%s223 + $0x20] sm:$0xff]
        %v6695 = vld [vmem:[%s223 + $0x28] sm:$0xff]
        %v6696 = vld [vmem:[%s223 + $0x30] sm:$0xff]
        %v6697 = vld [vmem:[%s223 + $0x38] sm:$0xff]
        %v6698 = vld [vmem:[%s223 + $0x40] sm:$0xff]
        %v6699 = vld [vmem:[%s223 + $0x48] sm:$0xff]
        %v6700 = vld [vmem:[%s223 + $0x50] sm:$0xff]
        %v6701 = vld [vmem:[%s223 + $0x58] sm:$0xff]
        %v6702 = vld [vmem:[%s223 + $0x60] sm:$0xff]
        %v6703 = vld [vmem:[%s223 + $0x68] sm:$0xff]
        %v6704 = vld [vmem:[%s223 + $0x70] sm:$0xff]
        %v6705 = vld [vmem:[%s223 + $0x78] sm:$0xff]
        %v6706 = vld [vmem:[%s223 + $0x80] sm:$0xff]
        %v6707 = vld [vmem:[%s223 + $0x88] sm:$0xff]
        %v6708 = vld [vmem:[%s223 + $0x90] sm:$0xff]
        %v6709 = vld [vmem:[%s223 + $0x98] sm:$0xff]
        %v6710 = vld [vmem:[%s223 + $0xa0] sm:$0xff]
        %v6711 = vld [vmem:[%s223 + $0xa8] sm:$0xff]
        %v6712 = vld [vmem:[%s223 + $0xb0] sm:$0xff]
        %v6713 = vld [vmem:[%s223 + $0xb8] sm:$0xff]
        %v6714 = vld [vmem:[%s223 + $0xc0] sm:$0xff]
        %v6715 = vld [vmem:[%s223 + $0xc8] sm:$0xff]
        %v6716 = vld [vmem:[%s223 + $0xd0] sm:$0xff]
        %v6717 = vld [vmem:[%s223 + $0xd8] sm:$0xff]
        %v6718 = vld [vmem:[%s223 + $0xe0] sm:$0xff]
        %v6719 = vld [vmem:[%s223 + $0xe8] sm:$0xff]
        %v6720 = vld [vmem:[%s223 + $0xf0] sm:$0xff]
        %v6721 = vld [vmem:[%s223 + $0xf8] sm:$0xff]
        %v6722 = vadd.f32 %v6690, %v6658
        %v6723 = vadd.f32 %v6691, %v6659
        %v6724 = vadd.f32 %v6692, %v6660
        %v6725 = vadd.f32 %v6693, %v6661
        %v6726 = vadd.f32 %v6694, %v6662
        %v6727 = vadd.f32 %v6695, %v6663
        %v6728 = vadd.f32 %v6696, %v6664
        %v6729 = vadd.f32 %v6697, %v6665
        %v6730 = vadd.f32 %v6698, %v6666
        %v6731 = vadd.f32 %v6699, %v6667
        %v6732 = vadd.f32 %v6700, %v6668
        %v6733 = vadd.f32 %v6701, %v6669
        %v6734 = vadd.f32 %v6702, %v6670
        %v6735 = vadd.f32 %v6703, %v6671
        %v6736 = vadd.f32 %v6704, %v6672
        %v6737 = vadd.f32 %v6705, %v6673
        %v6738 = vadd.f32 %v6706, %v6674
        %v6739 = vadd.f32 %v6707, %v6675
        %v6740 = vadd.f32 %v6708, %v6676
        %v6741 = vadd.f32 %v6709, %v6677
        %v6742 = vadd.f32 %v6710, %v6678
        %v6743 = vadd.f32 %v6711, %v6679
        %v6744 = vadd.f32 %v6712, %v6680
        %v6745 = vadd.f32 %v6713, %v6681
        %v6746 = vadd.f32 %v6714, %v6682
        %v6747 = vadd.f32 %v6715, %v6683
        %v6748 = vadd.f32 %v6716, %v6684
        %v6749 = vadd.f32 %v6717, %v6685
        %v6750 = vadd.f32 %v6718, %v6686
        %v6751 = vadd.f32 %v6719, %v6687
        %v6752 = vadd.f32 %v6720, %v6688
        %v6753 = vadd.f32 %v6721, %v6689
        %6754 = vst [vmem:[%s259] sm:$0xff] %v6722
        %6755 = vst [vmem:[%s259 + $0x8] sm:$0xff] %v6723
        %6756 = vst [vmem:[%s259 + $0x10] sm:$0xff] %v6724
        %6757 = vst [vmem:[%s259 + $0x18] sm:$0xff] %v6725
        %6758 = vst [vmem:[%s259 + $0x20] sm:$0xff] %v6726
        %6759 = vst [vmem:[%s259 + $0x28] sm:$0xff] %v6727
        %6760 = vst [vmem:[%s259 + $0x30] sm:$0xff] %v6728
        %6761 = vst [vmem:[%s259 + $0x38] sm:$0xff] %v6729
        %6762 = vst [vmem:[%s259 + $0x40] sm:$0xff] %v6730
        %6763 = vst [vmem:[%s259 + $0x48] sm:$0xff] %v6731
        %6764 = vst [vmem:[%s259 + $0x50] sm:$0xff] %v6732
        %6765 = vst [vmem:[%s259 + $0x58] sm:$0xff] %v6733
        %6766 = vst [vmem:[%s259 + $0x60] sm:$0xff] %v6734
        %6767 = vst [vmem:[%s259 + $0x68] sm:$0xff] %v6735
        %6768 = vst [vmem:[%s259 + $0x70] sm:$0xff] %v6736
        %6769 = vst [vmem:[%s259 + $0x78] sm:$0xff] %v6737
        %6770 = vst [vmem:[%s259 + $0x80] sm:$0xff] %v6738
        %6771 = vst [vmem:[%s259 + $0x88] sm:$0xff] %v6739
        %6772 = vst [vmem:[%s259 + $0x90] sm:$0xff] %v6740
        %6773 = vst [vmem:[%s259 + $0x98] sm:$0xff] %v6741
        %6774 = vst [vmem:[%s259 + $0xa0] sm:$0xff] %v6742
        %6775 = vst [vmem:[%s259 + $0xa8] sm:$0xff] %v6743
        %6776 = vst [vmem:[%s259 + $0xb0] sm:$0xff] %v6744
        %6777 = vst [vmem:[%s259 + $0xb8] sm:$0xff] %v6745
        %6778 = vst [vmem:[%s259 + $0xc0] sm:$0xff] %v6746
        %6779 = vst [vmem:[%s259 + $0xc8] sm:$0xff] %v6747
        %6780 = vst [vmem:[%s259 + $0xd0] sm:$0xff] %v6748
        %6781 = vst [vmem:[%s259 + $0xd8] sm:$0xff] %v6749
        %6782 = vst [vmem:[%s259 + $0xe0] sm:$0xff] %v6750
        %6783 = vst [vmem:[%s259 + $0xe8] sm:$0xff] %v6751
        %6784 = vst [vmem:[%s259 + $0xf0] sm:$0xff] %v6752
        %6785 = vst [vmem:[%s259 + $0xf8] sm:$0xff] %v6753
        %s6786 = sand.u32 %s120, 1
        %s6787 = scalar_lea.sflag [#allocation5], %s6786
        %s6788 = sand.u32 %s120, 1
        %s6789 = smul.addr %s6788, 256
        %s6790 = scalar_lea.vmem [#allocation11], %s6789
        // Predicated region
        $region53: #{tpu_custom_call.1} parent=35 // pred_check
          %p6791 = pneg %p130
        $region54: #{tpu_custom_call.1} parent=35 // pred_check_branch
          %6793 = sbr.rel (%p6791) target = $region56
        $region55: #{tpu_custom_call.1} parent=35 // pred_region
          %s6795 = ssub.s32 4096, 4096
          %6796 = vsyncadd %s6787, %s6795
          %s6797 = smul.addr %s23, 32
          %s6798 = smul.addr %s6797, 128
          %s6799 = scalar_lea.hbm %s4, %s6798
          %s6800 = sshll.u32 %s6790, 4
          %s6801 = int_to_ptr.vmem [resolvable:$true] %s6800
          %6806 = dma.vmem_to_hbm [thread:$0]  %s6801, 4096, %s6799, %s6787, 128, 128, 8
        $region56: #{tpu_custom_call.1} parent=35 // pred_fallthru
          _
      $region36: #{tpu_custom_call.1} parent=5 // pred_fallthru
        _
      %p6807 = scmp.le.s32.totalorder 2, %s18
      // Predicated region
      $region57: #{tpu_custom_call.1} parent=5 // pred_check
        %p6808 = pneg %p6807
      $region58: #{tpu_custom_call.1} parent=5 // pred_check_branch
        %6810 = sbr.rel (%p6808) target = $region60
      $region59: #{tpu_custom_call.1} parent=5 // pred_region
        %s6811 = ssub.s32 %s18, 2
        // Predicated region
        $region61: #{tpu_custom_call.1} parent=59 // pred_check
          %p6812 = pneg %p136
        $region62: #{tpu_custom_call.1} parent=59 // pred_check_branch
          %6814 = sbr.rel (%p6812) target = $region64
        $region63: #{tpu_custom_call.1} parent=59 // pred_region
          %s6815 = sand.u32 %s121, 1
          %s6816 = scalar_lea.sflag [#allocation5], %s6815
          %s6817 = sand.u32 %s121, 1
          %s6818 = smul.addr %s6817, 256
          %s6819 = scalar_lea.vmem [#allocation11], %s6818
          %6820 = dma.done %s6816, 4096
        $region64: #{tpu_custom_call.1} parent=59 // pred_fallthru
          _
      $region60: #{tpu_custom_call.1} parent=5 // pred_fallthru
        _
    $region6: #{tpu_custom_call.1} parent=1 // loop_footer
      %s22 = sadd.s32 1, %s18
    $region7: #{tpu_custom_call.1} parent=1 // loop_footer_branch
      %17 = sbr.rel target = $region3
    $region8: #{tpu_custom_call.1} parent=1 // loop_exit
      _
    %6821 = vsyncpa [#allocation4], 1
    %s6822 = scalar_lea.sflag [#allocation4], 1
    %6823 = vsyncpa %s6822, 1
    %6824 = vsyncpa [#allocation7], 1
    %6825 = vsyncpa [#allocation10], 1
    %6826 = vsyncpa [#allocation5], 1
    %s6827 = scalar_lea.sflag [#allocation5], 1
    %6828 = vsyncpa %s6827, 1

</llo_original>
